<compile_context>
chip_gen: v5e
topology: v5e:2x2
jax: 0.10.0
libtpu: 0.0.40
codegen_flags: <defaults>
</compile_context>

<pallas_src>
import functools

import jax
import jax.numpy as jnp
from jax import lax
from jax.experimental import pallas as pl
from jax.experimental.pallas import tpu as pltpu


# ---------------------------------------------------------------------------
# Packed parameter layout
# ---------------------------------------------------------------------------
# bf16 weight slab (N_W_ROWS, 256) — every section starts on an 8-row boundary
# (all starts are static Python ints, so the pl.ds starts are compile-time
# aligned; no pl.multiple_of needed).
# Lane blocks: [mu 0:64 | mu2 64:128 | sigma 128:192 | sigma2 192:256].
R_W2 = 0       # (256, 256) fused hidden layer 2 (block diagonal)
R_W3 = 256     # (256, 256) fused hidden layer 3 (block diagonal)
R_W4 = 512     # (128, 128) drift-only hidden layer 4 (mu | mu2), lanes 0:128
R_WH = 640     # (256, 4)   merged output heads, cols [mu, mu2, sigma, sigma2]
N_W_ROWS = 896

# f32 "smalls" slab (8, 256): layer-1 rows and all biases.
RS_W1 = 0      # rows 0,1: fused layer-1 weights (row = y column)
RS_B1 = 2      # fused layer-1 bias (256)
RS_B2 = 3      # fused layer-2 bias (256)
RS_B3 = 4      # fused layer-3 bias (256)
RS_B4 = 5      # drift layer-4 bias (lanes 0:128)
RS_BH = 6      # merged head bias  (lanes 0:4)
N_S_ROWS = 8


def _pairs(seq):
    """Group a flat (w0, b0, w1, b1, ...) sequence into [(w, b), ...]."""
    return [(seq[i], seq[i + 1]) for i in range(0, len(seq), 2)]


def _round_up(x, m):
    return ((x + m - 1) // m) * m


# ---------------------------------------------------------------------------
# Pallas kernel
# ---------------------------------------------------------------------------
def sde_kernel(n_steps, latents_ref, dt_ref, noise_ref, w_ref, s_ref, out_ref):
    B = latents_ref.shape[0]

    dt = dt_ref[...]                              # (B, 1) f32
    sqrt_dt = jnp.sqrt(dt)                        # (B, 1)

    def brow(row, width):
        # Load one small-slab row and pre-broadcast over the batch (sublane)
        # axis ONCE, outside the Euler loop (JAX does not CSE broadcasts).
        return jnp.broadcast_to(s_ref[pl.ds(row, 1), pl.ds(0, width)], (B, width))

    w1_r0 = brow(RS_W1, 256)
    w1_r1 = brow(RS_W1 + 1, 256)
    b1 = brow(RS_B1, 256)
    b2 = brow(RS_B2, 256)
    b3 = brow(RS_B3, 256)
    b4 = brow(RS_B4, 128)
    bh = brow(RS_BH, 4)

    def step(i, y):                               # y: (B, 2) f32
        y0 = y[:, 0:1]
        y1 = y[:, 1:2]

        # Fused layer 1 (K<=2): VPU broadcast multiply-add, f32 — no MXU push.
        h = jnp.maximum(y0 * w1_r0 + y1 * w1_r1 + b1, 0.0)          # (B, 256)

        # Fused block-diagonal hidden layers 2, 3: bf16 MXU dots, f32 accumulate.
        # TODO(synk): on v5e (128x128 MXUs) split these 256-wide dots into the
        # two 128x128 diagonal blocks to skip the all-zero off-diagonal tiles.
        h = jnp.maximum(
            jnp.dot(h.astype(jnp.bfloat16), w_ref[pl.ds(R_W2, 256), :],
                    preferred_element_type=jnp.float32) + b2, 0.0)
        h = jnp.maximum(
            jnp.dot(h.astype(jnp.bfloat16), w_ref[pl.ds(R_W3, 256), :],
                    preferred_element_type=jnp.float32) + b3, 0.0)

        hd = h[:, 0:128]                          # mu | mu2 hidden
        hs = h[:, 128:256]                        # sigma | sigma2 hidden

        # Drift-only 4th hidden layer (mu, mu2).
        hd = jnp.maximum(
            jnp.dot(hd.astype(jnp.bfloat16),
                    w_ref[pl.ds(R_W4, 128), pl.ds(0, 128)],
                    preferred_element_type=jnp.float32) + b4, 0.0)

        # Merged output heads: one (B,256)x(256,4) dot -> [mu|mu2|sigma|sigma2].
        hh = jnp.concatenate([hd, hs], axis=1).astype(jnp.bfloat16)  # (B, 256)
        fg = jnp.dot(hh, w_ref[pl.ds(R_WH, 256), pl.ds(0, 4)],
                     preferred_element_type=jnp.float32) + bh        # (B, 4)

        f = fg[:, 0:2]                            # drift
        g = fg[:, 2:4]                            # diffusion
        dW = sqrt_dt * noise_ref[i]               # (B, 2) Brownian increment
        return y + f * dt + g * dW

    # n_steps is static -> fully unroll so the LLO scheduler can overlap the
    # independent matmul chains across step boundaries.
    # TODO(synk): for tiny latency-critical batches (B<=8), stage W2/W3 once
    # with pltpu.matmul_push_rhs / matmul_acc_lhs so the stationary weights are
    # not re-streamed into the MXU every unrolled step.
    out_ref[...] = lax.fori_loop(0, n_steps, step, latents_ref[...], unroll=True)


# ---------------------------------------------------------------------------
# Wrapper: batch grid (parallel on v7x), weight slabs resident across blocks
# ---------------------------------------------------------------------------
def sde_forward(latents, start_times, dt, noise, packed_w, packed_s,
                n_euler_steps):
    # start_times is part of the module interface, but the drift/diffusion
    # nets ignore t, so it does not affect the result -> not DMA'd.
    del start_times
    B, D = latents.shape

    # Batch tile: multiple of 8 sublanes; large batches split across grid
    # steps (and across TensorCores on v7x via dimension_semantics).
    TB = 256 if B > 256 else max(8, _round_up(B, 8))
    BP = _round_up(B, TB)
    if BP != B:
        pad = BP - B
        latents = jnp.pad(latents, ((0, pad), (0, 0)))
        dt = jnp.pad(dt, ((0, pad), (0, 0)))
        noise = jnp.pad(noise, ((0, 0), (0, pad), (0, 0)))

    out = pl.pallas_call(
        functools.partial(sde_kernel, n_euler_steps),
        out_shape=jax.ShapeDtypeStruct((BP, D), latents.dtype),
        grid=(BP // TB,),
        in_specs=[
            pl.BlockSpec((TB, D), lambda b: (b, 0)),                 # latents
            pl.BlockSpec((TB, 1), lambda b: (b, 0)),                 # dt
            pl.BlockSpec((n_euler_steps, TB, D), lambda b: (0, b, 0)),  # noise
            pl.BlockSpec((N_W_ROWS, 256), lambda b: (0, 0)),         # bf16 weights
            pl.BlockSpec((N_S_ROWS, 256), lambda b: (0, 0)),         # f32 smalls
        ],
        out_specs=pl.BlockSpec((TB, D), lambda b: (b, 0)),
        compiler_params=pltpu.CompilerParams(
            dimension_semantics=("parallel",)),
    )(latents, dt, noise, packed_w, packed_s)
    return out[:B]


# ---------------------------------------------------------------------------
# Host-side parameter packing (36 tensors -> bf16 weight slab + f32 smalls)
# ---------------------------------------------------------------------------
def pack_sde_params(flat_params):
    mu = _pairs(flat_params[0:10])      # 1->64->64->64->64->1
    mu2 = _pairs(flat_params[10:20])    # 2->64->64->64->64->1
    sig = _pairs(flat_params[20:28])    # 1->64->64->64->1
    sig2 = _pairs(flat_params[28:36])   # 2->64->64->64->1
    nets = (mu, mu2, sig, sig2)

    W = jnp.zeros((N_W_ROWS, 256), jnp.float32)   # off-diagonal blocks MUST stay 0
    S = jnp.zeros((N_S_ROWS, 256), jnp.float32)

    # Fused layer 1: rows = y columns (mu/sigma only read y[:, 0:1]).
    for j, net in enumerate(nets):
        w, b = net[0]                   # w: (1 or 2, 64)
        c0 = 64 * j
        S = S.at[RS_W1:RS_W1 + w.shape[0], c0:c0 + 64].set(w)
        S = S.at[RS_B1, c0:c0 + 64].set(b[0])

    # Fused hidden layers 2 and 3: 256x256 block diagonal.
    for rw, rs_b, li in ((R_W2, RS_B2, 1), (R_W3, RS_B3, 2)):
        for j, net in enumerate(nets):
            w, b = net[li]              # (64, 64)
            c0 = 64 * j
            W = W.at[rw + c0:rw + c0 + 64, c0:c0 + 64].set(w)
            S = S.at[rs_b, c0:c0 + 64].set(b[0])

    # Drift-only 4th hidden layer: 128x128 block diagonal (mu | mu2).
    for j, net in enumerate((mu, mu2)):
        w, b = net[3]                   # (64, 64)
        c0 = 64 * j
        W = W.at[R_W4 + c0:R_W4 + c0 + 64, c0:c0 + 64].set(w)
        S = S.at[RS_B4, c0:c0 + 64].set(b[0])

    # Merged output heads (64->1 each), columns = [mu, mu2, sigma, sigma2].
    heads = (mu[4], mu2[4], sig[3], sig2[3])
    for j, (w, b) in enumerate(heads):
        W = W.at[R_WH + 64 * j:R_WH + 64 * (j + 1), j].set(w[:, 0])
        S = S.at[RS_BH, j].set(b[0, 0])

    return W.astype(jnp.bfloat16), S


# ---------------------------------------------------------------------------
# Deterministic parameter construction (PyTorch-style Linear init)
# ---------------------------------------------------------------------------
def _make_linear(key, fan_in, fan_out):
    kw, kb = jax.random.split(key)
    bound = 1.0 / jnp.sqrt(jnp.float32(fan_in))
    w = jax.random.uniform(kw, (fan_in, fan_out), jnp.float32, -bound, bound)
    b = jax.random.uniform(kb, (1, fan_out), jnp.float32, -bound, bound)
    return w, b


def _make_mlp(key, dims):
    keys = jax.random.split(key, len(dims) - 1)
    flat = []
    for k, din, dout in zip(keys, dims[:-1], dims[1:]):
        w, b = _make_linear(k, din, dout)
        flat += [w, b]
    return flat


def make_sde_params(key):
    k_mu, k_mu2, k_sig, k_sig2 = jax.random.split(key, 4)
    flat = []
    flat += _make_mlp(k_mu,   [1, 64, 64, 64, 64, 1])   # mu      (10 tensors)
    flat += _make_mlp(k_mu2,  [2, 64, 64, 64, 64, 1])   # mu2     (10 tensors)
    flat += _make_mlp(k_sig,  [1, 64, 64, 64, 1])       # sigma   ( 8 tensors)
    flat += _make_mlp(k_sig2, [2, 64, 64, 64, 1])       # sigma2  ( 8 tensors)
    return flat


# ---------------------------------------------------------------------------
# Pure-JAX reference (unfused).  quantize=True mimics the kernel's bf16
# weight/activation rounding on the MXU layers (layer 1 and biases stay f32).
# ---------------------------------------------------------------------------
def sde_forward_ref(latents, dt, noise, flat_params, n_steps, quantize=False):
    mu = _pairs(flat_params[0:10])
    mu2 = _pairs(flat_params[10:20])
    sig = _pairs(flat_params[20:28])
    sig2 = _pairs(flat_params[28:36])

    def q(x):
        return x.astype(jnp.bfloat16).astype(jnp.float32) if quantize else x

    def mlp(x, layers):
        w, b = layers[0]                       # first layer stays f32 (VPU path)
        x = jax.nn.relu(x @ w + b)
        last = len(layers) - 2                 # index of the head within layers[1:]
        for i, (w, b) in enumerate(layers[1:]):
            x = q(x) @ q(w) + b
            if i < last:
                x = jax.nn.relu(x)
        return x

    y = latents
    for i in range(n_steps):
        y0 = y[:, 0:1]
        f = jnp.concatenate([mlp(y0, mu), mlp(y, mu2)], axis=1)
        g = jnp.concatenate([mlp(y0, sig), mlp(y, sig2)], axis=1)
        y = y + f * dt + g * (jnp.sqrt(dt) * noise[i])
    return y


# ---------------------------------------------------------------------------
if __name__ == "__main__":
    B = 128              # batched trajectories amortize the MXU weight pushes
    LATENT_DIM = 2       # implied by f/g (concat of two scalar heads)
    N_EULER_STEPS = 8

    key = jax.random.PRNGKey(0)
    k_params, k_lat, k_t0, k_noise = jax.random.split(key, 4)

    flat_params = make_sde_params(k_params)
    packed_w, packed_s = pack_sde_params(flat_params)

    latents = jax.random.normal(k_lat, (B, LATENT_DIM), jnp.float32)
    start_times = jax.random.uniform(k_t0, (B, 1), jnp.float32)
    dt = jnp.full((B, 1), 0.01, jnp.float32)
    # Pre-sampled standard-normal Brownian increments (scaled by sqrt(dt) in-kernel).
    noise = jax.random.normal(k_noise, (N_EULER_STEPS, B, LATENT_DIM), jnp.float32)

    out = sde_forward(latents, start_times, dt, noise, packed_w, packed_s,
                      N_EULER_STEPS)
    out = jax.block_until_ready(out)
    assert out.shape == (B, LATENT_DIM)

    # Tight check vs. a reference that applies the same bf16 weight/activation
    # rounding the kernel uses on its MXU layers.
    ref_q = sde_forward_ref(latents, dt, noise, flat_params, N_EULER_STEPS,
                            quantize=True)
    assert jnp.allclose(out, ref_q, atol=2e-3, rtol=2e-3), (
        float(jnp.max(jnp.abs(out - ref_q))))

    # Sanity check vs. the pure-f32 model (bf16 weights introduce small drift).
    ref_f32 = sde_forward_ref(latents, dt, noise, flat_params, N_EULER_STEPS,
                              quantize=False)
    assert jnp.allclose(out, ref_f32, atol=5e-2, rtol=5e-2), (
        float(jnp.max(jnp.abs(out - ref_f32))))

    print("KERNEL_OK")
</pallas_src>

<mosaic_0001>
module attributes {stable_mosaic.version = 11 : i64} {
  func.func @sde_kernel(%arg0: i32, %arg1: memref<128x2xf32, #tpu.memory_space<vmem>>, %arg2: memref<128x1xf32, #tpu.memory_space<vmem>>, %arg3: memref<8x128x2xf32, #tpu.memory_space<vmem>>, %arg4: memref<896x256xbf16, #tpu.memory_space<vmem>>, %arg5: memref<8x256xf32, #tpu.memory_space<vmem>>, %arg6: memref<128x2xf32, #tpu.memory_space<vmem>>) attributes {dimension_semantics = [#tpu.dimension_semantics<parallel>], iteration_bounds = array<i64: 1>, scalar_prefetch = 0 : i64, scratch_operands = 0 : i64, tpu.core_type = #tpu.core_type<tc>, window_params = [{transform_indices = @transform_0, window_bounds = array<i64: 128, 2>}, {transform_indices = @transform_1, window_bounds = array<i64: 128, 1>}, {transform_indices = @transform_2, window_bounds = array<i64: 8, 128, 2>}, {pipeline_mode = #tpu.pipeline_mode<synchronous>, transform_indices = @transform_3, window_bounds = array<i64: 896, 256>}, {pipeline_mode = #tpu.pipeline_mode<synchronous>, transform_indices = @transform_4, window_bounds = array<i64: 8, 256>}, {transform_indices = @transform_5, window_bounds = array<i64: 128, 2>}]} {
    %c0 = arith.constant 0 : index
    %c0_0 = arith.constant 0 : index
    %0 = vector.load %arg2[%c0, %c0_0] : memref<128x1xf32, #tpu.memory_space<vmem>>, vector<128x1xf32>
    %1 = math.sqrt %0 : vector<128x1xf32>
    %c0_1 = arith.constant 0 : index
    %c0_2 = arith.constant 0 : index
    %2 = vector.load %arg5[%c0_1, %c0_2] : memref<8x256xf32, #tpu.memory_space<vmem>>, vector<1x256xf32>
    %3 = vector.shape_cast %2 : vector<1x256xf32> to vector<1x256xf32>
    %4 = vector.broadcast %3 : vector<1x256xf32> to vector<128x256xf32>
    %c1 = arith.constant 1 : index
    %c0_3 = arith.constant 0 : index
    %5 = vector.load %arg5[%c1, %c0_3] : memref<8x256xf32, #tpu.memory_space<vmem>>, vector<1x256xf32>
    %6 = vector.shape_cast %5 : vector<1x256xf32> to vector<1x256xf32>
    %7 = vector.broadcast %6 : vector<1x256xf32> to vector<128x256xf32>
    %c2 = arith.constant 2 : index
    %c0_4 = arith.constant 0 : index
    %8 = vector.load %arg5[%c2, %c0_4] : memref<8x256xf32, #tpu.memory_space<vmem>>, vector<1x256xf32>
    %9 = vector.shape_cast %8 : vector<1x256xf32> to vector<1x256xf32>
    %10 = vector.broadcast %9 : vector<1x256xf32> to vector<128x256xf32>
    %c3 = arith.constant 3 : index
    %c0_5 = arith.constant 0 : index
    %11 = vector.load %arg5[%c3, %c0_5] : memref<8x256xf32, #tpu.memory_space<vmem>>, vector<1x256xf32>
    %12 = vector.shape_cast %11 : vector<1x256xf32> to vector<1x256xf32>
    %13 = vector.broadcast %12 : vector<1x256xf32> to vector<128x256xf32>
    %c4 = arith.constant 4 : index
    %c0_6 = arith.constant 0 : index
    %14 = vector.load %arg5[%c4, %c0_6] : memref<8x256xf32, #tpu.memory_space<vmem>>, vector<1x256xf32>
    %15 = vector.shape_cast %14 : vector<1x256xf32> to vector<1x256xf32>
    %16 = vector.broadcast %15 : vector<1x256xf32> to vector<128x256xf32>
    %c5 = arith.constant 5 : index
    %c0_7 = arith.constant 0 : index
    %17 = vector.load %arg5[%c5, %c0_7] : memref<8x256xf32, #tpu.memory_space<vmem>>, vector<1x128xf32>
    %18 = vector.shape_cast %17 : vector<1x128xf32> to vector<1x128xf32>
    %19 = vector.broadcast %18 : vector<1x128xf32> to vector<128x128xf32>
    %c6 = arith.constant 6 : index
    %c0_8 = arith.constant 0 : index
    %20 = vector.load %arg5[%c6, %c0_8] : memref<8x256xf32, #tpu.memory_space<vmem>>, vector<1x4xf32>
    %21 = vector.shape_cast %20 : vector<1x4xf32> to vector<1x4xf32>
    %22 = vector.broadcast %21 : vector<1x4xf32> to vector<128x4xf32>
    %c0_9 = arith.constant 0 : index
    %c0_10 = arith.constant 0 : index
    %23 = vector.load %arg1[%c0_9, %c0_10] : memref<128x2xf32, #tpu.memory_space<vmem>>, vector<128x2xf32>
    %c0_i32 = arith.constant 0 : i32
    %24 = vector.extract_strided_slice %23 {offsets = [0, 0], sizes = [128, 1], strides = [1, 1]} : vector<128x2xf32> to vector<128x1xf32>
    %25 = vector.extract_strided_slice %23 {offsets = [0, 1], sizes = [128, 1], strides = [1, 1]} : vector<128x2xf32> to vector<128x1xf32>
    %26 = vector.broadcast %24 : vector<128x1xf32> to vector<128x256xf32>
    %27 = arith.mulf %26, %4 : vector<128x256xf32>
    %28 = vector.broadcast %25 : vector<128x1xf32> to vector<128x256xf32>
    %29 = arith.mulf %28, %7 : vector<128x256xf32>
    %30 = arith.addf %27, %29 : vector<128x256xf32>
    %31 = arith.addf %30, %10 : vector<128x256xf32>
    %cst = arith.constant 0.000000e+00 : f32
    %32 = vector.broadcast %cst : f32 to vector<128x256xf32>
    %33 = arith.maximumf %31, %32 : vector<128x256xf32>
    %34 = arith.truncf %33 : vector<128x256xf32> to vector<128x256xbf16>
    %c0_11 = arith.constant 0 : index
    %c0_12 = arith.constant 0 : index
    %35 = vector.load %arg4[%c0_11, %c0_12] : memref<896x256xbf16, #tpu.memory_space<vmem>>, vector<256x256xbf16>
    %cst_13 = arith.constant dense<0.000000e+00> : vector<128x256xf32>
    %36 = tpu.matmul %34, %35, %cst_13 {dimension_numbers = #tpu.dot_dimension_numbers<[1], [0], [0], [1], [0, 0, 1, 1], [], []>} : vector<128x256xbf16>, vector<256x256xbf16>, vector<128x256xf32> -> vector<128x256xf32>
    %37 = arith.addf %36, %13 : vector<128x256xf32>
    %cst_14 = arith.constant 0.000000e+00 : f32
    %38 = vector.broadcast %cst_14 : f32 to vector<128x256xf32>
    %39 = arith.maximumf %37, %38 : vector<128x256xf32>
    %40 = arith.truncf %39 : vector<128x256xf32> to vector<128x256xbf16>
    %c256 = arith.constant 256 : index
    %c0_15 = arith.constant 0 : index
    %41 = vector.load %arg4[%c256, %c0_15] : memref<896x256xbf16, #tpu.memory_space<vmem>>, vector<256x256xbf16>
    %cst_16 = arith.constant dense<0.000000e+00> : vector<128x256xf32>
    %42 = tpu.matmul %40, %41, %cst_16 {dimension_numbers = #tpu.dot_dimension_numbers<[1], [0], [0], [1], [0, 0, 1, 1], [], []>} : vector<128x256xbf16>, vector<256x256xbf16>, vector<128x256xf32> -> vector<128x256xf32>
    %43 = arith.addf %42, %16 : vector<128x256xf32>
    %cst_17 = arith.constant 0.000000e+00 : f32
    %44 = vector.broadcast %cst_17 : f32 to vector<128x256xf32>
    %45 = arith.maximumf %43, %44 : vector<128x256xf32>
    %46 = vector.extract_strided_slice %45 {offsets = [0, 0], sizes = [128, 128], strides = [1, 1]} : vector<128x256xf32> to vector<128x128xf32>
    %47 = vector.extract_strided_slice %45 {offsets = [0, 128], sizes = [128, 128], strides = [1, 1]} : vector<128x256xf32> to vector<128x128xf32>
    %48 = arith.truncf %46 : vector<128x128xf32> to vector<128x128xbf16>
    %c512 = arith.constant 512 : index
    %c0_18 = arith.constant 0 : index
    %49 = vector.load %arg4[%c512, %c0_18] : memref<896x256xbf16, #tpu.memory_space<vmem>>, vector<128x128xbf16>
    %cst_19 = arith.constant dense<0.000000e+00> : vector<128x128xf32>
    %50 = tpu.matmul %48, %49, %cst_19 {dimension_numbers = #tpu.dot_dimension_numbers<[1], [0], [0], [1], [0, 0, 1, 1], [], []>} : vector<128x128xbf16>, vector<128x128xbf16>, vector<128x128xf32> -> vector<128x128xf32>
    %51 = arith.addf %50, %19 : vector<128x128xf32>
    %cst_20 = arith.constant 0.000000e+00 : f32
    %52 = vector.broadcast %cst_20 : f32 to vector<128x128xf32>
    %53 = arith.maximumf %51, %52 : vector<128x128xf32>
    %54 = tpu.concatenate %53, %47 in 1 : vector<128x128xf32>, vector<128x128xf32> -> vector<128x256xf32>
    %55 = arith.truncf %54 : vector<128x256xf32> to vector<128x256xbf16>
    %c640 = arith.constant 640 : index
    %c0_21 = arith.constant 0 : index
    %56 = vector.load %arg4[%c640, %c0_21] : memref<896x256xbf16, #tpu.memory_space<vmem>>, vector<256x4xbf16>
    %cst_22 = arith.constant dense<0.000000e+00> : vector<128x4xf32>
    %57 = tpu.matmul %55, %56, %cst_22 {dimension_numbers = #tpu.dot_dimension_numbers<[1], [0], [0], [1], [0, 0, 1, 1], [], []>} : vector<128x256xbf16>, vector<256x4xbf16>, vector<128x4xf32> -> vector<128x4xf32>
    %58 = arith.addf %57, %22 : vector<128x4xf32>
    %59 = vector.extract_strided_slice %58 {offsets = [0, 0], sizes = [128, 2], strides = [1, 1]} : vector<128x4xf32> to vector<128x2xf32>
    %60 = vector.extract_strided_slice %58 {offsets = [0, 2], sizes = [128, 2], strides = [1, 1]} : vector<128x4xf32> to vector<128x2xf32>
    %61 = arith.index_cast %c0_i32 : i32 to index
    %c0_23 = arith.constant 0 : index
    %c0_24 = arith.constant 0 : index
    %62 = vector.load %arg3[%61, %c0_23, %c0_24] : memref<8x128x2xf32, #tpu.memory_space<vmem>>, vector<1x128x2xf32>
    %63 = vector.shape_cast %62 : vector<1x128x2xf32> to vector<128x2xf32>
    %64 = vector.broadcast %1 : vector<128x1xf32> to vector<128x2xf32>
    %65 = arith.mulf %64, %63 : vector<128x2xf32>
    %66 = vector.broadcast %0 : vector<128x1xf32> to vector<128x2xf32>
    %67 = arith.mulf %59, %66 : vector<128x2xf32>
    %68 = arith.addf %23, %67 : vector<128x2xf32>
    %69 = arith.mulf %60, %65 : vector<128x2xf32>
    %70 = arith.addf %68, %69 : vector<128x2xf32>
    %c1_i32 = arith.constant 1 : i32
    %71 = vector.extract_strided_slice %70 {offsets = [0, 0], sizes = [128, 1], strides = [1, 1]} : vector<128x2xf32> to vector<128x1xf32>
    %72 = vector.extract_strided_slice %70 {offsets = [0, 1], sizes = [128, 1], strides = [1, 1]} : vector<128x2xf32> to vector<128x1xf32>
    %73 = vector.broadcast %71 : vector<128x1xf32> to vector<128x256xf32>
    %74 = arith.mulf %73, %4 : vector<128x256xf32>
    %75 = vector.broadcast %72 : vector<128x1xf32> to vector<128x256xf32>
    %76 = arith.mulf %75, %7 : vector<128x256xf32>
    %77 = arith.addf %74, %76 : vector<128x256xf32>
    %78 = arith.addf %77, %10 : vector<128x256xf32>
    %cst_25 = arith.constant 0.000000e+00 : f32
    %79 = vector.broadcast %cst_25 : f32 to vector<128x256xf32>
    %80 = arith.maximumf %78, %79 : vector<128x256xf32>
    %81 = arith.truncf %80 : vector<128x256xf32> to vector<128x256xbf16>
    %c0_26 = arith.constant 0 : index
    %c0_27 = arith.constant 0 : index
    %82 = vector.load %arg4[%c0_26, %c0_27] : memref<896x256xbf16, #tpu.memory_space<vmem>>, vector<256x256xbf16>
    %cst_28 = arith.constant dense<0.000000e+00> : vector<128x256xf32>
    %83 = tpu.matmul %81, %82, %cst_28 {dimension_numbers = #tpu.dot_dimension_numbers<[1], [0], [0], [1], [0, 0, 1, 1], [], []>} : vector<128x256xbf16>, vector<256x256xbf16>, vector<128x256xf32> -> vector<128x256xf32>
    %84 = arith.addf %83, %13 : vector<128x256xf32>
    %cst_29 = arith.constant 0.000000e+00 : f32
    %85 = vector.broadcast %cst_29 : f32 to vector<128x256xf32>
    %86 = arith.maximumf %84, %85 : vector<128x256xf32>
    %87 = arith.truncf %86 : vector<128x256xf32> to vector<128x256xbf16>
    %c256_30 = arith.constant 256 : index
    %c0_31 = arith.constant 0 : index
    %88 = vector.load %arg4[%c256_30, %c0_31] : memref<896x256xbf16, #tpu.memory_space<vmem>>, vector<256x256xbf16>
    %cst_32 = arith.constant dense<0.000000e+00> : vector<128x256xf32>
    %89 = tpu.matmul %87, %88, %cst_32 {dimension_numbers = #tpu.dot_dimension_numbers<[1], [0], [0], [1], [0, 0, 1, 1], [], []>} : vector<128x256xbf16>, vector<256x256xbf16>, vector<128x256xf32> -> vector<128x256xf32>
    %90 = arith.addf %89, %16 : vector<128x256xf32>
    %cst_33 = arith.constant 0.000000e+00 : f32
    %91 = vector.broadcast %cst_33 : f32 to vector<128x256xf32>
    %92 = arith.maximumf %90, %91 : vector<128x256xf32>
    %93 = vector.extract_strided_slice %92 {offsets = [0, 0], sizes = [128, 128], strides = [1, 1]} : vector<128x256xf32> to vector<128x128xf32>
    %94 = vector.extract_strided_slice %92 {offsets = [0, 128], sizes = [128, 128], strides = [1, 1]} : vector<128x256xf32> to vector<128x128xf32>
    %95 = arith.truncf %93 : vector<128x128xf32> to vector<128x128xbf16>
    %c512_34 = arith.constant 512 : index
    %c0_35 = arith.constant 0 : index
    %96 = vector.load %arg4[%c512_34, %c0_35] : memref<896x256xbf16, #tpu.memory_space<vmem>>, vector<128x128xbf16>
    %cst_36 = arith.constant dense<0.000000e+00> : vector<128x128xf32>
    %97 = tpu.matmul %95, %96, %cst_36 {dimension_numbers = #tpu.dot_dimension_numbers<[1], [0], [0], [1], [0, 0, 1, 1], [], []>} : vector<128x128xbf16>, vector<128x128xbf16>, vector<128x128xf32> -> vector<128x128xf32>
    %98 = arith.addf %97, %19 : vector<128x128xf32>
    %cst_37 = arith.constant 0.000000e+00 : f32
    %99 = vector.broadcast %cst_37 : f32 to vector<128x128xf32>
    %100 = arith.maximumf %98, %99 : vector<128x128xf32>
    %101 = tpu.concatenate %100, %94 in 1 : vector<128x128xf32>, vector<128x128xf32> -> vector<128x256xf32>
    %102 = arith.truncf %101 : vector<128x256xf32> to vector<128x256xbf16>
    %c640_38 = arith.constant 640 : index
    %c0_39 = arith.constant 0 : index
    %103 = vector.load %arg4[%c640_38, %c0_39] : memref<896x256xbf16, #tpu.memory_space<vmem>>, vector<256x4xbf16>
    %cst_40 = arith.constant dense<0.000000e+00> : vector<128x4xf32>
    %104 = tpu.matmul %102, %103, %cst_40 {dimension_numbers = #tpu.dot_dimension_numbers<[1], [0], [0], [1], [0, 0, 1, 1], [], []>} : vector<128x256xbf16>, vector<256x4xbf16>, vector<128x4xf32> -> vector<128x4xf32>
    %105 = arith.addf %104, %22 : vector<128x4xf32>
    %106 = vector.extract_strided_slice %105 {offsets = [0, 0], sizes = [128, 2], strides = [1, 1]} : vector<128x4xf32> to vector<128x2xf32>
    %107 = vector.extract_strided_slice %105 {offsets = [0, 2], sizes = [128, 2], strides = [1, 1]} : vector<128x4xf32> to vector<128x2xf32>
    %108 = arith.index_cast %c1_i32 : i32 to index
    %c0_41 = arith.constant 0 : index
    %c0_42 = arith.constant 0 : index
    %109 = vector.load %arg3[%108, %c0_41, %c0_42] : memref<8x128x2xf32, #tpu.memory_space<vmem>>, vector<1x128x2xf32>
    %110 = vector.shape_cast %109 : vector<1x128x2xf32> to vector<128x2xf32>
    %111 = vector.broadcast %1 : vector<128x1xf32> to vector<128x2xf32>
    %112 = arith.mulf %111, %110 : vector<128x2xf32>
    %113 = vector.broadcast %0 : vector<128x1xf32> to vector<128x2xf32>
    %114 = arith.mulf %106, %113 : vector<128x2xf32>
    %115 = arith.addf %70, %114 : vector<128x2xf32>
    %116 = arith.mulf %107, %112 : vector<128x2xf32>
    %117 = arith.addf %115, %116 : vector<128x2xf32>
    %c2_i32 = arith.constant 2 : i32
    %118 = vector.extract_strided_slice %117 {offsets = [0, 0], sizes = [128, 1], strides = [1, 1]} : vector<128x2xf32> to vector<128x1xf32>
    %119 = vector.extract_strided_slice %117 {offsets = [0, 1], sizes = [128, 1], strides = [1, 1]} : vector<128x2xf32> to vector<128x1xf32>
    %120 = vector.broadcast %118 : vector<128x1xf32> to vector<128x256xf32>
    %121 = arith.mulf %120, %4 : vector<128x256xf32>
    %122 = vector.broadcast %119 : vector<128x1xf32> to vector<128x256xf32>
    %123 = arith.mulf %122, %7 : vector<128x256xf32>
    %124 = arith.addf %121, %123 : vector<128x256xf32>
    %125 = arith.addf %124, %10 : vector<128x256xf32>
    %cst_43 = arith.constant 0.000000e+00 : f32
    %126 = vector.broadcast %cst_43 : f32 to vector<128x256xf32>
    %127 = arith.maximumf %125, %126 : vector<128x256xf32>
    %128 = arith.truncf %127 : vector<128x256xf32> to vector<128x256xbf16>
    %c0_44 = arith.constant 0 : index
    %c0_45 = arith.constant 0 : index
    %129 = vector.load %arg4[%c0_44, %c0_45] : memref<896x256xbf16, #tpu.memory_space<vmem>>, vector<256x256xbf16>
    %cst_46 = arith.constant dense<0.000000e+00> : vector<128x256xf32>
    %130 = tpu.matmul %128, %129, %cst_46 {dimension_numbers = #tpu.dot_dimension_numbers<[1], [0], [0], [1], [0, 0, 1, 1], [], []>} : vector<128x256xbf16>, vector<256x256xbf16>, vector<128x256xf32> -> vector<128x256xf32>
    %131 = arith.addf %130, %13 : vector<128x256xf32>
    %cst_47 = arith.constant 0.000000e+00 : f32
    %132 = vector.broadcast %cst_47 : f32 to vector<128x256xf32>
    %133 = arith.maximumf %131, %132 : vector<128x256xf32>
    %134 = arith.truncf %133 : vector<128x256xf32> to vector<128x256xbf16>
    %c256_48 = arith.constant 256 : index
    %c0_49 = arith.constant 0 : index
    %135 = vector.load %arg4[%c256_48, %c0_49] : memref<896x256xbf16, #tpu.memory_space<vmem>>, vector<256x256xbf16>
    %cst_50 = arith.constant dense<0.000000e+00> : vector<128x256xf32>
    %136 = tpu.matmul %134, %135, %cst_50 {dimension_numbers = #tpu.dot_dimension_numbers<[1], [0], [0], [1], [0, 0, 1, 1], [], []>} : vector<128x256xbf16>, vector<256x256xbf16>, vector<128x256xf32> -> vector<128x256xf32>
    %137 = arith.addf %136, %16 : vector<128x256xf32>
    %cst_51 = arith.constant 0.000000e+00 : f32
    %138 = vector.broadcast %cst_51 : f32 to vector<128x256xf32>
    %139 = arith.maximumf %137, %138 : vector<128x256xf32>
    %140 = vector.extract_strided_slice %139 {offsets = [0, 0], sizes = [128, 128], strides = [1, 1]} : vector<128x256xf32> to vector<128x128xf32>
    %141 = vector.extract_strided_slice %139 {offsets = [0, 128], sizes = [128, 128], strides = [1, 1]} : vector<128x256xf32> to vector<128x128xf32>
    %142 = arith.truncf %140 : vector<128x128xf32> to vector<128x128xbf16>
    %c512_52 = arith.constant 512 : index
    %c0_53 = arith.constant 0 : index
    %143 = vector.load %arg4[%c512_52, %c0_53] : memref<896x256xbf16, #tpu.memory_space<vmem>>, vector<128x128xbf16>
    %cst_54 = arith.constant dense<0.000000e+00> : vector<128x128xf32>
    %144 = tpu.matmul %142, %143, %cst_54 {dimension_numbers = #tpu.dot_dimension_numbers<[1], [0], [0], [1], [0, 0, 1, 1], [], []>} : vector<128x128xbf16>, vector<128x128xbf16>, vector<128x128xf32> -> vector<128x128xf32>
    %145 = arith.addf %144, %19 : vector<128x128xf32>
    %cst_55 = arith.constant 0.000000e+00 : f32
    %146 = vector.broadcast %cst_55 : f32 to vector<128x128xf32>
    %147 = arith.maximumf %145, %146 : vector<128x128xf32>
    %148 = tpu.concatenate %147, %141 in 1 : vector<128x128xf32>, vector<128x128xf32> -> vector<128x256xf32>
    %149 = arith.truncf %148 : vector<128x256xf32> to vector<128x256xbf16>
    %c640_56 = arith.constant 640 : index
    %c0_57 = arith.constant 0 : index
    %150 = vector.load %arg4[%c640_56, %c0_57] : memref<896x256xbf16, #tpu.memory_space<vmem>>, vector<256x4xbf16>
    %cst_58 = arith.constant dense<0.000000e+00> : vector<128x4xf32>
    %151 = tpu.matmul %149, %150, %cst_58 {dimension_numbers = #tpu.dot_dimension_numbers<[1], [0], [0], [1], [0, 0, 1, 1], [], []>} : vector<128x256xbf16>, vector<256x4xbf16>, vector<128x4xf32> -> vector<128x4xf32>
    %152 = arith.addf %151, %22 : vector<128x4xf32>
    %153 = vector.extract_strided_slice %152 {offsets = [0, 0], sizes = [128, 2], strides = [1, 1]} : vector<128x4xf32> to vector<128x2xf32>
    %154 = vector.extract_strided_slice %152 {offsets = [0, 2], sizes = [128, 2], strides = [1, 1]} : vector<128x4xf32> to vector<128x2xf32>
    %155 = arith.index_cast %c2_i32 : i32 to index
    %c0_59 = arith.constant 0 : index
    %c0_60 = arith.constant 0 : index
    %156 = vector.load %arg3[%155, %c0_59, %c0_60] : memref<8x128x2xf32, #tpu.memory_space<vmem>>, vector<1x128x2xf32>
    %157 = vector.shape_cast %156 : vector<1x128x2xf32> to vector<128x2xf32>
    %158 = vector.broadcast %1 : vector<128x1xf32> to vector<128x2xf32>
    %159 = arith.mulf %158, %157 : vector<128x2xf32>
    %160 = vector.broadcast %0 : vector<128x1xf32> to vector<128x2xf32>
    %161 = arith.mulf %153, %160 : vector<128x2xf32>
    %162 = arith.addf %117, %161 : vector<128x2xf32>
    %163 = arith.mulf %154, %159 : vector<128x2xf32>
    %164 = arith.addf %162, %163 : vector<128x2xf32>
    %c3_i32 = arith.constant 3 : i32
    %165 = vector.extract_strided_slice %164 {offsets = [0, 0], sizes = [128, 1], strides = [1, 1]} : vector<128x2xf32> to vector<128x1xf32>
    %166 = vector.extract_strided_slice %164 {offsets = [0, 1], sizes = [128, 1], strides = [1, 1]} : vector<128x2xf32> to vector<128x1xf32>
    %167 = vector.broadcast %165 : vector<128x1xf32> to vector<128x256xf32>
    %168 = arith.mulf %167, %4 : vector<128x256xf32>
    %169 = vector.broadcast %166 : vector<128x1xf32> to vector<128x256xf32>
    %170 = arith.mulf %169, %7 : vector<128x256xf32>
    %171 = arith.addf %168, %170 : vector<128x256xf32>
    %172 = arith.addf %171, %10 : vector<128x256xf32>
    %cst_61 = arith.constant 0.000000e+00 : f32
    %173 = vector.broadcast %cst_61 : f32 to vector<128x256xf32>
    %174 = arith.maximumf %172, %173 : vector<128x256xf32>
    %175 = arith.truncf %174 : vector<128x256xf32> to vector<128x256xbf16>
    %c0_62 = arith.constant 0 : index
    %c0_63 = arith.constant 0 : index
    %176 = vector.load %arg4[%c0_62, %c0_63] : memref<896x256xbf16, #tpu.memory_space<vmem>>, vector<256x256xbf16>
    %cst_64 = arith.constant dense<0.000000e+00> : vector<128x256xf32>
    %177 = tpu.matmul %175, %176, %cst_64 {dimension_numbers = #tpu.dot_dimension_numbers<[1], [0], [0], [1], [0, 0, 1, 1], [], []>} : vector<128x256xbf16>, vector<256x256xbf16>, vector<128x256xf32> -> vector<128x256xf32>
    %178 = arith.addf %177, %13 : vector<128x256xf32>
    %cst_65 = arith.constant 0.000000e+00 : f32
    %179 = vector.broadcast %cst_65 : f32 to vector<128x256xf32>
    %180 = arith.maximumf %178, %179 : vector<128x256xf32>
    %181 = arith.truncf %180 : vector<128x256xf32> to vector<128x256xbf16>
    %c256_66 = arith.constant 256 : index
    %c0_67 = arith.constant 0 : index
    %182 = vector.load %arg4[%c256_66, %c0_67] : memref<896x256xbf16, #tpu.memory_space<vmem>>, vector<256x256xbf16>
    %cst_68 = arith.constant dense<0.000000e+00> : vector<128x256xf32>
    %183 = tpu.matmul %181, %182, %cst_68 {dimension_numbers = #tpu.dot_dimension_numbers<[1], [0], [0], [1], [0, 0, 1, 1], [], []>} : vector<128x256xbf16>, vector<256x256xbf16>, vector<128x256xf32> -> vector<128x256xf32>
    %184 = arith.addf %183, %16 : vector<128x256xf32>
    %cst_69 = arith.constant 0.000000e+00 : f32
    %185 = vector.broadcast %cst_69 : f32 to vector<128x256xf32>
    %186 = arith.maximumf %184, %185 : vector<128x256xf32>
    %187 = vector.extract_strided_slice %186 {offsets = [0, 0], sizes = [128, 128], strides = [1, 1]} : vector<128x256xf32> to vector<128x128xf32>
    %188 = vector.extract_strided_slice %186 {offsets = [0, 128], sizes = [128, 128], strides = [1, 1]} : vector<128x256xf32> to vector<128x128xf32>
    %189 = arith.truncf %187 : vector<128x128xf32> to vector<128x128xbf16>
    %c512_70 = arith.constant 512 : index
    %c0_71 = arith.constant 0 : index
    %190 = vector.load %arg4[%c512_70, %c0_71] : memref<896x256xbf16, #tpu.memory_space<vmem>>, vector<128x128xbf16>
    %cst_72 = arith.constant dense<0.000000e+00> : vector<128x128xf32>
    %191 = tpu.matmul %189, %190, %cst_72 {dimension_numbers = #tpu.dot_dimension_numbers<[1], [0], [0], [1], [0, 0, 1, 1], [], []>} : vector<128x128xbf16>, vector<128x128xbf16>, vector<128x128xf32> -> vector<128x128xf32>
    %192 = arith.addf %191, %19 : vector<128x128xf32>
    %cst_73 = arith.constant 0.000000e+00 : f32
    %193 = vector.broadcast %cst_73 : f32 to vector<128x128xf32>
    %194 = arith.maximumf %192, %193 : vector<128x128xf32>
    %195 = tpu.concatenate %194, %188 in 1 : vector<128x128xf32>, vector<128x128xf32> -> vector<128x256xf32>
    %196 = arith.truncf %195 : vector<128x256xf32> to vector<128x256xbf16>
    %c640_74 = arith.constant 640 : index
    %c0_75 = arith.constant 0 : index
    %197 = vector.load %arg4[%c640_74, %c0_75] : memref<896x256xbf16, #tpu.memory_space<vmem>>, vector<256x4xbf16>
    %cst_76 = arith.constant dense<0.000000e+00> : vector<128x4xf32>
    %198 = tpu.matmul %196, %197, %cst_76 {dimension_numbers = #tpu.dot_dimension_numbers<[1], [0], [0], [1], [0, 0, 1, 1], [], []>} : vector<128x256xbf16>, vector<256x4xbf16>, vector<128x4xf32> -> vector<128x4xf32>
    %199 = arith.addf %198, %22 : vector<128x4xf32>
    %200 = vector.extract_strided_slice %199 {offsets = [0, 0], sizes = [128, 2], strides = [1, 1]} : vector<128x4xf32> to vector<128x2xf32>
    %201 = vector.extract_strided_slice %199 {offsets = [0, 2], sizes = [128, 2], strides = [1, 1]} : vector<128x4xf32> to vector<128x2xf32>
    %202 = arith.index_cast %c3_i32 : i32 to index
    %c0_77 = arith.constant 0 : index
    %c0_78 = arith.constant 0 : index
    %203 = vector.load %arg3[%202, %c0_77, %c0_78] : memref<8x128x2xf32, #tpu.memory_space<vmem>>, vector<1x128x2xf32>
    %204 = vector.shape_cast %203 : vector<1x128x2xf32> to vector<128x2xf32>
    %205 = vector.broadcast %1 : vector<128x1xf32> to vector<128x2xf32>
    %206 = arith.mulf %205, %204 : vector<128x2xf32>
    %207 = vector.broadcast %0 : vector<128x1xf32> to vector<128x2xf32>
    %208 = arith.mulf %200, %207 : vector<128x2xf32>
    %209 = arith.addf %164, %208 : vector<128x2xf32>
    %210 = arith.mulf %201, %206 : vector<128x2xf32>
    %211 = arith.addf %209, %210 : vector<128x2xf32>
    %c4_i32 = arith.constant 4 : i32
    %212 = vector.extract_strided_slice %211 {offsets = [0, 0], sizes = [128, 1], strides = [1, 1]} : vector<128x2xf32> to vector<128x1xf32>
    %213 = vector.extract_strided_slice %211 {offsets = [0, 1], sizes = [128, 1], strides = [1, 1]} : vector<128x2xf32> to vector<128x1xf32>
    %214 = vector.broadcast %212 : vector<128x1xf32> to vector<128x256xf32>
    %215 = arith.mulf %214, %4 : vector<128x256xf32>
    %216 = vector.broadcast %213 : vector<128x1xf32> to vector<128x256xf32>
    %217 = arith.mulf %216, %7 : vector<128x256xf32>
    %218 = arith.addf %215, %217 : vector<128x256xf32>
    %219 = arith.addf %218, %10 : vector<128x256xf32>
    %cst_79 = arith.constant 0.000000e+00 : f32
    %220 = vector.broadcast %cst_79 : f32 to vector<128x256xf32>
    %221 = arith.maximumf %219, %220 : vector<128x256xf32>
    %222 = arith.truncf %221 : vector<128x256xf32> to vector<128x256xbf16>
    %c0_80 = arith.constant 0 : index
    %c0_81 = arith.constant 0 : index
    %223 = vector.load %arg4[%c0_80, %c0_81] : memref<896x256xbf16, #tpu.memory_space<vmem>>, vector<256x256xbf16>
    %cst_82 = arith.constant dense<0.000000e+00> : vector<128x256xf32>
    %224 = tpu.matmul %222, %223, %cst_82 {dimension_numbers = #tpu.dot_dimension_numbers<[1], [0], [0], [1], [0, 0, 1, 1], [], []>} : vector<128x256xbf16>, vector<256x256xbf16>, vector<128x256xf32> -> vector<128x256xf32>
    %225 = arith.addf %224, %13 : vector<128x256xf32>
    %cst_83 = arith.constant 0.000000e+00 : f32
    %226 = vector.broadcast %cst_83 : f32 to vector<128x256xf32>
    %227 = arith.maximumf %225, %226 : vector<128x256xf32>
    %228 = arith.truncf %227 : vector<128x256xf32> to vector<128x256xbf16>
    %c256_84 = arith.constant 256 : index
    %c0_85 = arith.constant 0 : index
    %229 = vector.load %arg4[%c256_84, %c0_85] : memref<896x256xbf16, #tpu.memory_space<vmem>>, vector<256x256xbf16>
    %cst_86 = arith.constant dense<0.000000e+00> : vector<128x256xf32>
    %230 = tpu.matmul %228, %229, %cst_86 {dimension_numbers = #tpu.dot_dimension_numbers<[1], [0], [0], [1], [0, 0, 1, 1], [], []>} : vector<128x256xbf16>, vector<256x256xbf16>, vector<128x256xf32> -> vector<128x256xf32>
    %231 = arith.addf %230, %16 : vector<128x256xf32>
    %cst_87 = arith.constant 0.000000e+00 : f32
    %232 = vector.broadcast %cst_87 : f32 to vector<128x256xf32>
    %233 = arith.maximumf %231, %232 : vector<128x256xf32>
    %234 = vector.extract_strided_slice %233 {offsets = [0, 0], sizes = [128, 128], strides = [1, 1]} : vector<128x256xf32> to vector<128x128xf32>
    %235 = vector.extract_strided_slice %233 {offsets = [0, 128], sizes = [128, 128], strides = [1, 1]} : vector<128x256xf32> to vector<128x128xf32>
    %236 = arith.truncf %234 : vector<128x128xf32> to vector<128x128xbf16>
    %c512_88 = arith.constant 512 : index
    %c0_89 = arith.constant 0 : index
    %237 = vector.load %arg4[%c512_88, %c0_89] : memref<896x256xbf16, #tpu.memory_space<vmem>>, vector<128x128xbf16>
    %cst_90 = arith.constant dense<0.000000e+00> : vector<128x128xf32>
    %238 = tpu.matmul %236, %237, %cst_90 {dimension_numbers = #tpu.dot_dimension_numbers<[1], [0], [0], [1], [0, 0, 1, 1], [], []>} : vector<128x128xbf16>, vector<128x128xbf16>, vector<128x128xf32> -> vector<128x128xf32>
    %239 = arith.addf %238, %19 : vector<128x128xf32>
    %cst_91 = arith.constant 0.000000e+00 : f32
    %240 = vector.broadcast %cst_91 : f32 to vector<128x128xf32>
    %241 = arith.maximumf %239, %240 : vector<128x128xf32>
    %242 = tpu.concatenate %241, %235 in 1 : vector<128x128xf32>, vector<128x128xf32> -> vector<128x256xf32>
    %243 = arith.truncf %242 : vector<128x256xf32> to vector<128x256xbf16>
    %c640_92 = arith.constant 640 : index
    %c0_93 = arith.constant 0 : index
    %244 = vector.load %arg4[%c640_92, %c0_93] : memref<896x256xbf16, #tpu.memory_space<vmem>>, vector<256x4xbf16>
    %cst_94 = arith.constant dense<0.000000e+00> : vector<128x4xf32>
    %245 = tpu.matmul %243, %244, %cst_94 {dimension_numbers = #tpu.dot_dimension_numbers<[1], [0], [0], [1], [0, 0, 1, 1], [], []>} : vector<128x256xbf16>, vector<256x4xbf16>, vector<128x4xf32> -> vector<128x4xf32>
    %246 = arith.addf %245, %22 : vector<128x4xf32>
    %247 = vector.extract_strided_slice %246 {offsets = [0, 0], sizes = [128, 2], strides = [1, 1]} : vector<128x4xf32> to vector<128x2xf32>
    %248 = vector.extract_strided_slice %246 {offsets = [0, 2], sizes = [128, 2], strides = [1, 1]} : vector<128x4xf32> to vector<128x2xf32>
    %249 = arith.index_cast %c4_i32 : i32 to index
    %c0_95 = arith.constant 0 : index
    %c0_96 = arith.constant 0 : index
    %250 = vector.load %arg3[%249, %c0_95, %c0_96] : memref<8x128x2xf32, #tpu.memory_space<vmem>>, vector<1x128x2xf32>
    %251 = vector.shape_cast %250 : vector<1x128x2xf32> to vector<128x2xf32>
    %252 = vector.broadcast %1 : vector<128x1xf32> to vector<128x2xf32>
    %253 = arith.mulf %252, %251 : vector<128x2xf32>
    %254 = vector.broadcast %0 : vector<128x1xf32> to vector<128x2xf32>
    %255 = arith.mulf %247, %254 : vector<128x2xf32>
    %256 = arith.addf %211, %255 : vector<128x2xf32>
    %257 = arith.mulf %248, %253 : vector<128x2xf32>
    %258 = arith.addf %256, %257 : vector<128x2xf32>
    %c5_i32 = arith.constant 5 : i32
    %259 = vector.extract_strided_slice %258 {offsets = [0, 0], sizes = [128, 1], strides = [1, 1]} : vector<128x2xf32> to vector<128x1xf32>
    %260 = vector.extract_strided_slice %258 {offsets = [0, 1], sizes = [128, 1], strides = [1, 1]} : vector<128x2xf32> to vector<128x1xf32>
    %261 = vector.broadcast %259 : vector<128x1xf32> to vector<128x256xf32>
    %262 = arith.mulf %261, %4 : vector<128x256xf32>
    %263 = vector.broadcast %260 : vector<128x1xf32> to vector<128x256xf32>
    %264 = arith.mulf %263, %7 : vector<128x256xf32>
    %265 = arith.addf %262, %264 : vector<128x256xf32>
    %266 = arith.addf %265, %10 : vector<128x256xf32>
    %cst_97 = arith.constant 0.000000e+00 : f32
    %267 = vector.broadcast %cst_97 : f32 to vector<128x256xf32>
    %268 = arith.maximumf %266, %267 : vector<128x256xf32>
    %269 = arith.truncf %268 : vector<128x256xf32> to vector<128x256xbf16>
    %c0_98 = arith.constant 0 : index
    %c0_99 = arith.constant 0 : index
    %270 = vector.load %arg4[%c0_98, %c0_99] : memref<896x256xbf16, #tpu.memory_space<vmem>>, vector<256x256xbf16>
    %cst_100 = arith.constant dense<0.000000e+00> : vector<128x256xf32>
    %271 = tpu.matmul %269, %270, %cst_100 {dimension_numbers = #tpu.dot_dimension_numbers<[1], [0], [0], [1], [0, 0, 1, 1], [], []>} : vector<128x256xbf16>, vector<256x256xbf16>, vector<128x256xf32> -> vector<128x256xf32>
    %272 = arith.addf %271, %13 : vector<128x256xf32>
    %cst_101 = arith.constant 0.000000e+00 : f32
    %273 = vector.broadcast %cst_101 : f32 to vector<128x256xf32>
    %274 = arith.maximumf %272, %273 : vector<128x256xf32>
    %275 = arith.truncf %274 : vector<128x256xf32> to vector<128x256xbf16>
    %c256_102 = arith.constant 256 : index
    %c0_103 = arith.constant 0 : index
    %276 = vector.load %arg4[%c256_102, %c0_103] : memref<896x256xbf16, #tpu.memory_space<vmem>>, vector<256x256xbf16>
    %cst_104 = arith.constant dense<0.000000e+00> : vector<128x256xf32>
    %277 = tpu.matmul %275, %276, %cst_104 {dimension_numbers = #tpu.dot_dimension_numbers<[1], [0], [0], [1], [0, 0, 1, 1], [], []>} : vector<128x256xbf16>, vector<256x256xbf16>, vector<128x256xf32> -> vector<128x256xf32>
    %278 = arith.addf %277, %16 : vector<128x256xf32>
    %cst_105 = arith.constant 0.000000e+00 : f32
    %279 = vector.broadcast %cst_105 : f32 to vector<128x256xf32>
    %280 = arith.maximumf %278, %279 : vector<128x256xf32>
    %281 = vector.extract_strided_slice %280 {offsets = [0, 0], sizes = [128, 128], strides = [1, 1]} : vector<128x256xf32> to vector<128x128xf32>
    %282 = vector.extract_strided_slice %280 {offsets = [0, 128], sizes = [128, 128], strides = [1, 1]} : vector<128x256xf32> to vector<128x128xf32>
    %283 = arith.truncf %281 : vector<128x128xf32> to vector<128x128xbf16>
    %c512_106 = arith.constant 512 : index
    %c0_107 = arith.constant 0 : index
    %284 = vector.load %arg4[%c512_106, %c0_107] : memref<896x256xbf16, #tpu.memory_space<vmem>>, vector<128x128xbf16>
    %cst_108 = arith.constant dense<0.000000e+00> : vector<128x128xf32>
    %285 = tpu.matmul %283, %284, %cst_108 {dimension_numbers = #tpu.dot_dimension_numbers<[1], [0], [0], [1], [0, 0, 1, 1], [], []>} : vector<128x128xbf16>, vector<128x128xbf16>, vector<128x128xf32> -> vector<128x128xf32>
    %286 = arith.addf %285, %19 : vector<128x128xf32>
    %cst_109 = arith.constant 0.000000e+00 : f32
    %287 = vector.broadcast %cst_109 : f32 to vector<128x128xf32>
    %288 = arith.maximumf %286, %287 : vector<128x128xf32>
    %289 = tpu.concatenate %288, %282 in 1 : vector<128x128xf32>, vector<128x128xf32> -> vector<128x256xf32>
    %290 = arith.truncf %289 : vector<128x256xf32> to vector<128x256xbf16>
    %c640_110 = arith.constant 640 : index
    %c0_111 = arith.constant 0 : index
    %291 = vector.load %arg4[%c640_110, %c0_111] : memref<896x256xbf16, #tpu.memory_space<vmem>>, vector<256x4xbf16>
    %cst_112 = arith.constant dense<0.000000e+00> : vector<128x4xf32>
    %292 = tpu.matmul %290, %291, %cst_112 {dimension_numbers = #tpu.dot_dimension_numbers<[1], [0], [0], [1], [0, 0, 1, 1], [], []>} : vector<128x256xbf16>, vector<256x4xbf16>, vector<128x4xf32> -> vector<128x4xf32>
    %293 = arith.addf %292, %22 : vector<128x4xf32>
    %294 = vector.extract_strided_slice %293 {offsets = [0, 0], sizes = [128, 2], strides = [1, 1]} : vector<128x4xf32> to vector<128x2xf32>
    %295 = vector.extract_strided_slice %293 {offsets = [0, 2], sizes = [128, 2], strides = [1, 1]} : vector<128x4xf32> to vector<128x2xf32>
    %296 = arith.index_cast %c5_i32 : i32 to index
    %c0_113 = arith.constant 0 : index
    %c0_114 = arith.constant 0 : index
    %297 = vector.load %arg3[%296, %c0_113, %c0_114] : memref<8x128x2xf32, #tpu.memory_space<vmem>>, vector<1x128x2xf32>
    %298 = vector.shape_cast %297 : vector<1x128x2xf32> to vector<128x2xf32>
    %299 = vector.broadcast %1 : vector<128x1xf32> to vector<128x2xf32>
    %300 = arith.mulf %299, %298 : vector<128x2xf32>
    %301 = vector.broadcast %0 : vector<128x1xf32> to vector<128x2xf32>
    %302 = arith.mulf %294, %301 : vector<128x2xf32>
    %303 = arith.addf %258, %302 : vector<128x2xf32>
    %304 = arith.mulf %295, %300 : vector<128x2xf32>
    %305 = arith.addf %303, %304 : vector<128x2xf32>
    %c6_i32 = arith.constant 6 : i32
    %306 = vector.extract_strided_slice %305 {offsets = [0, 0], sizes = [128, 1], strides = [1, 1]} : vector<128x2xf32> to vector<128x1xf32>
    %307 = vector.extract_strided_slice %305 {offsets = [0, 1], sizes = [128, 1], strides = [1, 1]} : vector<128x2xf32> to vector<128x1xf32>
    %308 = vector.broadcast %306 : vector<128x1xf32> to vector<128x256xf32>
    %309 = arith.mulf %308, %4 : vector<128x256xf32>
    %310 = vector.broadcast %307 : vector<128x1xf32> to vector<128x256xf32>
    %311 = arith.mulf %310, %7 : vector<128x256xf32>
    %312 = arith.addf %309, %311 : vector<128x256xf32>
    %313 = arith.addf %312, %10 : vector<128x256xf32>
    %cst_115 = arith.constant 0.000000e+00 : f32
    %314 = vector.broadcast %cst_115 : f32 to vector<128x256xf32>
    %315 = arith.maximumf %313, %314 : vector<128x256xf32>
    %316 = arith.truncf %315 : vector<128x256xf32> to vector<128x256xbf16>
    %c0_116 = arith.constant 0 : index
    %c0_117 = arith.constant 0 : index
    %317 = vector.load %arg4[%c0_116, %c0_117] : memref<896x256xbf16, #tpu.memory_space<vmem>>, vector<256x256xbf16>
    %cst_118 = arith.constant dense<0.000000e+00> : vector<128x256xf32>
    %318 = tpu.matmul %316, %317, %cst_118 {dimension_numbers = #tpu.dot_dimension_numbers<[1], [0], [0], [1], [0, 0, 1, 1], [], []>} : vector<128x256xbf16>, vector<256x256xbf16>, vector<128x256xf32> -> vector<128x256xf32>
    %319 = arith.addf %318, %13 : vector<128x256xf32>
    %cst_119 = arith.constant 0.000000e+00 : f32
    %320 = vector.broadcast %cst_119 : f32 to vector<128x256xf32>
    %321 = arith.maximumf %319, %320 : vector<128x256xf32>
    %322 = arith.truncf %321 : vector<128x256xf32> to vector<128x256xbf16>
    %c256_120 = arith.constant 256 : index
    %c0_121 = arith.constant 0 : index
    %323 = vector.load %arg4[%c256_120, %c0_121] : memref<896x256xbf16, #tpu.memory_space<vmem>>, vector<256x256xbf16>
    %cst_122 = arith.constant dense<0.000000e+00> : vector<128x256xf32>
    %324 = tpu.matmul %322, %323, %cst_122 {dimension_numbers = #tpu.dot_dimension_numbers<[1], [0], [0], [1], [0, 0, 1, 1], [], []>} : vector<128x256xbf16>, vector<256x256xbf16>, vector<128x256xf32> -> vector<128x256xf32>
    %325 = arith.addf %324, %16 : vector<128x256xf32>
    %cst_123 = arith.constant 0.000000e+00 : f32
    %326 = vector.broadcast %cst_123 : f32 to vector<128x256xf32>
    %327 = arith.maximumf %325, %326 : vector<128x256xf32>
    %328 = vector.extract_strided_slice %327 {offsets = [0, 0], sizes = [128, 128], strides = [1, 1]} : vector<128x256xf32> to vector<128x128xf32>
    %329 = vector.extract_strided_slice %327 {offsets = [0, 128], sizes = [128, 128], strides = [1, 1]} : vector<128x256xf32> to vector<128x128xf32>
    %330 = arith.truncf %328 : vector<128x128xf32> to vector<128x128xbf16>
    %c512_124 = arith.constant 512 : index
    %c0_125 = arith.constant 0 : index
    %331 = vector.load %arg4[%c512_124, %c0_125] : memref<896x256xbf16, #tpu.memory_space<vmem>>, vector<128x128xbf16>
    %cst_126 = arith.constant dense<0.000000e+00> : vector<128x128xf32>
    %332 = tpu.matmul %330, %331, %cst_126 {dimension_numbers = #tpu.dot_dimension_numbers<[1], [0], [0], [1], [0, 0, 1, 1], [], []>} : vector<128x128xbf16>, vector<128x128xbf16>, vector<128x128xf32> -> vector<128x128xf32>
    %333 = arith.addf %332, %19 : vector<128x128xf32>
    %cst_127 = arith.constant 0.000000e+00 : f32
    %334 = vector.broadcast %cst_127 : f32 to vector<128x128xf32>
    %335 = arith.maximumf %333, %334 : vector<128x128xf32>
    %336 = tpu.concatenate %335, %329 in 1 : vector<128x128xf32>, vector<128x128xf32> -> vector<128x256xf32>
    %337 = arith.truncf %336 : vector<128x256xf32> to vector<128x256xbf16>
    %c640_128 = arith.constant 640 : index
    %c0_129 = arith.constant 0 : index
    %338 = vector.load %arg4[%c640_128, %c0_129] : memref<896x256xbf16, #tpu.memory_space<vmem>>, vector<256x4xbf16>
    %cst_130 = arith.constant dense<0.000000e+00> : vector<128x4xf32>
    %339 = tpu.matmul %337, %338, %cst_130 {dimension_numbers = #tpu.dot_dimension_numbers<[1], [0], [0], [1], [0, 0, 1, 1], [], []>} : vector<128x256xbf16>, vector<256x4xbf16>, vector<128x4xf32> -> vector<128x4xf32>
    %340 = arith.addf %339, %22 : vector<128x4xf32>
    %341 = vector.extract_strided_slice %340 {offsets = [0, 0], sizes = [128, 2], strides = [1, 1]} : vector<128x4xf32> to vector<128x2xf32>
    %342 = vector.extract_strided_slice %340 {offsets = [0, 2], sizes = [128, 2], strides = [1, 1]} : vector<128x4xf32> to vector<128x2xf32>
    %343 = arith.index_cast %c6_i32 : i32 to index
    %c0_131 = arith.constant 0 : index
    %c0_132 = arith.constant 0 : index
    %344 = vector.load %arg3[%343, %c0_131, %c0_132] : memref<8x128x2xf32, #tpu.memory_space<vmem>>, vector<1x128x2xf32>
    %345 = vector.shape_cast %344 : vector<1x128x2xf32> to vector<128x2xf32>
    %346 = vector.broadcast %1 : vector<128x1xf32> to vector<128x2xf32>
    %347 = arith.mulf %346, %345 : vector<128x2xf32>
    %348 = vector.broadcast %0 : vector<128x1xf32> to vector<128x2xf32>
    %349 = arith.mulf %341, %348 : vector<128x2xf32>
    %350 = arith.addf %305, %349 : vector<128x2xf32>
    %351 = arith.mulf %342, %347 : vector<128x2xf32>
    %352 = arith.addf %350, %351 : vector<128x2xf32>
    %c7_i32 = arith.constant 7 : i32
    %353 = vector.extract_strided_slice %352 {offsets = [0, 0], sizes = [128, 1], strides = [1, 1]} : vector<128x2xf32> to vector<128x1xf32>
    %354 = vector.extract_strided_slice %352 {offsets = [0, 1], sizes = [128, 1], strides = [1, 1]} : vector<128x2xf32> to vector<128x1xf32>
    %355 = vector.broadcast %353 : vector<128x1xf32> to vector<128x256xf32>
    %356 = arith.mulf %355, %4 : vector<128x256xf32>
    %357 = vector.broadcast %354 : vector<128x1xf32> to vector<128x256xf32>
    %358 = arith.mulf %357, %7 : vector<128x256xf32>
    %359 = arith.addf %356, %358 : vector<128x256xf32>
    %360 = arith.addf %359, %10 : vector<128x256xf32>
    %cst_133 = arith.constant 0.000000e+00 : f32
    %361 = vector.broadcast %cst_133 : f32 to vector<128x256xf32>
    %362 = arith.maximumf %360, %361 : vector<128x256xf32>
    %363 = arith.truncf %362 : vector<128x256xf32> to vector<128x256xbf16>
    %c0_134 = arith.constant 0 : index
    %c0_135 = arith.constant 0 : index
    %364 = vector.load %arg4[%c0_134, %c0_135] : memref<896x256xbf16, #tpu.memory_space<vmem>>, vector<256x256xbf16>
    %cst_136 = arith.constant dense<0.000000e+00> : vector<128x256xf32>
    %365 = tpu.matmul %363, %364, %cst_136 {dimension_numbers = #tpu.dot_dimension_numbers<[1], [0], [0], [1], [0, 0, 1, 1], [], []>} : vector<128x256xbf16>, vector<256x256xbf16>, vector<128x256xf32> -> vector<128x256xf32>
    %366 = arith.addf %365, %13 : vector<128x256xf32>
    %cst_137 = arith.constant 0.000000e+00 : f32
    %367 = vector.broadcast %cst_137 : f32 to vector<128x256xf32>
    %368 = arith.maximumf %366, %367 : vector<128x256xf32>
    %369 = arith.truncf %368 : vector<128x256xf32> to vector<128x256xbf16>
    %c256_138 = arith.constant 256 : index
    %c0_139 = arith.constant 0 : index
    %370 = vector.load %arg4[%c256_138, %c0_139] : memref<896x256xbf16, #tpu.memory_space<vmem>>, vector<256x256xbf16>
    %cst_140 = arith.constant dense<0.000000e+00> : vector<128x256xf32>
    %371 = tpu.matmul %369, %370, %cst_140 {dimension_numbers = #tpu.dot_dimension_numbers<[1], [0], [0], [1], [0, 0, 1, 1], [], []>} : vector<128x256xbf16>, vector<256x256xbf16>, vector<128x256xf32> -> vector<128x256xf32>
    %372 = arith.addf %371, %16 : vector<128x256xf32>
    %cst_141 = arith.constant 0.000000e+00 : f32
    %373 = vector.broadcast %cst_141 : f32 to vector<128x256xf32>
    %374 = arith.maximumf %372, %373 : vector<128x256xf32>
    %375 = vector.extract_strided_slice %374 {offsets = [0, 0], sizes = [128, 128], strides = [1, 1]} : vector<128x256xf32> to vector<128x128xf32>
    %376 = vector.extract_strided_slice %374 {offsets = [0, 128], sizes = [128, 128], strides = [1, 1]} : vector<128x256xf32> to vector<128x128xf32>
    %377 = arith.truncf %375 : vector<128x128xf32> to vector<128x128xbf16>
    %c512_142 = arith.constant 512 : index
    %c0_143 = arith.constant 0 : index
    %378 = vector.load %arg4[%c512_142, %c0_143] : memref<896x256xbf16, #tpu.memory_space<vmem>>, vector<128x128xbf16>
    %cst_144 = arith.constant dense<0.000000e+00> : vector<128x128xf32>
    %379 = tpu.matmul %377, %378, %cst_144 {dimension_numbers = #tpu.dot_dimension_numbers<[1], [0], [0], [1], [0, 0, 1, 1], [], []>} : vector<128x128xbf16>, vector<128x128xbf16>, vector<128x128xf32> -> vector<128x128xf32>
    %380 = arith.addf %379, %19 : vector<128x128xf32>
    %cst_145 = arith.constant 0.000000e+00 : f32
    %381 = vector.broadcast %cst_145 : f32 to vector<128x128xf32>
    %382 = arith.maximumf %380, %381 : vector<128x128xf32>
    %383 = tpu.concatenate %382, %376 in 1 : vector<128x128xf32>, vector<128x128xf32> -> vector<128x256xf32>
    %384 = arith.truncf %383 : vector<128x256xf32> to vector<128x256xbf16>
    %c640_146 = arith.constant 640 : index
    %c0_147 = arith.constant 0 : index
    %385 = vector.load %arg4[%c640_146, %c0_147] : memref<896x256xbf16, #tpu.memory_space<vmem>>, vector<256x4xbf16>
    %cst_148 = arith.constant dense<0.000000e+00> : vector<128x4xf32>
    %386 = tpu.matmul %384, %385, %cst_148 {dimension_numbers = #tpu.dot_dimension_numbers<[1], [0], [0], [1], [0, 0, 1, 1], [], []>} : vector<128x256xbf16>, vector<256x4xbf16>, vector<128x4xf32> -> vector<128x4xf32>
    %387 = arith.addf %386, %22 : vector<128x4xf32>
    %388 = vector.extract_strided_slice %387 {offsets = [0, 0], sizes = [128, 2], strides = [1, 1]} : vector<128x4xf32> to vector<128x2xf32>
    %389 = vector.extract_strided_slice %387 {offsets = [0, 2], sizes = [128, 2], strides = [1, 1]} : vector<128x4xf32> to vector<128x2xf32>
    %390 = arith.index_cast %c7_i32 : i32 to index
    %c0_149 = arith.constant 0 : index
    %c0_150 = arith.constant 0 : index
    %391 = vector.load %arg3[%390, %c0_149, %c0_150] : memref<8x128x2xf32, #tpu.memory_space<vmem>>, vector<1x128x2xf32>
    %392 = vector.shape_cast %391 : vector<1x128x2xf32> to vector<128x2xf32>
    %393 = vector.broadcast %1 : vector<128x1xf32> to vector<128x2xf32>
    %394 = arith.mulf %393, %392 : vector<128x2xf32>
    %395 = vector.broadcast %0 : vector<128x1xf32> to vector<128x2xf32>
    %396 = arith.mulf %388, %395 : vector<128x2xf32>
    %397 = arith.addf %352, %396 : vector<128x2xf32>
    %398 = arith.mulf %389, %394 : vector<128x2xf32>
    %399 = arith.addf %397, %398 : vector<128x2xf32>
    %c8_i32 = arith.constant 8 : i32
    %c0_151 = arith.constant 0 : index
    %c0_152 = arith.constant 0 : index
    %400 = vector.load %arg6[%c0_151, %c0_152] : memref<128x2xf32, #tpu.memory_space<vmem>>, vector<128x2xf32>
    tpu.vector_store %arg6[%c0_151, %c0_152], %399 {strides = array<i32>} : memref<128x2xf32, #tpu.memory_space<vmem>>, vector<128x2xf32>,
    return
  }
  func.func @transform_0(%arg0: i32) -> (i32, i32) {
    %c0_i32 = arith.constant 0 : i32
    %c0_i32_0 = arith.constant 0 : i32
    return %arg0, %c0_i32 : i32, i32
  }
  func.func @transform_1(%arg0: i32) -> (i32, i32) {
    %c0_i32 = arith.constant 0 : i32
    %c0_i32_0 = arith.constant 0 : i32
    return %arg0, %c0_i32 : i32, i32
  }
  func.func @transform_2(%arg0: i32) -> (i32, i32, i32) {
    %c0_i32 = arith.constant 0 : i32
    %c0_i32_0 = arith.constant 0 : i32
    %c0_i32_1 = arith.constant 0 : i32
    return %c0_i32, %arg0, %c0_i32_0 : i32, i32, i32
  }
  func.func @transform_3(%arg0: i32) -> (i32, i32) {
    %c0_i32 = arith.constant 0 : i32
    %c0_i32_0 = arith.constant 0 : i32
    %c0_i32_1 = arith.constant 0 : i32
    return %c0_i32, %c0_i32_0 : i32, i32
  }
  func.func @transform_4(%arg0: i32) -> (i32, i32) {
    %c0_i32 = arith.constant 0 : i32
    %c0_i32_0 = arith.constant 0 : i32
    %c0_i32_1 = arith.constant 0 : i32
    return %c0_i32, %c0_i32_0 : i32, i32
  }
  func.func @transform_5(%arg0: i32) -> (i32, i32) {
    %c0_i32 = arith.constant 0 : i32
    %c0_i32_0 = arith.constant 0 : i32
    return %arg0, %c0_i32 : i32, i32
  }
}

</mosaic_0001>

<llo_original>
// kernel: tpu_custom_call.1
$region0: #{tpu_custom_call.1}
  #allocation0 [shape = 'u32[]', space=smem, size = 0x4, offset = 0x4, fixed_abs, tag = 'smem constant byte address 0x4 - core index']
  #allocation1 [shape = 'u32[72,128]{1,0:T(1,128)}', space=vmem, size = 0x9000, scoped, tag = 'internal scratch']
  %s0 = inlined_call_operand.vmem [shape: f32[128,2], index: 0, kind: input, shape index: {}]
  %s1 = inlined_call_operand.vmem [shape: f32[128,1], index: 1, kind: input, shape index: {}]
  %s2 = inlined_call_operand.vmem [shape: f32[8,128,2], index: 2, kind: input, shape index: {}]
  %s3 = inlined_call_operand.vmem [shape: bf16[896,256], index: 3, kind: input, shape index: {}]
  %s4 = inlined_call_operand.vmem [shape: f32[8,256], index: 4, kind: input, shape index: {}]
  %s5 = inlined_call_operand.vmem [shape: f32[128,2], index: 5, kind: output, shape index: {}]
  %s6 = sld [smem:[#allocation0]]
  $region30: #{tpu_custom_call.1} parent=0
    _
  %s8 = ssub.s32 1, %s6
  %s9 = scalar_select 0, %s8, %s6
  // Predicated region
  $region2: #{tpu_custom_call.1} parent=0 // pred_check
    _
  $region3: #{tpu_custom_call.1} parent=0 // pred_check_branch
    %11 = sbr.rel (0) target = $region5
  $region4: #{tpu_custom_call.1} parent=0 // pred_region
    _
  $region5: #{tpu_custom_call.1} parent=0 // pred_fallthru
    _
  // Predicated region
  $region6: #{tpu_custom_call.1} parent=0 // pred_check
    _
  $region7: #{tpu_custom_call.1} parent=0 // pred_check_branch
    %13 = sbr.rel (0) target = $region9
  $region8: #{tpu_custom_call.1} parent=0 // pred_region
    _
  $region9: #{tpu_custom_call.1} parent=0 // pred_fallthru
    _
  // Predicated region
  $region10: #{tpu_custom_call.1} parent=0 // pred_check
    _
  $region11: #{tpu_custom_call.1} parent=0 // pred_check_branch
    %15 = sbr.rel (0) target = $region13
  $region12: #{tpu_custom_call.1} parent=0 // pred_region
    _
  $region13: #{tpu_custom_call.1} parent=0 // pred_fallthru
    _
  // Predicated region
  $region14: #{tpu_custom_call.1} parent=0 // pred_check
    _
  $region15: #{tpu_custom_call.1} parent=0 // pred_check_branch
    %17 = sbr.rel (0) target = $region17
  $region16: #{tpu_custom_call.1} parent=0 // pred_region
    _
  $region17: #{tpu_custom_call.1} parent=0 // pred_fallthru
    _
  // Predicated region
  $region18: #{tpu_custom_call.1} parent=0 // pred_check
    _
  $region19: #{tpu_custom_call.1} parent=0 // pred_check_branch
    %19 = sbr.rel (0) target = $region21
  $region20: #{tpu_custom_call.1} parent=0 // pred_region
    _
  $region21: #{tpu_custom_call.1} parent=0 // pred_fallthru
    _
  %v20 = vld [vmem:[%s1] sm:$0xff]
  %v21 = vld [vmem:[%s1 + $0x8] sm:$0xff]
  %v22 = vld [vmem:[%s1 + $0x10] sm:$0xff]
  %v23 = vld [vmem:[%s1 + $0x18] sm:$0xff]
  %v24 = vld [vmem:[%s1 + $0x20] sm:$0xff]
  %v25 = vld [vmem:[%s1 + $0x28] sm:$0xff]
  %v26 = vld [vmem:[%s1 + $0x30] sm:$0xff]
  %v27 = vld [vmem:[%s1 + $0x38] sm:$0xff]
  %v28 = vld [vmem:[%s1 + $0x40] sm:$0xff]
  %v29 = vld [vmem:[%s1 + $0x48] sm:$0xff]
  %v30 = vld [vmem:[%s1 + $0x50] sm:$0xff]
  %v31 = vld [vmem:[%s1 + $0x58] sm:$0xff]
  %v32 = vld [vmem:[%s1 + $0x60] sm:$0xff]
  %v33 = vld [vmem:[%s1 + $0x68] sm:$0xff]
  %v34 = vld [vmem:[%s1 + $0x70] sm:$0xff]
  %v35 = vld [vmem:[%s1 + $0x78] sm:$0xff]
  %v36 = vrsqrt.pop %v20
  %v37 = vmul.f32 %v36, %v20
  %v38 = vmul.f32 %v37, %v36
  %v39 = vmul.f32 0.5, %v38
  %v40 = vsub.f32 1.5, %v39
  %v41 = vmul.f32 %v36, %v40
  %v42 = vmul.f32 %v20, %v41
  %vm43 = vcmp.eq.f32.partialorder %v20, inf
  %v44 = vsel %vm43, %v20, %v42
  %vm45 = vcmp.eq.f32.partialorder %v20, 0.0
  %v46 = vand.u32 %v20, 2147483648
  %v47 = vsel %vm45, %v46, %v44
  %v48 = vrsqrt.pop %v21
  %v49 = vmul.f32 %v48, %v21
  %v50 = vmul.f32 %v49, %v48
  %v51 = vmul.f32 0.5, %v50
  %v52 = vsub.f32 1.5, %v51
  %v53 = vmul.f32 %v48, %v52
  %v54 = vmul.f32 %v21, %v53
  %vm55 = vcmp.eq.f32.partialorder %v21, inf
  %v56 = vsel %vm55, %v21, %v54
  %vm57 = vcmp.eq.f32.partialorder %v21, 0.0
  %v58 = vand.u32 %v21, 2147483648
  %v59 = vsel %vm57, %v58, %v56
  %v60 = vrsqrt.pop %v22
  %v61 = vmul.f32 %v60, %v22
  %v62 = vmul.f32 %v61, %v60
  %v63 = vmul.f32 0.5, %v62
  %v64 = vsub.f32 1.5, %v63
  %v65 = vmul.f32 %v60, %v64
  %v66 = vmul.f32 %v22, %v65
  %vm67 = vcmp.eq.f32.partialorder %v22, inf
  %v68 = vsel %vm67, %v22, %v66
  %vm69 = vcmp.eq.f32.partialorder %v22, 0.0
  %v70 = vand.u32 %v22, 2147483648
  %v71 = vsel %vm69, %v70, %v68
  %v72 = vrsqrt.pop %v23
  %v73 = vmul.f32 %v72, %v23
  %v74 = vmul.f32 %v73, %v72
  %v75 = vmul.f32 0.5, %v74
  %v76 = vsub.f32 1.5, %v75
  %v77 = vmul.f32 %v72, %v76
  %v78 = vmul.f32 %v23, %v77
  %vm79 = vcmp.eq.f32.partialorder %v23, inf
  %v80 = vsel %vm79, %v23, %v78
  %vm81 = vcmp.eq.f32.partialorder %v23, 0.0
  %v82 = vand.u32 %v23, 2147483648
  %v83 = vsel %vm81, %v82, %v80
  %v84 = vrsqrt.pop %v24
  %v85 = vmul.f32 %v84, %v24
  %v86 = vmul.f32 %v85, %v84
  %v87 = vmul.f32 0.5, %v86
  %v88 = vsub.f32 1.5, %v87
  %v89 = vmul.f32 %v84, %v88
  %v90 = vmul.f32 %v24, %v89
  %vm91 = vcmp.eq.f32.partialorder %v24, inf
  %v92 = vsel %vm91, %v24, %v90
  %vm93 = vcmp.eq.f32.partialorder %v24, 0.0
  %v94 = vand.u32 %v24, 2147483648
  %v95 = vsel %vm93, %v94, %v92
  %v96 = vrsqrt.pop %v25
  %v97 = vmul.f32 %v96, %v25
  %v98 = vmul.f32 %v97, %v96
  %v99 = vmul.f32 0.5, %v98
  %v100 = vsub.f32 1.5, %v99
  %v101 = vmul.f32 %v96, %v100
  %v102 = vmul.f32 %v25, %v101
  %vm103 = vcmp.eq.f32.partialorder %v25, inf
  %v104 = vsel %vm103, %v25, %v102
  %vm105 = vcmp.eq.f32.partialorder %v25, 0.0
  %v106 = vand.u32 %v25, 2147483648
  %v107 = vsel %vm105, %v106, %v104
  %v108 = vrsqrt.pop %v26
  %v109 = vmul.f32 %v108, %v26
  %v110 = vmul.f32 %v109, %v108
  %v111 = vmul.f32 0.5, %v110
  %v112 = vsub.f32 1.5, %v111
  %v113 = vmul.f32 %v108, %v112
  %v114 = vmul.f32 %v26, %v113
  %vm115 = vcmp.eq.f32.partialorder %v26, inf
  %v116 = vsel %vm115, %v26, %v114
  %vm117 = vcmp.eq.f32.partialorder %v26, 0.0
  %v118 = vand.u32 %v26, 2147483648
  %v119 = vsel %vm117, %v118, %v116
  %v120 = vrsqrt.pop %v27
  %v121 = vmul.f32 %v120, %v27
  %v122 = vmul.f32 %v121, %v120
  %v123 = vmul.f32 0.5, %v122
  %v124 = vsub.f32 1.5, %v123
  %v125 = vmul.f32 %v120, %v124
  %v126 = vmul.f32 %v27, %v125
  %vm127 = vcmp.eq.f32.partialorder %v27, inf
  %v128 = vsel %vm127, %v27, %v126
  %vm129 = vcmp.eq.f32.partialorder %v27, 0.0
  %v130 = vand.u32 %v27, 2147483648
  %v131 = vsel %vm129, %v130, %v128
  %v132 = vrsqrt.pop %v28
  %v133 = vmul.f32 %v132, %v28
  %v134 = vmul.f32 %v133, %v132
  %v135 = vmul.f32 0.5, %v134
  %v136 = vsub.f32 1.5, %v135
  %v137 = vmul.f32 %v132, %v136
  %v138 = vmul.f32 %v28, %v137
  %vm139 = vcmp.eq.f32.partialorder %v28, inf
  %v140 = vsel %vm139, %v28, %v138
  %vm141 = vcmp.eq.f32.partialorder %v28, 0.0
  %v142 = vand.u32 %v28, 2147483648
  %v143 = vsel %vm141, %v142, %v140
  %v144 = vrsqrt.pop %v29
  %v145 = vmul.f32 %v144, %v29
  %v146 = vmul.f32 %v145, %v144
  %v147 = vmul.f32 0.5, %v146
  %v148 = vsub.f32 1.5, %v147
  %v149 = vmul.f32 %v144, %v148
  %v150 = vmul.f32 %v29, %v149
  %vm151 = vcmp.eq.f32.partialorder %v29, inf
  %v152 = vsel %vm151, %v29, %v150
  %vm153 = vcmp.eq.f32.partialorder %v29, 0.0
  %v154 = vand.u32 %v29, 2147483648
  %v155 = vsel %vm153, %v154, %v152
  %v156 = vrsqrt.pop %v30
  %v157 = vmul.f32 %v156, %v30
  %v158 = vmul.f32 %v157, %v156
  %v159 = vmul.f32 0.5, %v158
  %v160 = vsub.f32 1.5, %v159
  %v161 = vmul.f32 %v156, %v160
  %v162 = vmul.f32 %v30, %v161
  %vm163 = vcmp.eq.f32.partialorder %v30, inf
  %v164 = vsel %vm163, %v30, %v162
  %vm165 = vcmp.eq.f32.partialorder %v30, 0.0
  %v166 = vand.u32 %v30, 2147483648
  %v167 = vsel %vm165, %v166, %v164
  %v168 = vrsqrt.pop %v31
  %v169 = vmul.f32 %v168, %v31
  %v170 = vmul.f32 %v169, %v168
  %v171 = vmul.f32 0.5, %v170
  %v172 = vsub.f32 1.5, %v171
  %v173 = vmul.f32 %v168, %v172
  %v174 = vmul.f32 %v31, %v173
  %vm175 = vcmp.eq.f32.partialorder %v31, inf
  %v176 = vsel %vm175, %v31, %v174
  %vm177 = vcmp.eq.f32.partialorder %v31, 0.0
  %v178 = vand.u32 %v31, 2147483648
  %v179 = vsel %vm177, %v178, %v176
  %v180 = vrsqrt.pop %v32
  %v181 = vmul.f32 %v180, %v32
  %v182 = vmul.f32 %v181, %v180
  %v183 = vmul.f32 0.5, %v182
  %v184 = vsub.f32 1.5, %v183
  %v185 = vmul.f32 %v180, %v184
  %v186 = vmul.f32 %v32, %v185
  %vm187 = vcmp.eq.f32.partialorder %v32, inf
  %v188 = vsel %vm187, %v32, %v186
  %vm189 = vcmp.eq.f32.partialorder %v32, 0.0
  %v190 = vand.u32 %v32, 2147483648
  %v191 = vsel %vm189, %v190, %v188
  %v192 = vrsqrt.pop %v33
  %v193 = vmul.f32 %v192, %v33
  %v194 = vmul.f32 %v193, %v192
  %v195 = vmul.f32 0.5, %v194
  %v196 = vsub.f32 1.5, %v195
  %v197 = vmul.f32 %v192, %v196
  %v198 = vmul.f32 %v33, %v197
  %vm199 = vcmp.eq.f32.partialorder %v33, inf
  %v200 = vsel %vm199, %v33, %v198
  %vm201 = vcmp.eq.f32.partialorder %v33, 0.0
  %v202 = vand.u32 %v33, 2147483648
  %v203 = vsel %vm201, %v202, %v200
  %v204 = vrsqrt.pop %v34
  %v205 = vmul.f32 %v204, %v34
  %v206 = vmul.f32 %v205, %v204
  %v207 = vmul.f32 0.5, %v206
  %v208 = vsub.f32 1.5, %v207
  %v209 = vmul.f32 %v204, %v208
  %v210 = vmul.f32 %v34, %v209
  %vm211 = vcmp.eq.f32.partialorder %v34, inf
  %v212 = vsel %vm211, %v34, %v210
  %vm213 = vcmp.eq.f32.partialorder %v34, 0.0
  %v214 = vand.u32 %v34, 2147483648
  %v215 = vsel %vm213, %v214, %v212
  %v216 = vrsqrt.pop %v35
  %v217 = vmul.f32 %v216, %v35
  %v218 = vmul.f32 %v217, %v216
  %v219 = vmul.f32 0.5, %v218
  %v220 = vsub.f32 1.5, %v219
  %v221 = vmul.f32 %v216, %v220
  %v222 = vmul.f32 %v35, %v221
  %vm223 = vcmp.eq.f32.partialorder %v35, inf
  %v224 = vsel %vm223, %v35, %v222
  %vm225 = vcmp.eq.f32.partialorder %v35, 0.0
  %v226 = vand.u32 %v35, 2147483648
  %v227 = vsel %vm225, %v226, %v224
  %v228 = vld [vmem:[%s4] ss:$8 sm:$0x3]
  %v230 = vperm.slane %v228, 0
  %v231 = vperm.slane %v228, 1
  %s234 = scalar_lea.vmem %s4, 1
  %v235 = vld [vmem:[%s234] ss:$8 sm:$0x3]
  %v237 = vperm.slane %v235, 0
  %v238 = vperm.slane %v235, 1
  %s241 = scalar_lea.vmem %s4, 2
  %v242 = vld [vmem:[%s241] ss:$8 sm:$0x3]
  %v244 = vperm.slane %v242, 0
  %v245 = vperm.slane %v242, 1
  %s248 = scalar_lea.vmem %s4, 3
  %v249 = vld [vmem:[%s248] ss:$8 sm:$0x3]
  %v251 = vperm.slane %v249, 0
  %v252 = vperm.slane %v249, 1
  %s255 = scalar_lea.vmem %s4, 4
  %v256 = vld [vmem:[%s255] ss:$8 sm:$0x3]
  %v258 = vperm.slane %v256, 0
  %v259 = vperm.slane %v256, 1
  %v262 = vld [vmem:[%s4 + $0x5] ss:$0 sm:$0xff]
  %v263 = vld [vmem:[%s4 + $0x6] ss:$0 sm:$0xff]
  %v264 = vld [vmem:[%s0] sm:$0xff]
  %v265 = vld [vmem:[%s0 + $0x8] sm:$0xff]
  %v266 = vld [vmem:[%s0 + $0x10] sm:$0xff]
  %v267 = vld [vmem:[%s0 + $0x18] sm:$0xff]
  %v268 = vld [vmem:[%s0 + $0x20] sm:$0xff]
  %v269 = vld [vmem:[%s0 + $0x28] sm:$0xff]
  %v270 = vld [vmem:[%s0 + $0x30] sm:$0xff]
  %v271 = vld [vmem:[%s0 + $0x38] sm:$0xff]
  %v272 = vld [vmem:[%s0 + $0x40] sm:$0xff]
  %v273 = vld [vmem:[%s0 + $0x48] sm:$0xff]
  %v274 = vld [vmem:[%s0 + $0x50] sm:$0xff]
  %v275 = vld [vmem:[%s0 + $0x58] sm:$0xff]
  %v276 = vld [vmem:[%s0 + $0x60] sm:$0xff]
  %v277 = vld [vmem:[%s0 + $0x68] sm:$0xff]
  %v278 = vld [vmem:[%s0 + $0x70] sm:$0xff]
  %v279 = vld [vmem:[%s0 + $0x78] sm:$0xff]
  %281 = vset.pattern.permute.xlu0 0
  %282 = vperm.xlu0 %281, %v264
  %v283 = vpop.permute.xlu0 %282
  %286 = vset.pattern.permute.xlu0 0
  %287 = vperm.xlu0 %286, %v265
  %v288 = vpop.permute.xlu0 %287
  %291 = vset.pattern.permute.xlu0 0
  %292 = vperm.xlu0 %291, %v266
  %v293 = vpop.permute.xlu0 %292
  %296 = vset.pattern.permute.xlu0 0
  %297 = vperm.xlu0 %296, %v267
  %v298 = vpop.permute.xlu0 %297
  %301 = vset.pattern.permute.xlu0 0
  %302 = vperm.xlu0 %301, %v268
  %v303 = vpop.permute.xlu0 %302
  %306 = vset.pattern.permute.xlu0 0
  %307 = vperm.xlu0 %306, %v269
  %v308 = vpop.permute.xlu0 %307
  %311 = vset.pattern.permute.xlu0 0
  %312 = vperm.xlu0 %311, %v270
  %v313 = vpop.permute.xlu0 %312
  %316 = vset.pattern.permute.xlu0 0
  %317 = vperm.xlu0 %316, %v271
  %v318 = vpop.permute.xlu0 %317
  %321 = vset.pattern.permute.xlu0 0
  %322 = vperm.xlu0 %321, %v272
  %v323 = vpop.permute.xlu0 %322
  %326 = vset.pattern.permute.xlu0 0
  %327 = vperm.xlu0 %326, %v273
  %v328 = vpop.permute.xlu0 %327
  %331 = vset.pattern.permute.xlu0 0
  %332 = vperm.xlu0 %331, %v274
  %v333 = vpop.permute.xlu0 %332
  %336 = vset.pattern.permute.xlu0 0
  %337 = vperm.xlu0 %336, %v275
  %v338 = vpop.permute.xlu0 %337
  %341 = vset.pattern.permute.xlu0 0
  %342 = vperm.xlu0 %341, %v276
  %v343 = vpop.permute.xlu0 %342
  %346 = vset.pattern.permute.xlu0 0
  %347 = vperm.xlu0 %346, %v277
  %v348 = vpop.permute.xlu0 %347
  %351 = vset.pattern.permute.xlu0 0
  %352 = vperm.xlu0 %351, %v278
  %v353 = vpop.permute.xlu0 %352
  %356 = vset.pattern.permute.xlu0 0
  %357 = vperm.xlu0 %356, %v279
  %v358 = vpop.permute.xlu0 %357
  %v360 = vmul.f32 %v283, %v230
  %v361 = vmul.f32 %v283, %v231
  %v362 = vmul.f32 %v288, %v230
  %v363 = vmul.f32 %v288, %v231
  %v364 = vmul.f32 %v293, %v230
  %v365 = vmul.f32 %v293, %v231
  %v366 = vmul.f32 %v298, %v230
  %v367 = vmul.f32 %v298, %v231
  %v368 = vmul.f32 %v303, %v230
  %v369 = vmul.f32 %v303, %v231
  %v370 = vmul.f32 %v308, %v230
  %v371 = vmul.f32 %v308, %v231
  %v372 = vmul.f32 %v313, %v230
  %v373 = vmul.f32 %v313, %v231
  %v374 = vmul.f32 %v318, %v230
  %v375 = vmul.f32 %v318, %v231
  %v376 = vmul.f32 %v323, %v230
  %v377 = vmul.f32 %v323, %v231
  %v378 = vmul.f32 %v328, %v230
  %v379 = vmul.f32 %v328, %v231
  %v380 = vmul.f32 %v333, %v230
  %v381 = vmul.f32 %v333, %v231
  %v382 = vmul.f32 %v338, %v230
  %v383 = vmul.f32 %v338, %v231
  %v384 = vmul.f32 %v343, %v230
  %v385 = vmul.f32 %v343, %v231
  %v386 = vmul.f32 %v348, %v230
  %v387 = vmul.f32 %v348, %v231
  %v388 = vmul.f32 %v353, %v230
  %v389 = vmul.f32 %v353, %v231
  %v390 = vmul.f32 %v358, %v230
  %v391 = vmul.f32 %v358, %v231
  %392 = vset.pattern.permute.xlu0 1
  %393 = vperm.xlu0 %392, %v264
  %v394 = vpop.permute.xlu0 %393
  %396 = vset.pattern.permute.xlu0 1
  %397 = vperm.xlu0 %396, %v265
  %v398 = vpop.permute.xlu0 %397
  %400 = vset.pattern.permute.xlu0 1
  %401 = vperm.xlu0 %400, %v266
  %v402 = vpop.permute.xlu0 %401
  %404 = vset.pattern.permute.xlu0 1
  %405 = vperm.xlu0 %404, %v267
  %v406 = vpop.permute.xlu0 %405
  %408 = vset.pattern.permute.xlu0 1
  %409 = vperm.xlu0 %408, %v268
  %v410 = vpop.permute.xlu0 %409
  %412 = vset.pattern.permute.xlu0 1
  %413 = vperm.xlu0 %412, %v269
  %v414 = vpop.permute.xlu0 %413
  %416 = vset.pattern.permute.xlu0 1
  %417 = vperm.xlu0 %416, %v270
  %v418 = vpop.permute.xlu0 %417
  %420 = vset.pattern.permute.xlu0 1
  %421 = vperm.xlu0 %420, %v271
  %v422 = vpop.permute.xlu0 %421
  %424 = vset.pattern.permute.xlu0 1
  %425 = vperm.xlu0 %424, %v272
  %v426 = vpop.permute.xlu0 %425
  %428 = vset.pattern.permute.xlu0 1
  %429 = vperm.xlu0 %428, %v273
  %v430 = vpop.permute.xlu0 %429
  %432 = vset.pattern.permute.xlu0 1
  %433 = vperm.xlu0 %432, %v274
  %v434 = vpop.permute.xlu0 %433
  %436 = vset.pattern.permute.xlu0 1
  %437 = vperm.xlu0 %436, %v275
  %v438 = vpop.permute.xlu0 %437
  %440 = vset.pattern.permute.xlu0 1
  %441 = vperm.xlu0 %440, %v276
  %v442 = vpop.permute.xlu0 %441
  %444 = vset.pattern.permute.xlu0 1
  %445 = vperm.xlu0 %444, %v277
  %v446 = vpop.permute.xlu0 %445
  %448 = vset.pattern.permute.xlu0 1
  %449 = vperm.xlu0 %448, %v278
  %v450 = vpop.permute.xlu0 %449
  %452 = vset.pattern.permute.xlu0 1
  %453 = vperm.xlu0 %452, %v279
  %v454 = vpop.permute.xlu0 %453
  %v456 = vmul.f32 %v394, %v237
  %v457 = vmul.f32 %v394, %v238
  %v458 = vmul.f32 %v398, %v237
  %v459 = vmul.f32 %v398, %v238
  %v460 = vmul.f32 %v402, %v237
  %v461 = vmul.f32 %v402, %v238
  %v462 = vmul.f32 %v406, %v237
  %v463 = vmul.f32 %v406, %v238
  %v464 = vmul.f32 %v410, %v237
  %v465 = vmul.f32 %v410, %v238
  %v466 = vmul.f32 %v414, %v237
  %v467 = vmul.f32 %v414, %v238
  %v468 = vmul.f32 %v418, %v237
  %v469 = vmul.f32 %v418, %v238
  %v470 = vmul.f32 %v422, %v237
  %v471 = vmul.f32 %v422, %v238
  %v472 = vmul.f32 %v426, %v237
  %v473 = vmul.f32 %v426, %v238
  %v474 = vmul.f32 %v430, %v237
  %v475 = vmul.f32 %v430, %v238
  %v476 = vmul.f32 %v434, %v237
  %v477 = vmul.f32 %v434, %v238
  %v478 = vmul.f32 %v438, %v237
  %v479 = vmul.f32 %v438, %v238
  %v480 = vmul.f32 %v442, %v237
  %v481 = vmul.f32 %v442, %v238
  %v482 = vmul.f32 %v446, %v237
  %v483 = vmul.f32 %v446, %v238
  %v484 = vmul.f32 %v450, %v237
  %v485 = vmul.f32 %v450, %v238
  %v486 = vmul.f32 %v454, %v237
  %v487 = vmul.f32 %v454, %v238
  %v488 = vadd.f32 %v360, %v456
  %v489 = vadd.f32 %v361, %v457
  %v490 = vadd.f32 %v362, %v458
  %v491 = vadd.f32 %v363, %v459
  %v492 = vadd.f32 %v364, %v460
  %v493 = vadd.f32 %v365, %v461
  %v494 = vadd.f32 %v366, %v462
  %v495 = vadd.f32 %v367, %v463
  %v496 = vadd.f32 %v368, %v464
  %v497 = vadd.f32 %v369, %v465
  %v498 = vadd.f32 %v370, %v466
  %v499 = vadd.f32 %v371, %v467
  %v500 = vadd.f32 %v372, %v468
  %v501 = vadd.f32 %v373, %v469
  %v502 = vadd.f32 %v374, %v470
  %v503 = vadd.f32 %v375, %v471
  %v504 = vadd.f32 %v376, %v472
  %v505 = vadd.f32 %v377, %v473
  %v506 = vadd.f32 %v378, %v474
  %v507 = vadd.f32 %v379, %v475
  %v508 = vadd.f32 %v380, %v476
  %v509 = vadd.f32 %v381, %v477
  %v510 = vadd.f32 %v382, %v478
  %v511 = vadd.f32 %v383, %v479
  %v512 = vadd.f32 %v384, %v480
  %v513 = vadd.f32 %v385, %v481
  %v514 = vadd.f32 %v386, %v482
  %v515 = vadd.f32 %v387, %v483
  %v516 = vadd.f32 %v388, %v484
  %v517 = vadd.f32 %v389, %v485
  %v518 = vadd.f32 %v390, %v486
  %v519 = vadd.f32 %v391, %v487
  %v520 = vadd.f32 %v488, %v244
  %v521 = vadd.f32 %v489, %v245
  %v522 = vadd.f32 %v490, %v244
  %v523 = vadd.f32 %v491, %v245
  %v524 = vadd.f32 %v492, %v244
  %v525 = vadd.f32 %v493, %v245
  %v526 = vadd.f32 %v494, %v244
  %v527 = vadd.f32 %v495, %v245
  %v528 = vadd.f32 %v496, %v244
  %v529 = vadd.f32 %v497, %v245
  %v530 = vadd.f32 %v498, %v244
  %v531 = vadd.f32 %v499, %v245
  %v532 = vadd.f32 %v500, %v244
  %v533 = vadd.f32 %v501, %v245
  %v534 = vadd.f32 %v502, %v244
  %v535 = vadd.f32 %v503, %v245
  %v536 = vadd.f32 %v504, %v244
  %v537 = vadd.f32 %v505, %v245
  %v538 = vadd.f32 %v506, %v244
  %v539 = vadd.f32 %v507, %v245
  %v540 = vadd.f32 %v508, %v244
  %v541 = vadd.f32 %v509, %v245
  %v542 = vadd.f32 %v510, %v244
  %v543 = vadd.f32 %v511, %v245
  %v544 = vadd.f32 %v512, %v244
  %v545 = vadd.f32 %v513, %v245
  %v546 = vadd.f32 %v514, %v244
  %v547 = vadd.f32 %v515, %v245
  %v548 = vadd.f32 %v516, %v244
  %v549 = vadd.f32 %v517, %v245
  %v550 = vadd.f32 %v518, %v244
  %v551 = vadd.f32 %v519, %v245
  %v552 = vmax.f32 %v520, 0.0
  %v553 = vmax.f32 %v521, 0.0
  %v554 = vmax.f32 %v522, 0.0
  %v555 = vmax.f32 %v523, 0.0
  %v556 = vmax.f32 %v524, 0.0
  %v557 = vmax.f32 %v525, 0.0
  %v558 = vmax.f32 %v526, 0.0
  %v559 = vmax.f32 %v527, 0.0
  %v560 = vmax.f32 %v528, 0.0
  %v561 = vmax.f32 %v529, 0.0
  %v562 = vmax.f32 %v530, 0.0
  %v563 = vmax.f32 %v531, 0.0
  %v564 = vmax.f32 %v532, 0.0
  %v565 = vmax.f32 %v533, 0.0
  %v566 = vmax.f32 %v534, 0.0
  %v567 = vmax.f32 %v535, 0.0
  %v568 = vmax.f32 %v536, 0.0
  %v569 = vmax.f32 %v537, 0.0
  %v570 = vmax.f32 %v538, 0.0
  %v571 = vmax.f32 %v539, 0.0
  %v572 = vmax.f32 %v540, 0.0
  %v573 = vmax.f32 %v541, 0.0
  %v574 = vmax.f32 %v542, 0.0
  %v575 = vmax.f32 %v543, 0.0
  %v576 = vmax.f32 %v544, 0.0
  %v577 = vmax.f32 %v545, 0.0
  %v578 = vmax.f32 %v546, 0.0
  %v579 = vmax.f32 %v547, 0.0
  %v580 = vmax.f32 %v548, 0.0
  %v581 = vmax.f32 %v549, 0.0
  %v582 = vmax.f32 %v550, 0.0
  %v583 = vmax.f32 %v551, 0.0
  %v584 = vpack.c.bf16 %v554, %v552
  %v585 = vpack.c.bf16 %v555, %v553
  %v586 = vpack.c.bf16 %v558, %v556
  %v587 = vpack.c.bf16 %v559, %v557
  %v588 = vpack.c.bf16 %v562, %v560
  %v589 = vpack.c.bf16 %v563, %v561
  %v590 = vpack.c.bf16 %v566, %v564
  %v591 = vpack.c.bf16 %v567, %v565
  %v592 = vpack.c.bf16 %v570, %v568
  %v593 = vpack.c.bf16 %v571, %v569
  %v594 = vpack.c.bf16 %v574, %v572
  %v595 = vpack.c.bf16 %v575, %v573
  %v596 = vpack.c.bf16 %v578, %v576
  %v597 = vpack.c.bf16 %v579, %v577
  %v598 = vpack.c.bf16 %v582, %v580
  %v599 = vpack.c.bf16 %v583, %v581
  %v600 = vld [vmem:[%s3] sm:$0xff]
  %v601 = vld [vmem:[%s3 + $0x8] sm:$0xff]
  %v602 = vld [vmem:[%s3 + $0x10] sm:$0xff]
  %v603 = vld [vmem:[%s3 + $0x18] sm:$0xff]
  %v604 = vld [vmem:[%s3 + $0x20] sm:$0xff]
  %v605 = vld [vmem:[%s3 + $0x28] sm:$0xff]
  %v606 = vld [vmem:[%s3 + $0x30] sm:$0xff]
  %v607 = vld [vmem:[%s3 + $0x38] sm:$0xff]
  %v608 = vld [vmem:[%s3 + $0x40] sm:$0xff]
  %v609 = vld [vmem:[%s3 + $0x48] sm:$0xff]
  %v610 = vld [vmem:[%s3 + $0x50] sm:$0xff]
  %v611 = vld [vmem:[%s3 + $0x58] sm:$0xff]
  %v612 = vld [vmem:[%s3 + $0x60] sm:$0xff]
  %v613 = vld [vmem:[%s3 + $0x68] sm:$0xff]
  %v614 = vld [vmem:[%s3 + $0x70] sm:$0xff]
  %v615 = vld [vmem:[%s3 + $0x78] sm:$0xff]
  %v616 = vld [vmem:[%s3 + $0x80] sm:$0xff]
  %v617 = vld [vmem:[%s3 + $0x88] sm:$0xff]
  %v618 = vld [vmem:[%s3 + $0x90] sm:$0xff]
  %v619 = vld [vmem:[%s3 + $0x98] sm:$0xff]
  %v620 = vld [vmem:[%s3 + $0xa0] sm:$0xff]
  %v621 = vld [vmem:[%s3 + $0xa8] sm:$0xff]
  %v622 = vld [vmem:[%s3 + $0xb0] sm:$0xff]
  %v623 = vld [vmem:[%s3 + $0xb8] sm:$0xff]
  %v624 = vld [vmem:[%s3 + $0xc0] sm:$0xff]
  %v625 = vld [vmem:[%s3 + $0xc8] sm:$0xff]
  %v626 = vld [vmem:[%s3 + $0xd0] sm:$0xff]
  %v627 = vld [vmem:[%s3 + $0xd8] sm:$0xff]
  %v628 = vld [vmem:[%s3 + $0xe0] sm:$0xff]
  %v629 = vld [vmem:[%s3 + $0xe8] sm:$0xff]
  %v630 = vld [vmem:[%s3 + $0xf0] sm:$0xff]
  %v631 = vld [vmem:[%s3 + $0xf8] sm:$0xff]
  %v664 = vunpack.c.l.b16 %v600
  %v665 = vunpack.c.h.b16 %v600
  %v666 = vunpack.c.l.b16 %v601
  %v667 = vunpack.c.h.b16 %v601
  %v668 = vunpack.c.l.b16 %v602
  %v669 = vunpack.c.h.b16 %v602
  %v670 = vunpack.c.l.b16 %v603
  %v671 = vunpack.c.h.b16 %v603
  %v672 = vunpack.c.l.b16 %v604
  %v673 = vunpack.c.h.b16 %v604
  %v674 = vunpack.c.l.b16 %v605
  %v675 = vunpack.c.h.b16 %v605
  %v676 = vunpack.c.l.b16 %v606
  %v677 = vunpack.c.h.b16 %v606
  %v678 = vunpack.c.l.b16 %v607
  %v679 = vunpack.c.h.b16 %v607
  %v680 = vunpack.c.l.b16 %v608
  %v681 = vunpack.c.h.b16 %v608
  %v682 = vunpack.c.l.b16 %v609
  %v683 = vunpack.c.h.b16 %v609
  %v684 = vunpack.c.l.b16 %v610
  %v685 = vunpack.c.h.b16 %v610
  %v686 = vunpack.c.l.b16 %v611
  %v687 = vunpack.c.h.b16 %v611
  %v688 = vunpack.c.l.b16 %v612
  %v689 = vunpack.c.h.b16 %v612
  %v690 = vunpack.c.l.b16 %v613
  %v691 = vunpack.c.h.b16 %v613
  %v692 = vunpack.c.l.b16 %v614
  %v693 = vunpack.c.h.b16 %v614
  %v694 = vunpack.c.l.b16 %v615
  %v695 = vunpack.c.h.b16 %v615
  %v696 = vunpack.c.l.b16 %v616
  %v697 = vunpack.c.h.b16 %v616
  %v698 = vunpack.c.l.b16 %v617
  %v699 = vunpack.c.h.b16 %v617
  %v700 = vunpack.c.l.b16 %v618
  %v701 = vunpack.c.h.b16 %v618
  %v702 = vunpack.c.l.b16 %v619
  %v703 = vunpack.c.h.b16 %v619
  %v704 = vunpack.c.l.b16 %v620
  %v705 = vunpack.c.h.b16 %v620
  %v706 = vunpack.c.l.b16 %v621
  %v707 = vunpack.c.h.b16 %v621
  %v708 = vunpack.c.l.b16 %v622
  %v709 = vunpack.c.h.b16 %v622
  %v710 = vunpack.c.l.b16 %v623
  %v711 = vunpack.c.h.b16 %v623
  %v712 = vunpack.c.l.b16 %v624
  %v713 = vunpack.c.h.b16 %v624
  %v714 = vunpack.c.l.b16 %v625
  %v715 = vunpack.c.h.b16 %v625
  %v716 = vunpack.c.l.b16 %v626
  %v717 = vunpack.c.h.b16 %v626
  %v718 = vunpack.c.l.b16 %v627
  %v719 = vunpack.c.h.b16 %v627
  %v720 = vunpack.c.l.b16 %v628
  %v721 = vunpack.c.h.b16 %v628
  %v722 = vunpack.c.l.b16 %v629
  %v723 = vunpack.c.h.b16 %v629
  %v724 = vunpack.c.l.b16 %v630
  %v725 = vunpack.c.h.b16 %v630
  %v726 = vunpack.c.l.b16 %v631
  %v727 = vunpack.c.h.b16 %v631
  %v728 = vpack.c.b16 %v666, %v664
  %v729 = vpack.c.b16 %v667, %v665
  %v730 = vpack.c.b16 %v670, %v668
  %v731 = vpack.c.b16 %v671, %v669
  %v732 = vpack.c.b16 %v674, %v672
  %v733 = vpack.c.b16 %v675, %v673
  %v734 = vpack.c.b16 %v678, %v676
  %v735 = vpack.c.b16 %v679, %v677
  %v736 = vpack.c.b16 %v682, %v680
  %v737 = vpack.c.b16 %v683, %v681
  %v738 = vpack.c.b16 %v686, %v684
  %v739 = vpack.c.b16 %v687, %v685
  %v740 = vpack.c.b16 %v690, %v688
  %v741 = vpack.c.b16 %v691, %v689
  %v742 = vpack.c.b16 %v694, %v692
  %v743 = vpack.c.b16 %v695, %v693
  %v744 = vpack.c.b16 %v698, %v696
  %v745 = vpack.c.b16 %v699, %v697
  %v746 = vpack.c.b16 %v702, %v700
  %v747 = vpack.c.b16 %v703, %v701
  %v748 = vpack.c.b16 %v706, %v704
  %v749 = vpack.c.b16 %v707, %v705
  %v750 = vpack.c.b16 %v710, %v708
  %v751 = vpack.c.b16 %v711, %v709
  %v752 = vpack.c.b16 %v714, %v712
  %v753 = vpack.c.b16 %v715, %v713
  %v754 = vpack.c.b16 %v718, %v716
  %v755 = vpack.c.b16 %v719, %v717
  %v756 = vpack.c.b16 %v722, %v720
  %v757 = vpack.c.b16 %v723, %v721
  %v758 = vpack.c.b16 %v726, %v724
  %v759 = vpack.c.b16 %v727, %v725
  %792 = vmatpush.bf16.msra.mxu0 %v742
  %793 = vmatpush.bf16.msra.mxu0 %v740
  %794 = vmatpush.bf16.msra.mxu0 %v738
  %795 = vmatpush.bf16.msra.mxu0 %v736
  %796 = vmatpush.bf16.msra.mxu0 %v734
  %797 = vmatpush.bf16.msra.mxu0 %v732
  %798 = vmatpush.bf16.msra.mxu0 %v730
  %799 = vmatpush.bf16.msra.mxu0 %v728
  %800 = vmatmul.bf16.gmra.mxu0 %v584
  %v801 = vpop.f32.mrf.mxu0
  %v802 = vadd.f32 %v251, %v801
  %v803 = vpop.f32.mrf.mxu0
  %v804 = vadd.f32 %v251, %v803
  %805 = vmatmul.bf16.gmra.mxu0 %v586
  %v806 = vpop.f32.mrf.mxu0
  %v807 = vadd.f32 %v251, %v806
  %v808 = vpop.f32.mrf.mxu0
  %v809 = vadd.f32 %v251, %v808
  %810 = vmatmul.bf16.gmra.mxu0 %v588
  %v811 = vpop.f32.mrf.mxu0
  %v812 = vadd.f32 %v251, %v811
  %v813 = vpop.f32.mrf.mxu0
  %v814 = vadd.f32 %v251, %v813
  %815 = vmatmul.bf16.gmra.mxu0 %v590
  %v816 = vpop.f32.mrf.mxu0
  %v817 = vadd.f32 %v251, %v816
  %v818 = vpop.f32.mrf.mxu0
  %v819 = vadd.f32 %v251, %v818
  %820 = vmatmul.bf16.gmra.mxu0 %v592
  %v821 = vpop.f32.mrf.mxu0
  %v822 = vadd.f32 %v251, %v821
  %v823 = vpop.f32.mrf.mxu0
  %v824 = vadd.f32 %v251, %v823
  %825 = vmatmul.bf16.gmra.mxu0 %v594
  %v826 = vpop.f32.mrf.mxu0
  %v827 = vadd.f32 %v251, %v826
  %v828 = vpop.f32.mrf.mxu0
  %v829 = vadd.f32 %v251, %v828
  %830 = vmatmul.bf16.gmra.mxu0 %v596
  %v831 = vpop.f32.mrf.mxu0
  %v832 = vadd.f32 %v251, %v831
  %v833 = vpop.f32.mrf.mxu0
  %v834 = vadd.f32 %v251, %v833
  %835 = vmatmul.bf16.gmra.mxu0 %v598
  %v836 = vpop.f32.mrf.mxu0
  %v837 = vadd.f32 %v251, %v836
  %v838 = vpop.f32.mrf.mxu0
  %v839 = vadd.f32 %v251, %v838
  %840 = vdwg.mxu0
  %841 = vmatpush.bf16.msra.mxu0 %v758
  %842 = vmatpush.bf16.msra.mxu0 %v756
  %843 = vmatpush.bf16.msra.mxu0 %v754
  %844 = vmatpush.bf16.msra.mxu0 %v752
  %845 = vmatpush.bf16.msra.mxu0 %v750
  %846 = vmatpush.bf16.msra.mxu0 %v748
  %847 = vmatpush.bf16.msra.mxu0 %v746
  %848 = vmatpush.bf16.msra.mxu0 %v744
  %849 = vmatmul.bf16.gmra.mxu0 %v585
  %v850 = vpop.f32.mrf.mxu0
  %v851 = vadd.f32 %v802, %v850
  %v852 = vpop.f32.mrf.mxu0
  %v853 = vadd.f32 %v804, %v852
  %854 = vmatmul.bf16.gmra.mxu0 %v587
  %v855 = vpop.f32.mrf.mxu0
  %v856 = vadd.f32 %v807, %v855
  %v857 = vpop.f32.mrf.mxu0
  %v858 = vadd.f32 %v809, %v857
  %859 = vmatmul.bf16.gmra.mxu0 %v589
  %v860 = vpop.f32.mrf.mxu0
  %v861 = vadd.f32 %v812, %v860
  %v862 = vpop.f32.mrf.mxu0
  %v863 = vadd.f32 %v814, %v862
  %864 = vmatmul.bf16.gmra.mxu0 %v591
  %v865 = vpop.f32.mrf.mxu0
  %v866 = vadd.f32 %v817, %v865
  %v867 = vpop.f32.mrf.mxu0
  %v868 = vadd.f32 %v819, %v867
  %869 = vmatmul.bf16.gmra.mxu0 %v593
  %v870 = vpop.f32.mrf.mxu0
  %v871 = vadd.f32 %v822, %v870
  %v872 = vpop.f32.mrf.mxu0
  %v873 = vadd.f32 %v824, %v872
  %874 = vmatmul.bf16.gmra.mxu0 %v595
  %v875 = vpop.f32.mrf.mxu0
  %v876 = vadd.f32 %v827, %v875
  %v877 = vpop.f32.mrf.mxu0
  %v878 = vadd.f32 %v829, %v877
  %879 = vmatmul.bf16.gmra.mxu0 %v597
  %v880 = vpop.f32.mrf.mxu0
  %v881 = vadd.f32 %v832, %v880
  %v882 = vpop.f32.mrf.mxu0
  %v883 = vadd.f32 %v834, %v882
  %884 = vmatmul.bf16.gmra.mxu0 %v599
  %v885 = vpop.f32.mrf.mxu0
  %v886 = vadd.f32 %v837, %v885
  %v887 = vpop.f32.mrf.mxu0
  %v888 = vadd.f32 %v839, %v887
  %889 = vdwg.mxu0
  %890 = vmatpush.bf16.msra.mxu0 %v743
  %891 = vmatpush.bf16.msra.mxu0 %v741
  %892 = vmatpush.bf16.msra.mxu0 %v739
  %893 = vmatpush.bf16.msra.mxu0 %v737
  %894 = vmatpush.bf16.msra.mxu0 %v735
  %895 = vmatpush.bf16.msra.mxu0 %v733
  %896 = vmatpush.bf16.msra.mxu0 %v731
  %897 = vmatpush.bf16.msra.mxu0 %v729
  %898 = vmatmul.bf16.gmra.mxu0 %v584
  %v899 = vpop.f32.mrf.mxu0
  %v900 = vadd.f32 %v252, %v899
  %v901 = vpop.f32.mrf.mxu0
  %v902 = vadd.f32 %v252, %v901
  %903 = vmatmul.bf16.gmra.mxu0 %v586
  %v904 = vpop.f32.mrf.mxu0
  %v905 = vadd.f32 %v252, %v904
  %v906 = vpop.f32.mrf.mxu0
  %v907 = vadd.f32 %v252, %v906
  %908 = vmatmul.bf16.gmra.mxu0 %v588
  %v909 = vpop.f32.mrf.mxu0
  %v910 = vadd.f32 %v252, %v909
  %v911 = vpop.f32.mrf.mxu0
  %v912 = vadd.f32 %v252, %v911
  %913 = vmatmul.bf16.gmra.mxu0 %v590
  %v914 = vpop.f32.mrf.mxu0
  %v915 = vadd.f32 %v252, %v914
  %v916 = vpop.f32.mrf.mxu0
  %v917 = vadd.f32 %v252, %v916
  %918 = vmatmul.bf16.gmra.mxu0 %v592
  %v919 = vpop.f32.mrf.mxu0
  %v920 = vadd.f32 %v252, %v919
  %v921 = vpop.f32.mrf.mxu0
  %v922 = vadd.f32 %v252, %v921
  %923 = vmatmul.bf16.gmra.mxu0 %v594
  %v924 = vpop.f32.mrf.mxu0
  %v925 = vadd.f32 %v252, %v924
  %v926 = vpop.f32.mrf.mxu0
  %v927 = vadd.f32 %v252, %v926
  %928 = vmatmul.bf16.gmra.mxu0 %v596
  %v929 = vpop.f32.mrf.mxu0
  %v930 = vadd.f32 %v252, %v929
  %v931 = vpop.f32.mrf.mxu0
  %v932 = vadd.f32 %v252, %v931
  %933 = vmatmul.bf16.gmra.mxu0 %v598
  %v934 = vpop.f32.mrf.mxu0
  %v935 = vadd.f32 %v252, %v934
  %v936 = vpop.f32.mrf.mxu0
  %v937 = vadd.f32 %v252, %v936
  %938 = vdwg.mxu0
  %939 = vmatpush.bf16.msra.mxu0 %v759
  %940 = vmatpush.bf16.msra.mxu0 %v757
  %941 = vmatpush.bf16.msra.mxu0 %v755
  %942 = vmatpush.bf16.msra.mxu0 %v753
  %943 = vmatpush.bf16.msra.mxu0 %v751
  %944 = vmatpush.bf16.msra.mxu0 %v749
  %945 = vmatpush.bf16.msra.mxu0 %v747
  %946 = vmatpush.bf16.msra.mxu0 %v745
  %947 = vmatmul.bf16.gmra.mxu0 %v585
  %v948 = vpop.f32.mrf.mxu0
  %v949 = vadd.f32 %v900, %v948
  %v950 = vpop.f32.mrf.mxu0
  %v951 = vadd.f32 %v902, %v950
  %952 = vmatmul.bf16.gmra.mxu0 %v587
  %v953 = vpop.f32.mrf.mxu0
  %v954 = vadd.f32 %v905, %v953
  %v955 = vpop.f32.mrf.mxu0
  %v956 = vadd.f32 %v907, %v955
  %957 = vmatmul.bf16.gmra.mxu0 %v589
  %v958 = vpop.f32.mrf.mxu0
  %v959 = vadd.f32 %v910, %v958
  %v960 = vpop.f32.mrf.mxu0
  %v961 = vadd.f32 %v912, %v960
  %962 = vmatmul.bf16.gmra.mxu0 %v591
  %v963 = vpop.f32.mrf.mxu0
  %v964 = vadd.f32 %v915, %v963
  %v965 = vpop.f32.mrf.mxu0
  %v966 = vadd.f32 %v917, %v965
  %967 = vmatmul.bf16.gmra.mxu0 %v593
  %v968 = vpop.f32.mrf.mxu0
  %v969 = vadd.f32 %v920, %v968
  %v970 = vpop.f32.mrf.mxu0
  %v971 = vadd.f32 %v922, %v970
  %972 = vmatmul.bf16.gmra.mxu0 %v595
  %v973 = vpop.f32.mrf.mxu0
  %v974 = vadd.f32 %v925, %v973
  %v975 = vpop.f32.mrf.mxu0
  %v976 = vadd.f32 %v927, %v975
  %977 = vmatmul.bf16.gmra.mxu0 %v597
  %v978 = vpop.f32.mrf.mxu0
  %v979 = vadd.f32 %v930, %v978
  %v980 = vpop.f32.mrf.mxu0
  %v981 = vadd.f32 %v932, %v980
  %982 = vmatmul.bf16.gmra.mxu0 %v599
  %v983 = vpop.f32.mrf.mxu0
  %v984 = vadd.f32 %v935, %v983
  %v985 = vpop.f32.mrf.mxu0
  %v986 = vadd.f32 %v937, %v985
  %987 = vdwg.mxu0
  %v988 = vmax.f32 %v851, 0.0
  %v989 = vmax.f32 %v949, 0.0
  %v990 = vmax.f32 %v853, 0.0
  %v991 = vmax.f32 %v951, 0.0
  %v992 = vmax.f32 %v856, 0.0
  %v993 = vmax.f32 %v954, 0.0
  %v994 = vmax.f32 %v858, 0.0
  %v995 = vmax.f32 %v956, 0.0
  %v996 = vmax.f32 %v861, 0.0
  %v997 = vmax.f32 %v959, 0.0
  %v998 = vmax.f32 %v863, 0.0
  %v999 = vmax.f32 %v961, 0.0
  %v1000 = vmax.f32 %v866, 0.0
  %v1001 = vmax.f32 %v964, 0.0
  %v1002 = vmax.f32 %v868, 0.0
  %v1003 = vmax.f32 %v966, 0.0
  %v1004 = vmax.f32 %v871, 0.0
  %v1005 = vmax.f32 %v969, 0.0
  %v1006 = vmax.f32 %v873, 0.0
  %v1007 = vmax.f32 %v971, 0.0
  %v1008 = vmax.f32 %v876, 0.0
  %v1009 = vmax.f32 %v974, 0.0
  %v1010 = vmax.f32 %v878, 0.0
  %v1011 = vmax.f32 %v976, 0.0
  %v1012 = vmax.f32 %v881, 0.0
  %v1013 = vmax.f32 %v979, 0.0
  %v1014 = vmax.f32 %v883, 0.0
  %v1015 = vmax.f32 %v981, 0.0
  %v1016 = vmax.f32 %v886, 0.0
  %v1017 = vmax.f32 %v984, 0.0
  %v1018 = vmax.f32 %v888, 0.0
  %v1019 = vmax.f32 %v986, 0.0
  %v1020 = vpack.c.bf16 %v990, %v988
  %v1021 = vpack.c.bf16 %v991, %v989
  %v1022 = vpack.c.bf16 %v994, %v992
  %v1023 = vpack.c.bf16 %v995, %v993
  %v1024 = vpack.c.bf16 %v998, %v996
  %v1025 = vpack.c.bf16 %v999, %v997
  %v1026 = vpack.c.bf16 %v1002, %v1000
  %v1027 = vpack.c.bf16 %v1003, %v1001
  %v1028 = vpack.c.bf16 %v1006, %v1004
  %v1029 = vpack.c.bf16 %v1007, %v1005
  %v1030 = vpack.c.bf16 %v1010, %v1008
  %v1031 = vpack.c.bf16 %v1011, %v1009
  %v1032 = vpack.c.bf16 %v1014, %v1012
  %v1033 = vpack.c.bf16 %v1015, %v1013
  %v1034 = vpack.c.bf16 %v1018, %v1016
  %v1035 = vpack.c.bf16 %v1019, %v1017
  %v1036 = vld [vmem:[%s3 + $0x100] sm:$0xff]
  %v1037 = vld [vmem:[%s3 + $0x108] sm:$0xff]
  %v1038 = vld [vmem:[%s3 + $0x110] sm:$0xff]
  %v1039 = vld [vmem:[%s3 + $0x118] sm:$0xff]
  %v1040 = vld [vmem:[%s3 + $0x120] sm:$0xff]
  %v1041 = vld [vmem:[%s3 + $0x128] sm:$0xff]
  %v1042 = vld [vmem:[%s3 + $0x130] sm:$0xff]
  %v1043 = vld [vmem:[%s3 + $0x138] sm:$0xff]
  %v1044 = vld [vmem:[%s3 + $0x140] sm:$0xff]
  %v1045 = vld [vmem:[%s3 + $0x148] sm:$0xff]
  %v1046 = vld [vmem:[%s3 + $0x150] sm:$0xff]
  %v1047 = vld [vmem:[%s3 + $0x158] sm:$0xff]
  %v1048 = vld [vmem:[%s3 + $0x160] sm:$0xff]
  %v1049 = vld [vmem:[%s3 + $0x168] sm:$0xff]
  %v1050 = vld [vmem:[%s3 + $0x170] sm:$0xff]
  %v1051 = vld [vmem:[%s3 + $0x178] sm:$0xff]
  %v1052 = vld [vmem:[%s3 + $0x180] sm:$0xff]
  %v1053 = vld [vmem:[%s3 + $0x188] sm:$0xff]
  %v1054 = vld [vmem:[%s3 + $0x190] sm:$0xff]
  %v1055 = vld [vmem:[%s3 + $0x198] sm:$0xff]
  %v1056 = vld [vmem:[%s3 + $0x1a0] sm:$0xff]
  %v1057 = vld [vmem:[%s3 + $0x1a8] sm:$0xff]
  %v1058 = vld [vmem:[%s3 + $0x1b0] sm:$0xff]
  %v1059 = vld [vmem:[%s3 + $0x1b8] sm:$0xff]
  %v1060 = vld [vmem:[%s3 + $0x1c0] sm:$0xff]
  %v1061 = vld [vmem:[%s3 + $0x1c8] sm:$0xff]
  %v1062 = vld [vmem:[%s3 + $0x1d0] sm:$0xff]
  %v1063 = vld [vmem:[%s3 + $0x1d8] sm:$0xff]
  %v1064 = vld [vmem:[%s3 + $0x1e0] sm:$0xff]
  %v1065 = vld [vmem:[%s3 + $0x1e8] sm:$0xff]
  %v1066 = vld [vmem:[%s3 + $0x1f0] sm:$0xff]
  %v1067 = vld [vmem:[%s3 + $0x1f8] sm:$0xff]
  %v1100 = vunpack.c.l.b16 %v1036
  %v1101 = vunpack.c.h.b16 %v1036
  %v1102 = vunpack.c.l.b16 %v1037
  %v1103 = vunpack.c.h.b16 %v1037
  %v1104 = vunpack.c.l.b16 %v1038
  %v1105 = vunpack.c.h.b16 %v1038
  %v1106 = vunpack.c.l.b16 %v1039
  %v1107 = vunpack.c.h.b16 %v1039
  %v1108 = vunpack.c.l.b16 %v1040
  %v1109 = vunpack.c.h.b16 %v1040
  %v1110 = vunpack.c.l.b16 %v1041
  %v1111 = vunpack.c.h.b16 %v1041
  %v1112 = vunpack.c.l.b16 %v1042
  %v1113 = vunpack.c.h.b16 %v1042
  %v1114 = vunpack.c.l.b16 %v1043
  %v1115 = vunpack.c.h.b16 %v1043
  %v1116 = vunpack.c.l.b16 %v1044
  %v1117 = vunpack.c.h.b16 %v1044
  %v1118 = vunpack.c.l.b16 %v1045
  %v1119 = vunpack.c.h.b16 %v1045
  %v1120 = vunpack.c.l.b16 %v1046
  %v1121 = vunpack.c.h.b16 %v1046
  %v1122 = vunpack.c.l.b16 %v1047
  %v1123 = vunpack.c.h.b16 %v1047
  %v1124 = vunpack.c.l.b16 %v1048
  %v1125 = vunpack.c.h.b16 %v1048
  %v1126 = vunpack.c.l.b16 %v1049
  %v1127 = vunpack.c.h.b16 %v1049
  %v1128 = vunpack.c.l.b16 %v1050
  %v1129 = vunpack.c.h.b16 %v1050
  %v1130 = vunpack.c.l.b16 %v1051
  %v1131 = vunpack.c.h.b16 %v1051
  %v1132 = vunpack.c.l.b16 %v1052
  %v1133 = vunpack.c.h.b16 %v1052
  %v1134 = vunpack.c.l.b16 %v1053
  %v1135 = vunpack.c.h.b16 %v1053
  %v1136 = vunpack.c.l.b16 %v1054
  %v1137 = vunpack.c.h.b16 %v1054
  %v1138 = vunpack.c.l.b16 %v1055
  %v1139 = vunpack.c.h.b16 %v1055
  %v1140 = vunpack.c.l.b16 %v1056
  %v1141 = vunpack.c.h.b16 %v1056
  %v1142 = vunpack.c.l.b16 %v1057
  %v1143 = vunpack.c.h.b16 %v1057
  %v1144 = vunpack.c.l.b16 %v1058
  %v1145 = vunpack.c.h.b16 %v1058
  %v1146 = vunpack.c.l.b16 %v1059
  %v1147 = vunpack.c.h.b16 %v1059
  %v1148 = vunpack.c.l.b16 %v1060
  %v1149 = vunpack.c.h.b16 %v1060
  %v1150 = vunpack.c.l.b16 %v1061
  %v1151 = vunpack.c.h.b16 %v1061
  %v1152 = vunpack.c.l.b16 %v1062
  %v1153 = vunpack.c.h.b16 %v1062
  %v1154 = vunpack.c.l.b16 %v1063
  %v1155 = vunpack.c.h.b16 %v1063
  %v1156 = vunpack.c.l.b16 %v1064
  %v1157 = vunpack.c.h.b16 %v1064
  %v1158 = vunpack.c.l.b16 %v1065
  %v1159 = vunpack.c.h.b16 %v1065
  %v1160 = vunpack.c.l.b16 %v1066
  %v1161 = vunpack.c.h.b16 %v1066
  %v1162 = vunpack.c.l.b16 %v1067
  %v1163 = vunpack.c.h.b16 %v1067
  %v1164 = vpack.c.b16 %v1102, %v1100
  %v1165 = vpack.c.b16 %v1103, %v1101
  %v1166 = vpack.c.b16 %v1106, %v1104
  %v1167 = vpack.c.b16 %v1107, %v1105
  %v1168 = vpack.c.b16 %v1110, %v1108
  %v1169 = vpack.c.b16 %v1111, %v1109
  %v1170 = vpack.c.b16 %v1114, %v1112
  %v1171 = vpack.c.b16 %v1115, %v1113
  %v1172 = vpack.c.b16 %v1118, %v1116
  %v1173 = vpack.c.b16 %v1119, %v1117
  %v1174 = vpack.c.b16 %v1122, %v1120
  %v1175 = vpack.c.b16 %v1123, %v1121
  %v1176 = vpack.c.b16 %v1126, %v1124
  %v1177 = vpack.c.b16 %v1127, %v1125
  %v1178 = vpack.c.b16 %v1130, %v1128
  %v1179 = vpack.c.b16 %v1131, %v1129
  %v1180 = vpack.c.b16 %v1134, %v1132
  %v1181 = vpack.c.b16 %v1135, %v1133
  %v1182 = vpack.c.b16 %v1138, %v1136
  %v1183 = vpack.c.b16 %v1139, %v1137
  %v1184 = vpack.c.b16 %v1142, %v1140
  %v1185 = vpack.c.b16 %v1143, %v1141
  %v1186 = vpack.c.b16 %v1146, %v1144
  %v1187 = vpack.c.b16 %v1147, %v1145
  %v1188 = vpack.c.b16 %v1150, %v1148
  %v1189 = vpack.c.b16 %v1151, %v1149
  %v1190 = vpack.c.b16 %v1154, %v1152
  %v1191 = vpack.c.b16 %v1155, %v1153
  %v1192 = vpack.c.b16 %v1158, %v1156
  %v1193 = vpack.c.b16 %v1159, %v1157
  %v1194 = vpack.c.b16 %v1162, %v1160
  %v1195 = vpack.c.b16 %v1163, %v1161
  %1228 = vmatpush.bf16.msra.mxu0 %v1178
  %1229 = vmatpush.bf16.msra.mxu0 %v1176
  %1230 = vmatpush.bf16.msra.mxu0 %v1174
  %1231 = vmatpush.bf16.msra.mxu0 %v1172
  %1232 = vmatpush.bf16.msra.mxu0 %v1170
  %1233 = vmatpush.bf16.msra.mxu0 %v1168
  %1234 = vmatpush.bf16.msra.mxu0 %v1166
  %1235 = vmatpush.bf16.msra.mxu0 %v1164
  %1236 = vmatmul.bf16.gmra.mxu0 %v1020
  %v1237 = vpop.f32.mrf.mxu0
  %v1238 = vadd.f32 %v258, %v1237
  %v1239 = vpop.f32.mrf.mxu0
  %v1240 = vadd.f32 %v258, %v1239
  %1241 = vmatmul.bf16.gmra.mxu0 %v1022
  %v1242 = vpop.f32.mrf.mxu0
  %v1243 = vadd.f32 %v258, %v1242
  %v1244 = vpop.f32.mrf.mxu0
  %v1245 = vadd.f32 %v258, %v1244
  %1246 = vmatmul.bf16.gmra.mxu0 %v1024
  %v1247 = vpop.f32.mrf.mxu0
  %v1248 = vadd.f32 %v258, %v1247
  %v1249 = vpop.f32.mrf.mxu0
  %v1250 = vadd.f32 %v258, %v1249
  %1251 = vmatmul.bf16.gmra.mxu0 %v1026
  %v1252 = vpop.f32.mrf.mxu0
  %v1253 = vadd.f32 %v258, %v1252
  %v1254 = vpop.f32.mrf.mxu0
  %v1255 = vadd.f32 %v258, %v1254
  %1256 = vmatmul.bf16.gmra.mxu0 %v1028
  %v1257 = vpop.f32.mrf.mxu0
  %v1258 = vadd.f32 %v258, %v1257
  %v1259 = vpop.f32.mrf.mxu0
  %v1260 = vadd.f32 %v258, %v1259
  %1261 = vmatmul.bf16.gmra.mxu0 %v1030
  %v1262 = vpop.f32.mrf.mxu0
  %v1263 = vadd.f32 %v258, %v1262
  %v1264 = vpop.f32.mrf.mxu0
  %v1265 = vadd.f32 %v258, %v1264
  %1266 = vmatmul.bf16.gmra.mxu0 %v1032
  %v1267 = vpop.f32.mrf.mxu0
  %v1268 = vadd.f32 %v258, %v1267
  %v1269 = vpop.f32.mrf.mxu0
  %v1270 = vadd.f32 %v258, %v1269
  %1271 = vmatmul.bf16.gmra.mxu0 %v1034
  %v1272 = vpop.f32.mrf.mxu0
  %v1273 = vadd.f32 %v258, %v1272
  %v1274 = vpop.f32.mrf.mxu0
  %v1275 = vadd.f32 %v258, %v1274
  %1276 = vdwg.mxu0
  %1277 = vmatpush.bf16.msra.mxu0 %v1194
  %1278 = vmatpush.bf16.msra.mxu0 %v1192
  %1279 = vmatpush.bf16.msra.mxu0 %v1190
  %1280 = vmatpush.bf16.msra.mxu0 %v1188
  %1281 = vmatpush.bf16.msra.mxu0 %v1186
  %1282 = vmatpush.bf16.msra.mxu0 %v1184
  %1283 = vmatpush.bf16.msra.mxu0 %v1182
  %1284 = vmatpush.bf16.msra.mxu0 %v1180
  %1285 = vmatmul.bf16.gmra.mxu0 %v1021
  %v1286 = vpop.f32.mrf.mxu0
  %v1287 = vadd.f32 %v1238, %v1286
  %v1288 = vpop.f32.mrf.mxu0
  %v1289 = vadd.f32 %v1240, %v1288
  %1290 = vmatmul.bf16.gmra.mxu0 %v1023
  %v1291 = vpop.f32.mrf.mxu0
  %v1292 = vadd.f32 %v1243, %v1291
  %v1293 = vpop.f32.mrf.mxu0
  %v1294 = vadd.f32 %v1245, %v1293
  %1295 = vmatmul.bf16.gmra.mxu0 %v1025
  %v1296 = vpop.f32.mrf.mxu0
  %v1297 = vadd.f32 %v1248, %v1296
  %v1298 = vpop.f32.mrf.mxu0
  %v1299 = vadd.f32 %v1250, %v1298
  %1300 = vmatmul.bf16.gmra.mxu0 %v1027
  %v1301 = vpop.f32.mrf.mxu0
  %v1302 = vadd.f32 %v1253, %v1301
  %v1303 = vpop.f32.mrf.mxu0
  %v1304 = vadd.f32 %v1255, %v1303
  %1305 = vmatmul.bf16.gmra.mxu0 %v1029
  %v1306 = vpop.f32.mrf.mxu0
  %v1307 = vadd.f32 %v1258, %v1306
  %v1308 = vpop.f32.mrf.mxu0
  %v1309 = vadd.f32 %v1260, %v1308
  %1310 = vmatmul.bf16.gmra.mxu0 %v1031
  %v1311 = vpop.f32.mrf.mxu0
  %v1312 = vadd.f32 %v1263, %v1311
  %v1313 = vpop.f32.mrf.mxu0
  %v1314 = vadd.f32 %v1265, %v1313
  %1315 = vmatmul.bf16.gmra.mxu0 %v1033
  %v1316 = vpop.f32.mrf.mxu0
  %v1317 = vadd.f32 %v1268, %v1316
  %v1318 = vpop.f32.mrf.mxu0
  %v1319 = vadd.f32 %v1270, %v1318
  %1320 = vmatmul.bf16.gmra.mxu0 %v1035
  %v1321 = vpop.f32.mrf.mxu0
  %v1322 = vadd.f32 %v1273, %v1321
  %v1323 = vpop.f32.mrf.mxu0
  %v1324 = vadd.f32 %v1275, %v1323
  %1325 = vdwg.mxu0
  %1326 = vmatpush.bf16.msra.mxu0 %v1179
  %1327 = vmatpush.bf16.msra.mxu0 %v1177
  %1328 = vmatpush.bf16.msra.mxu0 %v1175
  %1329 = vmatpush.bf16.msra.mxu0 %v1173
  %1330 = vmatpush.bf16.msra.mxu0 %v1171
  %1331 = vmatpush.bf16.msra.mxu0 %v1169
  %1332 = vmatpush.bf16.msra.mxu0 %v1167
  %1333 = vmatpush.bf16.msra.mxu0 %v1165
  %1334 = vmatmul.bf16.gmra.mxu0 %v1020
  %v1335 = vpop.f32.mrf.mxu0
  %v1336 = vadd.f32 %v259, %v1335
  %v1337 = vpop.f32.mrf.mxu0
  %v1338 = vadd.f32 %v259, %v1337
  %1339 = vmatmul.bf16.gmra.mxu0 %v1022
  %v1340 = vpop.f32.mrf.mxu0
  %v1341 = vadd.f32 %v259, %v1340
  %v1342 = vpop.f32.mrf.mxu0
  %v1343 = vadd.f32 %v259, %v1342
  %1344 = vmatmul.bf16.gmra.mxu0 %v1024
  %v1345 = vpop.f32.mrf.mxu0
  %v1346 = vadd.f32 %v259, %v1345
  %v1347 = vpop.f32.mrf.mxu0
  %v1348 = vadd.f32 %v259, %v1347
  %1349 = vmatmul.bf16.gmra.mxu0 %v1026
  %v1350 = vpop.f32.mrf.mxu0
  %v1351 = vadd.f32 %v259, %v1350
  %v1352 = vpop.f32.mrf.mxu0
  %v1353 = vadd.f32 %v259, %v1352
  %1354 = vmatmul.bf16.gmra.mxu0 %v1028
  %v1355 = vpop.f32.mrf.mxu0
  %v1356 = vadd.f32 %v259, %v1355
  %v1357 = vpop.f32.mrf.mxu0
  %v1358 = vadd.f32 %v259, %v1357
  %1359 = vmatmul.bf16.gmra.mxu0 %v1030
  %v1360 = vpop.f32.mrf.mxu0
  %v1361 = vadd.f32 %v259, %v1360
  %v1362 = vpop.f32.mrf.mxu0
  %v1363 = vadd.f32 %v259, %v1362
  %1364 = vmatmul.bf16.gmra.mxu0 %v1032
  %v1365 = vpop.f32.mrf.mxu0
  %v1366 = vadd.f32 %v259, %v1365
  %v1367 = vpop.f32.mrf.mxu0
  %v1368 = vadd.f32 %v259, %v1367
  %1369 = vmatmul.bf16.gmra.mxu0 %v1034
  %v1370 = vpop.f32.mrf.mxu0
  %v1371 = vadd.f32 %v259, %v1370
  %v1372 = vpop.f32.mrf.mxu0
  %v1373 = vadd.f32 %v259, %v1372
  %1374 = vdwg.mxu0
  %1375 = vmatpush.bf16.msra.mxu0 %v1195
  %1376 = vmatpush.bf16.msra.mxu0 %v1193
  %1377 = vmatpush.bf16.msra.mxu0 %v1191
  %1378 = vmatpush.bf16.msra.mxu0 %v1189
  %1379 = vmatpush.bf16.msra.mxu0 %v1187
  %1380 = vmatpush.bf16.msra.mxu0 %v1185
  %1381 = vmatpush.bf16.msra.mxu0 %v1183
  %1382 = vmatpush.bf16.msra.mxu0 %v1181
  %1383 = vmatmul.bf16.gmra.mxu0 %v1021
  %v1384 = vpop.f32.mrf.mxu0
  %v1385 = vadd.f32 %v1336, %v1384
  %v1386 = vpop.f32.mrf.mxu0
  %v1387 = vadd.f32 %v1338, %v1386
  %1388 = vmatmul.bf16.gmra.mxu0 %v1023
  %v1389 = vpop.f32.mrf.mxu0
  %v1390 = vadd.f32 %v1341, %v1389
  %v1391 = vpop.f32.mrf.mxu0
  %v1392 = vadd.f32 %v1343, %v1391
  %1393 = vmatmul.bf16.gmra.mxu0 %v1025
  %v1394 = vpop.f32.mrf.mxu0
  %v1395 = vadd.f32 %v1346, %v1394
  %v1396 = vpop.f32.mrf.mxu0
  %v1397 = vadd.f32 %v1348, %v1396
  %1398 = vmatmul.bf16.gmra.mxu0 %v1027
  %v1399 = vpop.f32.mrf.mxu0
  %v1400 = vadd.f32 %v1351, %v1399
  %v1401 = vpop.f32.mrf.mxu0
  %v1402 = vadd.f32 %v1353, %v1401
  %1403 = vmatmul.bf16.gmra.mxu0 %v1029
  %v1404 = vpop.f32.mrf.mxu0
  %v1405 = vadd.f32 %v1356, %v1404
  %v1406 = vpop.f32.mrf.mxu0
  %v1407 = vadd.f32 %v1358, %v1406
  %1408 = vmatmul.bf16.gmra.mxu0 %v1031
  %v1409 = vpop.f32.mrf.mxu0
  %v1410 = vadd.f32 %v1361, %v1409
  %v1411 = vpop.f32.mrf.mxu0
  %v1412 = vadd.f32 %v1363, %v1411
  %1413 = vmatmul.bf16.gmra.mxu0 %v1033
  %v1414 = vpop.f32.mrf.mxu0
  %v1415 = vadd.f32 %v1366, %v1414
  %v1416 = vpop.f32.mrf.mxu0
  %v1417 = vadd.f32 %v1368, %v1416
  %1418 = vmatmul.bf16.gmra.mxu0 %v1035
  %v1419 = vpop.f32.mrf.mxu0
  %v1420 = vadd.f32 %v1371, %v1419
  %v1421 = vpop.f32.mrf.mxu0
  %v1422 = vadd.f32 %v1373, %v1421
  %1423 = vdwg.mxu0
  %v1424 = vmax.f32 %v1287, 0.0
  %v1425 = vmax.f32 %v1385, 0.0
  %v1426 = vmax.f32 %v1289, 0.0
  %v1427 = vmax.f32 %v1387, 0.0
  %v1428 = vmax.f32 %v1292, 0.0
  %v1429 = vmax.f32 %v1390, 0.0
  %v1430 = vmax.f32 %v1294, 0.0
  %v1431 = vmax.f32 %v1392, 0.0
  %v1432 = vmax.f32 %v1297, 0.0
  %v1433 = vmax.f32 %v1395, 0.0
  %v1434 = vmax.f32 %v1299, 0.0
  %v1435 = vmax.f32 %v1397, 0.0
  %v1436 = vmax.f32 %v1302, 0.0
  %v1437 = vmax.f32 %v1400, 0.0
  %v1438 = vmax.f32 %v1304, 0.0
  %v1439 = vmax.f32 %v1402, 0.0
  %v1440 = vmax.f32 %v1307, 0.0
  %v1441 = vmax.f32 %v1405, 0.0
  %v1442 = vmax.f32 %v1309, 0.0
  %v1443 = vmax.f32 %v1407, 0.0
  %v1444 = vmax.f32 %v1312, 0.0
  %v1445 = vmax.f32 %v1410, 0.0
  %v1446 = vmax.f32 %v1314, 0.0
  %v1447 = vmax.f32 %v1412, 0.0
  %v1448 = vmax.f32 %v1317, 0.0
  %v1449 = vmax.f32 %v1415, 0.0
  %v1450 = vmax.f32 %v1319, 0.0
  %v1451 = vmax.f32 %v1417, 0.0
  %v1452 = vmax.f32 %v1322, 0.0
  %v1453 = vmax.f32 %v1420, 0.0
  %v1454 = vmax.f32 %v1324, 0.0
  %v1455 = vmax.f32 %v1422, 0.0
  %v1456 = vpack.c.bf16 %v1426, %v1424
  %v1457 = vpack.c.bf16 %v1430, %v1428
  %v1458 = vpack.c.bf16 %v1434, %v1432
  %v1459 = vpack.c.bf16 %v1438, %v1436
  %v1460 = vpack.c.bf16 %v1442, %v1440
  %v1461 = vpack.c.bf16 %v1446, %v1444
  %v1462 = vpack.c.bf16 %v1450, %v1448
  %v1463 = vpack.c.bf16 %v1454, %v1452
  %v1464 = vld [vmem:[%s3 + $0x200] sm:$0xf]
  %v1465 = vld [vmem:[%s3 + $0x208] sm:$0xf]
  %v1466 = vld [vmem:[%s3 + $0x210] sm:$0xf]
  %v1467 = vld [vmem:[%s3 + $0x218] sm:$0xf]
  %v1468 = vld [vmem:[%s3 + $0x220] sm:$0xf]
  %v1469 = vld [vmem:[%s3 + $0x228] sm:$0xf]
  %v1470 = vld [vmem:[%s3 + $0x230] sm:$0xf]
  %v1471 = vld [vmem:[%s3 + $0x238] sm:$0xf]
  %v1472 = vld [vmem:[%s3 + $0x240] sm:$0xf]
  %v1473 = vld [vmem:[%s3 + $0x248] sm:$0xf]
  %v1474 = vld [vmem:[%s3 + $0x250] sm:$0xf]
  %v1475 = vld [vmem:[%s3 + $0x258] sm:$0xf]
  %v1476 = vld [vmem:[%s3 + $0x260] sm:$0xf]
  %v1477 = vld [vmem:[%s3 + $0x268] sm:$0xf]
  %v1478 = vld [vmem:[%s3 + $0x270] sm:$0xf]
  %v1479 = vld [vmem:[%s3 + $0x278] sm:$0xf]
  %v1496 = vunpack.c.l.b16 %v1464
  %v1497 = vunpack.c.l.b16 %v1465
  %v1498 = vunpack.c.l.b16 %v1466
  %v1499 = vunpack.c.l.b16 %v1467
  %v1500 = vunpack.c.l.b16 %v1468
  %v1501 = vunpack.c.l.b16 %v1469
  %v1502 = vunpack.c.l.b16 %v1470
  %v1503 = vunpack.c.l.b16 %v1471
  %v1504 = vunpack.c.l.b16 %v1472
  %v1505 = vunpack.c.l.b16 %v1473
  %v1506 = vunpack.c.l.b16 %v1474
  %v1507 = vunpack.c.l.b16 %v1475
  %v1508 = vunpack.c.l.b16 %v1476
  %v1509 = vunpack.c.l.b16 %v1477
  %v1510 = vunpack.c.l.b16 %v1478
  %v1511 = vunpack.c.l.b16 %v1479
  %v1512 = vpack.c.b16 %v1497, %v1496
  %v1513 = vpack.c.b16 %v1499, %v1498
  %v1514 = vpack.c.b16 %v1501, %v1500
  %v1515 = vpack.c.b16 %v1503, %v1502
  %v1516 = vpack.c.b16 %v1505, %v1504
  %v1517 = vpack.c.b16 %v1507, %v1506
  %v1518 = vpack.c.b16 %v1509, %v1508
  %v1519 = vpack.c.b16 %v1511, %v1510
  %1528 = vmatpush.bf16.msra.mxu0 %v1519
  %1529 = vmatpush.bf16.msra.mxu0 %v1518
  %1530 = vmatpush.bf16.msra.mxu0 %v1517
  %1531 = vmatpush.bf16.msra.mxu0 %v1516
  %1532 = vmatpush.bf16.msra.mxu0 %v1515
  %1533 = vmatpush.bf16.msra.mxu0 %v1514
  %1534 = vmatpush.bf16.msra.mxu0 %v1513
  %1535 = vmatpush.bf16.msra.mxu0 %v1512
  %1536 = vmatmul.bf16.gmra.mxu0 %v1456
  %v1537 = vpop.f32.mrf.mxu0
  %v1538 = vadd.f32 %v262, %v1537
  %v1539 = vpop.f32.mrf.mxu0
  %v1540 = vadd.f32 %v262, %v1539
  %1541 = vmatmul.bf16.gmra.mxu0 %v1457
  %v1542 = vpop.f32.mrf.mxu0
  %v1543 = vadd.f32 %v262, %v1542
  %v1544 = vpop.f32.mrf.mxu0
  %v1545 = vadd.f32 %v262, %v1544
  %1546 = vmatmul.bf16.gmra.mxu0 %v1458
  %v1547 = vpop.f32.mrf.mxu0
  %v1548 = vadd.f32 %v262, %v1547
  %v1549 = vpop.f32.mrf.mxu0
  %v1550 = vadd.f32 %v262, %v1549
  %1551 = vmatmul.bf16.gmra.mxu0 %v1459
  %v1552 = vpop.f32.mrf.mxu0
  %v1553 = vadd.f32 %v262, %v1552
  %v1554 = vpop.f32.mrf.mxu0
  %v1555 = vadd.f32 %v262, %v1554
  %1556 = vmatmul.bf16.gmra.mxu0 %v1460
  %v1557 = vpop.f32.mrf.mxu0
  %v1558 = vadd.f32 %v262, %v1557
  %v1559 = vpop.f32.mrf.mxu0
  %v1560 = vadd.f32 %v262, %v1559
  %1561 = vmatmul.bf16.gmra.mxu0 %v1461
  %v1562 = vpop.f32.mrf.mxu0
  %v1563 = vadd.f32 %v262, %v1562
  %v1564 = vpop.f32.mrf.mxu0
  %v1565 = vadd.f32 %v262, %v1564
  %1566 = vmatmul.bf16.gmra.mxu0 %v1462
  %v1567 = vpop.f32.mrf.mxu0
  %v1568 = vadd.f32 %v262, %v1567
  %v1569 = vpop.f32.mrf.mxu0
  %v1570 = vadd.f32 %v262, %v1569
  %1571 = vmatmul.bf16.gmra.mxu0 %v1463
  %v1572 = vpop.f32.mrf.mxu0
  %v1573 = vadd.f32 %v262, %v1572
  %v1574 = vpop.f32.mrf.mxu0
  %v1575 = vadd.f32 %v262, %v1574
  %1576 = vdwg.mxu0
  %v1577 = vmax.f32 %v1538, 0.0
  %v1578 = vmax.f32 %v1540, 0.0
  %v1579 = vmax.f32 %v1543, 0.0
  %v1580 = vmax.f32 %v1545, 0.0
  %v1581 = vmax.f32 %v1548, 0.0
  %v1582 = vmax.f32 %v1550, 0.0
  %v1583 = vmax.f32 %v1553, 0.0
  %v1584 = vmax.f32 %v1555, 0.0
  %v1585 = vmax.f32 %v1558, 0.0
  %v1586 = vmax.f32 %v1560, 0.0
  %v1587 = vmax.f32 %v1563, 0.0
  %v1588 = vmax.f32 %v1565, 0.0
  %v1589 = vmax.f32 %v1568, 0.0
  %v1590 = vmax.f32 %v1570, 0.0
  %v1591 = vmax.f32 %v1573, 0.0
  %v1592 = vmax.f32 %v1575, 0.0
  %v1593 = vpack.c.bf16 %v1578, %v1577
  %v1594 = vpack.c.bf16 %v1427, %v1425
  %v1595 = vpack.c.bf16 %v1580, %v1579
  %v1596 = vpack.c.bf16 %v1431, %v1429
  %v1597 = vpack.c.bf16 %v1582, %v1581
  %v1598 = vpack.c.bf16 %v1435, %v1433
  %v1599 = vpack.c.bf16 %v1584, %v1583
  %v1600 = vpack.c.bf16 %v1439, %v1437
  %v1601 = vpack.c.bf16 %v1586, %v1585
  %v1602 = vpack.c.bf16 %v1443, %v1441
  %v1603 = vpack.c.bf16 %v1588, %v1587
  %v1604 = vpack.c.bf16 %v1447, %v1445
  %v1605 = vpack.c.bf16 %v1590, %v1589
  %v1606 = vpack.c.bf16 %v1451, %v1449
  %v1607 = vpack.c.bf16 %v1592, %v1591
  %v1608 = vpack.c.bf16 %v1455, %v1453
  %v1609 = vld [vmem:[%s3 + $0x280] sm:$0xf]
  %v1610 = vld [vmem:[%s3 + $0x288] sm:$0xf]
  %v1611 = vld [vmem:[%s3 + $0x290] sm:$0xf]
  %v1612 = vld [vmem:[%s3 + $0x298] sm:$0xf]
  %v1613 = vld [vmem:[%s3 + $0x2a0] sm:$0xf]
  %v1614 = vld [vmem:[%s3 + $0x2a8] sm:$0xf]
  %v1615 = vld [vmem:[%s3 + $0x2b0] sm:$0xf]
  %v1616 = vld [vmem:[%s3 + $0x2b8] sm:$0xf]
  %v1617 = vld [vmem:[%s3 + $0x2c0] sm:$0xf]
  %v1618 = vld [vmem:[%s3 + $0x2c8] sm:$0xf]
  %v1619 = vld [vmem:[%s3 + $0x2d0] sm:$0xf]
  %v1620 = vld [vmem:[%s3 + $0x2d8] sm:$0xf]
  %v1621 = vld [vmem:[%s3 + $0x2e0] sm:$0xf]
  %v1622 = vld [vmem:[%s3 + $0x2e8] sm:$0xf]
  %v1623 = vld [vmem:[%s3 + $0x2f0] sm:$0xf]
  %v1624 = vld [vmem:[%s3 + $0x2f8] sm:$0xf]
  %v1625 = vld [vmem:[%s3 + $0x300] sm:$0xf]
  %v1626 = vld [vmem:[%s3 + $0x308] sm:$0xf]
  %v1627 = vld [vmem:[%s3 + $0x310] sm:$0xf]
  %v1628 = vld [vmem:[%s3 + $0x318] sm:$0xf]
  %v1629 = vld [vmem:[%s3 + $0x320] sm:$0xf]
  %v1630 = vld [vmem:[%s3 + $0x328] sm:$0xf]
  %v1631 = vld [vmem:[%s3 + $0x330] sm:$0xf]
  %v1632 = vld [vmem:[%s3 + $0x338] sm:$0xf]
  %v1633 = vld [vmem:[%s3 + $0x340] sm:$0xf]
  %v1634 = vld [vmem:[%s3 + $0x348] sm:$0xf]
  %v1635 = vld [vmem:[%s3 + $0x350] sm:$0xf]
  %v1636 = vld [vmem:[%s3 + $0x358] sm:$0xf]
  %v1637 = vld [vmem:[%s3 + $0x360] sm:$0xf]
  %v1638 = vld [vmem:[%s3 + $0x368] sm:$0xf]
  %v1639 = vld [vmem:[%s3 + $0x370] sm:$0xf]
  %v1640 = vld [vmem:[%s3 + $0x378] sm:$0xf]
  %v1673 = vunpack.c.l.b16 %v1609
  %v1674 = vunpack.c.l.b16 %v1610
  %v1675 = vunpack.c.l.b16 %v1611
  %v1676 = vunpack.c.l.b16 %v1612
  %v1677 = vunpack.c.l.b16 %v1613
  %v1678 = vunpack.c.l.b16 %v1614
  %v1679 = vunpack.c.l.b16 %v1615
  %v1680 = vunpack.c.l.b16 %v1616
  %v1681 = vunpack.c.l.b16 %v1617
  %v1682 = vunpack.c.l.b16 %v1618
  %v1683 = vunpack.c.l.b16 %v1619
  %v1684 = vunpack.c.l.b16 %v1620
  %v1685 = vunpack.c.l.b16 %v1621
  %v1686 = vunpack.c.l.b16 %v1622
  %v1687 = vunpack.c.l.b16 %v1623
  %v1688 = vunpack.c.l.b16 %v1624
  %v1689 = vunpack.c.l.b16 %v1625
  %v1690 = vunpack.c.l.b16 %v1626
  %v1691 = vunpack.c.l.b16 %v1627
  %v1692 = vunpack.c.l.b16 %v1628
  %v1693 = vunpack.c.l.b16 %v1629
  %v1694 = vunpack.c.l.b16 %v1630
  %v1695 = vunpack.c.l.b16 %v1631
  %v1696 = vunpack.c.l.b16 %v1632
  %v1697 = vunpack.c.l.b16 %v1633
  %v1698 = vunpack.c.l.b16 %v1634
  %v1699 = vunpack.c.l.b16 %v1635
  %v1700 = vunpack.c.l.b16 %v1636
  %v1701 = vunpack.c.l.b16 %v1637
  %v1702 = vunpack.c.l.b16 %v1638
  %v1703 = vunpack.c.l.b16 %v1639
  %v1704 = vunpack.c.l.b16 %v1640
  %v1705 = vpack.c.b16 %v1674, %v1673
  %v1706 = vpack.c.b16 %v1676, %v1675
  %v1707 = vpack.c.b16 %v1678, %v1677
  %v1708 = vpack.c.b16 %v1680, %v1679
  %v1709 = vpack.c.b16 %v1682, %v1681
  %v1710 = vpack.c.b16 %v1684, %v1683
  %v1711 = vpack.c.b16 %v1686, %v1685
  %v1712 = vpack.c.b16 %v1688, %v1687
  %v1713 = vpack.c.b16 %v1690, %v1689
  %v1714 = vpack.c.b16 %v1692, %v1691
  %v1715 = vpack.c.b16 %v1694, %v1693
  %v1716 = vpack.c.b16 %v1696, %v1695
  %v1717 = vpack.c.b16 %v1698, %v1697
  %v1718 = vpack.c.b16 %v1700, %v1699
  %v1719 = vpack.c.b16 %v1702, %v1701
  %v1720 = vpack.c.b16 %v1704, %v1703
  %1737 = vmatpush.bf16.msra.mxu0 %v1712
  %1738 = vmatpush.bf16.msra.mxu0 %v1711
  %1739 = vmatpush.bf16.msra.mxu0 %v1710
  %1740 = vmatpush.bf16.msra.mxu0 %v1709
  %1741 = vmatpush.bf16.msra.mxu0 %v1708
  %1742 = vmatpush.bf16.msra.mxu0 %v1707
  %1743 = vmatpush.bf16.msra.mxu0 %v1706
  %1744 = vmatpush.bf16.msra.mxu0 %v1705
  %1745 = vmatmul.bf16.gmra.mxu0 %v1593
  %v1746 = vpop.f32.mrf.mxu0
  %v1747 = vadd.f32 %v263, %v1746
  %v1748 = vpop.f32.mrf.mxu0
  %v1749 = vadd.f32 %v263, %v1748
  %1750 = vmatmul.bf16.gmra.mxu0 %v1595
  %v1751 = vpop.f32.mrf.mxu0
  %v1752 = vadd.f32 %v263, %v1751
  %v1753 = vpop.f32.mrf.mxu0
  %v1754 = vadd.f32 %v263, %v1753
  %1755 = vmatmul.bf16.gmra.mxu0 %v1597
  %v1756 = vpop.f32.mrf.mxu0
  %v1757 = vadd.f32 %v263, %v1756
  %v1758 = vpop.f32.mrf.mxu0
  %v1759 = vadd.f32 %v263, %v1758
  %1760 = vmatmul.bf16.gmra.mxu0 %v1599
  %v1761 = vpop.f32.mrf.mxu0
  %v1762 = vadd.f32 %v263, %v1761
  %v1763 = vpop.f32.mrf.mxu0
  %v1764 = vadd.f32 %v263, %v1763
  %1765 = vmatmul.bf16.gmra.mxu0 %v1601
  %v1766 = vpop.f32.mrf.mxu0
  %v1767 = vadd.f32 %v263, %v1766
  %v1768 = vpop.f32.mrf.mxu0
  %v1769 = vadd.f32 %v263, %v1768
  %1770 = vmatmul.bf16.gmra.mxu0 %v1603
  %v1771 = vpop.f32.mrf.mxu0
  %v1772 = vadd.f32 %v263, %v1771
  %v1773 = vpop.f32.mrf.mxu0
  %v1774 = vadd.f32 %v263, %v1773
  %1775 = vmatmul.bf16.gmra.mxu0 %v1605
  %v1776 = vpop.f32.mrf.mxu0
  %v1777 = vadd.f32 %v263, %v1776
  %v1778 = vpop.f32.mrf.mxu0
  %v1779 = vadd.f32 %v263, %v1778
  %1780 = vmatmul.bf16.gmra.mxu0 %v1607
  %v1781 = vpop.f32.mrf.mxu0
  %v1782 = vadd.f32 %v263, %v1781
  %v1783 = vpop.f32.mrf.mxu0
  %v1784 = vadd.f32 %v263, %v1783
  %1785 = vdwg.mxu0
  %1786 = vmatpush.bf16.msra.mxu0 %v1720
  %1787 = vmatpush.bf16.msra.mxu0 %v1719
  %1788 = vmatpush.bf16.msra.mxu0 %v1718
  %1789 = vmatpush.bf16.msra.mxu0 %v1717
  %1790 = vmatpush.bf16.msra.mxu0 %v1716
  %1791 = vmatpush.bf16.msra.mxu0 %v1715
  %1792 = vmatpush.bf16.msra.mxu0 %v1714
  %1793 = vmatpush.bf16.msra.mxu0 %v1713
  %1794 = vmatmul.bf16.gmra.mxu0 %v1594
  %v1795 = vpop.f32.mrf.mxu0
  %v1796 = vadd.f32 %v1747, %v1795
  %v1797 = vpop.f32.mrf.mxu0
  %v1798 = vadd.f32 %v1749, %v1797
  %1799 = vmatmul.bf16.gmra.mxu0 %v1596
  %v1800 = vpop.f32.mrf.mxu0
  %v1801 = vadd.f32 %v1752, %v1800
  %v1802 = vpop.f32.mrf.mxu0
  %v1803 = vadd.f32 %v1754, %v1802
  %1804 = vmatmul.bf16.gmra.mxu0 %v1598
  %v1805 = vpop.f32.mrf.mxu0
  %v1806 = vadd.f32 %v1757, %v1805
  %v1807 = vpop.f32.mrf.mxu0
  %v1808 = vadd.f32 %v1759, %v1807
  %1809 = vmatmul.bf16.gmra.mxu0 %v1600
  %v1810 = vpop.f32.mrf.mxu0
  %v1811 = vadd.f32 %v1762, %v1810
  %v1812 = vpop.f32.mrf.mxu0
  %v1813 = vadd.f32 %v1764, %v1812
  %1814 = vmatmul.bf16.gmra.mxu0 %v1602
  %v1815 = vpop.f32.mrf.mxu0
  %v1816 = vadd.f32 %v1767, %v1815
  %v1817 = vpop.f32.mrf.mxu0
  %v1818 = vadd.f32 %v1769, %v1817
  %1819 = vmatmul.bf16.gmra.mxu0 %v1604
  %v1820 = vpop.f32.mrf.mxu0
  %v1821 = vadd.f32 %v1772, %v1820
  %v1822 = vpop.f32.mrf.mxu0
  %v1823 = vadd.f32 %v1774, %v1822
  %1824 = vmatmul.bf16.gmra.mxu0 %v1606
  %v1825 = vpop.f32.mrf.mxu0
  %v1826 = vadd.f32 %v1777, %v1825
  %v1827 = vpop.f32.mrf.mxu0
  %v1828 = vadd.f32 %v1779, %v1827
  %1829 = vmatmul.bf16.gmra.mxu0 %v1608
  %v1830 = vpop.f32.mrf.mxu0
  %v1831 = vadd.f32 %v1782, %v1830
  %v1832 = vpop.f32.mrf.mxu0
  %v1833 = vadd.f32 %v1784, %v1832
  %1834 = vdwg.mxu0
  %v1835 = vld [vmem:[%s2] sm:$0xff]
  %v1836 = vld [vmem:[%s2 + $0x8] sm:$0xff]
  %v1837 = vld [vmem:[%s2 + $0x10] sm:$0xff]
  %v1838 = vld [vmem:[%s2 + $0x18] sm:$0xff]
  %v1839 = vld [vmem:[%s2 + $0x20] sm:$0xff]
  %v1840 = vld [vmem:[%s2 + $0x28] sm:$0xff]
  %v1841 = vld [vmem:[%s2 + $0x30] sm:$0xff]
  %v1842 = vld [vmem:[%s2 + $0x38] sm:$0xff]
  %v1843 = vld [vmem:[%s2 + $0x40] sm:$0xff]
  %v1844 = vld [vmem:[%s2 + $0x48] sm:$0xff]
  %v1845 = vld [vmem:[%s2 + $0x50] sm:$0xff]
  %v1846 = vld [vmem:[%s2 + $0x58] sm:$0xff]
  %v1847 = vld [vmem:[%s2 + $0x60] sm:$0xff]
  %v1848 = vld [vmem:[%s2 + $0x68] sm:$0xff]
  %v1849 = vld [vmem:[%s2 + $0x70] sm:$0xff]
  %v1850 = vld [vmem:[%s2 + $0x78] sm:$0xff]
  %1852 = vset.pattern.permute.xlu0 0
  %1853 = vperm.xlu0 %1852, %v47
  %v1854 = vpop.permute.xlu0 %1853
  %1857 = vset.pattern.permute.xlu0 0
  %1858 = vperm.xlu0 %1857, %v59
  %v1859 = vpop.permute.xlu0 %1858
  %1862 = vset.pattern.permute.xlu0 0
  %1863 = vperm.xlu0 %1862, %v71
  %v1864 = vpop.permute.xlu0 %1863
  %1867 = vset.pattern.permute.xlu0 0
  %1868 = vperm.xlu0 %1867, %v83
  %v1869 = vpop.permute.xlu0 %1868
  %1872 = vset.pattern.permute.xlu0 0
  %1873 = vperm.xlu0 %1872, %v95
  %v1874 = vpop.permute.xlu0 %1873
  %1877 = vset.pattern.permute.xlu0 0
  %1878 = vperm.xlu0 %1877, %v107
  %v1879 = vpop.permute.xlu0 %1878
  %1882 = vset.pattern.permute.xlu0 0
  %1883 = vperm.xlu0 %1882, %v119
  %v1884 = vpop.permute.xlu0 %1883
  %1887 = vset.pattern.permute.xlu0 0
  %1888 = vperm.xlu0 %1887, %v131
  %v1889 = vpop.permute.xlu0 %1888
  %1892 = vset.pattern.permute.xlu0 0
  %1893 = vperm.xlu0 %1892, %v143
  %v1894 = vpop.permute.xlu0 %1893
  %1897 = vset.pattern.permute.xlu0 0
  %1898 = vperm.xlu0 %1897, %v155
  %v1899 = vpop.permute.xlu0 %1898
  %1902 = vset.pattern.permute.xlu0 0
  %1903 = vperm.xlu0 %1902, %v167
  %v1904 = vpop.permute.xlu0 %1903
  %1907 = vset.pattern.permute.xlu0 0
  %1908 = vperm.xlu0 %1907, %v179
  %v1909 = vpop.permute.xlu0 %1908
  %1912 = vset.pattern.permute.xlu0 0
  %1913 = vperm.xlu0 %1912, %v191
  %v1914 = vpop.permute.xlu0 %1913
  %1917 = vset.pattern.permute.xlu0 0
  %1918 = vperm.xlu0 %1917, %v203
  %v1919 = vpop.permute.xlu0 %1918
  %1922 = vset.pattern.permute.xlu0 0
  %1923 = vperm.xlu0 %1922, %v215
  %v1924 = vpop.permute.xlu0 %1923
  %1927 = vset.pattern.permute.xlu0 0
  %1928 = vperm.xlu0 %1927, %v227
  %v1929 = vpop.permute.xlu0 %1928
  %v1931 = vmul.f32 %v1854, %v1835
  %v1932 = vmul.f32 %v1859, %v1836
  %v1933 = vmul.f32 %v1864, %v1837
  %v1934 = vmul.f32 %v1869, %v1838
  %v1935 = vmul.f32 %v1874, %v1839
  %v1936 = vmul.f32 %v1879, %v1840
  %v1937 = vmul.f32 %v1884, %v1841
  %v1938 = vmul.f32 %v1889, %v1842
  %v1939 = vmul.f32 %v1894, %v1843
  %v1940 = vmul.f32 %v1899, %v1844
  %v1941 = vmul.f32 %v1904, %v1845
  %v1942 = vmul.f32 %v1909, %v1846
  %v1943 = vmul.f32 %v1914, %v1847
  %v1944 = vmul.f32 %v1919, %v1848
  %v1945 = vmul.f32 %v1924, %v1849
  %v1946 = vmul.f32 %v1929, %v1850
  %1948 = vset.pattern.permute.xlu0 0
  %1949 = vperm.xlu0 %1948, %v20
  %v1950 = vpop.permute.xlu0 %1949
  %1953 = vset.pattern.permute.xlu0 0
  %1954 = vperm.xlu0 %1953, %v21
  %v1955 = vpop.permute.xlu0 %1954
  %1958 = vset.pattern.permute.xlu0 0
  %1959 = vperm.xlu0 %1958, %v22
  %v1960 = vpop.permute.xlu0 %1959
  %1963 = vset.pattern.permute.xlu0 0
  %1964 = vperm.xlu0 %1963, %v23
  %v1965 = vpop.permute.xlu0 %1964
  %1968 = vset.pattern.permute.xlu0 0
  %1969 = vperm.xlu0 %1968, %v24
  %v1970 = vpop.permute.xlu0 %1969
  %1973 = vset.pattern.permute.xlu0 0
  %1974 = vperm.xlu0 %1973, %v25
  %v1975 = vpop.permute.xlu0 %1974
  %1978 = vset.pattern.permute.xlu0 0
  %1979 = vperm.xlu0 %1978, %v26
  %v1980 = vpop.permute.xlu0 %1979
  %1983 = vset.pattern.permute.xlu0 0
  %1984 = vperm.xlu0 %1983, %v27
  %v1985 = vpop.permute.xlu0 %1984
  %1988 = vset.pattern.permute.xlu0 0
  %1989 = vperm.xlu0 %1988, %v28
  %v1990 = vpop.permute.xlu0 %1989
  %1993 = vset.pattern.permute.xlu0 0
  %1994 = vperm.xlu0 %1993, %v29
  %v1995 = vpop.permute.xlu0 %1994
  %1998 = vset.pattern.permute.xlu0 0
  %1999 = vperm.xlu0 %1998, %v30
  %v2000 = vpop.permute.xlu0 %1999
  %2003 = vset.pattern.permute.xlu0 0
  %2004 = vperm.xlu0 %2003, %v31
  %v2005 = vpop.permute.xlu0 %2004
  %2008 = vset.pattern.permute.xlu0 0
  %2009 = vperm.xlu0 %2008, %v32
  %v2010 = vpop.permute.xlu0 %2009
  %2013 = vset.pattern.permute.xlu0 0
  %2014 = vperm.xlu0 %2013, %v33
  %v2015 = vpop.permute.xlu0 %2014
  %2018 = vset.pattern.permute.xlu0 0
  %2019 = vperm.xlu0 %2018, %v34
  %v2020 = vpop.permute.xlu0 %2019
  %2023 = vset.pattern.permute.xlu0 0
  %2024 = vperm.xlu0 %2023, %v35
  %v2025 = vpop.permute.xlu0 %2024
  %v2027 = vmul.f32 %v1796, %v1950
  %v2028 = vmul.f32 %v1798, %v1955
  %v2029 = vmul.f32 %v1801, %v1960
  %v2030 = vmul.f32 %v1803, %v1965
  %v2031 = vmul.f32 %v1806, %v1970
  %v2032 = vmul.f32 %v1808, %v1975
  %v2033 = vmul.f32 %v1811, %v1980
  %v2034 = vmul.f32 %v1813, %v1985
  %v2035 = vmul.f32 %v1816, %v1990
  %v2036 = vmul.f32 %v1818, %v1995
  %v2037 = vmul.f32 %v1821, %v2000
  %v2038 = vmul.f32 %v1823, %v2005
  %v2039 = vmul.f32 %v1826, %v2010
  %v2040 = vmul.f32 %v1828, %v2015
  %v2041 = vmul.f32 %v1831, %v2020
  %v2042 = vmul.f32 %v1833, %v2025
  %v2043 = vadd.f32 %v264, %v2027
  %v2044 = vadd.f32 %v265, %v2028
  %v2045 = vadd.f32 %v266, %v2029
  %v2046 = vadd.f32 %v267, %v2030
  %v2047 = vadd.f32 %v268, %v2031
  %v2048 = vadd.f32 %v269, %v2032
  %v2049 = vadd.f32 %v270, %v2033
  %v2050 = vadd.f32 %v271, %v2034
  %v2051 = vadd.f32 %v272, %v2035
  %v2052 = vadd.f32 %v273, %v2036
  %v2053 = vadd.f32 %v274, %v2037
  %v2054 = vadd.f32 %v275, %v2038
  %v2055 = vadd.f32 %v276, %v2039
  %v2056 = vadd.f32 %v277, %v2040
  %v2057 = vadd.f32 %v278, %v2041
  %v2058 = vadd.f32 %v279, %v2042
  %2075 = vrot.lane.b32.xlu0 %v1931, 2
  %v2076 = vpop.permute.xlu0 %2075
  %2077 = vrot.lane.b32.xlu0 %v1932, 2
  %v2078 = vpop.permute.xlu0 %2077
  %2079 = vrot.lane.b32.xlu0 %v1933, 2
  %v2080 = vpop.permute.xlu0 %2079
  %2081 = vrot.lane.b32.xlu0 %v1934, 2
  %v2082 = vpop.permute.xlu0 %2081
  %2083 = vrot.lane.b32.xlu0 %v1935, 2
  %v2084 = vpop.permute.xlu0 %2083
  %2085 = vrot.lane.b32.xlu0 %v1936, 2
  %v2086 = vpop.permute.xlu0 %2085
  %2087 = vrot.lane.b32.xlu0 %v1937, 2
  %v2088 = vpop.permute.xlu0 %2087
  %2089 = vrot.lane.b32.xlu0 %v1938, 2
  %v2090 = vpop.permute.xlu0 %2089
  %2091 = vrot.lane.b32.xlu0 %v1939, 2
  %v2092 = vpop.permute.xlu0 %2091
  %2093 = vrot.lane.b32.xlu0 %v1940, 2
  %v2094 = vpop.permute.xlu0 %2093
  %2095 = vrot.lane.b32.xlu0 %v1941, 2
  %v2096 = vpop.permute.xlu0 %2095
  %2097 = vrot.lane.b32.xlu0 %v1942, 2
  %v2098 = vpop.permute.xlu0 %2097
  %2099 = vrot.lane.b32.xlu0 %v1943, 2
  %v2100 = vpop.permute.xlu0 %2099
  %2101 = vrot.lane.b32.xlu0 %v1944, 2
  %v2102 = vpop.permute.xlu0 %2101
  %2103 = vrot.lane.b32.xlu0 %v1945, 2
  %v2104 = vpop.permute.xlu0 %2103
  %2105 = vrot.lane.b32.xlu0 %v1946, 2
  %v2106 = vpop.permute.xlu0 %2105
  %v2123 = vmul.f32 %v1796, %v2076
  %v2124 = vmul.f32 %v1798, %v2078
  %v2125 = vmul.f32 %v1801, %v2080
  %v2126 = vmul.f32 %v1803, %v2082
  %v2127 = vmul.f32 %v1806, %v2084
  %v2128 = vmul.f32 %v1808, %v2086
  %v2129 = vmul.f32 %v1811, %v2088
  %v2130 = vmul.f32 %v1813, %v2090
  %v2131 = vmul.f32 %v1816, %v2092
  %v2132 = vmul.f32 %v1818, %v2094
  %v2133 = vmul.f32 %v1821, %v2096
  %v2134 = vmul.f32 %v1823, %v2098
  %v2135 = vmul.f32 %v1826, %v2100
  %v2136 = vmul.f32 %v1828, %v2102
  %v2137 = vmul.f32 %v1831, %v2104
  %v2138 = vmul.f32 %v1833, %v2106
  %2155 = vrot.lane.b32.xlu0 %v2123, 126
  %v2156 = vpop.permute.xlu0 %2155
  %2157 = vrot.lane.b32.xlu0 %v2124, 126
  %v2158 = vpop.permute.xlu0 %2157
  %2159 = vrot.lane.b32.xlu0 %v2125, 126
  %v2160 = vpop.permute.xlu0 %2159
  %2161 = vrot.lane.b32.xlu0 %v2126, 126
  %v2162 = vpop.permute.xlu0 %2161
  %2163 = vrot.lane.b32.xlu0 %v2127, 126
  %v2164 = vpop.permute.xlu0 %2163
  %2165 = vrot.lane.b32.xlu0 %v2128, 126
  %v2166 = vpop.permute.xlu0 %2165
  %2167 = vrot.lane.b32.xlu0 %v2129, 126
  %v2168 = vpop.permute.xlu0 %2167
  %2169 = vrot.lane.b32.xlu0 %v2130, 126
  %v2170 = vpop.permute.xlu0 %2169
  %2171 = vrot.lane.b32.xlu0 %v2131, 126
  %v2172 = vpop.permute.xlu0 %2171
  %2173 = vrot.lane.b32.xlu0 %v2132, 126
  %v2174 = vpop.permute.xlu0 %2173
  %2175 = vrot.lane.b32.xlu0 %v2133, 126
  %v2176 = vpop.permute.xlu0 %2175
  %2177 = vrot.lane.b32.xlu0 %v2134, 126
  %v2178 = vpop.permute.xlu0 %2177
  %2179 = vrot.lane.b32.xlu0 %v2135, 126
  %v2180 = vpop.permute.xlu0 %2179
  %2181 = vrot.lane.b32.xlu0 %v2136, 126
  %v2182 = vpop.permute.xlu0 %2181
  %2183 = vrot.lane.b32.xlu0 %v2137, 126
  %v2184 = vpop.permute.xlu0 %2183
  %2185 = vrot.lane.b32.xlu0 %v2138, 126
  %v2186 = vpop.permute.xlu0 %2185
  %v2203 = vadd.f32 %v2043, %v2156
  %v2204 = vadd.f32 %v2044, %v2158
  %v2205 = vadd.f32 %v2045, %v2160
  %v2206 = vadd.f32 %v2046, %v2162
  %v2207 = vadd.f32 %v2047, %v2164
  %v2208 = vadd.f32 %v2048, %v2166
  %v2209 = vadd.f32 %v2049, %v2168
  %v2210 = vadd.f32 %v2050, %v2170
  %v2211 = vadd.f32 %v2051, %v2172
  %v2212 = vadd.f32 %v2052, %v2174
  %v2213 = vadd.f32 %v2053, %v2176
  %v2214 = vadd.f32 %v2054, %v2178
  %v2215 = vadd.f32 %v2055, %v2180
  %v2216 = vadd.f32 %v2056, %v2182
  %v2217 = vadd.f32 %v2057, %v2184
  %v2218 = vadd.f32 %v2058, %v2186
  %2220 = vset.pattern.permute.xlu0 0
  %2221 = vperm.xlu0 %2220, %v2203
  %v2222 = vpop.permute.xlu0 %2221
  %2225 = vset.pattern.permute.xlu0 0
  %2226 = vperm.xlu0 %2225, %v2204
  %v2227 = vpop.permute.xlu0 %2226
  %2230 = vset.pattern.permute.xlu0 0
  %2231 = vperm.xlu0 %2230, %v2205
  %v2232 = vpop.permute.xlu0 %2231
  %2235 = vset.pattern.permute.xlu0 0
  %2236 = vperm.xlu0 %2235, %v2206
  %v2237 = vpop.permute.xlu0 %2236
  %2240 = vset.pattern.permute.xlu0 0
  %2241 = vperm.xlu0 %2240, %v2207
  %v2242 = vpop.permute.xlu0 %2241
  %2245 = vset.pattern.permute.xlu0 0
  %2246 = vperm.xlu0 %2245, %v2208
  %v2247 = vpop.permute.xlu0 %2246
  %2250 = vset.pattern.permute.xlu0 0
  %2251 = vperm.xlu0 %2250, %v2209
  %v2252 = vpop.permute.xlu0 %2251
  %2255 = vset.pattern.permute.xlu0 0
  %2256 = vperm.xlu0 %2255, %v2210
  %v2257 = vpop.permute.xlu0 %2256
  %2260 = vset.pattern.permute.xlu0 0
  %2261 = vperm.xlu0 %2260, %v2211
  %v2262 = vpop.permute.xlu0 %2261
  %2265 = vset.pattern.permute.xlu0 0
  %2266 = vperm.xlu0 %2265, %v2212
  %v2267 = vpop.permute.xlu0 %2266
  %2270 = vset.pattern.permute.xlu0 0
  %2271 = vperm.xlu0 %2270, %v2213
  %v2272 = vpop.permute.xlu0 %2271
  %2275 = vset.pattern.permute.xlu0 0
  %2276 = vperm.xlu0 %2275, %v2214
  %v2277 = vpop.permute.xlu0 %2276
  %2280 = vset.pattern.permute.xlu0 0
  %2281 = vperm.xlu0 %2280, %v2215
  %v2282 = vpop.permute.xlu0 %2281
  %2285 = vset.pattern.permute.xlu0 0
  %2286 = vperm.xlu0 %2285, %v2216
  %v2287 = vpop.permute.xlu0 %2286
  %2290 = vset.pattern.permute.xlu0 0
  %2291 = vperm.xlu0 %2290, %v2217
  %v2292 = vpop.permute.xlu0 %2291
  %2295 = vset.pattern.permute.xlu0 0
  %2296 = vperm.xlu0 %2295, %v2218
  %v2297 = vpop.permute.xlu0 %2296
  %v2299 = vmul.f32 %v2222, %v230
  %v2300 = vmul.f32 %v2222, %v231
  %v2301 = vmul.f32 %v2227, %v230
  %v2302 = vmul.f32 %v2227, %v231
  %v2303 = vmul.f32 %v2232, %v230
  %v2304 = vmul.f32 %v2232, %v231
  %v2305 = vmul.f32 %v2237, %v230
  %v2306 = vmul.f32 %v2237, %v231
  %v2307 = vmul.f32 %v2242, %v230
  %v2308 = vmul.f32 %v2242, %v231
  %v2309 = vmul.f32 %v2247, %v230
  %v2310 = vmul.f32 %v2247, %v231
  %v2311 = vmul.f32 %v2252, %v230
  %v2312 = vmul.f32 %v2252, %v231
  %v2313 = vmul.f32 %v2257, %v230
  %v2314 = vmul.f32 %v2257, %v231
  %v2315 = vmul.f32 %v2262, %v230
  %v2316 = vmul.f32 %v2262, %v231
  %v2317 = vmul.f32 %v2267, %v230
  %v2318 = vmul.f32 %v2267, %v231
  %v2319 = vmul.f32 %v2272, %v230
  %v2320 = vmul.f32 %v2272, %v231
  %v2321 = vmul.f32 %v2277, %v230
  %v2322 = vmul.f32 %v2277, %v231
  %v2323 = vmul.f32 %v2282, %v230
  %v2324 = vmul.f32 %v2282, %v231
  %v2325 = vmul.f32 %v2287, %v230
  %v2326 = vmul.f32 %v2287, %v231
  %v2327 = vmul.f32 %v2292, %v230
  %v2328 = vmul.f32 %v2292, %v231
  %v2329 = vmul.f32 %v2297, %v230
  %v2330 = vmul.f32 %v2297, %v231
  %2331 = vset.pattern.permute.xlu0 1
  %2332 = vperm.xlu0 %2331, %v2203
  %v2333 = vpop.permute.xlu0 %2332
  %2335 = vset.pattern.permute.xlu0 1
  %2336 = vperm.xlu0 %2335, %v2204
  %v2337 = vpop.permute.xlu0 %2336
  %2339 = vset.pattern.permute.xlu0 1
  %2340 = vperm.xlu0 %2339, %v2205
  %v2341 = vpop.permute.xlu0 %2340
  %2343 = vset.pattern.permute.xlu0 1
  %2344 = vperm.xlu0 %2343, %v2206
  %v2345 = vpop.permute.xlu0 %2344
  %2347 = vset.pattern.permute.xlu0 1
  %2348 = vperm.xlu0 %2347, %v2207
  %v2349 = vpop.permute.xlu0 %2348
  %2351 = vset.pattern.permute.xlu0 1
  %2352 = vperm.xlu0 %2351, %v2208
  %v2353 = vpop.permute.xlu0 %2352
  %2355 = vset.pattern.permute.xlu0 1
  %2356 = vperm.xlu0 %2355, %v2209
  %v2357 = vpop.permute.xlu0 %2356
  %2359 = vset.pattern.permute.xlu0 1
  %2360 = vperm.xlu0 %2359, %v2210
  %v2361 = vpop.permute.xlu0 %2360
  %2363 = vset.pattern.permute.xlu0 1
  %2364 = vperm.xlu0 %2363, %v2211
  %v2365 = vpop.permute.xlu0 %2364
  %2367 = vset.pattern.permute.xlu0 1
  %2368 = vperm.xlu0 %2367, %v2212
  %v2369 = vpop.permute.xlu0 %2368
  %2371 = vset.pattern.permute.xlu0 1
  %2372 = vperm.xlu0 %2371, %v2213
  %v2373 = vpop.permute.xlu0 %2372
  %2375 = vset.pattern.permute.xlu0 1
  %2376 = vperm.xlu0 %2375, %v2214
  %v2377 = vpop.permute.xlu0 %2376
  %2379 = vset.pattern.permute.xlu0 1
  %2380 = vperm.xlu0 %2379, %v2215
  %v2381 = vpop.permute.xlu0 %2380
  %2383 = vset.pattern.permute.xlu0 1
  %2384 = vperm.xlu0 %2383, %v2216
  %v2385 = vpop.permute.xlu0 %2384
  %2387 = vset.pattern.permute.xlu0 1
  %2388 = vperm.xlu0 %2387, %v2217
  %v2389 = vpop.permute.xlu0 %2388
  %2391 = vset.pattern.permute.xlu0 1
  %2392 = vperm.xlu0 %2391, %v2218
  %v2393 = vpop.permute.xlu0 %2392
  %v2395 = vmul.f32 %v2333, %v237
  %v2396 = vmul.f32 %v2333, %v238
  %v2397 = vmul.f32 %v2337, %v237
  %v2398 = vmul.f32 %v2337, %v238
  %v2399 = vmul.f32 %v2341, %v237
  %v2400 = vmul.f32 %v2341, %v238
  %v2401 = vmul.f32 %v2345, %v237
  %v2402 = vmul.f32 %v2345, %v238
  %v2403 = vmul.f32 %v2349, %v237
  %v2404 = vmul.f32 %v2349, %v238
  %v2405 = vmul.f32 %v2353, %v237
  %v2406 = vmul.f32 %v2353, %v238
  %v2407 = vmul.f32 %v2357, %v237
  %v2408 = vmul.f32 %v2357, %v238
  %v2409 = vmul.f32 %v2361, %v237
  %v2410 = vmul.f32 %v2361, %v238
  %v2411 = vmul.f32 %v2365, %v237
  %v2412 = vmul.f32 %v2365, %v238
  %v2413 = vmul.f32 %v2369, %v237
  %v2414 = vmul.f32 %v2369, %v238
  %v2415 = vmul.f32 %v2373, %v237
  %v2416 = vmul.f32 %v2373, %v238
  %v2417 = vmul.f32 %v2377, %v237
  %v2418 = vmul.f32 %v2377, %v238
  %v2419 = vmul.f32 %v2381, %v237
  %v2420 = vmul.f32 %v2381, %v238
  %v2421 = vmul.f32 %v2385, %v237
  %v2422 = vmul.f32 %v2385, %v238
  %v2423 = vmul.f32 %v2389, %v237
  %v2424 = vmul.f32 %v2389, %v238
  %v2425 = vmul.f32 %v2393, %v237
  %v2426 = vmul.f32 %v2393, %v238
  %v2427 = vadd.f32 %v2299, %v2395
  %v2428 = vadd.f32 %v2300, %v2396
  %v2429 = vadd.f32 %v2301, %v2397
  %v2430 = vadd.f32 %v2302, %v2398
  %v2431 = vadd.f32 %v2303, %v2399
  %v2432 = vadd.f32 %v2304, %v2400
  %v2433 = vadd.f32 %v2305, %v2401
  %v2434 = vadd.f32 %v2306, %v2402
  %v2435 = vadd.f32 %v2307, %v2403
  %v2436 = vadd.f32 %v2308, %v2404
  %v2437 = vadd.f32 %v2309, %v2405
  %v2438 = vadd.f32 %v2310, %v2406
  %v2439 = vadd.f32 %v2311, %v2407
  %v2440 = vadd.f32 %v2312, %v2408
  %v2441 = vadd.f32 %v2313, %v2409
  %v2442 = vadd.f32 %v2314, %v2410
  %v2443 = vadd.f32 %v2315, %v2411
  %v2444 = vadd.f32 %v2316, %v2412
  %v2445 = vadd.f32 %v2317, %v2413
  %v2446 = vadd.f32 %v2318, %v2414
  %v2447 = vadd.f32 %v2319, %v2415
  %v2448 = vadd.f32 %v2320, %v2416
  %v2449 = vadd.f32 %v2321, %v2417
  %v2450 = vadd.f32 %v2322, %v2418
  %v2451 = vadd.f32 %v2323, %v2419
  %v2452 = vadd.f32 %v2324, %v2420
  %v2453 = vadd.f32 %v2325, %v2421
  %v2454 = vadd.f32 %v2326, %v2422
  %v2455 = vadd.f32 %v2327, %v2423
  %v2456 = vadd.f32 %v2328, %v2424
  %v2457 = vadd.f32 %v2329, %v2425
  %v2458 = vadd.f32 %v2330, %v2426
  %v2459 = vadd.f32 %v2427, %v244
  %v2460 = vadd.f32 %v2428, %v245
  %v2461 = vadd.f32 %v2429, %v244
  %v2462 = vadd.f32 %v2430, %v245
  %v2463 = vadd.f32 %v2431, %v244
  %v2464 = vadd.f32 %v2432, %v245
  %v2465 = vadd.f32 %v2433, %v244
  %v2466 = vadd.f32 %v2434, %v245
  %v2467 = vadd.f32 %v2435, %v244
  %v2468 = vadd.f32 %v2436, %v245
  %v2469 = vadd.f32 %v2437, %v244
  %v2470 = vadd.f32 %v2438, %v245
  %v2471 = vadd.f32 %v2439, %v244
  %v2472 = vadd.f32 %v2440, %v245
  %v2473 = vadd.f32 %v2441, %v244
  %v2474 = vadd.f32 %v2442, %v245
  %v2475 = vadd.f32 %v2443, %v244
  %v2476 = vadd.f32 %v2444, %v245
  %v2477 = vadd.f32 %v2445, %v244
  %v2478 = vadd.f32 %v2446, %v245
  %v2479 = vadd.f32 %v2447, %v244
  %v2480 = vadd.f32 %v2448, %v245
  %v2481 = vadd.f32 %v2449, %v244
  %v2482 = vadd.f32 %v2450, %v245
  %v2483 = vadd.f32 %v2451, %v244
  %v2484 = vadd.f32 %v2452, %v245
  %v2485 = vadd.f32 %v2453, %v244
  %v2486 = vadd.f32 %v2454, %v245
  %v2487 = vadd.f32 %v2455, %v244
  %v2488 = vadd.f32 %v2456, %v245
  %v2489 = vadd.f32 %v2457, %v244
  %v2490 = vadd.f32 %v2458, %v245
  %v2491 = vmax.f32 %v2459, 0.0
  %v2492 = vmax.f32 %v2460, 0.0
  %v2493 = vmax.f32 %v2461, 0.0
  %v2494 = vmax.f32 %v2462, 0.0
  %v2495 = vmax.f32 %v2463, 0.0
  %v2496 = vmax.f32 %v2464, 0.0
  %v2497 = vmax.f32 %v2465, 0.0
  %v2498 = vmax.f32 %v2466, 0.0
  %v2499 = vmax.f32 %v2467, 0.0
  %v2500 = vmax.f32 %v2468, 0.0
  %v2501 = vmax.f32 %v2469, 0.0
  %v2502 = vmax.f32 %v2470, 0.0
  %v2503 = vmax.f32 %v2471, 0.0
  %v2504 = vmax.f32 %v2472, 0.0
  %v2505 = vmax.f32 %v2473, 0.0
  %v2506 = vmax.f32 %v2474, 0.0
  %v2507 = vmax.f32 %v2475, 0.0
  %v2508 = vmax.f32 %v2476, 0.0
  %v2509 = vmax.f32 %v2477, 0.0
  %v2510 = vmax.f32 %v2478, 0.0
  %v2511 = vmax.f32 %v2479, 0.0
  %v2512 = vmax.f32 %v2480, 0.0
  %v2513 = vmax.f32 %v2481, 0.0
  %v2514 = vmax.f32 %v2482, 0.0
  %v2515 = vmax.f32 %v2483, 0.0
  %v2516 = vmax.f32 %v2484, 0.0
  %v2517 = vmax.f32 %v2485, 0.0
  %v2518 = vmax.f32 %v2486, 0.0
  %v2519 = vmax.f32 %v2487, 0.0
  %v2520 = vmax.f32 %v2488, 0.0
  %v2521 = vmax.f32 %v2489, 0.0
  %v2522 = vmax.f32 %v2490, 0.0
  %v2523 = vpack.c.bf16 %v2493, %v2491
  %v2524 = vpack.c.bf16 %v2494, %v2492
  %v2525 = vpack.c.bf16 %v2497, %v2495
  %v2526 = vpack.c.bf16 %v2498, %v2496
  %v2527 = vpack.c.bf16 %v2501, %v2499
  %v2528 = vpack.c.bf16 %v2502, %v2500
  %v2529 = vpack.c.bf16 %v2505, %v2503
  %v2530 = vpack.c.bf16 %v2506, %v2504
  %v2531 = vpack.c.bf16 %v2509, %v2507
  %v2532 = vpack.c.bf16 %v2510, %v2508
  %v2533 = vpack.c.bf16 %v2513, %v2511
  %v2534 = vpack.c.bf16 %v2514, %v2512
  %v2535 = vpack.c.bf16 %v2517, %v2515
  %v2536 = vpack.c.bf16 %v2518, %v2516
  %v2537 = vpack.c.bf16 %v2521, %v2519
  %v2538 = vpack.c.bf16 %v2522, %v2520
  %2539 = vmatpush.bf16.msra.mxu0 %v742
  %2540 = vmatpush.bf16.msra.mxu0 %v740
  %2541 = vmatpush.bf16.msra.mxu0 %v738
  %2542 = vmatpush.bf16.msra.mxu0 %v736
  %2543 = vmatpush.bf16.msra.mxu0 %v734
  %2544 = vmatpush.bf16.msra.mxu0 %v732
  %2545 = vmatpush.bf16.msra.mxu0 %v730
  %2546 = vmatpush.bf16.msra.mxu0 %v728
  %2547 = vmatmul.bf16.gmra.mxu0 %v2523
  %v2548 = vpop.f32.mrf.mxu0
  %v2549 = vadd.f32 %v251, %v2548
  %v2550 = vpop.f32.mrf.mxu0
  %v2551 = vadd.f32 %v251, %v2550
  %2552 = vmatmul.bf16.gmra.mxu0 %v2525
  %v2553 = vpop.f32.mrf.mxu0
  %v2554 = vadd.f32 %v251, %v2553
  %v2555 = vpop.f32.mrf.mxu0
  %v2556 = vadd.f32 %v251, %v2555
  %2557 = vmatmul.bf16.gmra.mxu0 %v2527
  %v2558 = vpop.f32.mrf.mxu0
  %v2559 = vadd.f32 %v251, %v2558
  %v2560 = vpop.f32.mrf.mxu0
  %v2561 = vadd.f32 %v251, %v2560
  %2562 = vmatmul.bf16.gmra.mxu0 %v2529
  %v2563 = vpop.f32.mrf.mxu0
  %v2564 = vadd.f32 %v251, %v2563
  %v2565 = vpop.f32.mrf.mxu0
  %v2566 = vadd.f32 %v251, %v2565
  %2567 = vmatmul.bf16.gmra.mxu0 %v2531
  %v2568 = vpop.f32.mrf.mxu0
  %v2569 = vadd.f32 %v251, %v2568
  %v2570 = vpop.f32.mrf.mxu0
  %v2571 = vadd.f32 %v251, %v2570
  %2572 = vmatmul.bf16.gmra.mxu0 %v2533
  %v2573 = vpop.f32.mrf.mxu0
  %v2574 = vadd.f32 %v251, %v2573
  %v2575 = vpop.f32.mrf.mxu0
  %v2576 = vadd.f32 %v251, %v2575
  %2577 = vmatmul.bf16.gmra.mxu0 %v2535
  %v2578 = vpop.f32.mrf.mxu0
  %v2579 = vadd.f32 %v251, %v2578
  %v2580 = vpop.f32.mrf.mxu0
  %v2581 = vadd.f32 %v251, %v2580
  %2582 = vmatmul.bf16.gmra.mxu0 %v2537
  %v2583 = vpop.f32.mrf.mxu0
  %v2584 = vadd.f32 %v251, %v2583
  %v2585 = vpop.f32.mrf.mxu0
  %v2586 = vadd.f32 %v251, %v2585
  %2587 = vdwg.mxu0
  %2588 = vmatpush.bf16.msra.mxu0 %v758
  %2589 = vmatpush.bf16.msra.mxu0 %v756
  %2590 = vmatpush.bf16.msra.mxu0 %v754
  %2591 = vmatpush.bf16.msra.mxu0 %v752
  %2592 = vmatpush.bf16.msra.mxu0 %v750
  %2593 = vmatpush.bf16.msra.mxu0 %v748
  %2594 = vmatpush.bf16.msra.mxu0 %v746
  %2595 = vmatpush.bf16.msra.mxu0 %v744
  %2596 = vmatmul.bf16.gmra.mxu0 %v2524
  %v2597 = vpop.f32.mrf.mxu0
  %v2598 = vadd.f32 %v2549, %v2597
  %v2599 = vpop.f32.mrf.mxu0
  %v2600 = vadd.f32 %v2551, %v2599
  %2601 = vmatmul.bf16.gmra.mxu0 %v2526
  %v2602 = vpop.f32.mrf.mxu0
  %v2603 = vadd.f32 %v2554, %v2602
  %v2604 = vpop.f32.mrf.mxu0
  %v2605 = vadd.f32 %v2556, %v2604
  %2606 = vmatmul.bf16.gmra.mxu0 %v2528
  %v2607 = vpop.f32.mrf.mxu0
  %v2608 = vadd.f32 %v2559, %v2607
  %v2609 = vpop.f32.mrf.mxu0
  %v2610 = vadd.f32 %v2561, %v2609
  %2611 = vmatmul.bf16.gmra.mxu0 %v2530
  %v2612 = vpop.f32.mrf.mxu0
  %v2613 = vadd.f32 %v2564, %v2612
  %v2614 = vpop.f32.mrf.mxu0
  %v2615 = vadd.f32 %v2566, %v2614
  %2616 = vmatmul.bf16.gmra.mxu0 %v2532
  %v2617 = vpop.f32.mrf.mxu0
  %v2618 = vadd.f32 %v2569, %v2617
  %v2619 = vpop.f32.mrf.mxu0
  %v2620 = vadd.f32 %v2571, %v2619
  %2621 = vmatmul.bf16.gmra.mxu0 %v2534
  %v2622 = vpop.f32.mrf.mxu0
  %v2623 = vadd.f32 %v2574, %v2622
  %v2624 = vpop.f32.mrf.mxu0
  %v2625 = vadd.f32 %v2576, %v2624
  %2626 = vmatmul.bf16.gmra.mxu0 %v2536
  %v2627 = vpop.f32.mrf.mxu0
  %v2628 = vadd.f32 %v2579, %v2627
  %v2629 = vpop.f32.mrf.mxu0
  %v2630 = vadd.f32 %v2581, %v2629
  %2631 = vmatmul.bf16.gmra.mxu0 %v2538
  %v2632 = vpop.f32.mrf.mxu0
  %v2633 = vadd.f32 %v2584, %v2632
  %v2634 = vpop.f32.mrf.mxu0
  %v2635 = vadd.f32 %v2586, %v2634
  %2636 = vdwg.mxu0
  %2637 = vmatpush.bf16.msra.mxu0 %v743
  %2638 = vmatpush.bf16.msra.mxu0 %v741
  %2639 = vmatpush.bf16.msra.mxu0 %v739
  %2640 = vmatpush.bf16.msra.mxu0 %v737
  %2641 = vmatpush.bf16.msra.mxu0 %v735
  %2642 = vmatpush.bf16.msra.mxu0 %v733
  %2643 = vmatpush.bf16.msra.mxu0 %v731
  %2644 = vmatpush.bf16.msra.mxu0 %v729
  %2645 = vmatmul.bf16.gmra.mxu0 %v2523
  %v2646 = vpop.f32.mrf.mxu0
  %v2647 = vadd.f32 %v252, %v2646
  %v2648 = vpop.f32.mrf.mxu0
  %v2649 = vadd.f32 %v252, %v2648
  %2650 = vmatmul.bf16.gmra.mxu0 %v2525
  %v2651 = vpop.f32.mrf.mxu0
  %v2652 = vadd.f32 %v252, %v2651
  %v2653 = vpop.f32.mrf.mxu0
  %v2654 = vadd.f32 %v252, %v2653
  %2655 = vmatmul.bf16.gmra.mxu0 %v2527
  %v2656 = vpop.f32.mrf.mxu0
  %v2657 = vadd.f32 %v252, %v2656
  %v2658 = vpop.f32.mrf.mxu0
  %v2659 = vadd.f32 %v252, %v2658
  %2660 = vmatmul.bf16.gmra.mxu0 %v2529
  %v2661 = vpop.f32.mrf.mxu0
  %v2662 = vadd.f32 %v252, %v2661
  %v2663 = vpop.f32.mrf.mxu0
  %v2664 = vadd.f32 %v252, %v2663
  %2665 = vmatmul.bf16.gmra.mxu0 %v2531
  %v2666 = vpop.f32.mrf.mxu0
  %v2667 = vadd.f32 %v252, %v2666
  %v2668 = vpop.f32.mrf.mxu0
  %v2669 = vadd.f32 %v252, %v2668
  %2670 = vmatmul.bf16.gmra.mxu0 %v2533
  %v2671 = vpop.f32.mrf.mxu0
  %v2672 = vadd.f32 %v252, %v2671
  %v2673 = vpop.f32.mrf.mxu0
  %v2674 = vadd.f32 %v252, %v2673
  %2675 = vmatmul.bf16.gmra.mxu0 %v2535
  %v2676 = vpop.f32.mrf.mxu0
  %v2677 = vadd.f32 %v252, %v2676
  %v2678 = vpop.f32.mrf.mxu0
  %v2679 = vadd.f32 %v252, %v2678
  %2680 = vmatmul.bf16.gmra.mxu0 %v2537
  %v2681 = vpop.f32.mrf.mxu0
  %v2682 = vadd.f32 %v252, %v2681
  %v2683 = vpop.f32.mrf.mxu0
  %v2684 = vadd.f32 %v252, %v2683
  %2685 = vdwg.mxu0
  %2686 = vmatpush.bf16.msra.mxu0 %v759
  %2687 = vmatpush.bf16.msra.mxu0 %v757
  %2688 = vmatpush.bf16.msra.mxu0 %v755
  %2689 = vmatpush.bf16.msra.mxu0 %v753
  %2690 = vmatpush.bf16.msra.mxu0 %v751
  %2691 = vmatpush.bf16.msra.mxu0 %v749
  %2692 = vmatpush.bf16.msra.mxu0 %v747
  %2693 = vmatpush.bf16.msra.mxu0 %v745
  %2694 = vmatmul.bf16.gmra.mxu0 %v2524
  %v2695 = vpop.f32.mrf.mxu0
  %v2696 = vadd.f32 %v2647, %v2695
  %v2697 = vpop.f32.mrf.mxu0
  %v2698 = vadd.f32 %v2649, %v2697
  %2699 = vmatmul.bf16.gmra.mxu0 %v2526
  %v2700 = vpop.f32.mrf.mxu0
  %v2701 = vadd.f32 %v2652, %v2700
  %v2702 = vpop.f32.mrf.mxu0
  %v2703 = vadd.f32 %v2654, %v2702
  %2704 = vmatmul.bf16.gmra.mxu0 %v2528
  %v2705 = vpop.f32.mrf.mxu0
  %v2706 = vadd.f32 %v2657, %v2705
  %v2707 = vpop.f32.mrf.mxu0
  %v2708 = vadd.f32 %v2659, %v2707
  %2709 = vmatmul.bf16.gmra.mxu0 %v2530
  %v2710 = vpop.f32.mrf.mxu0
  %v2711 = vadd.f32 %v2662, %v2710
  %v2712 = vpop.f32.mrf.mxu0
  %v2713 = vadd.f32 %v2664, %v2712
  %2714 = vmatmul.bf16.gmra.mxu0 %v2532
  %v2715 = vpop.f32.mrf.mxu0
  %v2716 = vadd.f32 %v2667, %v2715
  %v2717 = vpop.f32.mrf.mxu0
  %v2718 = vadd.f32 %v2669, %v2717
  %2719 = vmatmul.bf16.gmra.mxu0 %v2534
  %v2720 = vpop.f32.mrf.mxu0
  %v2721 = vadd.f32 %v2672, %v2720
  %v2722 = vpop.f32.mrf.mxu0
  %v2723 = vadd.f32 %v2674, %v2722
  %2724 = vmatmul.bf16.gmra.mxu0 %v2536
  %v2725 = vpop.f32.mrf.mxu0
  %v2726 = vadd.f32 %v2677, %v2725
  %v2727 = vpop.f32.mrf.mxu0
  %v2728 = vadd.f32 %v2679, %v2727
  %2729 = vmatmul.bf16.gmra.mxu0 %v2538
  %v2730 = vpop.f32.mrf.mxu0
  %v2731 = vadd.f32 %v2682, %v2730
  %v2732 = vpop.f32.mrf.mxu0
  %v2733 = vadd.f32 %v2684, %v2732
  %2734 = vdwg.mxu0
  %v2735 = vmax.f32 %v2598, 0.0
  %v2736 = vmax.f32 %v2696, 0.0
  %v2737 = vmax.f32 %v2600, 0.0
  %v2738 = vmax.f32 %v2698, 0.0
  %v2739 = vmax.f32 %v2603, 0.0
  %v2740 = vmax.f32 %v2701, 0.0
  %v2741 = vmax.f32 %v2605, 0.0
  %v2742 = vmax.f32 %v2703, 0.0
  %v2743 = vmax.f32 %v2608, 0.0
  %v2744 = vmax.f32 %v2706, 0.0
  %v2745 = vmax.f32 %v2610, 0.0
  %v2746 = vmax.f32 %v2708, 0.0
  %v2747 = vmax.f32 %v2613, 0.0
  %v2748 = vmax.f32 %v2711, 0.0
  %v2749 = vmax.f32 %v2615, 0.0
  %v2750 = vmax.f32 %v2713, 0.0
  %v2751 = vmax.f32 %v2618, 0.0
  %v2752 = vmax.f32 %v2716, 0.0
  %v2753 = vmax.f32 %v2620, 0.0
  %v2754 = vmax.f32 %v2718, 0.0
  %v2755 = vmax.f32 %v2623, 0.0
  %v2756 = vmax.f32 %v2721, 0.0
  %v2757 = vmax.f32 %v2625, 0.0
  %v2758 = vmax.f32 %v2723, 0.0
  %v2759 = vmax.f32 %v2628, 0.0
  %v2760 = vmax.f32 %v2726, 0.0
  %v2761 = vmax.f32 %v2630, 0.0
  %v2762 = vmax.f32 %v2728, 0.0
  %v2763 = vmax.f32 %v2633, 0.0
  %v2764 = vmax.f32 %v2731, 0.0
  %v2765 = vmax.f32 %v2635, 0.0
  %v2766 = vmax.f32 %v2733, 0.0
  %v2767 = vpack.c.bf16 %v2737, %v2735
  %v2768 = vpack.c.bf16 %v2738, %v2736
  %v2769 = vpack.c.bf16 %v2741, %v2739
  %v2770 = vpack.c.bf16 %v2742, %v2740
  %v2771 = vpack.c.bf16 %v2745, %v2743
  %v2772 = vpack.c.bf16 %v2746, %v2744
  %v2773 = vpack.c.bf16 %v2749, %v2747
  %v2774 = vpack.c.bf16 %v2750, %v2748
  %v2775 = vpack.c.bf16 %v2753, %v2751
  %v2776 = vpack.c.bf16 %v2754, %v2752
  %v2777 = vpack.c.bf16 %v2757, %v2755
  %v2778 = vpack.c.bf16 %v2758, %v2756
  %v2779 = vpack.c.bf16 %v2761, %v2759
  %v2780 = vpack.c.bf16 %v2762, %v2760
  %v2781 = vpack.c.bf16 %v2765, %v2763
  %v2782 = vpack.c.bf16 %v2766, %v2764
  %2783 = vmatpush.bf16.msra.mxu0 %v1178
  %2784 = vmatpush.bf16.msra.mxu0 %v1176
  %2785 = vmatpush.bf16.msra.mxu0 %v1174
  %2786 = vmatpush.bf16.msra.mxu0 %v1172
  %2787 = vmatpush.bf16.msra.mxu0 %v1170
  %2788 = vmatpush.bf16.msra.mxu0 %v1168
  %2789 = vmatpush.bf16.msra.mxu0 %v1166
  %2790 = vmatpush.bf16.msra.mxu0 %v1164
  %2791 = vmatmul.bf16.gmra.mxu0 %v2767
  %v2792 = vpop.f32.mrf.mxu0
  %v2793 = vadd.f32 %v258, %v2792
  %v2794 = vpop.f32.mrf.mxu0
  %v2795 = vadd.f32 %v258, %v2794
  %2796 = vmatmul.bf16.gmra.mxu0 %v2769
  %v2797 = vpop.f32.mrf.mxu0
  %v2798 = vadd.f32 %v258, %v2797
  %v2799 = vpop.f32.mrf.mxu0
  %v2800 = vadd.f32 %v258, %v2799
  %2801 = vmatmul.bf16.gmra.mxu0 %v2771
  %v2802 = vpop.f32.mrf.mxu0
  %v2803 = vadd.f32 %v258, %v2802
  %v2804 = vpop.f32.mrf.mxu0
  %v2805 = vadd.f32 %v258, %v2804
  %2806 = vmatmul.bf16.gmra.mxu0 %v2773
  %v2807 = vpop.f32.mrf.mxu0
  %v2808 = vadd.f32 %v258, %v2807
  %v2809 = vpop.f32.mrf.mxu0
  %v2810 = vadd.f32 %v258, %v2809
  %2811 = vmatmul.bf16.gmra.mxu0 %v2775
  %v2812 = vpop.f32.mrf.mxu0
  %v2813 = vadd.f32 %v258, %v2812
  %v2814 = vpop.f32.mrf.mxu0
  %v2815 = vadd.f32 %v258, %v2814
  %2816 = vmatmul.bf16.gmra.mxu0 %v2777
  %v2817 = vpop.f32.mrf.mxu0
  %v2818 = vadd.f32 %v258, %v2817
  %v2819 = vpop.f32.mrf.mxu0
  %v2820 = vadd.f32 %v258, %v2819
  %2821 = vmatmul.bf16.gmra.mxu0 %v2779
  %v2822 = vpop.f32.mrf.mxu0
  %v2823 = vadd.f32 %v258, %v2822
  %v2824 = vpop.f32.mrf.mxu0
  %v2825 = vadd.f32 %v258, %v2824
  %2826 = vmatmul.bf16.gmra.mxu0 %v2781
  %v2827 = vpop.f32.mrf.mxu0
  %v2828 = vadd.f32 %v258, %v2827
  %v2829 = vpop.f32.mrf.mxu0
  %v2830 = vadd.f32 %v258, %v2829
  %2831 = vdwg.mxu0
  %2832 = vmatpush.bf16.msra.mxu0 %v1194
  %2833 = vmatpush.bf16.msra.mxu0 %v1192
  %2834 = vmatpush.bf16.msra.mxu0 %v1190
  %2835 = vmatpush.bf16.msra.mxu0 %v1188
  %2836 = vmatpush.bf16.msra.mxu0 %v1186
  %2837 = vmatpush.bf16.msra.mxu0 %v1184
  %2838 = vmatpush.bf16.msra.mxu0 %v1182
  %2839 = vmatpush.bf16.msra.mxu0 %v1180
  %2840 = vmatmul.bf16.gmra.mxu0 %v2768
  %v2841 = vpop.f32.mrf.mxu0
  %v2842 = vadd.f32 %v2793, %v2841
  %v2843 = vpop.f32.mrf.mxu0
  %v2844 = vadd.f32 %v2795, %v2843
  %2845 = vmatmul.bf16.gmra.mxu0 %v2770
  %v2846 = vpop.f32.mrf.mxu0
  %v2847 = vadd.f32 %v2798, %v2846
  %v2848 = vpop.f32.mrf.mxu0
  %v2849 = vadd.f32 %v2800, %v2848
  %2850 = vmatmul.bf16.gmra.mxu0 %v2772
  %v2851 = vpop.f32.mrf.mxu0
  %v2852 = vadd.f32 %v2803, %v2851
  %v2853 = vpop.f32.mrf.mxu0
  %v2854 = vadd.f32 %v2805, %v2853
  %2855 = vmatmul.bf16.gmra.mxu0 %v2774
  %v2856 = vpop.f32.mrf.mxu0
  %v2857 = vadd.f32 %v2808, %v2856
  %v2858 = vpop.f32.mrf.mxu0
  %v2859 = vadd.f32 %v2810, %v2858
  %2860 = vmatmul.bf16.gmra.mxu0 %v2776
  %v2861 = vpop.f32.mrf.mxu0
  %v2862 = vadd.f32 %v2813, %v2861
  %v2863 = vpop.f32.mrf.mxu0
  %v2864 = vadd.f32 %v2815, %v2863
  %2865 = vmatmul.bf16.gmra.mxu0 %v2778
  %v2866 = vpop.f32.mrf.mxu0
  %v2867 = vadd.f32 %v2818, %v2866
  %v2868 = vpop.f32.mrf.mxu0
  %v2869 = vadd.f32 %v2820, %v2868
  %2870 = vmatmul.bf16.gmra.mxu0 %v2780
  %v2871 = vpop.f32.mrf.mxu0
  %v2872 = vadd.f32 %v2823, %v2871
  %v2873 = vpop.f32.mrf.mxu0
  %v2874 = vadd.f32 %v2825, %v2873
  %2875 = vmatmul.bf16.gmra.mxu0 %v2782
  %v2876 = vpop.f32.mrf.mxu0
  %v2877 = vadd.f32 %v2828, %v2876
  %v2878 = vpop.f32.mrf.mxu0
  %v2879 = vadd.f32 %v2830, %v2878
  %2880 = vdwg.mxu0
  %2881 = vmatpush.bf16.msra.mxu0 %v1179
  %2882 = vmatpush.bf16.msra.mxu0 %v1177
  %2883 = vmatpush.bf16.msra.mxu0 %v1175
  %2884 = vmatpush.bf16.msra.mxu0 %v1173
  %2885 = vmatpush.bf16.msra.mxu0 %v1171
  %2886 = vmatpush.bf16.msra.mxu0 %v1169
  %2887 = vmatpush.bf16.msra.mxu0 %v1167
  %2888 = vmatpush.bf16.msra.mxu0 %v1165
  %2889 = vmatmul.bf16.gmra.mxu0 %v2767
  %v2890 = vpop.f32.mrf.mxu0
  %v2891 = vadd.f32 %v259, %v2890
  %v2892 = vpop.f32.mrf.mxu0
  %v2893 = vadd.f32 %v259, %v2892
  %2894 = vmatmul.bf16.gmra.mxu0 %v2769
  %v2895 = vpop.f32.mrf.mxu0
  %v2896 = vadd.f32 %v259, %v2895
  %v2897 = vpop.f32.mrf.mxu0
  %v2898 = vadd.f32 %v259, %v2897
  %2899 = vmatmul.bf16.gmra.mxu0 %v2771
  %v2900 = vpop.f32.mrf.mxu0
  %v2901 = vadd.f32 %v259, %v2900
  %v2902 = vpop.f32.mrf.mxu0
  %v2903 = vadd.f32 %v259, %v2902
  %2904 = vmatmul.bf16.gmra.mxu0 %v2773
  %v2905 = vpop.f32.mrf.mxu0
  %v2906 = vadd.f32 %v259, %v2905
  %v2907 = vpop.f32.mrf.mxu0
  %v2908 = vadd.f32 %v259, %v2907
  %2909 = vmatmul.bf16.gmra.mxu0 %v2775
  %v2910 = vpop.f32.mrf.mxu0
  %v2911 = vadd.f32 %v259, %v2910
  %v2912 = vpop.f32.mrf.mxu0
  %v2913 = vadd.f32 %v259, %v2912
  %2914 = vmatmul.bf16.gmra.mxu0 %v2777
  %v2915 = vpop.f32.mrf.mxu0
  %v2916 = vadd.f32 %v259, %v2915
  %v2917 = vpop.f32.mrf.mxu0
  %v2918 = vadd.f32 %v259, %v2917
  %2919 = vmatmul.bf16.gmra.mxu0 %v2779
  %v2920 = vpop.f32.mrf.mxu0
  %v2921 = vadd.f32 %v259, %v2920
  %v2922 = vpop.f32.mrf.mxu0
  %v2923 = vadd.f32 %v259, %v2922
  %2924 = vmatmul.bf16.gmra.mxu0 %v2781
  %v2925 = vpop.f32.mrf.mxu0
  %v2926 = vadd.f32 %v259, %v2925
  %v2927 = vpop.f32.mrf.mxu0
  %v2928 = vadd.f32 %v259, %v2927
  %2929 = vdwg.mxu0
  %2930 = vmatpush.bf16.msra.mxu0 %v1195
  %2931 = vmatpush.bf16.msra.mxu0 %v1193
  %2932 = vmatpush.bf16.msra.mxu0 %v1191
  %2933 = vmatpush.bf16.msra.mxu0 %v1189
  %2934 = vmatpush.bf16.msra.mxu0 %v1187
  %2935 = vmatpush.bf16.msra.mxu0 %v1185
  %2936 = vmatpush.bf16.msra.mxu0 %v1183
  %2937 = vmatpush.bf16.msra.mxu0 %v1181
  %2938 = vmatmul.bf16.gmra.mxu0 %v2768
  %v2939 = vpop.f32.mrf.mxu0
  %v2940 = vadd.f32 %v2891, %v2939
  %v2941 = vpop.f32.mrf.mxu0
  %v2942 = vadd.f32 %v2893, %v2941
  %2943 = vmatmul.bf16.gmra.mxu0 %v2770
  %v2944 = vpop.f32.mrf.mxu0
  %v2945 = vadd.f32 %v2896, %v2944
  %v2946 = vpop.f32.mrf.mxu0
  %v2947 = vadd.f32 %v2898, %v2946
  %2948 = vmatmul.bf16.gmra.mxu0 %v2772
  %v2949 = vpop.f32.mrf.mxu0
  %v2950 = vadd.f32 %v2901, %v2949
  %v2951 = vpop.f32.mrf.mxu0
  %v2952 = vadd.f32 %v2903, %v2951
  %2953 = vmatmul.bf16.gmra.mxu0 %v2774
  %v2954 = vpop.f32.mrf.mxu0
  %v2955 = vadd.f32 %v2906, %v2954
  %v2956 = vpop.f32.mrf.mxu0
  %v2957 = vadd.f32 %v2908, %v2956
  %2958 = vmatmul.bf16.gmra.mxu0 %v2776
  %v2959 = vpop.f32.mrf.mxu0
  %v2960 = vadd.f32 %v2911, %v2959
  %v2961 = vpop.f32.mrf.mxu0
  %v2962 = vadd.f32 %v2913, %v2961
  %2963 = vmatmul.bf16.gmra.mxu0 %v2778
  %v2964 = vpop.f32.mrf.mxu0
  %v2965 = vadd.f32 %v2916, %v2964
  %v2966 = vpop.f32.mrf.mxu0
  %v2967 = vadd.f32 %v2918, %v2966
  %2968 = vmatmul.bf16.gmra.mxu0 %v2780
  %v2969 = vpop.f32.mrf.mxu0
  %v2970 = vadd.f32 %v2921, %v2969
  %v2971 = vpop.f32.mrf.mxu0
  %v2972 = vadd.f32 %v2923, %v2971
  %2973 = vmatmul.bf16.gmra.mxu0 %v2782
  %v2974 = vpop.f32.mrf.mxu0
  %v2975 = vadd.f32 %v2926, %v2974
  %v2976 = vpop.f32.mrf.mxu0
  %v2977 = vadd.f32 %v2928, %v2976
  %2978 = vdwg.mxu0
  %v2979 = vmax.f32 %v2842, 0.0
  %v2980 = vmax.f32 %v2940, 0.0
  %v2981 = vmax.f32 %v2844, 0.0
  %v2982 = vmax.f32 %v2942, 0.0
  %v2983 = vmax.f32 %v2847, 0.0
  %v2984 = vmax.f32 %v2945, 0.0
  %v2985 = vmax.f32 %v2849, 0.0
  %v2986 = vmax.f32 %v2947, 0.0
  %v2987 = vmax.f32 %v2852, 0.0
  %v2988 = vmax.f32 %v2950, 0.0
  %v2989 = vmax.f32 %v2854, 0.0
  %v2990 = vmax.f32 %v2952, 0.0
  %v2991 = vmax.f32 %v2857, 0.0
  %v2992 = vmax.f32 %v2955, 0.0
  %v2993 = vmax.f32 %v2859, 0.0
  %v2994 = vmax.f32 %v2957, 0.0
  %v2995 = vmax.f32 %v2862, 0.0
  %v2996 = vmax.f32 %v2960, 0.0
  %v2997 = vmax.f32 %v2864, 0.0
  %v2998 = vmax.f32 %v2962, 0.0
  %v2999 = vmax.f32 %v2867, 0.0
  %v3000 = vmax.f32 %v2965, 0.0
  %v3001 = vmax.f32 %v2869, 0.0
  %v3002 = vmax.f32 %v2967, 0.0
  %v3003 = vmax.f32 %v2872, 0.0
  %v3004 = vmax.f32 %v2970, 0.0
  %v3005 = vmax.f32 %v2874, 0.0
  %v3006 = vmax.f32 %v2972, 0.0
  %v3007 = vmax.f32 %v2877, 0.0
  %v3008 = vmax.f32 %v2975, 0.0
  %v3009 = vmax.f32 %v2879, 0.0
  %v3010 = vmax.f32 %v2977, 0.0
  %v3011 = vpack.c.bf16 %v2981, %v2979
  %v3012 = vpack.c.bf16 %v2985, %v2983
  %v3013 = vpack.c.bf16 %v2989, %v2987
  %v3014 = vpack.c.bf16 %v2993, %v2991
  %v3015 = vpack.c.bf16 %v2997, %v2995
  %v3016 = vpack.c.bf16 %v3001, %v2999
  %v3017 = vpack.c.bf16 %v3005, %v3003
  %v3018 = vpack.c.bf16 %v3009, %v3007
  %3019 = vmatpush.bf16.msra.mxu0 %v1519
  %3020 = vmatpush.bf16.msra.mxu0 %v1518
  %3021 = vmatpush.bf16.msra.mxu0 %v1517
  %3022 = vmatpush.bf16.msra.mxu0 %v1516
  %3023 = vmatpush.bf16.msra.mxu0 %v1515
  %3024 = vmatpush.bf16.msra.mxu0 %v1514
  %3025 = vmatpush.bf16.msra.mxu0 %v1513
  %3026 = vmatpush.bf16.msra.mxu0 %v1512
  %3027 = vmatmul.bf16.gmra.mxu0 %v3011
  %v3028 = vpop.f32.mrf.mxu0
  %v3029 = vadd.f32 %v262, %v3028
  %v3030 = vpop.f32.mrf.mxu0
  %v3031 = vadd.f32 %v262, %v3030
  %3032 = vmatmul.bf16.gmra.mxu0 %v3012
  %v3033 = vpop.f32.mrf.mxu0
  %v3034 = vadd.f32 %v262, %v3033
  %v3035 = vpop.f32.mrf.mxu0
  %v3036 = vadd.f32 %v262, %v3035
  %3037 = vmatmul.bf16.gmra.mxu0 %v3013
  %v3038 = vpop.f32.mrf.mxu0
  %v3039 = vadd.f32 %v262, %v3038
  %v3040 = vpop.f32.mrf.mxu0
  %v3041 = vadd.f32 %v262, %v3040
  %3042 = vmatmul.bf16.gmra.mxu0 %v3014
  %v3043 = vpop.f32.mrf.mxu0
  %v3044 = vadd.f32 %v262, %v3043
  %v3045 = vpop.f32.mrf.mxu0
  %v3046 = vadd.f32 %v262, %v3045
  %3047 = vmatmul.bf16.gmra.mxu0 %v3015
  %v3048 = vpop.f32.mrf.mxu0
  %v3049 = vadd.f32 %v262, %v3048
  %v3050 = vpop.f32.mrf.mxu0
  %v3051 = vadd.f32 %v262, %v3050
  %3052 = vmatmul.bf16.gmra.mxu0 %v3016
  %v3053 = vpop.f32.mrf.mxu0
  %v3054 = vadd.f32 %v262, %v3053
  %v3055 = vpop.f32.mrf.mxu0
  %v3056 = vadd.f32 %v262, %v3055
  %3057 = vmatmul.bf16.gmra.mxu0 %v3017
  %v3058 = vpop.f32.mrf.mxu0
  %v3059 = vadd.f32 %v262, %v3058
  %v3060 = vpop.f32.mrf.mxu0
  %v3061 = vadd.f32 %v262, %v3060
  %3062 = vmatmul.bf16.gmra.mxu0 %v3018
  %v3063 = vpop.f32.mrf.mxu0
  %v3064 = vadd.f32 %v262, %v3063
  %v3065 = vpop.f32.mrf.mxu0
  %v3066 = vadd.f32 %v262, %v3065
  %3067 = vdwg.mxu0
  %v3068 = vmax.f32 %v3029, 0.0
  %v3069 = vmax.f32 %v3031, 0.0
  %v3070 = vmax.f32 %v3034, 0.0
  %v3071 = vmax.f32 %v3036, 0.0
  %v3072 = vmax.f32 %v3039, 0.0
  %v3073 = vmax.f32 %v3041, 0.0
  %v3074 = vmax.f32 %v3044, 0.0
  %v3075 = vmax.f32 %v3046, 0.0
  %v3076 = vmax.f32 %v3049, 0.0
  %v3077 = vmax.f32 %v3051, 0.0
  %v3078 = vmax.f32 %v3054, 0.0
  %v3079 = vmax.f32 %v3056, 0.0
  %v3080 = vmax.f32 %v3059, 0.0
  %v3081 = vmax.f32 %v3061, 0.0
  %v3082 = vmax.f32 %v3064, 0.0
  %v3083 = vmax.f32 %v3066, 0.0
  %v3084 = vpack.c.bf16 %v3069, %v3068
  %v3085 = vpack.c.bf16 %v2982, %v2980
  %v3086 = vpack.c.bf16 %v3071, %v3070
  %v3087 = vpack.c.bf16 %v2986, %v2984
  %v3088 = vpack.c.bf16 %v3073, %v3072
  %v3089 = vpack.c.bf16 %v2990, %v2988
  %v3090 = vpack.c.bf16 %v3075, %v3074
  %v3091 = vpack.c.bf16 %v2994, %v2992
  %v3092 = vpack.c.bf16 %v3077, %v3076
  %v3093 = vpack.c.bf16 %v2998, %v2996
  %v3094 = vpack.c.bf16 %v3079, %v3078
  %v3095 = vpack.c.bf16 %v3002, %v3000
  %v3096 = vpack.c.bf16 %v3081, %v3080
  %v3097 = vpack.c.bf16 %v3006, %v3004
  %v3098 = vpack.c.bf16 %v3083, %v3082
  %v3099 = vpack.c.bf16 %v3010, %v3008
  %3100 = vmatpush.bf16.msra.mxu0 %v1712
  %3101 = vmatpush.bf16.msra.mxu0 %v1711
  %3102 = vmatpush.bf16.msra.mxu0 %v1710
  %3103 = vmatpush.bf16.msra.mxu0 %v1709
  %3104 = vmatpush.bf16.msra.mxu0 %v1708
  %3105 = vmatpush.bf16.msra.mxu0 %v1707
  %3106 = vmatpush.bf16.msra.mxu0 %v1706
  %3107 = vmatpush.bf16.msra.mxu0 %v1705
  %3108 = vmatmul.bf16.gmra.mxu0 %v3084
  %v3109 = vpop.f32.mrf.mxu0
  %v3110 = vadd.f32 %v263, %v3109
  %v3111 = vpop.f32.mrf.mxu0
  %v3112 = vadd.f32 %v263, %v3111
  %3113 = vmatmul.bf16.gmra.mxu0 %v3086
  %v3114 = vpop.f32.mrf.mxu0
  %v3115 = vadd.f32 %v263, %v3114
  %v3116 = vpop.f32.mrf.mxu0
  %v3117 = vadd.f32 %v263, %v3116
  %3118 = vmatmul.bf16.gmra.mxu0 %v3088
  %v3119 = vpop.f32.mrf.mxu0
  %v3120 = vadd.f32 %v263, %v3119
  %v3121 = vpop.f32.mrf.mxu0
  %v3122 = vadd.f32 %v263, %v3121
  %3123 = vmatmul.bf16.gmra.mxu0 %v3090
  %v3124 = vpop.f32.mrf.mxu0
  %v3125 = vadd.f32 %v263, %v3124
  %v3126 = vpop.f32.mrf.mxu0
  %v3127 = vadd.f32 %v263, %v3126
  %3128 = vmatmul.bf16.gmra.mxu0 %v3092
  %v3129 = vpop.f32.mrf.mxu0
  %v3130 = vadd.f32 %v263, %v3129
  %v3131 = vpop.f32.mrf.mxu0
  %v3132 = vadd.f32 %v263, %v3131
  %3133 = vmatmul.bf16.gmra.mxu0 %v3094
  %v3134 = vpop.f32.mrf.mxu0
  %v3135 = vadd.f32 %v263, %v3134
  %v3136 = vpop.f32.mrf.mxu0
  %v3137 = vadd.f32 %v263, %v3136
  %3138 = vmatmul.bf16.gmra.mxu0 %v3096
  %v3139 = vpop.f32.mrf.mxu0
  %v3140 = vadd.f32 %v263, %v3139
  %v3141 = vpop.f32.mrf.mxu0
  %v3142 = vadd.f32 %v263, %v3141
  %3143 = vmatmul.bf16.gmra.mxu0 %v3098
  %v3144 = vpop.f32.mrf.mxu0
  %v3145 = vadd.f32 %v263, %v3144
  %v3146 = vpop.f32.mrf.mxu0
  %v3147 = vadd.f32 %v263, %v3146
  %3148 = vdwg.mxu0
  %3149 = vmatpush.bf16.msra.mxu0 %v1720
  %3150 = vmatpush.bf16.msra.mxu0 %v1719
  %3151 = vmatpush.bf16.msra.mxu0 %v1718
  %3152 = vmatpush.bf16.msra.mxu0 %v1717
  %3153 = vmatpush.bf16.msra.mxu0 %v1716
  %3154 = vmatpush.bf16.msra.mxu0 %v1715
  %3155 = vmatpush.bf16.msra.mxu0 %v1714
  %3156 = vmatpush.bf16.msra.mxu0 %v1713
  %3157 = vmatmul.bf16.gmra.mxu0 %v3085
  %v3158 = vpop.f32.mrf.mxu0
  %v3159 = vadd.f32 %v3110, %v3158
  %v3160 = vpop.f32.mrf.mxu0
  %v3161 = vadd.f32 %v3112, %v3160
  %3162 = vmatmul.bf16.gmra.mxu0 %v3087
  %v3163 = vpop.f32.mrf.mxu0
  %v3164 = vadd.f32 %v3115, %v3163
  %v3165 = vpop.f32.mrf.mxu0
  %v3166 = vadd.f32 %v3117, %v3165
  %3167 = vmatmul.bf16.gmra.mxu0 %v3089
  %v3168 = vpop.f32.mrf.mxu0
  %v3169 = vadd.f32 %v3120, %v3168
  %v3170 = vpop.f32.mrf.mxu0
  %v3171 = vadd.f32 %v3122, %v3170
  %3172 = vmatmul.bf16.gmra.mxu0 %v3091
  %v3173 = vpop.f32.mrf.mxu0
  %v3174 = vadd.f32 %v3125, %v3173
  %v3175 = vpop.f32.mrf.mxu0
  %v3176 = vadd.f32 %v3127, %v3175
  %3177 = vmatmul.bf16.gmra.mxu0 %v3093
  %v3178 = vpop.f32.mrf.mxu0
  %v3179 = vadd.f32 %v3130, %v3178
  %v3180 = vpop.f32.mrf.mxu0
  %v3181 = vadd.f32 %v3132, %v3180
  %3182 = vmatmul.bf16.gmra.mxu0 %v3095
  %v3183 = vpop.f32.mrf.mxu0
  %v3184 = vadd.f32 %v3135, %v3183
  %v3185 = vpop.f32.mrf.mxu0
  %v3186 = vadd.f32 %v3137, %v3185
  %3187 = vmatmul.bf16.gmra.mxu0 %v3097
  %v3188 = vpop.f32.mrf.mxu0
  %v3189 = vadd.f32 %v3140, %v3188
  %v3190 = vpop.f32.mrf.mxu0
  %v3191 = vadd.f32 %v3142, %v3190
  %3192 = vmatmul.bf16.gmra.mxu0 %v3099
  %v3193 = vpop.f32.mrf.mxu0
  %v3194 = vadd.f32 %v3145, %v3193
  %v3195 = vpop.f32.mrf.mxu0
  %v3196 = vadd.f32 %v3147, %v3195
  %3197 = vdwg.mxu0
  %s3198 = scalar_lea.vmem %s2, 128
  %v3199 = vld [vmem:[%s3198] sm:$0xff]
  %v3200 = vld [vmem:[%s3198 + $0x8] sm:$0xff]
  %v3201 = vld [vmem:[%s3198 + $0x10] sm:$0xff]
  %v3202 = vld [vmem:[%s3198 + $0x18] sm:$0xff]
  %v3203 = vld [vmem:[%s3198 + $0x20] sm:$0xff]
  %v3204 = vld [vmem:[%s3198 + $0x28] sm:$0xff]
  %v3205 = vld [vmem:[%s3198 + $0x30] sm:$0xff]
  %v3206 = vld [vmem:[%s3198 + $0x38] sm:$0xff]
  %v3207 = vld [vmem:[%s3198 + $0x40] sm:$0xff]
  %v3208 = vld [vmem:[%s3198 + $0x48] sm:$0xff]
  %v3209 = vld [vmem:[%s3198 + $0x50] sm:$0xff]
  %v3210 = vld [vmem:[%s3198 + $0x58] sm:$0xff]
  %v3211 = vld [vmem:[%s3198 + $0x60] sm:$0xff]
  %v3212 = vld [vmem:[%s3198 + $0x68] sm:$0xff]
  %v3213 = vld [vmem:[%s3198 + $0x70] sm:$0xff]
  %v3214 = vld [vmem:[%s3198 + $0x78] sm:$0xff]
  %v3215 = vmul.f32 %v1854, %v3199
  %v3216 = vmul.f32 %v1859, %v3200
  %v3217 = vmul.f32 %v1864, %v3201
  %v3218 = vmul.f32 %v1869, %v3202
  %v3219 = vmul.f32 %v1874, %v3203
  %v3220 = vmul.f32 %v1879, %v3204
  %v3221 = vmul.f32 %v1884, %v3205
  %v3222 = vmul.f32 %v1889, %v3206
  %v3223 = vmul.f32 %v1894, %v3207
  %v3224 = vmul.f32 %v1899, %v3208
  %v3225 = vmul.f32 %v1904, %v3209
  %v3226 = vmul.f32 %v1909, %v3210
  %v3227 = vmul.f32 %v1914, %v3211
  %v3228 = vmul.f32 %v1919, %v3212
  %v3229 = vmul.f32 %v1924, %v3213
  %v3230 = vmul.f32 %v1929, %v3214
  %v3231 = vmul.f32 %v3159, %v1950
  %v3232 = vmul.f32 %v3161, %v1955
  %v3233 = vmul.f32 %v3164, %v1960
  %v3234 = vmul.f32 %v3166, %v1965
  %v3235 = vmul.f32 %v3169, %v1970
  %v3236 = vmul.f32 %v3171, %v1975
  %v3237 = vmul.f32 %v3174, %v1980
  %v3238 = vmul.f32 %v3176, %v1985
  %v3239 = vmul.f32 %v3179, %v1990
  %v3240 = vmul.f32 %v3181, %v1995
  %v3241 = vmul.f32 %v3184, %v2000
  %v3242 = vmul.f32 %v3186, %v2005
  %v3243 = vmul.f32 %v3189, %v2010
  %v3244 = vmul.f32 %v3191, %v2015
  %v3245 = vmul.f32 %v3194, %v2020
  %v3246 = vmul.f32 %v3196, %v2025
  %v3247 = vadd.f32 %v2203, %v3231
  %v3248 = vadd.f32 %v2204, %v3232
  %v3249 = vadd.f32 %v2205, %v3233
  %v3250 = vadd.f32 %v2206, %v3234
  %v3251 = vadd.f32 %v2207, %v3235
  %v3252 = vadd.f32 %v2208, %v3236
  %v3253 = vadd.f32 %v2209, %v3237
  %v3254 = vadd.f32 %v2210, %v3238
  %v3255 = vadd.f32 %v2211, %v3239
  %v3256 = vadd.f32 %v2212, %v3240
  %v3257 = vadd.f32 %v2213, %v3241
  %v3258 = vadd.f32 %v2214, %v3242
  %v3259 = vadd.f32 %v2215, %v3243
  %v3260 = vadd.f32 %v2216, %v3244
  %v3261 = vadd.f32 %v2217, %v3245
  %v3262 = vadd.f32 %v2218, %v3246
  %3279 = vrot.lane.b32.xlu0 %v3215, 2
  %v3280 = vpop.permute.xlu0 %3279
  %3281 = vrot.lane.b32.xlu0 %v3216, 2
  %v3282 = vpop.permute.xlu0 %3281
  %3283 = vrot.lane.b32.xlu0 %v3217, 2
  %v3284 = vpop.permute.xlu0 %3283
  %3285 = vrot.lane.b32.xlu0 %v3218, 2
  %v3286 = vpop.permute.xlu0 %3285
  %3287 = vrot.lane.b32.xlu0 %v3219, 2
  %v3288 = vpop.permute.xlu0 %3287
  %3289 = vrot.lane.b32.xlu0 %v3220, 2
  %v3290 = vpop.permute.xlu0 %3289
  %3291 = vrot.lane.b32.xlu0 %v3221, 2
  %v3292 = vpop.permute.xlu0 %3291
  %3293 = vrot.lane.b32.xlu0 %v3222, 2
  %v3294 = vpop.permute.xlu0 %3293
  %3295 = vrot.lane.b32.xlu0 %v3223, 2
  %v3296 = vpop.permute.xlu0 %3295
  %3297 = vrot.lane.b32.xlu0 %v3224, 2
  %v3298 = vpop.permute.xlu0 %3297
  %3299 = vrot.lane.b32.xlu0 %v3225, 2
  %v3300 = vpop.permute.xlu0 %3299
  %3301 = vrot.lane.b32.xlu0 %v3226, 2
  %v3302 = vpop.permute.xlu0 %3301
  %3303 = vrot.lane.b32.xlu0 %v3227, 2
  %v3304 = vpop.permute.xlu0 %3303
  %3305 = vrot.lane.b32.xlu0 %v3228, 2
  %v3306 = vpop.permute.xlu0 %3305
  %3307 = vrot.lane.b32.xlu0 %v3229, 2
  %v3308 = vpop.permute.xlu0 %3307
  %3309 = vrot.lane.b32.xlu0 %v3230, 2
  %v3310 = vpop.permute.xlu0 %3309
  %v3327 = vmul.f32 %v3159, %v3280
  %v3328 = vmul.f32 %v3161, %v3282
  %v3329 = vmul.f32 %v3164, %v3284
  %v3330 = vmul.f32 %v3166, %v3286
  %v3331 = vmul.f32 %v3169, %v3288
  %v3332 = vmul.f32 %v3171, %v3290
  %v3333 = vmul.f32 %v3174, %v3292
  %v3334 = vmul.f32 %v3176, %v3294
  %v3335 = vmul.f32 %v3179, %v3296
  %v3336 = vmul.f32 %v3181, %v3298
  %v3337 = vmul.f32 %v3184, %v3300
  %v3338 = vmul.f32 %v3186, %v3302
  %v3339 = vmul.f32 %v3189, %v3304
  %v3340 = vmul.f32 %v3191, %v3306
  %v3341 = vmul.f32 %v3194, %v3308
  %v3342 = vmul.f32 %v3196, %v3310
  %3359 = vrot.lane.b32.xlu0 %v3327, 126
  %v3360 = vpop.permute.xlu0 %3359
  %3361 = vrot.lane.b32.xlu0 %v3328, 126
  %v3362 = vpop.permute.xlu0 %3361
  %3363 = vrot.lane.b32.xlu0 %v3329, 126
  %v3364 = vpop.permute.xlu0 %3363
  %3365 = vrot.lane.b32.xlu0 %v3330, 126
  %v3366 = vpop.permute.xlu0 %3365
  %3367 = vrot.lane.b32.xlu0 %v3331, 126
  %v3368 = vpop.permute.xlu0 %3367
  %3369 = vrot.lane.b32.xlu0 %v3332, 126
  %v3370 = vpop.permute.xlu0 %3369
  %3371 = vrot.lane.b32.xlu0 %v3333, 126
  %v3372 = vpop.permute.xlu0 %3371
  %3373 = vrot.lane.b32.xlu0 %v3334, 126
  %v3374 = vpop.permute.xlu0 %3373
  %3375 = vrot.lane.b32.xlu0 %v3335, 126
  %v3376 = vpop.permute.xlu0 %3375
  %3377 = vrot.lane.b32.xlu0 %v3336, 126
  %v3378 = vpop.permute.xlu0 %3377
  %3379 = vrot.lane.b32.xlu0 %v3337, 126
  %v3380 = vpop.permute.xlu0 %3379
  %3381 = vrot.lane.b32.xlu0 %v3338, 126
  %v3382 = vpop.permute.xlu0 %3381
  %3383 = vrot.lane.b32.xlu0 %v3339, 126
  %v3384 = vpop.permute.xlu0 %3383
  %3385 = vrot.lane.b32.xlu0 %v3340, 126
  %v3386 = vpop.permute.xlu0 %3385
  %3387 = vrot.lane.b32.xlu0 %v3341, 126
  %v3388 = vpop.permute.xlu0 %3387
  %3389 = vrot.lane.b32.xlu0 %v3342, 126
  %v3390 = vpop.permute.xlu0 %3389
  %v3407 = vadd.f32 %v3247, %v3360
  %v3408 = vadd.f32 %v3248, %v3362
  %v3409 = vadd.f32 %v3249, %v3364
  %v3410 = vadd.f32 %v3250, %v3366
  %v3411 = vadd.f32 %v3251, %v3368
  %v3412 = vadd.f32 %v3252, %v3370
  %v3413 = vadd.f32 %v3253, %v3372
  %v3414 = vadd.f32 %v3254, %v3374
  %v3415 = vadd.f32 %v3255, %v3376
  %v3416 = vadd.f32 %v3256, %v3378
  %v3417 = vadd.f32 %v3257, %v3380
  %v3418 = vadd.f32 %v3258, %v3382
  %v3419 = vadd.f32 %v3259, %v3384
  %v3420 = vadd.f32 %v3260, %v3386
  %v3421 = vadd.f32 %v3261, %v3388
  %v3422 = vadd.f32 %v3262, %v3390
  %3424 = vset.pattern.permute.xlu0 0
  %3425 = vperm.xlu0 %3424, %v3407
  %v3426 = vpop.permute.xlu0 %3425
  %3429 = vset.pattern.permute.xlu0 0
  %3430 = vperm.xlu0 %3429, %v3408
  %v3431 = vpop.permute.xlu0 %3430
  %3434 = vset.pattern.permute.xlu0 0
  %3435 = vperm.xlu0 %3434, %v3409
  %v3436 = vpop.permute.xlu0 %3435
  %3439 = vset.pattern.permute.xlu0 0
  %3440 = vperm.xlu0 %3439, %v3410
  %v3441 = vpop.permute.xlu0 %3440
  %3444 = vset.pattern.permute.xlu0 0
  %3445 = vperm.xlu0 %3444, %v3411
  %v3446 = vpop.permute.xlu0 %3445
  %3449 = vset.pattern.permute.xlu0 0
  %3450 = vperm.xlu0 %3449, %v3412
  %v3451 = vpop.permute.xlu0 %3450
  %3454 = vset.pattern.permute.xlu0 0
  %3455 = vperm.xlu0 %3454, %v3413
  %v3456 = vpop.permute.xlu0 %3455
  %3459 = vset.pattern.permute.xlu0 0
  %3460 = vperm.xlu0 %3459, %v3414
  %v3461 = vpop.permute.xlu0 %3460
  %3464 = vset.pattern.permute.xlu0 0
  %3465 = vperm.xlu0 %3464, %v3415
  %v3466 = vpop.permute.xlu0 %3465
  %3469 = vset.pattern.permute.xlu0 0
  %3470 = vperm.xlu0 %3469, %v3416
  %v3471 = vpop.permute.xlu0 %3470
  %3474 = vset.pattern.permute.xlu0 0
  %3475 = vperm.xlu0 %3474, %v3417
  %v3476 = vpop.permute.xlu0 %3475
  %3479 = vset.pattern.permute.xlu0 0
  %3480 = vperm.xlu0 %3479, %v3418
  %v3481 = vpop.permute.xlu0 %3480
  %3484 = vset.pattern.permute.xlu0 0
  %3485 = vperm.xlu0 %3484, %v3419
  %v3486 = vpop.permute.xlu0 %3485
  %3489 = vset.pattern.permute.xlu0 0
  %3490 = vperm.xlu0 %3489, %v3420
  %v3491 = vpop.permute.xlu0 %3490
  %3494 = vset.pattern.permute.xlu0 0
  %3495 = vperm.xlu0 %3494, %v3421
  %v3496 = vpop.permute.xlu0 %3495
  %3499 = vset.pattern.permute.xlu0 0
  %3500 = vperm.xlu0 %3499, %v3422
  %v3501 = vpop.permute.xlu0 %3500
  %v3503 = vmul.f32 %v3426, %v230
  %v3504 = vmul.f32 %v3426, %v231
  %v3505 = vmul.f32 %v3431, %v230
  %v3506 = vmul.f32 %v3431, %v231
  %v3507 = vmul.f32 %v3436, %v230
  %v3508 = vmul.f32 %v3436, %v231
  %v3509 = vmul.f32 %v3441, %v230
  %v3510 = vmul.f32 %v3441, %v231
  %v3511 = vmul.f32 %v3446, %v230
  %v3512 = vmul.f32 %v3446, %v231
  %v3513 = vmul.f32 %v3451, %v230
  %v3514 = vmul.f32 %v3451, %v231
  %v3515 = vmul.f32 %v3456, %v230
  %v3516 = vmul.f32 %v3456, %v231
  %v3517 = vmul.f32 %v3461, %v230
  %v3518 = vmul.f32 %v3461, %v231
  %v3519 = vmul.f32 %v3466, %v230
  %v3520 = vmul.f32 %v3466, %v231
  %v3521 = vmul.f32 %v3471, %v230
  %v3522 = vmul.f32 %v3471, %v231
  %v3523 = vmul.f32 %v3476, %v230
  %v3524 = vmul.f32 %v3476, %v231
  %v3525 = vmul.f32 %v3481, %v230
  %v3526 = vmul.f32 %v3481, %v231
  %v3527 = vmul.f32 %v3486, %v230
  %v3528 = vmul.f32 %v3486, %v231
  %v3529 = vmul.f32 %v3491, %v230
  %v3530 = vmul.f32 %v3491, %v231
  %v3531 = vmul.f32 %v3496, %v230
  %v3532 = vmul.f32 %v3496, %v231
  %v3533 = vmul.f32 %v3501, %v230
  %v3534 = vmul.f32 %v3501, %v231
  %3535 = vset.pattern.permute.xlu0 1
  %3536 = vperm.xlu0 %3535, %v3407
  %v3537 = vpop.permute.xlu0 %3536
  %3539 = vset.pattern.permute.xlu0 1
  %3540 = vperm.xlu0 %3539, %v3408
  %v3541 = vpop.permute.xlu0 %3540
  %3543 = vset.pattern.permute.xlu0 1
  %3544 = vperm.xlu0 %3543, %v3409
  %v3545 = vpop.permute.xlu0 %3544
  %3547 = vset.pattern.permute.xlu0 1
  %3548 = vperm.xlu0 %3547, %v3410
  %v3549 = vpop.permute.xlu0 %3548
  %3551 = vset.pattern.permute.xlu0 1
  %3552 = vperm.xlu0 %3551, %v3411
  %v3553 = vpop.permute.xlu0 %3552
  %3555 = vset.pattern.permute.xlu0 1
  %3556 = vperm.xlu0 %3555, %v3412
  %v3557 = vpop.permute.xlu0 %3556
  %3559 = vset.pattern.permute.xlu0 1
  %3560 = vperm.xlu0 %3559, %v3413
  %v3561 = vpop.permute.xlu0 %3560
  %3563 = vset.pattern.permute.xlu0 1
  %3564 = vperm.xlu0 %3563, %v3414
  %v3565 = vpop.permute.xlu0 %3564
  %3567 = vset.pattern.permute.xlu0 1
  %3568 = vperm.xlu0 %3567, %v3415
  %v3569 = vpop.permute.xlu0 %3568
  %3571 = vset.pattern.permute.xlu0 1
  %3572 = vperm.xlu0 %3571, %v3416
  %v3573 = vpop.permute.xlu0 %3572
  %3575 = vset.pattern.permute.xlu0 1
  %3576 = vperm.xlu0 %3575, %v3417
  %v3577 = vpop.permute.xlu0 %3576
  %3579 = vset.pattern.permute.xlu0 1
  %3580 = vperm.xlu0 %3579, %v3418
  %v3581 = vpop.permute.xlu0 %3580
  %3583 = vset.pattern.permute.xlu0 1
  %3584 = vperm.xlu0 %3583, %v3419
  %v3585 = vpop.permute.xlu0 %3584
  %3587 = vset.pattern.permute.xlu0 1
  %3588 = vperm.xlu0 %3587, %v3420
  %v3589 = vpop.permute.xlu0 %3588
  %3591 = vset.pattern.permute.xlu0 1
  %3592 = vperm.xlu0 %3591, %v3421
  %v3593 = vpop.permute.xlu0 %3592
  %3595 = vset.pattern.permute.xlu0 1
  %3596 = vperm.xlu0 %3595, %v3422
  %v3597 = vpop.permute.xlu0 %3596
  %v3599 = vmul.f32 %v3537, %v237
  %v3600 = vmul.f32 %v3537, %v238
  %v3601 = vmul.f32 %v3541, %v237
  %v3602 = vmul.f32 %v3541, %v238
  %v3603 = vmul.f32 %v3545, %v237
  %v3604 = vmul.f32 %v3545, %v238
  %v3605 = vmul.f32 %v3549, %v237
  %v3606 = vmul.f32 %v3549, %v238
  %v3607 = vmul.f32 %v3553, %v237
  %v3608 = vmul.f32 %v3553, %v238
  %v3609 = vmul.f32 %v3557, %v237
  %v3610 = vmul.f32 %v3557, %v238
  %v3611 = vmul.f32 %v3561, %v237
  %v3612 = vmul.f32 %v3561, %v238
  %v3613 = vmul.f32 %v3565, %v237
  %v3614 = vmul.f32 %v3565, %v238
  %v3615 = vmul.f32 %v3569, %v237
  %v3616 = vmul.f32 %v3569, %v238
  %v3617 = vmul.f32 %v3573, %v237
  %v3618 = vmul.f32 %v3573, %v238
  %v3619 = vmul.f32 %v3577, %v237
  %v3620 = vmul.f32 %v3577, %v238
  %v3621 = vmul.f32 %v3581, %v237
  %v3622 = vmul.f32 %v3581, %v238
  %v3623 = vmul.f32 %v3585, %v237
  %v3624 = vmul.f32 %v3585, %v238
  %v3625 = vmul.f32 %v3589, %v237
  %v3626 = vmul.f32 %v3589, %v238
  %v3627 = vmul.f32 %v3593, %v237
  %v3628 = vmul.f32 %v3593, %v238
  %v3629 = vmul.f32 %v3597, %v237
  %v3630 = vmul.f32 %v3597, %v238
  %v3631 = vadd.f32 %v3503, %v3599
  %v3632 = vadd.f32 %v3504, %v3600
  %v3633 = vadd.f32 %v3505, %v3601
  %v3634 = vadd.f32 %v3506, %v3602
  %v3635 = vadd.f32 %v3507, %v3603
  %v3636 = vadd.f32 %v3508, %v3604
  %v3637 = vadd.f32 %v3509, %v3605
  %v3638 = vadd.f32 %v3510, %v3606
  %v3639 = vadd.f32 %v3511, %v3607
  %v3640 = vadd.f32 %v3512, %v3608
  %v3641 = vadd.f32 %v3513, %v3609
  %v3642 = vadd.f32 %v3514, %v3610
  %v3643 = vadd.f32 %v3515, %v3611
  %v3644 = vadd.f32 %v3516, %v3612
  %v3645 = vadd.f32 %v3517, %v3613
  %v3646 = vadd.f32 %v3518, %v3614
  %v3647 = vadd.f32 %v3519, %v3615
  %v3648 = vadd.f32 %v3520, %v3616
  %v3649 = vadd.f32 %v3521, %v3617
  %v3650 = vadd.f32 %v3522, %v3618
  %v3651 = vadd.f32 %v3523, %v3619
  %v3652 = vadd.f32 %v3524, %v3620
  %v3653 = vadd.f32 %v3525, %v3621
  %v3654 = vadd.f32 %v3526, %v3622
  %v3655 = vadd.f32 %v3527, %v3623
  %v3656 = vadd.f32 %v3528, %v3624
  %v3657 = vadd.f32 %v3529, %v3625
  %v3658 = vadd.f32 %v3530, %v3626
  %v3659 = vadd.f32 %v3531, %v3627
  %v3660 = vadd.f32 %v3532, %v3628
  %v3661 = vadd.f32 %v3533, %v3629
  %v3662 = vadd.f32 %v3534, %v3630
  %v3663 = vadd.f32 %v3631, %v244
  %v3664 = vadd.f32 %v3632, %v245
  %v3665 = vadd.f32 %v3633, %v244
  %v3666 = vadd.f32 %v3634, %v245
  %v3667 = vadd.f32 %v3635, %v244
  %v3668 = vadd.f32 %v3636, %v245
  %v3669 = vadd.f32 %v3637, %v244
  %v3670 = vadd.f32 %v3638, %v245
  %v3671 = vadd.f32 %v3639, %v244
  %v3672 = vadd.f32 %v3640, %v245
  %v3673 = vadd.f32 %v3641, %v244
  %v3674 = vadd.f32 %v3642, %v245
  %v3675 = vadd.f32 %v3643, %v244
  %v3676 = vadd.f32 %v3644, %v245
  %v3677 = vadd.f32 %v3645, %v244
  %v3678 = vadd.f32 %v3646, %v245
  %v3679 = vadd.f32 %v3647, %v244
  %v3680 = vadd.f32 %v3648, %v245
  %v3681 = vadd.f32 %v3649, %v244
  %v3682 = vadd.f32 %v3650, %v245
  %v3683 = vadd.f32 %v3651, %v244
  %v3684 = vadd.f32 %v3652, %v245
  %v3685 = vadd.f32 %v3653, %v244
  %v3686 = vadd.f32 %v3654, %v245
  %v3687 = vadd.f32 %v3655, %v244
  %v3688 = vadd.f32 %v3656, %v245
  %v3689 = vadd.f32 %v3657, %v244
  %v3690 = vadd.f32 %v3658, %v245
  %v3691 = vadd.f32 %v3659, %v244
  %v3692 = vadd.f32 %v3660, %v245
  %v3693 = vadd.f32 %v3661, %v244
  %v3694 = vadd.f32 %v3662, %v245
  %v3695 = vmax.f32 %v3663, 0.0
  %v3696 = vmax.f32 %v3664, 0.0
  %v3697 = vmax.f32 %v3665, 0.0
  %v3698 = vmax.f32 %v3666, 0.0
  %v3699 = vmax.f32 %v3667, 0.0
  %v3700 = vmax.f32 %v3668, 0.0
  %v3701 = vmax.f32 %v3669, 0.0
  %v3702 = vmax.f32 %v3670, 0.0
  %v3703 = vmax.f32 %v3671, 0.0
  %v3704 = vmax.f32 %v3672, 0.0
  %v3705 = vmax.f32 %v3673, 0.0
  %v3706 = vmax.f32 %v3674, 0.0
  %v3707 = vmax.f32 %v3675, 0.0
  %v3708 = vmax.f32 %v3676, 0.0
  %v3709 = vmax.f32 %v3677, 0.0
  %v3710 = vmax.f32 %v3678, 0.0
  %v3711 = vmax.f32 %v3679, 0.0
  %v3712 = vmax.f32 %v3680, 0.0
  %v3713 = vmax.f32 %v3681, 0.0
  %v3714 = vmax.f32 %v3682, 0.0
  %v3715 = vmax.f32 %v3683, 0.0
  %v3716 = vmax.f32 %v3684, 0.0
  %v3717 = vmax.f32 %v3685, 0.0
  %v3718 = vmax.f32 %v3686, 0.0
  %v3719 = vmax.f32 %v3687, 0.0
  %v3720 = vmax.f32 %v3688, 0.0
  %v3721 = vmax.f32 %v3689, 0.0
  %v3722 = vmax.f32 %v3690, 0.0
  %v3723 = vmax.f32 %v3691, 0.0
  %v3724 = vmax.f32 %v3692, 0.0
  %v3725 = vmax.f32 %v3693, 0.0
  %v3726 = vmax.f32 %v3694, 0.0
  %v3727 = vpack.c.bf16 %v3697, %v3695
  %v3728 = vpack.c.bf16 %v3698, %v3696
  %v3729 = vpack.c.bf16 %v3701, %v3699
  %v3730 = vpack.c.bf16 %v3702, %v3700
  %v3731 = vpack.c.bf16 %v3705, %v3703
  %v3732 = vpack.c.bf16 %v3706, %v3704
  %v3733 = vpack.c.bf16 %v3709, %v3707
  %v3734 = vpack.c.bf16 %v3710, %v3708
  %v3735 = vpack.c.bf16 %v3713, %v3711
  %v3736 = vpack.c.bf16 %v3714, %v3712
  %v3737 = vpack.c.bf16 %v3717, %v3715
  %v3738 = vpack.c.bf16 %v3718, %v3716
  %v3739 = vpack.c.bf16 %v3721, %v3719
  %v3740 = vpack.c.bf16 %v3722, %v3720
  %v3741 = vpack.c.bf16 %v3725, %v3723
  %v3742 = vpack.c.bf16 %v3726, %v3724
  %3743 = vmatpush.bf16.msra.mxu0 %v742
  %3744 = vmatpush.bf16.msra.mxu0 %v740
  %3745 = vmatpush.bf16.msra.mxu0 %v738
  %3746 = vmatpush.bf16.msra.mxu0 %v736
  %3747 = vmatpush.bf16.msra.mxu0 %v734
  %3748 = vmatpush.bf16.msra.mxu0 %v732
  %3749 = vmatpush.bf16.msra.mxu0 %v730
  %3750 = vmatpush.bf16.msra.mxu0 %v728
  %3751 = vmatmul.bf16.gmra.mxu0 %v3727
  %v3752 = vpop.f32.mrf.mxu0
  %v3753 = vadd.f32 %v251, %v3752
  %v3754 = vpop.f32.mrf.mxu0
  %v3755 = vadd.f32 %v251, %v3754
  %3756 = vmatmul.bf16.gmra.mxu0 %v3729
  %v3757 = vpop.f32.mrf.mxu0
  %v3758 = vadd.f32 %v251, %v3757
  %v3759 = vpop.f32.mrf.mxu0
  %v3760 = vadd.f32 %v251, %v3759
  %3761 = vmatmul.bf16.gmra.mxu0 %v3731
  %v3762 = vpop.f32.mrf.mxu0
  %v3763 = vadd.f32 %v251, %v3762
  %v3764 = vpop.f32.mrf.mxu0
  %v3765 = vadd.f32 %v251, %v3764
  %3766 = vmatmul.bf16.gmra.mxu0 %v3733
  %v3767 = vpop.f32.mrf.mxu0
  %v3768 = vadd.f32 %v251, %v3767
  %v3769 = vpop.f32.mrf.mxu0
  %v3770 = vadd.f32 %v251, %v3769
  %3771 = vmatmul.bf16.gmra.mxu0 %v3735
  %v3772 = vpop.f32.mrf.mxu0
  %v3773 = vadd.f32 %v251, %v3772
  %v3774 = vpop.f32.mrf.mxu0
  %v3775 = vadd.f32 %v251, %v3774
  %3776 = vmatmul.bf16.gmra.mxu0 %v3737
  %v3777 = vpop.f32.mrf.mxu0
  %v3778 = vadd.f32 %v251, %v3777
  %v3779 = vpop.f32.mrf.mxu0
  %v3780 = vadd.f32 %v251, %v3779
  %3781 = vmatmul.bf16.gmra.mxu0 %v3739
  %v3782 = vpop.f32.mrf.mxu0
  %v3783 = vadd.f32 %v251, %v3782
  %v3784 = vpop.f32.mrf.mxu0
  %v3785 = vadd.f32 %v251, %v3784
  %3786 = vmatmul.bf16.gmra.mxu0 %v3741
  %v3787 = vpop.f32.mrf.mxu0
  %v3788 = vadd.f32 %v251, %v3787
  %v3789 = vpop.f32.mrf.mxu0
  %v3790 = vadd.f32 %v251, %v3789
  %3791 = vdwg.mxu0
  %3792 = vmatpush.bf16.msra.mxu0 %v758
  %3793 = vmatpush.bf16.msra.mxu0 %v756
  %3794 = vmatpush.bf16.msra.mxu0 %v754
  %3795 = vmatpush.bf16.msra.mxu0 %v752
  %3796 = vmatpush.bf16.msra.mxu0 %v750
  %3797 = vmatpush.bf16.msra.mxu0 %v748
  %3798 = vmatpush.bf16.msra.mxu0 %v746
  %3799 = vmatpush.bf16.msra.mxu0 %v744
  %3800 = vmatmul.bf16.gmra.mxu0 %v3728
  %v3801 = vpop.f32.mrf.mxu0
  %v3802 = vadd.f32 %v3753, %v3801
  %v3803 = vpop.f32.mrf.mxu0
  %v3804 = vadd.f32 %v3755, %v3803
  %3805 = vmatmul.bf16.gmra.mxu0 %v3730
  %v3806 = vpop.f32.mrf.mxu0
  %v3807 = vadd.f32 %v3758, %v3806
  %v3808 = vpop.f32.mrf.mxu0
  %v3809 = vadd.f32 %v3760, %v3808
  %3810 = vmatmul.bf16.gmra.mxu0 %v3732
  %v3811 = vpop.f32.mrf.mxu0
  %v3812 = vadd.f32 %v3763, %v3811
  %v3813 = vpop.f32.mrf.mxu0
  %v3814 = vadd.f32 %v3765, %v3813
  %3815 = vmatmul.bf16.gmra.mxu0 %v3734
  %v3816 = vpop.f32.mrf.mxu0
  %v3817 = vadd.f32 %v3768, %v3816
  %v3818 = vpop.f32.mrf.mxu0
  %v3819 = vadd.f32 %v3770, %v3818
  %3820 = vmatmul.bf16.gmra.mxu0 %v3736
  %v3821 = vpop.f32.mrf.mxu0
  %v3822 = vadd.f32 %v3773, %v3821
  %v3823 = vpop.f32.mrf.mxu0
  %v3824 = vadd.f32 %v3775, %v3823
  %3825 = vmatmul.bf16.gmra.mxu0 %v3738
  %v3826 = vpop.f32.mrf.mxu0
  %v3827 = vadd.f32 %v3778, %v3826
  %v3828 = vpop.f32.mrf.mxu0
  %v3829 = vadd.f32 %v3780, %v3828
  %3830 = vmatmul.bf16.gmra.mxu0 %v3740
  %v3831 = vpop.f32.mrf.mxu0
  %v3832 = vadd.f32 %v3783, %v3831
  %v3833 = vpop.f32.mrf.mxu0
  %v3834 = vadd.f32 %v3785, %v3833
  %3835 = vmatmul.bf16.gmra.mxu0 %v3742
  %v3836 = vpop.f32.mrf.mxu0
  %v3837 = vadd.f32 %v3788, %v3836
  %v3838 = vpop.f32.mrf.mxu0
  %v3839 = vadd.f32 %v3790, %v3838
  %3840 = vdwg.mxu0
  %3841 = vmatpush.bf16.msra.mxu0 %v743
  %3842 = vmatpush.bf16.msra.mxu0 %v741
  %3843 = vmatpush.bf16.msra.mxu0 %v739
  %3844 = vmatpush.bf16.msra.mxu0 %v737
  %3845 = vmatpush.bf16.msra.mxu0 %v735
  %3846 = vmatpush.bf16.msra.mxu0 %v733
  %3847 = vmatpush.bf16.msra.mxu0 %v731
  %3848 = vmatpush.bf16.msra.mxu0 %v729
  %3849 = vmatmul.bf16.gmra.mxu0 %v3727
  %v3850 = vpop.f32.mrf.mxu0
  %v3851 = vadd.f32 %v252, %v3850
  %v3852 = vpop.f32.mrf.mxu0
  %v3853 = vadd.f32 %v252, %v3852
  %3854 = vmatmul.bf16.gmra.mxu0 %v3729
  %v3855 = vpop.f32.mrf.mxu0
  %v3856 = vadd.f32 %v252, %v3855
  %v3857 = vpop.f32.mrf.mxu0
  %v3858 = vadd.f32 %v252, %v3857
  %3859 = vmatmul.bf16.gmra.mxu0 %v3731
  %v3860 = vpop.f32.mrf.mxu0
  %v3861 = vadd.f32 %v252, %v3860
  %v3862 = vpop.f32.mrf.mxu0
  %v3863 = vadd.f32 %v252, %v3862
  %3864 = vmatmul.bf16.gmra.mxu0 %v3733
  %v3865 = vpop.f32.mrf.mxu0
  %v3866 = vadd.f32 %v252, %v3865
  %v3867 = vpop.f32.mrf.mxu0
  %v3868 = vadd.f32 %v252, %v3867
  %3869 = vmatmul.bf16.gmra.mxu0 %v3735
  %v3870 = vpop.f32.mrf.mxu0
  %v3871 = vadd.f32 %v252, %v3870
  %v3872 = vpop.f32.mrf.mxu0
  %v3873 = vadd.f32 %v252, %v3872
  %3874 = vmatmul.bf16.gmra.mxu0 %v3737
  %v3875 = vpop.f32.mrf.mxu0
  %v3876 = vadd.f32 %v252, %v3875
  %v3877 = vpop.f32.mrf.mxu0
  %v3878 = vadd.f32 %v252, %v3877
  %3879 = vmatmul.bf16.gmra.mxu0 %v3739
  %v3880 = vpop.f32.mrf.mxu0
  %v3881 = vadd.f32 %v252, %v3880
  %v3882 = vpop.f32.mrf.mxu0
  %v3883 = vadd.f32 %v252, %v3882
  %3884 = vmatmul.bf16.gmra.mxu0 %v3741
  %v3885 = vpop.f32.mrf.mxu0
  %v3886 = vadd.f32 %v252, %v3885
  %v3887 = vpop.f32.mrf.mxu0
  %v3888 = vadd.f32 %v252, %v3887
  %3889 = vdwg.mxu0
  %3890 = vmatpush.bf16.msra.mxu0 %v759
  %3891 = vmatpush.bf16.msra.mxu0 %v757
  %3892 = vmatpush.bf16.msra.mxu0 %v755
  %3893 = vmatpush.bf16.msra.mxu0 %v753
  %3894 = vmatpush.bf16.msra.mxu0 %v751
  %3895 = vmatpush.bf16.msra.mxu0 %v749
  %3896 = vmatpush.bf16.msra.mxu0 %v747
  %3897 = vmatpush.bf16.msra.mxu0 %v745
  %3898 = vmatmul.bf16.gmra.mxu0 %v3728
  %v3899 = vpop.f32.mrf.mxu0
  %v3900 = vadd.f32 %v3851, %v3899
  %v3901 = vpop.f32.mrf.mxu0
  %v3902 = vadd.f32 %v3853, %v3901
  %3903 = vmatmul.bf16.gmra.mxu0 %v3730
  %v3904 = vpop.f32.mrf.mxu0
  %v3905 = vadd.f32 %v3856, %v3904
  %v3906 = vpop.f32.mrf.mxu0
  %v3907 = vadd.f32 %v3858, %v3906
  %3908 = vmatmul.bf16.gmra.mxu0 %v3732
  %v3909 = vpop.f32.mrf.mxu0
  %v3910 = vadd.f32 %v3861, %v3909
  %v3911 = vpop.f32.mrf.mxu0
  %v3912 = vadd.f32 %v3863, %v3911
  %3913 = vmatmul.bf16.gmra.mxu0 %v3734
  %v3914 = vpop.f32.mrf.mxu0
  %v3915 = vadd.f32 %v3866, %v3914
  %v3916 = vpop.f32.mrf.mxu0
  %v3917 = vadd.f32 %v3868, %v3916
  %3918 = vmatmul.bf16.gmra.mxu0 %v3736
  %v3919 = vpop.f32.mrf.mxu0
  %v3920 = vadd.f32 %v3871, %v3919
  %v3921 = vpop.f32.mrf.mxu0
  %v3922 = vadd.f32 %v3873, %v3921
  %3923 = vmatmul.bf16.gmra.mxu0 %v3738
  %v3924 = vpop.f32.mrf.mxu0
  %v3925 = vadd.f32 %v3876, %v3924
  %v3926 = vpop.f32.mrf.mxu0
  %v3927 = vadd.f32 %v3878, %v3926
  %3928 = vmatmul.bf16.gmra.mxu0 %v3740
  %v3929 = vpop.f32.mrf.mxu0
  %v3930 = vadd.f32 %v3881, %v3929
  %v3931 = vpop.f32.mrf.mxu0
  %v3932 = vadd.f32 %v3883, %v3931
  %3933 = vmatmul.bf16.gmra.mxu0 %v3742
  %v3934 = vpop.f32.mrf.mxu0
  %v3935 = vadd.f32 %v3886, %v3934
  %v3936 = vpop.f32.mrf.mxu0
  %v3937 = vadd.f32 %v3888, %v3936
  %3938 = vdwg.mxu0
  %v3939 = vmax.f32 %v3802, 0.0
  %v3940 = vmax.f32 %v3900, 0.0
  %v3941 = vmax.f32 %v3804, 0.0
  %v3942 = vmax.f32 %v3902, 0.0
  %v3943 = vmax.f32 %v3807, 0.0
  %v3944 = vmax.f32 %v3905, 0.0
  %v3945 = vmax.f32 %v3809, 0.0
  %v3946 = vmax.f32 %v3907, 0.0
  %v3947 = vmax.f32 %v3812, 0.0
  %v3948 = vmax.f32 %v3910, 0.0
  %v3949 = vmax.f32 %v3814, 0.0
  %v3950 = vmax.f32 %v3912, 0.0
  %v3951 = vmax.f32 %v3817, 0.0
  %v3952 = vmax.f32 %v3915, 0.0
  %v3953 = vmax.f32 %v3819, 0.0
  %v3954 = vmax.f32 %v3917, 0.0
  %v3955 = vmax.f32 %v3822, 0.0
  %v3956 = vmax.f32 %v3920, 0.0
  %v3957 = vmax.f32 %v3824, 0.0
  %v3958 = vmax.f32 %v3922, 0.0
  %v3959 = vmax.f32 %v3827, 0.0
  %v3960 = vmax.f32 %v3925, 0.0
  %v3961 = vmax.f32 %v3829, 0.0
  %v3962 = vmax.f32 %v3927, 0.0
  %v3963 = vmax.f32 %v3832, 0.0
  %v3964 = vmax.f32 %v3930, 0.0
  %v3965 = vmax.f32 %v3834, 0.0
  %v3966 = vmax.f32 %v3932, 0.0
  %v3967 = vmax.f32 %v3837, 0.0
  %v3968 = vmax.f32 %v3935, 0.0
  %v3969 = vmax.f32 %v3839, 0.0
  %v3970 = vmax.f32 %v3937, 0.0
  %v3971 = vpack.c.bf16 %v3941, %v3939
  %v3972 = vpack.c.bf16 %v3942, %v3940
  %v3973 = vpack.c.bf16 %v3945, %v3943
  %v3974 = vpack.c.bf16 %v3946, %v3944
  %v3975 = vpack.c.bf16 %v3949, %v3947
  %v3976 = vpack.c.bf16 %v3950, %v3948
  %v3977 = vpack.c.bf16 %v3953, %v3951
  %v3978 = vpack.c.bf16 %v3954, %v3952
  %v3979 = vpack.c.bf16 %v3957, %v3955
  %v3980 = vpack.c.bf16 %v3958, %v3956
  %v3981 = vpack.c.bf16 %v3961, %v3959
  %v3982 = vpack.c.bf16 %v3962, %v3960
  %v3983 = vpack.c.bf16 %v3965, %v3963
  %v3984 = vpack.c.bf16 %v3966, %v3964
  %v3985 = vpack.c.bf16 %v3969, %v3967
  %v3986 = vpack.c.bf16 %v3970, %v3968
  %3987 = vmatpush.bf16.msra.mxu0 %v1178
  %3988 = vmatpush.bf16.msra.mxu0 %v1176
  %3989 = vmatpush.bf16.msra.mxu0 %v1174
  %3990 = vmatpush.bf16.msra.mxu0 %v1172
  %3991 = vmatpush.bf16.msra.mxu0 %v1170
  %3992 = vmatpush.bf16.msra.mxu0 %v1168
  %3993 = vmatpush.bf16.msra.mxu0 %v1166
  %3994 = vmatpush.bf16.msra.mxu0 %v1164
  %3995 = vmatmul.bf16.gmra.mxu0 %v3971
  %v3996 = vpop.f32.mrf.mxu0
  %v3997 = vadd.f32 %v258, %v3996
  %v3998 = vpop.f32.mrf.mxu0
  %v3999 = vadd.f32 %v258, %v3998
  %4000 = vmatmul.bf16.gmra.mxu0 %v3973
  %v4001 = vpop.f32.mrf.mxu0
  %v4002 = vadd.f32 %v258, %v4001
  %v4003 = vpop.f32.mrf.mxu0
  %v4004 = vadd.f32 %v258, %v4003
  %4005 = vmatmul.bf16.gmra.mxu0 %v3975
  %v4006 = vpop.f32.mrf.mxu0
  %v4007 = vadd.f32 %v258, %v4006
  %v4008 = vpop.f32.mrf.mxu0
  %v4009 = vadd.f32 %v258, %v4008
  %4010 = vmatmul.bf16.gmra.mxu0 %v3977
  %v4011 = vpop.f32.mrf.mxu0
  %v4012 = vadd.f32 %v258, %v4011
  %v4013 = vpop.f32.mrf.mxu0
  %v4014 = vadd.f32 %v258, %v4013
  %4015 = vmatmul.bf16.gmra.mxu0 %v3979
  %v4016 = vpop.f32.mrf.mxu0
  %v4017 = vadd.f32 %v258, %v4016
  %v4018 = vpop.f32.mrf.mxu0
  %v4019 = vadd.f32 %v258, %v4018
  %4020 = vmatmul.bf16.gmra.mxu0 %v3981
  %v4021 = vpop.f32.mrf.mxu0
  %v4022 = vadd.f32 %v258, %v4021
  %v4023 = vpop.f32.mrf.mxu0
  %v4024 = vadd.f32 %v258, %v4023
  %4025 = vmatmul.bf16.gmra.mxu0 %v3983
  %v4026 = vpop.f32.mrf.mxu0
  %v4027 = vadd.f32 %v258, %v4026
  %v4028 = vpop.f32.mrf.mxu0
  %v4029 = vadd.f32 %v258, %v4028
  %4030 = vmatmul.bf16.gmra.mxu0 %v3985
  %v4031 = vpop.f32.mrf.mxu0
  %v4032 = vadd.f32 %v258, %v4031
  %v4033 = vpop.f32.mrf.mxu0
  %v4034 = vadd.f32 %v258, %v4033
  %4035 = vdwg.mxu0
  %4036 = vmatpush.bf16.msra.mxu0 %v1194
  %4037 = vmatpush.bf16.msra.mxu0 %v1192
  %4038 = vmatpush.bf16.msra.mxu0 %v1190
  %4039 = vmatpush.bf16.msra.mxu0 %v1188
  %4040 = vmatpush.bf16.msra.mxu0 %v1186
  %4041 = vmatpush.bf16.msra.mxu0 %v1184
  %4042 = vmatpush.bf16.msra.mxu0 %v1182
  %4043 = vmatpush.bf16.msra.mxu0 %v1180
  %4044 = vmatmul.bf16.gmra.mxu0 %v3972
  %v4045 = vpop.f32.mrf.mxu0
  %v4046 = vadd.f32 %v3997, %v4045
  %v4047 = vpop.f32.mrf.mxu0
  %v4048 = vadd.f32 %v3999, %v4047
  %4049 = vmatmul.bf16.gmra.mxu0 %v3974
  %v4050 = vpop.f32.mrf.mxu0
  %v4051 = vadd.f32 %v4002, %v4050
  %v4052 = vpop.f32.mrf.mxu0
  %v4053 = vadd.f32 %v4004, %v4052
  %4054 = vmatmul.bf16.gmra.mxu0 %v3976
  %v4055 = vpop.f32.mrf.mxu0
  %v4056 = vadd.f32 %v4007, %v4055
  %v4057 = vpop.f32.mrf.mxu0
  %v4058 = vadd.f32 %v4009, %v4057
  %4059 = vmatmul.bf16.gmra.mxu0 %v3978
  %v4060 = vpop.f32.mrf.mxu0
  %v4061 = vadd.f32 %v4012, %v4060
  %v4062 = vpop.f32.mrf.mxu0
  %v4063 = vadd.f32 %v4014, %v4062
  %4064 = vmatmul.bf16.gmra.mxu0 %v3980
  %v4065 = vpop.f32.mrf.mxu0
  %v4066 = vadd.f32 %v4017, %v4065
  %v4067 = vpop.f32.mrf.mxu0
  %v4068 = vadd.f32 %v4019, %v4067
  %4069 = vmatmul.bf16.gmra.mxu0 %v3982
  %v4070 = vpop.f32.mrf.mxu0
  %v4071 = vadd.f32 %v4022, %v4070
  %v4072 = vpop.f32.mrf.mxu0
  %v4073 = vadd.f32 %v4024, %v4072
  %4074 = vmatmul.bf16.gmra.mxu0 %v3984
  %v4075 = vpop.f32.mrf.mxu0
  %v4076 = vadd.f32 %v4027, %v4075
  %v4077 = vpop.f32.mrf.mxu0
  %v4078 = vadd.f32 %v4029, %v4077
  %4079 = vmatmul.bf16.gmra.mxu0 %v3986
  %v4080 = vpop.f32.mrf.mxu0
  %v4081 = vadd.f32 %v4032, %v4080
  %v4082 = vpop.f32.mrf.mxu0
  %v4083 = vadd.f32 %v4034, %v4082
  %4084 = vdwg.mxu0
  %4085 = vmatpush.bf16.msra.mxu0 %v1179
  %4086 = vmatpush.bf16.msra.mxu0 %v1177
  %4087 = vmatpush.bf16.msra.mxu0 %v1175
  %4088 = vmatpush.bf16.msra.mxu0 %v1173
  %4089 = vmatpush.bf16.msra.mxu0 %v1171
  %4090 = vmatpush.bf16.msra.mxu0 %v1169
  %4091 = vmatpush.bf16.msra.mxu0 %v1167
  %4092 = vmatpush.bf16.msra.mxu0 %v1165
  %4093 = vmatmul.bf16.gmra.mxu0 %v3971
  %v4094 = vpop.f32.mrf.mxu0
  %v4095 = vadd.f32 %v259, %v4094
  %v4096 = vpop.f32.mrf.mxu0
  %v4097 = vadd.f32 %v259, %v4096
  %4098 = vmatmul.bf16.gmra.mxu0 %v3973
  %v4099 = vpop.f32.mrf.mxu0
  %v4100 = vadd.f32 %v259, %v4099
  %v4101 = vpop.f32.mrf.mxu0
  %v4102 = vadd.f32 %v259, %v4101
  %4103 = vmatmul.bf16.gmra.mxu0 %v3975
  %v4104 = vpop.f32.mrf.mxu0
  %v4105 = vadd.f32 %v259, %v4104
  %v4106 = vpop.f32.mrf.mxu0
  %v4107 = vadd.f32 %v259, %v4106
  %4108 = vmatmul.bf16.gmra.mxu0 %v3977
  %v4109 = vpop.f32.mrf.mxu0
  %v4110 = vadd.f32 %v259, %v4109
  %v4111 = vpop.f32.mrf.mxu0
  %v4112 = vadd.f32 %v259, %v4111
  %4113 = vmatmul.bf16.gmra.mxu0 %v3979
  %v4114 = vpop.f32.mrf.mxu0
  %v4115 = vadd.f32 %v259, %v4114
  %v4116 = vpop.f32.mrf.mxu0
  %v4117 = vadd.f32 %v259, %v4116
  %4118 = vmatmul.bf16.gmra.mxu0 %v3981
  %v4119 = vpop.f32.mrf.mxu0
  %v4120 = vadd.f32 %v259, %v4119
  %v4121 = vpop.f32.mrf.mxu0
  %v4122 = vadd.f32 %v259, %v4121
  %4123 = vmatmul.bf16.gmra.mxu0 %v3983
  %v4124 = vpop.f32.mrf.mxu0
  %v4125 = vadd.f32 %v259, %v4124
  %v4126 = vpop.f32.mrf.mxu0
  %v4127 = vadd.f32 %v259, %v4126
  %4128 = vmatmul.bf16.gmra.mxu0 %v3985
  %v4129 = vpop.f32.mrf.mxu0
  %v4130 = vadd.f32 %v259, %v4129
  %v4131 = vpop.f32.mrf.mxu0
  %v4132 = vadd.f32 %v259, %v4131
  %4133 = vdwg.mxu0
  %4134 = vmatpush.bf16.msra.mxu0 %v1195
  %4135 = vmatpush.bf16.msra.mxu0 %v1193
  %4136 = vmatpush.bf16.msra.mxu0 %v1191
  %4137 = vmatpush.bf16.msra.mxu0 %v1189
  %4138 = vmatpush.bf16.msra.mxu0 %v1187
  %4139 = vmatpush.bf16.msra.mxu0 %v1185
  %4140 = vmatpush.bf16.msra.mxu0 %v1183
  %4141 = vmatpush.bf16.msra.mxu0 %v1181
  %4142 = vmatmul.bf16.gmra.mxu0 %v3972
  %v4143 = vpop.f32.mrf.mxu0
  %v4144 = vadd.f32 %v4095, %v4143
  %v4145 = vpop.f32.mrf.mxu0
  %v4146 = vadd.f32 %v4097, %v4145
  %4147 = vmatmul.bf16.gmra.mxu0 %v3974
  %v4148 = vpop.f32.mrf.mxu0
  %v4149 = vadd.f32 %v4100, %v4148
  %v4150 = vpop.f32.mrf.mxu0
  %v4151 = vadd.f32 %v4102, %v4150
  %4152 = vmatmul.bf16.gmra.mxu0 %v3976
  %v4153 = vpop.f32.mrf.mxu0
  %v4154 = vadd.f32 %v4105, %v4153
  %v4155 = vpop.f32.mrf.mxu0
  %v4156 = vadd.f32 %v4107, %v4155
  %4157 = vmatmul.bf16.gmra.mxu0 %v3978
  %v4158 = vpop.f32.mrf.mxu0
  %v4159 = vadd.f32 %v4110, %v4158
  %v4160 = vpop.f32.mrf.mxu0
  %v4161 = vadd.f32 %v4112, %v4160
  %4162 = vmatmul.bf16.gmra.mxu0 %v3980
  %v4163 = vpop.f32.mrf.mxu0
  %v4164 = vadd.f32 %v4115, %v4163
  %v4165 = vpop.f32.mrf.mxu0
  %v4166 = vadd.f32 %v4117, %v4165
  %4167 = vmatmul.bf16.gmra.mxu0 %v3982
  %v4168 = vpop.f32.mrf.mxu0
  %v4169 = vadd.f32 %v4120, %v4168
  %v4170 = vpop.f32.mrf.mxu0
  %v4171 = vadd.f32 %v4122, %v4170
  %4172 = vmatmul.bf16.gmra.mxu0 %v3984
  %v4173 = vpop.f32.mrf.mxu0
  %v4174 = vadd.f32 %v4125, %v4173
  %v4175 = vpop.f32.mrf.mxu0
  %v4176 = vadd.f32 %v4127, %v4175
  %4177 = vmatmul.bf16.gmra.mxu0 %v3986
  %v4178 = vpop.f32.mrf.mxu0
  %v4179 = vadd.f32 %v4130, %v4178
  %v4180 = vpop.f32.mrf.mxu0
  %v4181 = vadd.f32 %v4132, %v4180
  %4182 = vdwg.mxu0
  %v4183 = vmax.f32 %v4046, 0.0
  %v4184 = vmax.f32 %v4144, 0.0
  %v4185 = vmax.f32 %v4048, 0.0
  %v4186 = vmax.f32 %v4146, 0.0
  %v4187 = vmax.f32 %v4051, 0.0
  %v4188 = vmax.f32 %v4149, 0.0
  %v4189 = vmax.f32 %v4053, 0.0
  %v4190 = vmax.f32 %v4151, 0.0
  %v4191 = vmax.f32 %v4056, 0.0
  %v4192 = vmax.f32 %v4154, 0.0
  %v4193 = vmax.f32 %v4058, 0.0
  %v4194 = vmax.f32 %v4156, 0.0
  %v4195 = vmax.f32 %v4061, 0.0
  %v4196 = vmax.f32 %v4159, 0.0
  %v4197 = vmax.f32 %v4063, 0.0
  %v4198 = vmax.f32 %v4161, 0.0
  %v4199 = vmax.f32 %v4066, 0.0
  %v4200 = vmax.f32 %v4164, 0.0
  %v4201 = vmax.f32 %v4068, 0.0
  %v4202 = vmax.f32 %v4166, 0.0
  %v4203 = vmax.f32 %v4071, 0.0
  %v4204 = vmax.f32 %v4169, 0.0
  %v4205 = vmax.f32 %v4073, 0.0
  %v4206 = vmax.f32 %v4171, 0.0
  %v4207 = vmax.f32 %v4076, 0.0
  %v4208 = vmax.f32 %v4174, 0.0
  %v4209 = vmax.f32 %v4078, 0.0
  %v4210 = vmax.f32 %v4176, 0.0
  %v4211 = vmax.f32 %v4081, 0.0
  %v4212 = vmax.f32 %v4179, 0.0
  %v4213 = vmax.f32 %v4083, 0.0
  %v4214 = vmax.f32 %v4181, 0.0
  %v4215 = vpack.c.bf16 %v4185, %v4183
  %v4216 = vpack.c.bf16 %v4189, %v4187
  %v4217 = vpack.c.bf16 %v4193, %v4191
  %v4218 = vpack.c.bf16 %v4197, %v4195
  %v4219 = vpack.c.bf16 %v4201, %v4199
  %v4220 = vpack.c.bf16 %v4205, %v4203
  %v4221 = vpack.c.bf16 %v4209, %v4207
  %v4222 = vpack.c.bf16 %v4213, %v4211
  %4223 = vmatpush.bf16.msra.mxu0 %v1519
  %4224 = vmatpush.bf16.msra.mxu0 %v1518
  %4225 = vmatpush.bf16.msra.mxu0 %v1517
  %4226 = vmatpush.bf16.msra.mxu0 %v1516
  %4227 = vmatpush.bf16.msra.mxu0 %v1515
  %4228 = vmatpush.bf16.msra.mxu0 %v1514
  %4229 = vmatpush.bf16.msra.mxu0 %v1513
  %4230 = vmatpush.bf16.msra.mxu0 %v1512
  %4231 = vmatmul.bf16.gmra.mxu0 %v4215
  %v4232 = vpop.f32.mrf.mxu0
  %v4233 = vadd.f32 %v262, %v4232
  %v4234 = vpop.f32.mrf.mxu0
  %v4235 = vadd.f32 %v262, %v4234
  %4236 = vmatmul.bf16.gmra.mxu0 %v4216
  %v4237 = vpop.f32.mrf.mxu0
  %v4238 = vadd.f32 %v262, %v4237
  %v4239 = vpop.f32.mrf.mxu0
  %v4240 = vadd.f32 %v262, %v4239
  %4241 = vmatmul.bf16.gmra.mxu0 %v4217
  %v4242 = vpop.f32.mrf.mxu0
  %v4243 = vadd.f32 %v262, %v4242
  %v4244 = vpop.f32.mrf.mxu0
  %v4245 = vadd.f32 %v262, %v4244
  %4246 = vmatmul.bf16.gmra.mxu0 %v4218
  %v4247 = vpop.f32.mrf.mxu0
  %v4248 = vadd.f32 %v262, %v4247
  %v4249 = vpop.f32.mrf.mxu0
  %v4250 = vadd.f32 %v262, %v4249
  %4251 = vmatmul.bf16.gmra.mxu0 %v4219
  %v4252 = vpop.f32.mrf.mxu0
  %v4253 = vadd.f32 %v262, %v4252
  %v4254 = vpop.f32.mrf.mxu0
  %v4255 = vadd.f32 %v262, %v4254
  %4256 = vmatmul.bf16.gmra.mxu0 %v4220
  %v4257 = vpop.f32.mrf.mxu0
  %v4258 = vadd.f32 %v262, %v4257
  %v4259 = vpop.f32.mrf.mxu0
  %v4260 = vadd.f32 %v262, %v4259
  %4261 = vmatmul.bf16.gmra.mxu0 %v4221
  %v4262 = vpop.f32.mrf.mxu0
  %v4263 = vadd.f32 %v262, %v4262
  %v4264 = vpop.f32.mrf.mxu0
  %v4265 = vadd.f32 %v262, %v4264
  %4266 = vmatmul.bf16.gmra.mxu0 %v4222
  %v4267 = vpop.f32.mrf.mxu0
  %v4268 = vadd.f32 %v262, %v4267
  %v4269 = vpop.f32.mrf.mxu0
  %v4270 = vadd.f32 %v262, %v4269
  %4271 = vdwg.mxu0
  %v4272 = vmax.f32 %v4233, 0.0
  %v4273 = vmax.f32 %v4235, 0.0
  %v4274 = vmax.f32 %v4238, 0.0
  %v4275 = vmax.f32 %v4240, 0.0
  %v4276 = vmax.f32 %v4243, 0.0
  %v4277 = vmax.f32 %v4245, 0.0
  %v4278 = vmax.f32 %v4248, 0.0
  %v4279 = vmax.f32 %v4250, 0.0
  %v4280 = vmax.f32 %v4253, 0.0
  %v4281 = vmax.f32 %v4255, 0.0
  %v4282 = vmax.f32 %v4258, 0.0
  %v4283 = vmax.f32 %v4260, 0.0
  %v4284 = vmax.f32 %v4263, 0.0
  %v4285 = vmax.f32 %v4265, 0.0
  %v4286 = vmax.f32 %v4268, 0.0
  %v4287 = vmax.f32 %v4270, 0.0
  %v4288 = vpack.c.bf16 %v4273, %v4272
  %v4289 = vpack.c.bf16 %v4186, %v4184
  %v4290 = vpack.c.bf16 %v4275, %v4274
  %v4291 = vpack.c.bf16 %v4190, %v4188
  %v4292 = vpack.c.bf16 %v4277, %v4276
  %v4293 = vpack.c.bf16 %v4194, %v4192
  %v4294 = vpack.c.bf16 %v4279, %v4278
  %v4295 = vpack.c.bf16 %v4198, %v4196
  %v4296 = vpack.c.bf16 %v4281, %v4280
  %v4297 = vpack.c.bf16 %v4202, %v4200
  %v4298 = vpack.c.bf16 %v4283, %v4282
  %v4299 = vpack.c.bf16 %v4206, %v4204
  %v4300 = vpack.c.bf16 %v4285, %v4284
  %v4301 = vpack.c.bf16 %v4210, %v4208
  %v4302 = vpack.c.bf16 %v4287, %v4286
  %v4303 = vpack.c.bf16 %v4214, %v4212
  %4304 = vmatpush.bf16.msra.mxu0 %v1712
  %4305 = vmatpush.bf16.msra.mxu0 %v1711
  %4306 = vmatpush.bf16.msra.mxu0 %v1710
  %4307 = vmatpush.bf16.msra.mxu0 %v1709
  %4308 = vmatpush.bf16.msra.mxu0 %v1708
  %4309 = vmatpush.bf16.msra.mxu0 %v1707
  %4310 = vmatpush.bf16.msra.mxu0 %v1706
  %4311 = vmatpush.bf16.msra.mxu0 %v1705
  %4312 = vmatmul.bf16.gmra.mxu0 %v4288
  %v4313 = vpop.f32.mrf.mxu0
  %v4314 = vadd.f32 %v263, %v4313
  %v4315 = vpop.f32.mrf.mxu0
  %v4316 = vadd.f32 %v263, %v4315
  %4317 = vmatmul.bf16.gmra.mxu0 %v4290
  %v4318 = vpop.f32.mrf.mxu0
  %v4319 = vadd.f32 %v263, %v4318
  %v4320 = vpop.f32.mrf.mxu0
  %v4321 = vadd.f32 %v263, %v4320
  %4322 = vmatmul.bf16.gmra.mxu0 %v4292
  %v4323 = vpop.f32.mrf.mxu0
  %v4324 = vadd.f32 %v263, %v4323
  %v4325 = vpop.f32.mrf.mxu0
  %v4326 = vadd.f32 %v263, %v4325
  %4327 = vmatmul.bf16.gmra.mxu0 %v4294
  %v4328 = vpop.f32.mrf.mxu0
  %v4329 = vadd.f32 %v263, %v4328
  %v4330 = vpop.f32.mrf.mxu0
  %v4331 = vadd.f32 %v263, %v4330
  %4332 = vmatmul.bf16.gmra.mxu0 %v4296
  %v4333 = vpop.f32.mrf.mxu0
  %v4334 = vadd.f32 %v263, %v4333
  %v4335 = vpop.f32.mrf.mxu0
  %v4336 = vadd.f32 %v263, %v4335
  %4337 = vmatmul.bf16.gmra.mxu0 %v4298
  %v4338 = vpop.f32.mrf.mxu0
  %v4339 = vadd.f32 %v263, %v4338
  %v4340 = vpop.f32.mrf.mxu0
  %v4341 = vadd.f32 %v263, %v4340
  %4342 = vmatmul.bf16.gmra.mxu0 %v4300
  %v4343 = vpop.f32.mrf.mxu0
  %v4344 = vadd.f32 %v263, %v4343
  %v4345 = vpop.f32.mrf.mxu0
  %v4346 = vadd.f32 %v263, %v4345
  %4347 = vmatmul.bf16.gmra.mxu0 %v4302
  %v4348 = vpop.f32.mrf.mxu0
  %v4349 = vadd.f32 %v263, %v4348
  %v4350 = vpop.f32.mrf.mxu0
  %v4351 = vadd.f32 %v263, %v4350
  %4352 = vdwg.mxu0
  %4353 = vmatpush.bf16.msra.mxu0 %v1720
  %4354 = vmatpush.bf16.msra.mxu0 %v1719
  %4355 = vmatpush.bf16.msra.mxu0 %v1718
  %4356 = vmatpush.bf16.msra.mxu0 %v1717
  %4357 = vmatpush.bf16.msra.mxu0 %v1716
  %4358 = vmatpush.bf16.msra.mxu0 %v1715
  %4359 = vmatpush.bf16.msra.mxu0 %v1714
  %4360 = vmatpush.bf16.msra.mxu0 %v1713
  %4361 = vmatmul.bf16.gmra.mxu0 %v4289
  %v4362 = vpop.f32.mrf.mxu0
  %v4363 = vadd.f32 %v4314, %v4362
  %v4364 = vpop.f32.mrf.mxu0
  %v4365 = vadd.f32 %v4316, %v4364
  %4366 = vmatmul.bf16.gmra.mxu0 %v4291
  %v4367 = vpop.f32.mrf.mxu0
  %v4368 = vadd.f32 %v4319, %v4367
  %v4369 = vpop.f32.mrf.mxu0
  %v4370 = vadd.f32 %v4321, %v4369
  %4371 = vmatmul.bf16.gmra.mxu0 %v4293
  %v4372 = vpop.f32.mrf.mxu0
  %v4373 = vadd.f32 %v4324, %v4372
  %v4374 = vpop.f32.mrf.mxu0
  %v4375 = vadd.f32 %v4326, %v4374
  %4376 = vmatmul.bf16.gmra.mxu0 %v4295
  %v4377 = vpop.f32.mrf.mxu0
  %v4378 = vadd.f32 %v4329, %v4377
  %v4379 = vpop.f32.mrf.mxu0
  %v4380 = vadd.f32 %v4331, %v4379
  %4381 = vmatmul.bf16.gmra.mxu0 %v4297
  %v4382 = vpop.f32.mrf.mxu0
  %v4383 = vadd.f32 %v4334, %v4382
  %v4384 = vpop.f32.mrf.mxu0
  %v4385 = vadd.f32 %v4336, %v4384
  %4386 = vmatmul.bf16.gmra.mxu0 %v4299
  %v4387 = vpop.f32.mrf.mxu0
  %v4388 = vadd.f32 %v4339, %v4387
  %v4389 = vpop.f32.mrf.mxu0
  %v4390 = vadd.f32 %v4341, %v4389
  %4391 = vmatmul.bf16.gmra.mxu0 %v4301
  %v4392 = vpop.f32.mrf.mxu0
  %v4393 = vadd.f32 %v4344, %v4392
  %v4394 = vpop.f32.mrf.mxu0
  %v4395 = vadd.f32 %v4346, %v4394
  %4396 = vmatmul.bf16.gmra.mxu0 %v4303
  %v4397 = vpop.f32.mrf.mxu0
  %v4398 = vadd.f32 %v4349, %v4397
  %v4399 = vpop.f32.mrf.mxu0
  %v4400 = vadd.f32 %v4351, %v4399
  %4401 = vdwg.mxu0
  %s4402 = scalar_lea.vmem %s2, 256
  %v4403 = vld [vmem:[%s4402] sm:$0xff]
  %v4404 = vld [vmem:[%s4402 + $0x8] sm:$0xff]
  %v4405 = vld [vmem:[%s4402 + $0x10] sm:$0xff]
  %v4406 = vld [vmem:[%s4402 + $0x18] sm:$0xff]
  %v4407 = vld [vmem:[%s4402 + $0x20] sm:$0xff]
  %v4408 = vld [vmem:[%s4402 + $0x28] sm:$0xff]
  %v4409 = vld [vmem:[%s4402 + $0x30] sm:$0xff]
  %v4410 = vld [vmem:[%s4402 + $0x38] sm:$0xff]
  %v4411 = vld [vmem:[%s4402 + $0x40] sm:$0xff]
  %v4412 = vld [vmem:[%s4402 + $0x48] sm:$0xff]
  %v4413 = vld [vmem:[%s4402 + $0x50] sm:$0xff]
  %v4414 = vld [vmem:[%s4402 + $0x58] sm:$0xff]
  %v4415 = vld [vmem:[%s4402 + $0x60] sm:$0xff]
  %v4416 = vld [vmem:[%s4402 + $0x68] sm:$0xff]
  %v4417 = vld [vmem:[%s4402 + $0x70] sm:$0xff]
  %v4418 = vld [vmem:[%s4402 + $0x78] sm:$0xff]
  %v4419 = vmul.f32 %v1854, %v4403
  %v4420 = vmul.f32 %v1859, %v4404
  %v4421 = vmul.f32 %v1864, %v4405
  %v4422 = vmul.f32 %v1869, %v4406
  %v4423 = vmul.f32 %v1874, %v4407
  %v4424 = vmul.f32 %v1879, %v4408
  %v4425 = vmul.f32 %v1884, %v4409
  %v4426 = vmul.f32 %v1889, %v4410
  %v4427 = vmul.f32 %v1894, %v4411
  %v4428 = vmul.f32 %v1899, %v4412
  %v4429 = vmul.f32 %v1904, %v4413
  %v4430 = vmul.f32 %v1909, %v4414
  %v4431 = vmul.f32 %v1914, %v4415
  %v4432 = vmul.f32 %v1919, %v4416
  %v4433 = vmul.f32 %v1924, %v4417
  %v4434 = vmul.f32 %v1929, %v4418
  %v4435 = vmul.f32 %v4363, %v1950
  %v4436 = vmul.f32 %v4365, %v1955
  %v4437 = vmul.f32 %v4368, %v1960
  %v4438 = vmul.f32 %v4370, %v1965
  %v4439 = vmul.f32 %v4373, %v1970
  %v4440 = vmul.f32 %v4375, %v1975
  %v4441 = vmul.f32 %v4378, %v1980
  %v4442 = vmul.f32 %v4380, %v1985
  %v4443 = vmul.f32 %v4383, %v1990
  %v4444 = vmul.f32 %v4385, %v1995
  %v4445 = vmul.f32 %v4388, %v2000
  %v4446 = vmul.f32 %v4390, %v2005
  %v4447 = vmul.f32 %v4393, %v2010
  %v4448 = vmul.f32 %v4395, %v2015
  %v4449 = vmul.f32 %v4398, %v2020
  %v4450 = vmul.f32 %v4400, %v2025
  %v4451 = vadd.f32 %v3407, %v4435
  %v4452 = vadd.f32 %v3408, %v4436
  %v4453 = vadd.f32 %v3409, %v4437
  %v4454 = vadd.f32 %v3410, %v4438
  %v4455 = vadd.f32 %v3411, %v4439
  %v4456 = vadd.f32 %v3412, %v4440
  %v4457 = vadd.f32 %v3413, %v4441
  %v4458 = vadd.f32 %v3414, %v4442
  %v4459 = vadd.f32 %v3415, %v4443
  %v4460 = vadd.f32 %v3416, %v4444
  %v4461 = vadd.f32 %v3417, %v4445
  %v4462 = vadd.f32 %v3418, %v4446
  %v4463 = vadd.f32 %v3419, %v4447
  %v4464 = vadd.f32 %v3420, %v4448
  %v4465 = vadd.f32 %v3421, %v4449
  %v4466 = vadd.f32 %v3422, %v4450
  %4483 = vrot.lane.b32.xlu0 %v4419, 2
  %v4484 = vpop.permute.xlu0 %4483
  %4485 = vrot.lane.b32.xlu0 %v4420, 2
  %v4486 = vpop.permute.xlu0 %4485
  %4487 = vrot.lane.b32.xlu0 %v4421, 2
  %v4488 = vpop.permute.xlu0 %4487
  %4489 = vrot.lane.b32.xlu0 %v4422, 2
  %v4490 = vpop.permute.xlu0 %4489
  %4491 = vrot.lane.b32.xlu0 %v4423, 2
  %v4492 = vpop.permute.xlu0 %4491
  %4493 = vrot.lane.b32.xlu0 %v4424, 2
  %v4494 = vpop.permute.xlu0 %4493
  %4495 = vrot.lane.b32.xlu0 %v4425, 2
  %v4496 = vpop.permute.xlu0 %4495
  %4497 = vrot.lane.b32.xlu0 %v4426, 2
  %v4498 = vpop.permute.xlu0 %4497
  %4499 = vrot.lane.b32.xlu0 %v4427, 2
  %v4500 = vpop.permute.xlu0 %4499
  %4501 = vrot.lane.b32.xlu0 %v4428, 2
  %v4502 = vpop.permute.xlu0 %4501
  %4503 = vrot.lane.b32.xlu0 %v4429, 2
  %v4504 = vpop.permute.xlu0 %4503
  %4505 = vrot.lane.b32.xlu0 %v4430, 2
  %v4506 = vpop.permute.xlu0 %4505
  %4507 = vrot.lane.b32.xlu0 %v4431, 2
  %v4508 = vpop.permute.xlu0 %4507
  %4509 = vrot.lane.b32.xlu0 %v4432, 2
  %v4510 = vpop.permute.xlu0 %4509
  %4511 = vrot.lane.b32.xlu0 %v4433, 2
  %v4512 = vpop.permute.xlu0 %4511
  %4513 = vrot.lane.b32.xlu0 %v4434, 2
  %v4514 = vpop.permute.xlu0 %4513
  %v4531 = vmul.f32 %v4363, %v4484
  %v4532 = vmul.f32 %v4365, %v4486
  %v4533 = vmul.f32 %v4368, %v4488
  %v4534 = vmul.f32 %v4370, %v4490
  %v4535 = vmul.f32 %v4373, %v4492
  %v4536 = vmul.f32 %v4375, %v4494
  %v4537 = vmul.f32 %v4378, %v4496
  %v4538 = vmul.f32 %v4380, %v4498
  %v4539 = vmul.f32 %v4383, %v4500
  %v4540 = vmul.f32 %v4385, %v4502
  %v4541 = vmul.f32 %v4388, %v4504
  %v4542 = vmul.f32 %v4390, %v4506
  %v4543 = vmul.f32 %v4393, %v4508
  %v4544 = vmul.f32 %v4395, %v4510
  %v4545 = vmul.f32 %v4398, %v4512
  %v4546 = vmul.f32 %v4400, %v4514
  %4563 = vrot.lane.b32.xlu0 %v4531, 126
  %v4564 = vpop.permute.xlu0 %4563
  %4565 = vrot.lane.b32.xlu0 %v4532, 126
  %v4566 = vpop.permute.xlu0 %4565
  %4567 = vrot.lane.b32.xlu0 %v4533, 126
  %v4568 = vpop.permute.xlu0 %4567
  %4569 = vrot.lane.b32.xlu0 %v4534, 126
  %v4570 = vpop.permute.xlu0 %4569
  %4571 = vrot.lane.b32.xlu0 %v4535, 126
  %v4572 = vpop.permute.xlu0 %4571
  %4573 = vrot.lane.b32.xlu0 %v4536, 126
  %v4574 = vpop.permute.xlu0 %4573
  %4575 = vrot.lane.b32.xlu0 %v4537, 126
  %v4576 = vpop.permute.xlu0 %4575
  %4577 = vrot.lane.b32.xlu0 %v4538, 126
  %v4578 = vpop.permute.xlu0 %4577
  %4579 = vrot.lane.b32.xlu0 %v4539, 126
  %v4580 = vpop.permute.xlu0 %4579
  %4581 = vrot.lane.b32.xlu0 %v4540, 126
  %v4582 = vpop.permute.xlu0 %4581
  %4583 = vrot.lane.b32.xlu0 %v4541, 126
  %v4584 = vpop.permute.xlu0 %4583
  %4585 = vrot.lane.b32.xlu0 %v4542, 126
  %v4586 = vpop.permute.xlu0 %4585
  %4587 = vrot.lane.b32.xlu0 %v4543, 126
  %v4588 = vpop.permute.xlu0 %4587
  %4589 = vrot.lane.b32.xlu0 %v4544, 126
  %v4590 = vpop.permute.xlu0 %4589
  %4591 = vrot.lane.b32.xlu0 %v4545, 126
  %v4592 = vpop.permute.xlu0 %4591
  %4593 = vrot.lane.b32.xlu0 %v4546, 126
  %v4594 = vpop.permute.xlu0 %4593
  %v4611 = vadd.f32 %v4451, %v4564
  %v4612 = vadd.f32 %v4452, %v4566
  %v4613 = vadd.f32 %v4453, %v4568
  %v4614 = vadd.f32 %v4454, %v4570
  %v4615 = vadd.f32 %v4455, %v4572
  %v4616 = vadd.f32 %v4456, %v4574
  %v4617 = vadd.f32 %v4457, %v4576
  %v4618 = vadd.f32 %v4458, %v4578
  %v4619 = vadd.f32 %v4459, %v4580
  %v4620 = vadd.f32 %v4460, %v4582
  %v4621 = vadd.f32 %v4461, %v4584
  %v4622 = vadd.f32 %v4462, %v4586
  %v4623 = vadd.f32 %v4463, %v4588
  %v4624 = vadd.f32 %v4464, %v4590
  %v4625 = vadd.f32 %v4465, %v4592
  %v4626 = vadd.f32 %v4466, %v4594
  %4628 = vset.pattern.permute.xlu0 0
  %4629 = vperm.xlu0 %4628, %v4611
  %v4630 = vpop.permute.xlu0 %4629
  %4633 = vset.pattern.permute.xlu0 0
  %4634 = vperm.xlu0 %4633, %v4612
  %v4635 = vpop.permute.xlu0 %4634
  %4638 = vset.pattern.permute.xlu0 0
  %4639 = vperm.xlu0 %4638, %v4613
  %v4640 = vpop.permute.xlu0 %4639
  %4643 = vset.pattern.permute.xlu0 0
  %4644 = vperm.xlu0 %4643, %v4614
  %v4645 = vpop.permute.xlu0 %4644
  %4648 = vset.pattern.permute.xlu0 0
  %4649 = vperm.xlu0 %4648, %v4615
  %v4650 = vpop.permute.xlu0 %4649
  %4653 = vset.pattern.permute.xlu0 0
  %4654 = vperm.xlu0 %4653, %v4616
  %v4655 = vpop.permute.xlu0 %4654
  %4658 = vset.pattern.permute.xlu0 0
  %4659 = vperm.xlu0 %4658, %v4617
  %v4660 = vpop.permute.xlu0 %4659
  %4663 = vset.pattern.permute.xlu0 0
  %4664 = vperm.xlu0 %4663, %v4618
  %v4665 = vpop.permute.xlu0 %4664
  %4668 = vset.pattern.permute.xlu0 0
  %4669 = vperm.xlu0 %4668, %v4619
  %v4670 = vpop.permute.xlu0 %4669
  %4673 = vset.pattern.permute.xlu0 0
  %4674 = vperm.xlu0 %4673, %v4620
  %v4675 = vpop.permute.xlu0 %4674
  %4678 = vset.pattern.permute.xlu0 0
  %4679 = vperm.xlu0 %4678, %v4621
  %v4680 = vpop.permute.xlu0 %4679
  %4683 = vset.pattern.permute.xlu0 0
  %4684 = vperm.xlu0 %4683, %v4622
  %v4685 = vpop.permute.xlu0 %4684
  %4688 = vset.pattern.permute.xlu0 0
  %4689 = vperm.xlu0 %4688, %v4623
  %v4690 = vpop.permute.xlu0 %4689
  %4693 = vset.pattern.permute.xlu0 0
  %4694 = vperm.xlu0 %4693, %v4624
  %v4695 = vpop.permute.xlu0 %4694
  %4698 = vset.pattern.permute.xlu0 0
  %4699 = vperm.xlu0 %4698, %v4625
  %v4700 = vpop.permute.xlu0 %4699
  %4703 = vset.pattern.permute.xlu0 0
  %4704 = vperm.xlu0 %4703, %v4626
  %v4705 = vpop.permute.xlu0 %4704
  %v4707 = vmul.f32 %v4630, %v230
  %v4708 = vmul.f32 %v4630, %v231
  %v4709 = vmul.f32 %v4635, %v230
  %v4710 = vmul.f32 %v4635, %v231
  %v4711 = vmul.f32 %v4640, %v230
  %v4712 = vmul.f32 %v4640, %v231
  %v4713 = vmul.f32 %v4645, %v230
  %v4714 = vmul.f32 %v4645, %v231
  %v4715 = vmul.f32 %v4650, %v230
  %v4716 = vmul.f32 %v4650, %v231
  %v4717 = vmul.f32 %v4655, %v230
  %v4718 = vmul.f32 %v4655, %v231
  %v4719 = vmul.f32 %v4660, %v230
  %v4720 = vmul.f32 %v4660, %v231
  %v4721 = vmul.f32 %v4665, %v230
  %v4722 = vmul.f32 %v4665, %v231
  %v4723 = vmul.f32 %v4670, %v230
  %v4724 = vmul.f32 %v4670, %v231
  %v4725 = vmul.f32 %v4675, %v230
  %v4726 = vmul.f32 %v4675, %v231
  %v4727 = vmul.f32 %v4680, %v230
  %v4728 = vmul.f32 %v4680, %v231
  %v4729 = vmul.f32 %v4685, %v230
  %v4730 = vmul.f32 %v4685, %v231
  %v4731 = vmul.f32 %v4690, %v230
  %v4732 = vmul.f32 %v4690, %v231
  %v4733 = vmul.f32 %v4695, %v230
  %v4734 = vmul.f32 %v4695, %v231
  %v4735 = vmul.f32 %v4700, %v230
  %v4736 = vmul.f32 %v4700, %v231
  %v4737 = vmul.f32 %v4705, %v230
  %v4738 = vmul.f32 %v4705, %v231
  %4739 = vset.pattern.permute.xlu0 1
  %4740 = vperm.xlu0 %4739, %v4611
  %v4741 = vpop.permute.xlu0 %4740
  %4743 = vset.pattern.permute.xlu0 1
  %4744 = vperm.xlu0 %4743, %v4612
  %v4745 = vpop.permute.xlu0 %4744
  %4747 = vset.pattern.permute.xlu0 1
  %4748 = vperm.xlu0 %4747, %v4613
  %v4749 = vpop.permute.xlu0 %4748
  %4751 = vset.pattern.permute.xlu0 1
  %4752 = vperm.xlu0 %4751, %v4614
  %v4753 = vpop.permute.xlu0 %4752
  %4755 = vset.pattern.permute.xlu0 1
  %4756 = vperm.xlu0 %4755, %v4615
  %v4757 = vpop.permute.xlu0 %4756
  %4759 = vset.pattern.permute.xlu0 1
  %4760 = vperm.xlu0 %4759, %v4616
  %v4761 = vpop.permute.xlu0 %4760
  %4763 = vset.pattern.permute.xlu0 1
  %4764 = vperm.xlu0 %4763, %v4617
  %v4765 = vpop.permute.xlu0 %4764
  %4767 = vset.pattern.permute.xlu0 1
  %4768 = vperm.xlu0 %4767, %v4618
  %v4769 = vpop.permute.xlu0 %4768
  %4771 = vset.pattern.permute.xlu0 1
  %4772 = vperm.xlu0 %4771, %v4619
  %v4773 = vpop.permute.xlu0 %4772
  %4775 = vset.pattern.permute.xlu0 1
  %4776 = vperm.xlu0 %4775, %v4620
  %v4777 = vpop.permute.xlu0 %4776
  %4779 = vset.pattern.permute.xlu0 1
  %4780 = vperm.xlu0 %4779, %v4621
  %v4781 = vpop.permute.xlu0 %4780
  %4783 = vset.pattern.permute.xlu0 1
  %4784 = vperm.xlu0 %4783, %v4622
  %v4785 = vpop.permute.xlu0 %4784
  %4787 = vset.pattern.permute.xlu0 1
  %4788 = vperm.xlu0 %4787, %v4623
  %v4789 = vpop.permute.xlu0 %4788
  %4791 = vset.pattern.permute.xlu0 1
  %4792 = vperm.xlu0 %4791, %v4624
  %v4793 = vpop.permute.xlu0 %4792
  %4795 = vset.pattern.permute.xlu0 1
  %4796 = vperm.xlu0 %4795, %v4625
  %v4797 = vpop.permute.xlu0 %4796
  %4799 = vset.pattern.permute.xlu0 1
  %4800 = vperm.xlu0 %4799, %v4626
  %v4801 = vpop.permute.xlu0 %4800
  %v4803 = vmul.f32 %v4741, %v237
  %v4804 = vmul.f32 %v4741, %v238
  %v4805 = vmul.f32 %v4745, %v237
  %v4806 = vmul.f32 %v4745, %v238
  %v4807 = vmul.f32 %v4749, %v237
  %v4808 = vmul.f32 %v4749, %v238
  %v4809 = vmul.f32 %v4753, %v237
  %v4810 = vmul.f32 %v4753, %v238
  %v4811 = vmul.f32 %v4757, %v237
  %v4812 = vmul.f32 %v4757, %v238
  %v4813 = vmul.f32 %v4761, %v237
  %v4814 = vmul.f32 %v4761, %v238
  %v4815 = vmul.f32 %v4765, %v237
  %v4816 = vmul.f32 %v4765, %v238
  %v4817 = vmul.f32 %v4769, %v237
  %v4818 = vmul.f32 %v4769, %v238
  %v4819 = vmul.f32 %v4773, %v237
  %v4820 = vmul.f32 %v4773, %v238
  %v4821 = vmul.f32 %v4777, %v237
  %v4822 = vmul.f32 %v4777, %v238
  %v4823 = vmul.f32 %v4781, %v237
  %v4824 = vmul.f32 %v4781, %v238
  %v4825 = vmul.f32 %v4785, %v237
  %v4826 = vmul.f32 %v4785, %v238
  %v4827 = vmul.f32 %v4789, %v237
  %v4828 = vmul.f32 %v4789, %v238
  %v4829 = vmul.f32 %v4793, %v237
  %v4830 = vmul.f32 %v4793, %v238
  %v4831 = vmul.f32 %v4797, %v237
  %v4832 = vmul.f32 %v4797, %v238
  %v4833 = vmul.f32 %v4801, %v237
  %v4834 = vmul.f32 %v4801, %v238
  %v4835 = vadd.f32 %v4707, %v4803
  %v4836 = vadd.f32 %v4708, %v4804
  %v4837 = vadd.f32 %v4709, %v4805
  %v4838 = vadd.f32 %v4710, %v4806
  %v4839 = vadd.f32 %v4711, %v4807
  %v4840 = vadd.f32 %v4712, %v4808
  %v4841 = vadd.f32 %v4713, %v4809
  %v4842 = vadd.f32 %v4714, %v4810
  %v4843 = vadd.f32 %v4715, %v4811
  %v4844 = vadd.f32 %v4716, %v4812
  %v4845 = vadd.f32 %v4717, %v4813
  %v4846 = vadd.f32 %v4718, %v4814
  %v4847 = vadd.f32 %v4719, %v4815
  %v4848 = vadd.f32 %v4720, %v4816
  %v4849 = vadd.f32 %v4721, %v4817
  %v4850 = vadd.f32 %v4722, %v4818
  %v4851 = vadd.f32 %v4723, %v4819
  %v4852 = vadd.f32 %v4724, %v4820
  %v4853 = vadd.f32 %v4725, %v4821
  %v4854 = vadd.f32 %v4726, %v4822
  %v4855 = vadd.f32 %v4727, %v4823
  %v4856 = vadd.f32 %v4728, %v4824
  %v4857 = vadd.f32 %v4729, %v4825
  %v4858 = vadd.f32 %v4730, %v4826
  %v4859 = vadd.f32 %v4731, %v4827
  %v4860 = vadd.f32 %v4732, %v4828
  %v4861 = vadd.f32 %v4733, %v4829
  %v4862 = vadd.f32 %v4734, %v4830
  %v4863 = vadd.f32 %v4735, %v4831
  %v4864 = vadd.f32 %v4736, %v4832
  %v4865 = vadd.f32 %v4737, %v4833
  %v4866 = vadd.f32 %v4738, %v4834
  %v4867 = vadd.f32 %v4835, %v244
  %v4868 = vadd.f32 %v4836, %v245
  %v4869 = vadd.f32 %v4837, %v244
  %v4870 = vadd.f32 %v4838, %v245
  %v4871 = vadd.f32 %v4839, %v244
  %v4872 = vadd.f32 %v4840, %v245
  %v4873 = vadd.f32 %v4841, %v244
  %v4874 = vadd.f32 %v4842, %v245
  %v4875 = vadd.f32 %v4843, %v244
  %v4876 = vadd.f32 %v4844, %v245
  %v4877 = vadd.f32 %v4845, %v244
  %v4878 = vadd.f32 %v4846, %v245
  %v4879 = vadd.f32 %v4847, %v244
  %v4880 = vadd.f32 %v4848, %v245
  %v4881 = vadd.f32 %v4849, %v244
  %v4882 = vadd.f32 %v4850, %v245
  %v4883 = vadd.f32 %v4851, %v244
  %v4884 = vadd.f32 %v4852, %v245
  %v4885 = vadd.f32 %v4853, %v244
  %v4886 = vadd.f32 %v4854, %v245
  %v4887 = vadd.f32 %v4855, %v244
  %v4888 = vadd.f32 %v4856, %v245
  %v4889 = vadd.f32 %v4857, %v244
  %v4890 = vadd.f32 %v4858, %v245
  %v4891 = vadd.f32 %v4859, %v244
  %v4892 = vadd.f32 %v4860, %v245
  %v4893 = vadd.f32 %v4861, %v244
  %v4894 = vadd.f32 %v4862, %v245
  %v4895 = vadd.f32 %v4863, %v244
  %v4896 = vadd.f32 %v4864, %v245
  %v4897 = vadd.f32 %v4865, %v244
  %v4898 = vadd.f32 %v4866, %v245
  %v4899 = vmax.f32 %v4867, 0.0
  %v4900 = vmax.f32 %v4868, 0.0
  %v4901 = vmax.f32 %v4869, 0.0
  %v4902 = vmax.f32 %v4870, 0.0
  %v4903 = vmax.f32 %v4871, 0.0
  %v4904 = vmax.f32 %v4872, 0.0
  %v4905 = vmax.f32 %v4873, 0.0
  %v4906 = vmax.f32 %v4874, 0.0
  %v4907 = vmax.f32 %v4875, 0.0
  %v4908 = vmax.f32 %v4876, 0.0
  %v4909 = vmax.f32 %v4877, 0.0
  %v4910 = vmax.f32 %v4878, 0.0
  %v4911 = vmax.f32 %v4879, 0.0
  %v4912 = vmax.f32 %v4880, 0.0
  %v4913 = vmax.f32 %v4881, 0.0
  %v4914 = vmax.f32 %v4882, 0.0
  %v4915 = vmax.f32 %v4883, 0.0
  %v4916 = vmax.f32 %v4884, 0.0
  %v4917 = vmax.f32 %v4885, 0.0
  %v4918 = vmax.f32 %v4886, 0.0
  %v4919 = vmax.f32 %v4887, 0.0
  %v4920 = vmax.f32 %v4888, 0.0
  %v4921 = vmax.f32 %v4889, 0.0
  %v4922 = vmax.f32 %v4890, 0.0
  %v4923 = vmax.f32 %v4891, 0.0
  %v4924 = vmax.f32 %v4892, 0.0
  %v4925 = vmax.f32 %v4893, 0.0
  %v4926 = vmax.f32 %v4894, 0.0
  %v4927 = vmax.f32 %v4895, 0.0
  %v4928 = vmax.f32 %v4896, 0.0
  %v4929 = vmax.f32 %v4897, 0.0
  %v4930 = vmax.f32 %v4898, 0.0
  %v4931 = vpack.c.bf16 %v4901, %v4899
  %v4932 = vpack.c.bf16 %v4902, %v4900
  %v4933 = vpack.c.bf16 %v4905, %v4903
  %v4934 = vpack.c.bf16 %v4906, %v4904
  %v4935 = vpack.c.bf16 %v4909, %v4907
  %v4936 = vpack.c.bf16 %v4910, %v4908
  %v4937 = vpack.c.bf16 %v4913, %v4911
  %v4938 = vpack.c.bf16 %v4914, %v4912
  %v4939 = vpack.c.bf16 %v4917, %v4915
  %v4940 = vpack.c.bf16 %v4918, %v4916
  %v4941 = vpack.c.bf16 %v4921, %v4919
  %v4942 = vpack.c.bf16 %v4922, %v4920
  %v4943 = vpack.c.bf16 %v4925, %v4923
  %v4944 = vpack.c.bf16 %v4926, %v4924
  %v4945 = vpack.c.bf16 %v4929, %v4927
  %v4946 = vpack.c.bf16 %v4930, %v4928
  %4947 = vmatpush.bf16.msra.mxu0 %v742
  %4948 = vmatpush.bf16.msra.mxu0 %v740
  %4949 = vmatpush.bf16.msra.mxu0 %v738
  %4950 = vmatpush.bf16.msra.mxu0 %v736
  %4951 = vmatpush.bf16.msra.mxu0 %v734
  %4952 = vmatpush.bf16.msra.mxu0 %v732
  %4953 = vmatpush.bf16.msra.mxu0 %v730
  %4954 = vmatpush.bf16.msra.mxu0 %v728
  %4955 = vmatmul.bf16.gmra.mxu0 %v4931
  %v4956 = vpop.f32.mrf.mxu0
  %v4957 = vadd.f32 %v251, %v4956
  %v4958 = vpop.f32.mrf.mxu0
  %v4959 = vadd.f32 %v251, %v4958
  %4960 = vmatmul.bf16.gmra.mxu0 %v4933
  %v4961 = vpop.f32.mrf.mxu0
  %v4962 = vadd.f32 %v251, %v4961
  %v4963 = vpop.f32.mrf.mxu0
  %v4964 = vadd.f32 %v251, %v4963
  %4965 = vmatmul.bf16.gmra.mxu0 %v4935
  %v4966 = vpop.f32.mrf.mxu0
  %v4967 = vadd.f32 %v251, %v4966
  %v4968 = vpop.f32.mrf.mxu0
  %v4969 = vadd.f32 %v251, %v4968
  %4970 = vmatmul.bf16.gmra.mxu0 %v4937
  %v4971 = vpop.f32.mrf.mxu0
  %v4972 = vadd.f32 %v251, %v4971
  %v4973 = vpop.f32.mrf.mxu0
  %v4974 = vadd.f32 %v251, %v4973
  %4975 = vmatmul.bf16.gmra.mxu0 %v4939
  %v4976 = vpop.f32.mrf.mxu0
  %v4977 = vadd.f32 %v251, %v4976
  %v4978 = vpop.f32.mrf.mxu0
  %v4979 = vadd.f32 %v251, %v4978
  %4980 = vmatmul.bf16.gmra.mxu0 %v4941
  %v4981 = vpop.f32.mrf.mxu0
  %v4982 = vadd.f32 %v251, %v4981
  %v4983 = vpop.f32.mrf.mxu0
  %v4984 = vadd.f32 %v251, %v4983
  %4985 = vmatmul.bf16.gmra.mxu0 %v4943
  %v4986 = vpop.f32.mrf.mxu0
  %v4987 = vadd.f32 %v251, %v4986
  %v4988 = vpop.f32.mrf.mxu0
  %v4989 = vadd.f32 %v251, %v4988
  %4990 = vmatmul.bf16.gmra.mxu0 %v4945
  %v4991 = vpop.f32.mrf.mxu0
  %v4992 = vadd.f32 %v251, %v4991
  %v4993 = vpop.f32.mrf.mxu0
  %v4994 = vadd.f32 %v251, %v4993
  %4995 = vdwg.mxu0
  %4996 = vmatpush.bf16.msra.mxu0 %v758
  %4997 = vmatpush.bf16.msra.mxu0 %v756
  %4998 = vmatpush.bf16.msra.mxu0 %v754
  %4999 = vmatpush.bf16.msra.mxu0 %v752
  %5000 = vmatpush.bf16.msra.mxu0 %v750
  %5001 = vmatpush.bf16.msra.mxu0 %v748
  %5002 = vmatpush.bf16.msra.mxu0 %v746
  %5003 = vmatpush.bf16.msra.mxu0 %v744
  %5004 = vmatmul.bf16.gmra.mxu0 %v4932
  %v5005 = vpop.f32.mrf.mxu0
  %v5006 = vadd.f32 %v4957, %v5005
  %v5007 = vpop.f32.mrf.mxu0
  %v5008 = vadd.f32 %v4959, %v5007
  %5009 = vmatmul.bf16.gmra.mxu0 %v4934
  %v5010 = vpop.f32.mrf.mxu0
  %v5011 = vadd.f32 %v4962, %v5010
  %v5012 = vpop.f32.mrf.mxu0
  %v5013 = vadd.f32 %v4964, %v5012
  %5014 = vmatmul.bf16.gmra.mxu0 %v4936
  %v5015 = vpop.f32.mrf.mxu0
  %v5016 = vadd.f32 %v4967, %v5015
  %v5017 = vpop.f32.mrf.mxu0
  %v5018 = vadd.f32 %v4969, %v5017
  %5019 = vmatmul.bf16.gmra.mxu0 %v4938
  %v5020 = vpop.f32.mrf.mxu0
  %v5021 = vadd.f32 %v4972, %v5020
  %v5022 = vpop.f32.mrf.mxu0
  %v5023 = vadd.f32 %v4974, %v5022
  %5024 = vmatmul.bf16.gmra.mxu0 %v4940
  %v5025 = vpop.f32.mrf.mxu0
  %v5026 = vadd.f32 %v4977, %v5025
  %v5027 = vpop.f32.mrf.mxu0
  %v5028 = vadd.f32 %v4979, %v5027
  %5029 = vmatmul.bf16.gmra.mxu0 %v4942
  %v5030 = vpop.f32.mrf.mxu0
  %v5031 = vadd.f32 %v4982, %v5030
  %v5032 = vpop.f32.mrf.mxu0
  %v5033 = vadd.f32 %v4984, %v5032
  %5034 = vmatmul.bf16.gmra.mxu0 %v4944
  %v5035 = vpop.f32.mrf.mxu0
  %v5036 = vadd.f32 %v4987, %v5035
  %v5037 = vpop.f32.mrf.mxu0
  %v5038 = vadd.f32 %v4989, %v5037
  %5039 = vmatmul.bf16.gmra.mxu0 %v4946
  %v5040 = vpop.f32.mrf.mxu0
  %v5041 = vadd.f32 %v4992, %v5040
  %v5042 = vpop.f32.mrf.mxu0
  %v5043 = vadd.f32 %v4994, %v5042
  %5044 = vdwg.mxu0
  %5045 = vmatpush.bf16.msra.mxu0 %v743
  %5046 = vmatpush.bf16.msra.mxu0 %v741
  %5047 = vmatpush.bf16.msra.mxu0 %v739
  %5048 = vmatpush.bf16.msra.mxu0 %v737
  %5049 = vmatpush.bf16.msra.mxu0 %v735
  %5050 = vmatpush.bf16.msra.mxu0 %v733
  %5051 = vmatpush.bf16.msra.mxu0 %v731
  %5052 = vmatpush.bf16.msra.mxu0 %v729
  %5053 = vmatmul.bf16.gmra.mxu0 %v4931
  %v5054 = vpop.f32.mrf.mxu0
  %v5055 = vadd.f32 %v252, %v5054
  %v5056 = vpop.f32.mrf.mxu0
  %v5057 = vadd.f32 %v252, %v5056
  %5058 = vmatmul.bf16.gmra.mxu0 %v4933
  %v5059 = vpop.f32.mrf.mxu0
  %v5060 = vadd.f32 %v252, %v5059
  %v5061 = vpop.f32.mrf.mxu0
  %v5062 = vadd.f32 %v252, %v5061
  %5063 = vmatmul.bf16.gmra.mxu0 %v4935
  %v5064 = vpop.f32.mrf.mxu0
  %v5065 = vadd.f32 %v252, %v5064
  %v5066 = vpop.f32.mrf.mxu0
  %v5067 = vadd.f32 %v252, %v5066
  %5068 = vmatmul.bf16.gmra.mxu0 %v4937
  %v5069 = vpop.f32.mrf.mxu0
  %v5070 = vadd.f32 %v252, %v5069
  %v5071 = vpop.f32.mrf.mxu0
  %v5072 = vadd.f32 %v252, %v5071
  %5073 = vmatmul.bf16.gmra.mxu0 %v4939
  %v5074 = vpop.f32.mrf.mxu0
  %v5075 = vadd.f32 %v252, %v5074
  %v5076 = vpop.f32.mrf.mxu0
  %v5077 = vadd.f32 %v252, %v5076
  %5078 = vmatmul.bf16.gmra.mxu0 %v4941
  %v5079 = vpop.f32.mrf.mxu0
  %v5080 = vadd.f32 %v252, %v5079
  %v5081 = vpop.f32.mrf.mxu0
  %v5082 = vadd.f32 %v252, %v5081
  %5083 = vmatmul.bf16.gmra.mxu0 %v4943
  %v5084 = vpop.f32.mrf.mxu0
  %v5085 = vadd.f32 %v252, %v5084
  %v5086 = vpop.f32.mrf.mxu0
  %v5087 = vadd.f32 %v252, %v5086
  %5088 = vmatmul.bf16.gmra.mxu0 %v4945
  %v5089 = vpop.f32.mrf.mxu0
  %v5090 = vadd.f32 %v252, %v5089
  %v5091 = vpop.f32.mrf.mxu0
  %v5092 = vadd.f32 %v252, %v5091
  %5093 = vdwg.mxu0
  %5094 = vmatpush.bf16.msra.mxu0 %v759
  %5095 = vmatpush.bf16.msra.mxu0 %v757
  %5096 = vmatpush.bf16.msra.mxu0 %v755
  %5097 = vmatpush.bf16.msra.mxu0 %v753
  %5098 = vmatpush.bf16.msra.mxu0 %v751
  %5099 = vmatpush.bf16.msra.mxu0 %v749
  %5100 = vmatpush.bf16.msra.mxu0 %v747
  %5101 = vmatpush.bf16.msra.mxu0 %v745
  %5102 = vmatmul.bf16.gmra.mxu0 %v4932
  %v5103 = vpop.f32.mrf.mxu0
  %v5104 = vadd.f32 %v5055, %v5103
  %v5105 = vpop.f32.mrf.mxu0
  %v5106 = vadd.f32 %v5057, %v5105
  %5107 = vmatmul.bf16.gmra.mxu0 %v4934
  %v5108 = vpop.f32.mrf.mxu0
  %v5109 = vadd.f32 %v5060, %v5108
  %v5110 = vpop.f32.mrf.mxu0
  %v5111 = vadd.f32 %v5062, %v5110
  %5112 = vmatmul.bf16.gmra.mxu0 %v4936
  %v5113 = vpop.f32.mrf.mxu0
  %v5114 = vadd.f32 %v5065, %v5113
  %v5115 = vpop.f32.mrf.mxu0
  %v5116 = vadd.f32 %v5067, %v5115
  %5117 = vmatmul.bf16.gmra.mxu0 %v4938
  %v5118 = vpop.f32.mrf.mxu0
  %v5119 = vadd.f32 %v5070, %v5118
  %v5120 = vpop.f32.mrf.mxu0
  %v5121 = vadd.f32 %v5072, %v5120
  %5122 = vmatmul.bf16.gmra.mxu0 %v4940
  %v5123 = vpop.f32.mrf.mxu0
  %v5124 = vadd.f32 %v5075, %v5123
  %v5125 = vpop.f32.mrf.mxu0
  %v5126 = vadd.f32 %v5077, %v5125
  %5127 = vmatmul.bf16.gmra.mxu0 %v4942
  %v5128 = vpop.f32.mrf.mxu0
  %v5129 = vadd.f32 %v5080, %v5128
  %v5130 = vpop.f32.mrf.mxu0
  %v5131 = vadd.f32 %v5082, %v5130
  %5132 = vmatmul.bf16.gmra.mxu0 %v4944
  %v5133 = vpop.f32.mrf.mxu0
  %v5134 = vadd.f32 %v5085, %v5133
  %v5135 = vpop.f32.mrf.mxu0
  %v5136 = vadd.f32 %v5087, %v5135
  %5137 = vmatmul.bf16.gmra.mxu0 %v4946
  %v5138 = vpop.f32.mrf.mxu0
  %v5139 = vadd.f32 %v5090, %v5138
  %v5140 = vpop.f32.mrf.mxu0
  %v5141 = vadd.f32 %v5092, %v5140
  %5142 = vdwg.mxu0
  %v5143 = vmax.f32 %v5006, 0.0
  %v5144 = vmax.f32 %v5104, 0.0
  %v5145 = vmax.f32 %v5008, 0.0
  %v5146 = vmax.f32 %v5106, 0.0
  %v5147 = vmax.f32 %v5011, 0.0
  %v5148 = vmax.f32 %v5109, 0.0
  %v5149 = vmax.f32 %v5013, 0.0
  %v5150 = vmax.f32 %v5111, 0.0
  %v5151 = vmax.f32 %v5016, 0.0
  %v5152 = vmax.f32 %v5114, 0.0
  %v5153 = vmax.f32 %v5018, 0.0
  %v5154 = vmax.f32 %v5116, 0.0
  %v5155 = vmax.f32 %v5021, 0.0
  %v5156 = vmax.f32 %v5119, 0.0
  %v5157 = vmax.f32 %v5023, 0.0
  %v5158 = vmax.f32 %v5121, 0.0
  %v5159 = vmax.f32 %v5026, 0.0
  %v5160 = vmax.f32 %v5124, 0.0
  %v5161 = vmax.f32 %v5028, 0.0
  %v5162 = vmax.f32 %v5126, 0.0
  %v5163 = vmax.f32 %v5031, 0.0
  %v5164 = vmax.f32 %v5129, 0.0
  %v5165 = vmax.f32 %v5033, 0.0
  %v5166 = vmax.f32 %v5131, 0.0
  %v5167 = vmax.f32 %v5036, 0.0
  %v5168 = vmax.f32 %v5134, 0.0
  %v5169 = vmax.f32 %v5038, 0.0
  %v5170 = vmax.f32 %v5136, 0.0
  %v5171 = vmax.f32 %v5041, 0.0
  %v5172 = vmax.f32 %v5139, 0.0
  %v5173 = vmax.f32 %v5043, 0.0
  %v5174 = vmax.f32 %v5141, 0.0
  %v5175 = vpack.c.bf16 %v5145, %v5143
  %v5176 = vpack.c.bf16 %v5146, %v5144
  %v5177 = vpack.c.bf16 %v5149, %v5147
  %v5178 = vpack.c.bf16 %v5150, %v5148
  %v5179 = vpack.c.bf16 %v5153, %v5151
  %v5180 = vpack.c.bf16 %v5154, %v5152
  %v5181 = vpack.c.bf16 %v5157, %v5155
  %v5182 = vpack.c.bf16 %v5158, %v5156
  %v5183 = vpack.c.bf16 %v5161, %v5159
  %v5184 = vpack.c.bf16 %v5162, %v5160
  %v5185 = vpack.c.bf16 %v5165, %v5163
  %v5186 = vpack.c.bf16 %v5166, %v5164
  %v5187 = vpack.c.bf16 %v5169, %v5167
  %v5188 = vpack.c.bf16 %v5170, %v5168
  %v5189 = vpack.c.bf16 %v5173, %v5171
  %v5190 = vpack.c.bf16 %v5174, %v5172
  %5191 = vmatpush.bf16.msra.mxu0 %v1178
  %5192 = vmatpush.bf16.msra.mxu0 %v1176
  %5193 = vmatpush.bf16.msra.mxu0 %v1174
  %5194 = vmatpush.bf16.msra.mxu0 %v1172
  %5195 = vmatpush.bf16.msra.mxu0 %v1170
  %5196 = vmatpush.bf16.msra.mxu0 %v1168
  %5197 = vmatpush.bf16.msra.mxu0 %v1166
  %5198 = vmatpush.bf16.msra.mxu0 %v1164
  %5199 = vmatmul.bf16.gmra.mxu0 %v5175
  %v5200 = vpop.f32.mrf.mxu0
  %v5201 = vadd.f32 %v258, %v5200
  %v5202 = vpop.f32.mrf.mxu0
  %v5203 = vadd.f32 %v258, %v5202
  %5204 = vmatmul.bf16.gmra.mxu0 %v5177
  %v5205 = vpop.f32.mrf.mxu0
  %v5206 = vadd.f32 %v258, %v5205
  %v5207 = vpop.f32.mrf.mxu0
  %v5208 = vadd.f32 %v258, %v5207
  %5209 = vmatmul.bf16.gmra.mxu0 %v5179
  %v5210 = vpop.f32.mrf.mxu0
  %v5211 = vadd.f32 %v258, %v5210
  %v5212 = vpop.f32.mrf.mxu0
  %v5213 = vadd.f32 %v258, %v5212
  %5214 = vmatmul.bf16.gmra.mxu0 %v5181
  %v5215 = vpop.f32.mrf.mxu0
  %v5216 = vadd.f32 %v258, %v5215
  %v5217 = vpop.f32.mrf.mxu0
  %v5218 = vadd.f32 %v258, %v5217
  %5219 = vmatmul.bf16.gmra.mxu0 %v5183
  %v5220 = vpop.f32.mrf.mxu0
  %v5221 = vadd.f32 %v258, %v5220
  %v5222 = vpop.f32.mrf.mxu0
  %v5223 = vadd.f32 %v258, %v5222
  %5224 = vmatmul.bf16.gmra.mxu0 %v5185
  %v5225 = vpop.f32.mrf.mxu0
  %v5226 = vadd.f32 %v258, %v5225
  %v5227 = vpop.f32.mrf.mxu0
  %v5228 = vadd.f32 %v258, %v5227
  %5229 = vmatmul.bf16.gmra.mxu0 %v5187
  %v5230 = vpop.f32.mrf.mxu0
  %v5231 = vadd.f32 %v258, %v5230
  %v5232 = vpop.f32.mrf.mxu0
  %v5233 = vadd.f32 %v258, %v5232
  %5234 = vmatmul.bf16.gmra.mxu0 %v5189
  %v5235 = vpop.f32.mrf.mxu0
  %v5236 = vadd.f32 %v258, %v5235
  %v5237 = vpop.f32.mrf.mxu0
  %v5238 = vadd.f32 %v258, %v5237
  %5239 = vdwg.mxu0
  %5240 = vmatpush.bf16.msra.mxu0 %v1194
  %5241 = vmatpush.bf16.msra.mxu0 %v1192
  %5242 = vmatpush.bf16.msra.mxu0 %v1190
  %5243 = vmatpush.bf16.msra.mxu0 %v1188
  %5244 = vmatpush.bf16.msra.mxu0 %v1186
  %5245 = vmatpush.bf16.msra.mxu0 %v1184
  %5246 = vmatpush.bf16.msra.mxu0 %v1182
  %5247 = vmatpush.bf16.msra.mxu0 %v1180
  %5248 = vmatmul.bf16.gmra.mxu0 %v5176
  %v5249 = vpop.f32.mrf.mxu0
  %v5250 = vadd.f32 %v5201, %v5249
  %v5251 = vpop.f32.mrf.mxu0
  %v5252 = vadd.f32 %v5203, %v5251
  %5253 = vmatmul.bf16.gmra.mxu0 %v5178
  %v5254 = vpop.f32.mrf.mxu0
  %v5255 = vadd.f32 %v5206, %v5254
  %v5256 = vpop.f32.mrf.mxu0
  %v5257 = vadd.f32 %v5208, %v5256
  %5258 = vmatmul.bf16.gmra.mxu0 %v5180
  %v5259 = vpop.f32.mrf.mxu0
  %v5260 = vadd.f32 %v5211, %v5259
  %v5261 = vpop.f32.mrf.mxu0
  %v5262 = vadd.f32 %v5213, %v5261
  %5263 = vmatmul.bf16.gmra.mxu0 %v5182
  %v5264 = vpop.f32.mrf.mxu0
  %v5265 = vadd.f32 %v5216, %v5264
  %v5266 = vpop.f32.mrf.mxu0
  %v5267 = vadd.f32 %v5218, %v5266
  %5268 = vmatmul.bf16.gmra.mxu0 %v5184
  %v5269 = vpop.f32.mrf.mxu0
  %v5270 = vadd.f32 %v5221, %v5269
  %v5271 = vpop.f32.mrf.mxu0
  %v5272 = vadd.f32 %v5223, %v5271
  %5273 = vmatmul.bf16.gmra.mxu0 %v5186
  %v5274 = vpop.f32.mrf.mxu0
  %v5275 = vadd.f32 %v5226, %v5274
  %v5276 = vpop.f32.mrf.mxu0
  %v5277 = vadd.f32 %v5228, %v5276
  %5278 = vmatmul.bf16.gmra.mxu0 %v5188
  %v5279 = vpop.f32.mrf.mxu0
  %v5280 = vadd.f32 %v5231, %v5279
  %v5281 = vpop.f32.mrf.mxu0
  %v5282 = vadd.f32 %v5233, %v5281
  %5283 = vmatmul.bf16.gmra.mxu0 %v5190
  %v5284 = vpop.f32.mrf.mxu0
  %v5285 = vadd.f32 %v5236, %v5284
  %v5286 = vpop.f32.mrf.mxu0
  %v5287 = vadd.f32 %v5238, %v5286
  %5288 = vdwg.mxu0
  %5289 = vmatpush.bf16.msra.mxu0 %v1179
  %5290 = vmatpush.bf16.msra.mxu0 %v1177
  %5291 = vmatpush.bf16.msra.mxu0 %v1175
  %5292 = vmatpush.bf16.msra.mxu0 %v1173
  %5293 = vmatpush.bf16.msra.mxu0 %v1171
  %5294 = vmatpush.bf16.msra.mxu0 %v1169
  %5295 = vmatpush.bf16.msra.mxu0 %v1167
  %5296 = vmatpush.bf16.msra.mxu0 %v1165
  %5297 = vmatmul.bf16.gmra.mxu0 %v5175
  %v5298 = vpop.f32.mrf.mxu0
  %v5299 = vadd.f32 %v259, %v5298
  %v5300 = vpop.f32.mrf.mxu0
  %v5301 = vadd.f32 %v259, %v5300
  %5302 = vmatmul.bf16.gmra.mxu0 %v5177
  %v5303 = vpop.f32.mrf.mxu0
  %v5304 = vadd.f32 %v259, %v5303
  %v5305 = vpop.f32.mrf.mxu0
  %v5306 = vadd.f32 %v259, %v5305
  %5307 = vmatmul.bf16.gmra.mxu0 %v5179
  %v5308 = vpop.f32.mrf.mxu0
  %v5309 = vadd.f32 %v259, %v5308
  %v5310 = vpop.f32.mrf.mxu0
  %v5311 = vadd.f32 %v259, %v5310
  %5312 = vmatmul.bf16.gmra.mxu0 %v5181
  %v5313 = vpop.f32.mrf.mxu0
  %v5314 = vadd.f32 %v259, %v5313
  %v5315 = vpop.f32.mrf.mxu0
  %v5316 = vadd.f32 %v259, %v5315
  %5317 = vmatmul.bf16.gmra.mxu0 %v5183
  %v5318 = vpop.f32.mrf.mxu0
  %v5319 = vadd.f32 %v259, %v5318
  %v5320 = vpop.f32.mrf.mxu0
  %v5321 = vadd.f32 %v259, %v5320
  %5322 = vmatmul.bf16.gmra.mxu0 %v5185
  %v5323 = vpop.f32.mrf.mxu0
  %v5324 = vadd.f32 %v259, %v5323
  %v5325 = vpop.f32.mrf.mxu0
  %v5326 = vadd.f32 %v259, %v5325
  %5327 = vmatmul.bf16.gmra.mxu0 %v5187
  %v5328 = vpop.f32.mrf.mxu0
  %v5329 = vadd.f32 %v259, %v5328
  %v5330 = vpop.f32.mrf.mxu0
  %v5331 = vadd.f32 %v259, %v5330
  %5332 = vmatmul.bf16.gmra.mxu0 %v5189
  %v5333 = vpop.f32.mrf.mxu0
  %v5334 = vadd.f32 %v259, %v5333
  %v5335 = vpop.f32.mrf.mxu0
  %v5336 = vadd.f32 %v259, %v5335
  %5337 = vdwg.mxu0
  %5338 = vmatpush.bf16.msra.mxu0 %v1195
  %5339 = vmatpush.bf16.msra.mxu0 %v1193
  %5340 = vmatpush.bf16.msra.mxu0 %v1191
  %5341 = vmatpush.bf16.msra.mxu0 %v1189
  %5342 = vmatpush.bf16.msra.mxu0 %v1187
  %5343 = vmatpush.bf16.msra.mxu0 %v1185
  %5344 = vmatpush.bf16.msra.mxu0 %v1183
  %5345 = vmatpush.bf16.msra.mxu0 %v1181
  %5346 = vmatmul.bf16.gmra.mxu0 %v5176
  %v5347 = vpop.f32.mrf.mxu0
  %v5348 = vadd.f32 %v5299, %v5347
  %v5349 = vpop.f32.mrf.mxu0
  %v5350 = vadd.f32 %v5301, %v5349
  %5351 = vmatmul.bf16.gmra.mxu0 %v5178
  %v5352 = vpop.f32.mrf.mxu0
  %v5353 = vadd.f32 %v5304, %v5352
  %v5354 = vpop.f32.mrf.mxu0
  %v5355 = vadd.f32 %v5306, %v5354
  %5356 = vmatmul.bf16.gmra.mxu0 %v5180
  %v5357 = vpop.f32.mrf.mxu0
  %v5358 = vadd.f32 %v5309, %v5357
  %v5359 = vpop.f32.mrf.mxu0
  %v5360 = vadd.f32 %v5311, %v5359
  %5361 = vmatmul.bf16.gmra.mxu0 %v5182
  %v5362 = vpop.f32.mrf.mxu0
  %v5363 = vadd.f32 %v5314, %v5362
  %v5364 = vpop.f32.mrf.mxu0
  %v5365 = vadd.f32 %v5316, %v5364
  %5366 = vmatmul.bf16.gmra.mxu0 %v5184
  %v5367 = vpop.f32.mrf.mxu0
  %v5368 = vadd.f32 %v5319, %v5367
  %v5369 = vpop.f32.mrf.mxu0
  %v5370 = vadd.f32 %v5321, %v5369
  %5371 = vmatmul.bf16.gmra.mxu0 %v5186
  %v5372 = vpop.f32.mrf.mxu0
  %v5373 = vadd.f32 %v5324, %v5372
  %v5374 = vpop.f32.mrf.mxu0
  %v5375 = vadd.f32 %v5326, %v5374
  %5376 = vmatmul.bf16.gmra.mxu0 %v5188
  %v5377 = vpop.f32.mrf.mxu0
  %v5378 = vadd.f32 %v5329, %v5377
  %v5379 = vpop.f32.mrf.mxu0
  %v5380 = vadd.f32 %v5331, %v5379
  %5381 = vmatmul.bf16.gmra.mxu0 %v5190
  %v5382 = vpop.f32.mrf.mxu0
  %v5383 = vadd.f32 %v5334, %v5382
  %v5384 = vpop.f32.mrf.mxu0
  %v5385 = vadd.f32 %v5336, %v5384
  %5386 = vdwg.mxu0
  %v5387 = vmax.f32 %v5250, 0.0
  %v5388 = vmax.f32 %v5348, 0.0
  %v5389 = vmax.f32 %v5252, 0.0
  %v5390 = vmax.f32 %v5350, 0.0
  %v5391 = vmax.f32 %v5255, 0.0
  %v5392 = vmax.f32 %v5353, 0.0
  %v5393 = vmax.f32 %v5257, 0.0
  %v5394 = vmax.f32 %v5355, 0.0
  %v5395 = vmax.f32 %v5260, 0.0
  %v5396 = vmax.f32 %v5358, 0.0
  %v5397 = vmax.f32 %v5262, 0.0
  %v5398 = vmax.f32 %v5360, 0.0
  %v5399 = vmax.f32 %v5265, 0.0
  %v5400 = vmax.f32 %v5363, 0.0
  %v5401 = vmax.f32 %v5267, 0.0
  %v5402 = vmax.f32 %v5365, 0.0
  %v5403 = vmax.f32 %v5270, 0.0
  %v5404 = vmax.f32 %v5368, 0.0
  %v5405 = vmax.f32 %v5272, 0.0
  %v5406 = vmax.f32 %v5370, 0.0
  %v5407 = vmax.f32 %v5275, 0.0
  %v5408 = vmax.f32 %v5373, 0.0
  %v5409 = vmax.f32 %v5277, 0.0
  %v5410 = vmax.f32 %v5375, 0.0
  %v5411 = vmax.f32 %v5280, 0.0
  %v5412 = vmax.f32 %v5378, 0.0
  %v5413 = vmax.f32 %v5282, 0.0
  %v5414 = vmax.f32 %v5380, 0.0
  %v5415 = vmax.f32 %v5285, 0.0
  %v5416 = vmax.f32 %v5383, 0.0
  %v5417 = vmax.f32 %v5287, 0.0
  %v5418 = vmax.f32 %v5385, 0.0
  %v5419 = vpack.c.bf16 %v5389, %v5387
  %v5420 = vpack.c.bf16 %v5393, %v5391
  %v5421 = vpack.c.bf16 %v5397, %v5395
  %v5422 = vpack.c.bf16 %v5401, %v5399
  %v5423 = vpack.c.bf16 %v5405, %v5403
  %v5424 = vpack.c.bf16 %v5409, %v5407
  %v5425 = vpack.c.bf16 %v5413, %v5411
  %v5426 = vpack.c.bf16 %v5417, %v5415
  %5427 = vmatpush.bf16.msra.mxu0 %v1519
  %5428 = vmatpush.bf16.msra.mxu0 %v1518
  %5429 = vmatpush.bf16.msra.mxu0 %v1517
  %5430 = vmatpush.bf16.msra.mxu0 %v1516
  %5431 = vmatpush.bf16.msra.mxu0 %v1515
  %5432 = vmatpush.bf16.msra.mxu0 %v1514
  %5433 = vmatpush.bf16.msra.mxu0 %v1513
  %5434 = vmatpush.bf16.msra.mxu0 %v1512
  %5435 = vmatmul.bf16.gmra.mxu0 %v5419
  %v5436 = vpop.f32.mrf.mxu0
  %v5437 = vadd.f32 %v262, %v5436
  %v5438 = vpop.f32.mrf.mxu0
  %v5439 = vadd.f32 %v262, %v5438
  %5440 = vmatmul.bf16.gmra.mxu0 %v5420
  %v5441 = vpop.f32.mrf.mxu0
  %v5442 = vadd.f32 %v262, %v5441
  %v5443 = vpop.f32.mrf.mxu0
  %v5444 = vadd.f32 %v262, %v5443
  %5445 = vmatmul.bf16.gmra.mxu0 %v5421
  %v5446 = vpop.f32.mrf.mxu0
  %v5447 = vadd.f32 %v262, %v5446
  %v5448 = vpop.f32.mrf.mxu0
  %v5449 = vadd.f32 %v262, %v5448
  %5450 = vmatmul.bf16.gmra.mxu0 %v5422
  %v5451 = vpop.f32.mrf.mxu0
  %v5452 = vadd.f32 %v262, %v5451
  %v5453 = vpop.f32.mrf.mxu0
  %v5454 = vadd.f32 %v262, %v5453
  %5455 = vmatmul.bf16.gmra.mxu0 %v5423
  %v5456 = vpop.f32.mrf.mxu0
  %v5457 = vadd.f32 %v262, %v5456
  %v5458 = vpop.f32.mrf.mxu0
  %v5459 = vadd.f32 %v262, %v5458
  %5460 = vmatmul.bf16.gmra.mxu0 %v5424
  %v5461 = vpop.f32.mrf.mxu0
  %v5462 = vadd.f32 %v262, %v5461
  %v5463 = vpop.f32.mrf.mxu0
  %v5464 = vadd.f32 %v262, %v5463
  %5465 = vmatmul.bf16.gmra.mxu0 %v5425
  %v5466 = vpop.f32.mrf.mxu0
  %v5467 = vadd.f32 %v262, %v5466
  %v5468 = vpop.f32.mrf.mxu0
  %v5469 = vadd.f32 %v262, %v5468
  %5470 = vmatmul.bf16.gmra.mxu0 %v5426
  %v5471 = vpop.f32.mrf.mxu0
  %v5472 = vadd.f32 %v262, %v5471
  %v5473 = vpop.f32.mrf.mxu0
  %v5474 = vadd.f32 %v262, %v5473
  %5475 = vdwg.mxu0
  %v5476 = vmax.f32 %v5437, 0.0
  %v5477 = vmax.f32 %v5439, 0.0
  %v5478 = vmax.f32 %v5442, 0.0
  %v5479 = vmax.f32 %v5444, 0.0
  %v5480 = vmax.f32 %v5447, 0.0
  %v5481 = vmax.f32 %v5449, 0.0
  %v5482 = vmax.f32 %v5452, 0.0
  %v5483 = vmax.f32 %v5454, 0.0
  %v5484 = vmax.f32 %v5457, 0.0
  %v5485 = vmax.f32 %v5459, 0.0
  %v5486 = vmax.f32 %v5462, 0.0
  %v5487 = vmax.f32 %v5464, 0.0
  %v5488 = vmax.f32 %v5467, 0.0
  %v5489 = vmax.f32 %v5469, 0.0
  %v5490 = vmax.f32 %v5472, 0.0
  %v5491 = vmax.f32 %v5474, 0.0
  %v5492 = vpack.c.bf16 %v5477, %v5476
  %v5493 = vpack.c.bf16 %v5390, %v5388
  %v5494 = vpack.c.bf16 %v5479, %v5478
  %v5495 = vpack.c.bf16 %v5394, %v5392
  %v5496 = vpack.c.bf16 %v5481, %v5480
  %v5497 = vpack.c.bf16 %v5398, %v5396
  %v5498 = vpack.c.bf16 %v5483, %v5482
  %v5499 = vpack.c.bf16 %v5402, %v5400
  %v5500 = vpack.c.bf16 %v5485, %v5484
  %v5501 = vpack.c.bf16 %v5406, %v5404
  %v5502 = vpack.c.bf16 %v5487, %v5486
  %v5503 = vpack.c.bf16 %v5410, %v5408
  %v5504 = vpack.c.bf16 %v5489, %v5488
  %v5505 = vpack.c.bf16 %v5414, %v5412
  %v5506 = vpack.c.bf16 %v5491, %v5490
  %v5507 = vpack.c.bf16 %v5418, %v5416
  %5508 = vmatpush.bf16.msra.mxu0 %v1712
  %5509 = vmatpush.bf16.msra.mxu0 %v1711
  %5510 = vmatpush.bf16.msra.mxu0 %v1710
  %5511 = vmatpush.bf16.msra.mxu0 %v1709
  %5512 = vmatpush.bf16.msra.mxu0 %v1708
  %5513 = vmatpush.bf16.msra.mxu0 %v1707
  %5514 = vmatpush.bf16.msra.mxu0 %v1706
  %5515 = vmatpush.bf16.msra.mxu0 %v1705
  %5516 = vmatmul.bf16.gmra.mxu0 %v5492
  %v5517 = vpop.f32.mrf.mxu0
  %v5518 = vadd.f32 %v263, %v5517
  %v5519 = vpop.f32.mrf.mxu0
  %v5520 = vadd.f32 %v263, %v5519
  %5521 = vmatmul.bf16.gmra.mxu0 %v5494
  %v5522 = vpop.f32.mrf.mxu0
  %v5523 = vadd.f32 %v263, %v5522
  %v5524 = vpop.f32.mrf.mxu0
  %v5525 = vadd.f32 %v263, %v5524
  %5526 = vmatmul.bf16.gmra.mxu0 %v5496
  %v5527 = vpop.f32.mrf.mxu0
  %v5528 = vadd.f32 %v263, %v5527
  %v5529 = vpop.f32.mrf.mxu0
  %v5530 = vadd.f32 %v263, %v5529
  %5531 = vmatmul.bf16.gmra.mxu0 %v5498
  %v5532 = vpop.f32.mrf.mxu0
  %v5533 = vadd.f32 %v263, %v5532
  %v5534 = vpop.f32.mrf.mxu0
  %v5535 = vadd.f32 %v263, %v5534
  %5536 = vmatmul.bf16.gmra.mxu0 %v5500
  %v5537 = vpop.f32.mrf.mxu0
  %v5538 = vadd.f32 %v263, %v5537
  %v5539 = vpop.f32.mrf.mxu0
  %v5540 = vadd.f32 %v263, %v5539
  %5541 = vmatmul.bf16.gmra.mxu0 %v5502
  %v5542 = vpop.f32.mrf.mxu0
  %v5543 = vadd.f32 %v263, %v5542
  %v5544 = vpop.f32.mrf.mxu0
  %v5545 = vadd.f32 %v263, %v5544
  %5546 = vmatmul.bf16.gmra.mxu0 %v5504
  %v5547 = vpop.f32.mrf.mxu0
  %v5548 = vadd.f32 %v263, %v5547
  %v5549 = vpop.f32.mrf.mxu0
  %v5550 = vadd.f32 %v263, %v5549
  %5551 = vmatmul.bf16.gmra.mxu0 %v5506
  %v5552 = vpop.f32.mrf.mxu0
  %v5553 = vadd.f32 %v263, %v5552
  %v5554 = vpop.f32.mrf.mxu0
  %v5555 = vadd.f32 %v263, %v5554
  %5556 = vdwg.mxu0
  %5557 = vmatpush.bf16.msra.mxu0 %v1720
  %5558 = vmatpush.bf16.msra.mxu0 %v1719
  %5559 = vmatpush.bf16.msra.mxu0 %v1718
  %5560 = vmatpush.bf16.msra.mxu0 %v1717
  %5561 = vmatpush.bf16.msra.mxu0 %v1716
  %5562 = vmatpush.bf16.msra.mxu0 %v1715
  %5563 = vmatpush.bf16.msra.mxu0 %v1714
  %5564 = vmatpush.bf16.msra.mxu0 %v1713
  %5565 = vmatmul.bf16.gmra.mxu0 %v5493
  %v5566 = vpop.f32.mrf.mxu0
  %v5567 = vadd.f32 %v5518, %v5566
  %v5568 = vpop.f32.mrf.mxu0
  %v5569 = vadd.f32 %v5520, %v5568
  %5570 = vmatmul.bf16.gmra.mxu0 %v5495
  %v5571 = vpop.f32.mrf.mxu0
  %v5572 = vadd.f32 %v5523, %v5571
  %v5573 = vpop.f32.mrf.mxu0
  %v5574 = vadd.f32 %v5525, %v5573
  %5575 = vmatmul.bf16.gmra.mxu0 %v5497
  %v5576 = vpop.f32.mrf.mxu0
  %v5577 = vadd.f32 %v5528, %v5576
  %v5578 = vpop.f32.mrf.mxu0
  %v5579 = vadd.f32 %v5530, %v5578
  %5580 = vmatmul.bf16.gmra.mxu0 %v5499
  %v5581 = vpop.f32.mrf.mxu0
  %v5582 = vadd.f32 %v5533, %v5581
  %v5583 = vpop.f32.mrf.mxu0
  %v5584 = vadd.f32 %v5535, %v5583
  %5585 = vmatmul.bf16.gmra.mxu0 %v5501
  %v5586 = vpop.f32.mrf.mxu0
  %v5587 = vadd.f32 %v5538, %v5586
  %v5588 = vpop.f32.mrf.mxu0
  %v5589 = vadd.f32 %v5540, %v5588
  %5590 = vmatmul.bf16.gmra.mxu0 %v5503
  %v5591 = vpop.f32.mrf.mxu0
  %v5592 = vadd.f32 %v5543, %v5591
  %v5593 = vpop.f32.mrf.mxu0
  %v5594 = vadd.f32 %v5545, %v5593
  %5595 = vmatmul.bf16.gmra.mxu0 %v5505
  %v5596 = vpop.f32.mrf.mxu0
  %v5597 = vadd.f32 %v5548, %v5596
  %v5598 = vpop.f32.mrf.mxu0
  %v5599 = vadd.f32 %v5550, %v5598
  %5600 = vmatmul.bf16.gmra.mxu0 %v5507
  %v5601 = vpop.f32.mrf.mxu0
  %v5602 = vadd.f32 %v5553, %v5601
  %v5603 = vpop.f32.mrf.mxu0
  %v5604 = vadd.f32 %v5555, %v5603
  %5605 = vdwg.mxu0
  %s5606 = scalar_lea.vmem %s2, 384
  %v5607 = vld [vmem:[%s5606] sm:$0xff]
  %v5608 = vld [vmem:[%s5606 + $0x8] sm:$0xff]
  %v5609 = vld [vmem:[%s5606 + $0x10] sm:$0xff]
  %v5610 = vld [vmem:[%s5606 + $0x18] sm:$0xff]
  %v5611 = vld [vmem:[%s5606 + $0x20] sm:$0xff]
  %v5612 = vld [vmem:[%s5606 + $0x28] sm:$0xff]
  %v5613 = vld [vmem:[%s5606 + $0x30] sm:$0xff]
  %v5614 = vld [vmem:[%s5606 + $0x38] sm:$0xff]
  %v5615 = vld [vmem:[%s5606 + $0x40] sm:$0xff]
  %v5616 = vld [vmem:[%s5606 + $0x48] sm:$0xff]
  %v5617 = vld [vmem:[%s5606 + $0x50] sm:$0xff]
  %v5618 = vld [vmem:[%s5606 + $0x58] sm:$0xff]
  %v5619 = vld [vmem:[%s5606 + $0x60] sm:$0xff]
  %v5620 = vld [vmem:[%s5606 + $0x68] sm:$0xff]
  %v5621 = vld [vmem:[%s5606 + $0x70] sm:$0xff]
  %v5622 = vld [vmem:[%s5606 + $0x78] sm:$0xff]
  %v5623 = vmul.f32 %v1854, %v5607
  %v5624 = vmul.f32 %v1859, %v5608
  %v5625 = vmul.f32 %v1864, %v5609
  %v5626 = vmul.f32 %v1869, %v5610
  %v5627 = vmul.f32 %v1874, %v5611
  %v5628 = vmul.f32 %v1879, %v5612
  %v5629 = vmul.f32 %v1884, %v5613
  %v5630 = vmul.f32 %v1889, %v5614
  %v5631 = vmul.f32 %v1894, %v5615
  %v5632 = vmul.f32 %v1899, %v5616
  %v5633 = vmul.f32 %v1904, %v5617
  %v5634 = vmul.f32 %v1909, %v5618
  %v5635 = vmul.f32 %v1914, %v5619
  %v5636 = vmul.f32 %v1919, %v5620
  %v5637 = vmul.f32 %v1924, %v5621
  %v5638 = vmul.f32 %v1929, %v5622
  %v5639 = vmul.f32 %v5567, %v1950
  %v5640 = vmul.f32 %v5569, %v1955
  %v5641 = vmul.f32 %v5572, %v1960
  %v5642 = vmul.f32 %v5574, %v1965
  %v5643 = vmul.f32 %v5577, %v1970
  %v5644 = vmul.f32 %v5579, %v1975
  %v5645 = vmul.f32 %v5582, %v1980
  %v5646 = vmul.f32 %v5584, %v1985
  %v5647 = vmul.f32 %v5587, %v1990
  %v5648 = vmul.f32 %v5589, %v1995
  %v5649 = vmul.f32 %v5592, %v2000
  %v5650 = vmul.f32 %v5594, %v2005
  %v5651 = vmul.f32 %v5597, %v2010
  %v5652 = vmul.f32 %v5599, %v2015
  %v5653 = vmul.f32 %v5602, %v2020
  %v5654 = vmul.f32 %v5604, %v2025
  %v5655 = vadd.f32 %v4611, %v5639
  %v5656 = vadd.f32 %v4612, %v5640
  %v5657 = vadd.f32 %v4613, %v5641
  %v5658 = vadd.f32 %v4614, %v5642
  %v5659 = vadd.f32 %v4615, %v5643
  %v5660 = vadd.f32 %v4616, %v5644
  %v5661 = vadd.f32 %v4617, %v5645
  %v5662 = vadd.f32 %v4618, %v5646
  %v5663 = vadd.f32 %v4619, %v5647
  %v5664 = vadd.f32 %v4620, %v5648
  %v5665 = vadd.f32 %v4621, %v5649
  %v5666 = vadd.f32 %v4622, %v5650
  %v5667 = vadd.f32 %v4623, %v5651
  %v5668 = vadd.f32 %v4624, %v5652
  %v5669 = vadd.f32 %v4625, %v5653
  %v5670 = vadd.f32 %v4626, %v5654
  %5687 = vrot.lane.b32.xlu0 %v5623, 2
  %v5688 = vpop.permute.xlu0 %5687
  %5689 = vrot.lane.b32.xlu0 %v5624, 2
  %v5690 = vpop.permute.xlu0 %5689
  %5691 = vrot.lane.b32.xlu0 %v5625, 2
  %v5692 = vpop.permute.xlu0 %5691
  %5693 = vrot.lane.b32.xlu0 %v5626, 2
  %v5694 = vpop.permute.xlu0 %5693
  %5695 = vrot.lane.b32.xlu0 %v5627, 2
  %v5696 = vpop.permute.xlu0 %5695
  %5697 = vrot.lane.b32.xlu0 %v5628, 2
  %v5698 = vpop.permute.xlu0 %5697
  %5699 = vrot.lane.b32.xlu0 %v5629, 2
  %v5700 = vpop.permute.xlu0 %5699
  %5701 = vrot.lane.b32.xlu0 %v5630, 2
  %v5702 = vpop.permute.xlu0 %5701
  %5703 = vrot.lane.b32.xlu0 %v5631, 2
  %v5704 = vpop.permute.xlu0 %5703
  %5705 = vrot.lane.b32.xlu0 %v5632, 2
  %v5706 = vpop.permute.xlu0 %5705
  %5707 = vrot.lane.b32.xlu0 %v5633, 2
  %v5708 = vpop.permute.xlu0 %5707
  %5709 = vrot.lane.b32.xlu0 %v5634, 2
  %v5710 = vpop.permute.xlu0 %5709
  %5711 = vrot.lane.b32.xlu0 %v5635, 2
  %v5712 = vpop.permute.xlu0 %5711
  %5713 = vrot.lane.b32.xlu0 %v5636, 2
  %v5714 = vpop.permute.xlu0 %5713
  %5715 = vrot.lane.b32.xlu0 %v5637, 2
  %v5716 = vpop.permute.xlu0 %5715
  %5717 = vrot.lane.b32.xlu0 %v5638, 2
  %v5718 = vpop.permute.xlu0 %5717
  %v5735 = vmul.f32 %v5567, %v5688
  %v5736 = vmul.f32 %v5569, %v5690
  %v5737 = vmul.f32 %v5572, %v5692
  %v5738 = vmul.f32 %v5574, %v5694
  %v5739 = vmul.f32 %v5577, %v5696
  %v5740 = vmul.f32 %v5579, %v5698
  %v5741 = vmul.f32 %v5582, %v5700
  %v5742 = vmul.f32 %v5584, %v5702
  %v5743 = vmul.f32 %v5587, %v5704
  %v5744 = vmul.f32 %v5589, %v5706
  %v5745 = vmul.f32 %v5592, %v5708
  %v5746 = vmul.f32 %v5594, %v5710
  %v5747 = vmul.f32 %v5597, %v5712
  %v5748 = vmul.f32 %v5599, %v5714
  %v5749 = vmul.f32 %v5602, %v5716
  %v5750 = vmul.f32 %v5604, %v5718
  %5767 = vrot.lane.b32.xlu0 %v5735, 126
  %v5768 = vpop.permute.xlu0 %5767
  %5769 = vrot.lane.b32.xlu0 %v5736, 126
  %v5770 = vpop.permute.xlu0 %5769
  %5771 = vrot.lane.b32.xlu0 %v5737, 126
  %v5772 = vpop.permute.xlu0 %5771
  %5773 = vrot.lane.b32.xlu0 %v5738, 126
  %v5774 = vpop.permute.xlu0 %5773
  %5775 = vrot.lane.b32.xlu0 %v5739, 126
  %v5776 = vpop.permute.xlu0 %5775
  %5777 = vrot.lane.b32.xlu0 %v5740, 126
  %v5778 = vpop.permute.xlu0 %5777
  %5779 = vrot.lane.b32.xlu0 %v5741, 126
  %v5780 = vpop.permute.xlu0 %5779
  %5781 = vrot.lane.b32.xlu0 %v5742, 126
  %v5782 = vpop.permute.xlu0 %5781
  %5783 = vrot.lane.b32.xlu0 %v5743, 126
  %v5784 = vpop.permute.xlu0 %5783
  %5785 = vrot.lane.b32.xlu0 %v5744, 126
  %v5786 = vpop.permute.xlu0 %5785
  %5787 = vrot.lane.b32.xlu0 %v5745, 126
  %v5788 = vpop.permute.xlu0 %5787
  %5789 = vrot.lane.b32.xlu0 %v5746, 126
  %v5790 = vpop.permute.xlu0 %5789
  %5791 = vrot.lane.b32.xlu0 %v5747, 126
  %v5792 = vpop.permute.xlu0 %5791
  %5793 = vrot.lane.b32.xlu0 %v5748, 126
  %v5794 = vpop.permute.xlu0 %5793
  %5795 = vrot.lane.b32.xlu0 %v5749, 126
  %v5796 = vpop.permute.xlu0 %5795
  %5797 = vrot.lane.b32.xlu0 %v5750, 126
  %v5798 = vpop.permute.xlu0 %5797
  %v5815 = vadd.f32 %v5655, %v5768
  %v5816 = vadd.f32 %v5656, %v5770
  %v5817 = vadd.f32 %v5657, %v5772
  %v5818 = vadd.f32 %v5658, %v5774
  %v5819 = vadd.f32 %v5659, %v5776
  %v5820 = vadd.f32 %v5660, %v5778
  %v5821 = vadd.f32 %v5661, %v5780
  %v5822 = vadd.f32 %v5662, %v5782
  %v5823 = vadd.f32 %v5663, %v5784
  %v5824 = vadd.f32 %v5664, %v5786
  %v5825 = vadd.f32 %v5665, %v5788
  %v5826 = vadd.f32 %v5666, %v5790
  %v5827 = vadd.f32 %v5667, %v5792
  %v5828 = vadd.f32 %v5668, %v5794
  %v5829 = vadd.f32 %v5669, %v5796
  %v5830 = vadd.f32 %v5670, %v5798
  %5832 = vset.pattern.permute.xlu0 0
  %5833 = vperm.xlu0 %5832, %v5815
  %v5834 = vpop.permute.xlu0 %5833
  %5837 = vset.pattern.permute.xlu0 0
  %5838 = vperm.xlu0 %5837, %v5816
  %v5839 = vpop.permute.xlu0 %5838
  %5842 = vset.pattern.permute.xlu0 0
  %5843 = vperm.xlu0 %5842, %v5817
  %v5844 = vpop.permute.xlu0 %5843
  %5847 = vset.pattern.permute.xlu0 0
  %5848 = vperm.xlu0 %5847, %v5818
  %v5849 = vpop.permute.xlu0 %5848
  %5852 = vset.pattern.permute.xlu0 0
  %5853 = vperm.xlu0 %5852, %v5819
  %v5854 = vpop.permute.xlu0 %5853
  %5857 = vset.pattern.permute.xlu0 0
  %5858 = vperm.xlu0 %5857, %v5820
  %v5859 = vpop.permute.xlu0 %5858
  %5862 = vset.pattern.permute.xlu0 0
  %5863 = vperm.xlu0 %5862, %v5821
  %v5864 = vpop.permute.xlu0 %5863
  %5867 = vset.pattern.permute.xlu0 0
  %5868 = vperm.xlu0 %5867, %v5822
  %v5869 = vpop.permute.xlu0 %5868
  %5872 = vset.pattern.permute.xlu0 0
  %5873 = vperm.xlu0 %5872, %v5823
  %v5874 = vpop.permute.xlu0 %5873
  %5877 = vset.pattern.permute.xlu0 0
  %5878 = vperm.xlu0 %5877, %v5824
  %v5879 = vpop.permute.xlu0 %5878
  %5882 = vset.pattern.permute.xlu0 0
  %5883 = vperm.xlu0 %5882, %v5825
  %v5884 = vpop.permute.xlu0 %5883
  %5887 = vset.pattern.permute.xlu0 0
  %5888 = vperm.xlu0 %5887, %v5826
  %v5889 = vpop.permute.xlu0 %5888
  %5892 = vset.pattern.permute.xlu0 0
  %5893 = vperm.xlu0 %5892, %v5827
  %v5894 = vpop.permute.xlu0 %5893
  %5897 = vset.pattern.permute.xlu0 0
  %5898 = vperm.xlu0 %5897, %v5828
  %v5899 = vpop.permute.xlu0 %5898
  %5902 = vset.pattern.permute.xlu0 0
  %5903 = vperm.xlu0 %5902, %v5829
  %v5904 = vpop.permute.xlu0 %5903
  %5907 = vset.pattern.permute.xlu0 0
  %5908 = vperm.xlu0 %5907, %v5830
  %v5909 = vpop.permute.xlu0 %5908
  %v5911 = vmul.f32 %v5834, %v230
  %v5912 = vmul.f32 %v5834, %v231
  %v5913 = vmul.f32 %v5839, %v230
  %v5914 = vmul.f32 %v5839, %v231
  %v5915 = vmul.f32 %v5844, %v230
  %v5916 = vmul.f32 %v5844, %v231
  %v5917 = vmul.f32 %v5849, %v230
  %v5918 = vmul.f32 %v5849, %v231
  %v5919 = vmul.f32 %v5854, %v230
  %v5920 = vmul.f32 %v5854, %v231
  %v5921 = vmul.f32 %v5859, %v230
  %v5922 = vmul.f32 %v5859, %v231
  %v5923 = vmul.f32 %v5864, %v230
  %v5924 = vmul.f32 %v5864, %v231
  %v5925 = vmul.f32 %v5869, %v230
  %v5926 = vmul.f32 %v5869, %v231
  %v5927 = vmul.f32 %v5874, %v230
  %v5928 = vmul.f32 %v5874, %v231
  %v5929 = vmul.f32 %v5879, %v230
  %v5930 = vmul.f32 %v5879, %v231
  %v5931 = vmul.f32 %v5884, %v230
  %v5932 = vmul.f32 %v5884, %v231
  %v5933 = vmul.f32 %v5889, %v230
  %v5934 = vmul.f32 %v5889, %v231
  %v5935 = vmul.f32 %v5894, %v230
  %v5936 = vmul.f32 %v5894, %v231
  %v5937 = vmul.f32 %v5899, %v230
  %v5938 = vmul.f32 %v5899, %v231
  %v5939 = vmul.f32 %v5904, %v230
  %v5940 = vmul.f32 %v5904, %v231
  %v5941 = vmul.f32 %v5909, %v230
  %v5942 = vmul.f32 %v5909, %v231
  %5943 = vset.pattern.permute.xlu0 1
  %5944 = vperm.xlu0 %5943, %v5815
  %v5945 = vpop.permute.xlu0 %5944
  %5947 = vset.pattern.permute.xlu0 1
  %5948 = vperm.xlu0 %5947, %v5816
  %v5949 = vpop.permute.xlu0 %5948
  %5951 = vset.pattern.permute.xlu0 1
  %5952 = vperm.xlu0 %5951, %v5817
  %v5953 = vpop.permute.xlu0 %5952
  %5955 = vset.pattern.permute.xlu0 1
  %5956 = vperm.xlu0 %5955, %v5818
  %v5957 = vpop.permute.xlu0 %5956
  %5959 = vset.pattern.permute.xlu0 1
  %5960 = vperm.xlu0 %5959, %v5819
  %v5961 = vpop.permute.xlu0 %5960
  %5963 = vset.pattern.permute.xlu0 1
  %5964 = vperm.xlu0 %5963, %v5820
  %v5965 = vpop.permute.xlu0 %5964
  %5967 = vset.pattern.permute.xlu0 1
  %5968 = vperm.xlu0 %5967, %v5821
  %v5969 = vpop.permute.xlu0 %5968
  %5971 = vset.pattern.permute.xlu0 1
  %5972 = vperm.xlu0 %5971, %v5822
  %v5973 = vpop.permute.xlu0 %5972
  %5975 = vset.pattern.permute.xlu0 1
  %5976 = vperm.xlu0 %5975, %v5823
  %v5977 = vpop.permute.xlu0 %5976
  %5979 = vset.pattern.permute.xlu0 1
  %5980 = vperm.xlu0 %5979, %v5824
  %v5981 = vpop.permute.xlu0 %5980
  %5983 = vset.pattern.permute.xlu0 1
  %5984 = vperm.xlu0 %5983, %v5825
  %v5985 = vpop.permute.xlu0 %5984
  %5987 = vset.pattern.permute.xlu0 1
  %5988 = vperm.xlu0 %5987, %v5826
  %v5989 = vpop.permute.xlu0 %5988
  %5991 = vset.pattern.permute.xlu0 1
  %5992 = vperm.xlu0 %5991, %v5827
  %v5993 = vpop.permute.xlu0 %5992
  %5995 = vset.pattern.permute.xlu0 1
  %5996 = vperm.xlu0 %5995, %v5828
  %v5997 = vpop.permute.xlu0 %5996
  %5999 = vset.pattern.permute.xlu0 1
  %6000 = vperm.xlu0 %5999, %v5829
  %v6001 = vpop.permute.xlu0 %6000
  %6003 = vset.pattern.permute.xlu0 1
  %6004 = vperm.xlu0 %6003, %v5830
  %v6005 = vpop.permute.xlu0 %6004
  %v6007 = vmul.f32 %v5945, %v237
  %v6008 = vmul.f32 %v5945, %v238
  %v6009 = vmul.f32 %v5949, %v237
  %v6010 = vmul.f32 %v5949, %v238
  %v6011 = vmul.f32 %v5953, %v237
  %v6012 = vmul.f32 %v5953, %v238
  %v6013 = vmul.f32 %v5957, %v237
  %v6014 = vmul.f32 %v5957, %v238
  %v6015 = vmul.f32 %v5961, %v237
  %v6016 = vmul.f32 %v5961, %v238
  %v6017 = vmul.f32 %v5965, %v237
  %v6018 = vmul.f32 %v5965, %v238
  %v6019 = vmul.f32 %v5969, %v237
  %v6020 = vmul.f32 %v5969, %v238
  %v6021 = vmul.f32 %v5973, %v237
  %v6022 = vmul.f32 %v5973, %v238
  %v6023 = vmul.f32 %v5977, %v237
  %v6024 = vmul.f32 %v5977, %v238
  %v6025 = vmul.f32 %v5981, %v237
  %v6026 = vmul.f32 %v5981, %v238
  %v6027 = vmul.f32 %v5985, %v237
  %v6028 = vmul.f32 %v5985, %v238
  %v6029 = vmul.f32 %v5989, %v237
  %v6030 = vmul.f32 %v5989, %v238
  %v6031 = vmul.f32 %v5993, %v237
  %v6032 = vmul.f32 %v5993, %v238
  %v6033 = vmul.f32 %v5997, %v237
  %v6034 = vmul.f32 %v5997, %v238
  %v6035 = vmul.f32 %v6001, %v237
  %v6036 = vmul.f32 %v6001, %v238
  %v6037 = vmul.f32 %v6005, %v237
  %v6038 = vmul.f32 %v6005, %v238
  %v6039 = vadd.f32 %v5911, %v6007
  %v6040 = vadd.f32 %v5912, %v6008
  %v6041 = vadd.f32 %v5913, %v6009
  %v6042 = vadd.f32 %v5914, %v6010
  %v6043 = vadd.f32 %v5915, %v6011
  %v6044 = vadd.f32 %v5916, %v6012
  %v6045 = vadd.f32 %v5917, %v6013
  %v6046 = vadd.f32 %v5918, %v6014
  %v6047 = vadd.f32 %v5919, %v6015
  %v6048 = vadd.f32 %v5920, %v6016
  %v6049 = vadd.f32 %v5921, %v6017
  %v6050 = vadd.f32 %v5922, %v6018
  %v6051 = vadd.f32 %v5923, %v6019
  %v6052 = vadd.f32 %v5924, %v6020
  %v6053 = vadd.f32 %v5925, %v6021
  %v6054 = vadd.f32 %v5926, %v6022
  %v6055 = vadd.f32 %v5927, %v6023
  %v6056 = vadd.f32 %v5928, %v6024
  %v6057 = vadd.f32 %v5929, %v6025
  %v6058 = vadd.f32 %v5930, %v6026
  %v6059 = vadd.f32 %v5931, %v6027
  %v6060 = vadd.f32 %v5932, %v6028
  %v6061 = vadd.f32 %v5933, %v6029
  %v6062 = vadd.f32 %v5934, %v6030
  %v6063 = vadd.f32 %v5935, %v6031
  %v6064 = vadd.f32 %v5936, %v6032
  %v6065 = vadd.f32 %v5937, %v6033
  %v6066 = vadd.f32 %v5938, %v6034
  %v6067 = vadd.f32 %v5939, %v6035
  %v6068 = vadd.f32 %v5940, %v6036
  %v6069 = vadd.f32 %v5941, %v6037
  %v6070 = vadd.f32 %v5942, %v6038
  %v6071 = vadd.f32 %v6039, %v244
  %v6072 = vadd.f32 %v6040, %v245
  %v6073 = vadd.f32 %v6041, %v244
  %v6074 = vadd.f32 %v6042, %v245
  %v6075 = vadd.f32 %v6043, %v244
  %v6076 = vadd.f32 %v6044, %v245
  %v6077 = vadd.f32 %v6045, %v244
  %v6078 = vadd.f32 %v6046, %v245
  %v6079 = vadd.f32 %v6047, %v244
  %v6080 = vadd.f32 %v6048, %v245
  %v6081 = vadd.f32 %v6049, %v244
  %v6082 = vadd.f32 %v6050, %v245
  %v6083 = vadd.f32 %v6051, %v244
  %v6084 = vadd.f32 %v6052, %v245
  %v6085 = vadd.f32 %v6053, %v244
  %v6086 = vadd.f32 %v6054, %v245
  %v6087 = vadd.f32 %v6055, %v244
  %v6088 = vadd.f32 %v6056, %v245
  %v6089 = vadd.f32 %v6057, %v244
  %v6090 = vadd.f32 %v6058, %v245
  %v6091 = vadd.f32 %v6059, %v244
  %v6092 = vadd.f32 %v6060, %v245
  %v6093 = vadd.f32 %v6061, %v244
  %v6094 = vadd.f32 %v6062, %v245
  %v6095 = vadd.f32 %v6063, %v244
  %v6096 = vadd.f32 %v6064, %v245
  %v6097 = vadd.f32 %v6065, %v244
  %v6098 = vadd.f32 %v6066, %v245
  %v6099 = vadd.f32 %v6067, %v244
  %v6100 = vadd.f32 %v6068, %v245
  %v6101 = vadd.f32 %v6069, %v244
  %v6102 = vadd.f32 %v6070, %v245
  %v6103 = vmax.f32 %v6071, 0.0
  %v6104 = vmax.f32 %v6072, 0.0
  %v6105 = vmax.f32 %v6073, 0.0
  %v6106 = vmax.f32 %v6074, 0.0
  %v6107 = vmax.f32 %v6075, 0.0
  %v6108 = vmax.f32 %v6076, 0.0
  %v6109 = vmax.f32 %v6077, 0.0
  %v6110 = vmax.f32 %v6078, 0.0
  %v6111 = vmax.f32 %v6079, 0.0
  %v6112 = vmax.f32 %v6080, 0.0
  %v6113 = vmax.f32 %v6081, 0.0
  %v6114 = vmax.f32 %v6082, 0.0
  %v6115 = vmax.f32 %v6083, 0.0
  %v6116 = vmax.f32 %v6084, 0.0
  %v6117 = vmax.f32 %v6085, 0.0
  %v6118 = vmax.f32 %v6086, 0.0
  %v6119 = vmax.f32 %v6087, 0.0
  %v6120 = vmax.f32 %v6088, 0.0
  %v6121 = vmax.f32 %v6089, 0.0
  %v6122 = vmax.f32 %v6090, 0.0
  %v6123 = vmax.f32 %v6091, 0.0
  %v6124 = vmax.f32 %v6092, 0.0
  %v6125 = vmax.f32 %v6093, 0.0
  %v6126 = vmax.f32 %v6094, 0.0
  %v6127 = vmax.f32 %v6095, 0.0
  %v6128 = vmax.f32 %v6096, 0.0
  %v6129 = vmax.f32 %v6097, 0.0
  %v6130 = vmax.f32 %v6098, 0.0
  %v6131 = vmax.f32 %v6099, 0.0
  %v6132 = vmax.f32 %v6100, 0.0
  %v6133 = vmax.f32 %v6101, 0.0
  %v6134 = vmax.f32 %v6102, 0.0
  %v6135 = vpack.c.bf16 %v6105, %v6103
  %v6136 = vpack.c.bf16 %v6106, %v6104
  %v6137 = vpack.c.bf16 %v6109, %v6107
  %v6138 = vpack.c.bf16 %v6110, %v6108
  %v6139 = vpack.c.bf16 %v6113, %v6111
  %v6140 = vpack.c.bf16 %v6114, %v6112
  %v6141 = vpack.c.bf16 %v6117, %v6115
  %v6142 = vpack.c.bf16 %v6118, %v6116
  %v6143 = vpack.c.bf16 %v6121, %v6119
  %v6144 = vpack.c.bf16 %v6122, %v6120
  %v6145 = vpack.c.bf16 %v6125, %v6123
  %v6146 = vpack.c.bf16 %v6126, %v6124
  %v6147 = vpack.c.bf16 %v6129, %v6127
  %v6148 = vpack.c.bf16 %v6130, %v6128
  %v6149 = vpack.c.bf16 %v6133, %v6131
  %v6150 = vpack.c.bf16 %v6134, %v6132
  %6151 = vmatpush.bf16.msra.mxu0 %v742
  %6152 = vmatpush.bf16.msra.mxu0 %v740
  %6153 = vmatpush.bf16.msra.mxu0 %v738
  %6154 = vmatpush.bf16.msra.mxu0 %v736
  %6155 = vmatpush.bf16.msra.mxu0 %v734
  %6156 = vmatpush.bf16.msra.mxu0 %v732
  %6157 = vmatpush.bf16.msra.mxu0 %v730
  %6158 = vmatpush.bf16.msra.mxu0 %v728
  %6159 = vmatmul.bf16.gmra.mxu0 %v6135
  %v6160 = vpop.f32.mrf.mxu0
  %v6161 = vadd.f32 %v251, %v6160
  %v6162 = vpop.f32.mrf.mxu0
  %v6163 = vadd.f32 %v251, %v6162
  %6164 = vmatmul.bf16.gmra.mxu0 %v6137
  %v6165 = vpop.f32.mrf.mxu0
  %v6166 = vadd.f32 %v251, %v6165
  %v6167 = vpop.f32.mrf.mxu0
  %v6168 = vadd.f32 %v251, %v6167
  %6169 = vmatmul.bf16.gmra.mxu0 %v6139
  %v6170 = vpop.f32.mrf.mxu0
  %v6171 = vadd.f32 %v251, %v6170
  %v6172 = vpop.f32.mrf.mxu0
  %v6173 = vadd.f32 %v251, %v6172
  %6174 = vmatmul.bf16.gmra.mxu0 %v6141
  %v6175 = vpop.f32.mrf.mxu0
  %v6176 = vadd.f32 %v251, %v6175
  %v6177 = vpop.f32.mrf.mxu0
  %v6178 = vadd.f32 %v251, %v6177
  %6179 = vmatmul.bf16.gmra.mxu0 %v6143
  %v6180 = vpop.f32.mrf.mxu0
  %v6181 = vadd.f32 %v251, %v6180
  %v6182 = vpop.f32.mrf.mxu0
  %v6183 = vadd.f32 %v251, %v6182
  %6184 = vmatmul.bf16.gmra.mxu0 %v6145
  %v6185 = vpop.f32.mrf.mxu0
  %v6186 = vadd.f32 %v251, %v6185
  %v6187 = vpop.f32.mrf.mxu0
  %v6188 = vadd.f32 %v251, %v6187
  %6189 = vmatmul.bf16.gmra.mxu0 %v6147
  %v6190 = vpop.f32.mrf.mxu0
  %v6191 = vadd.f32 %v251, %v6190
  %v6192 = vpop.f32.mrf.mxu0
  %v6193 = vadd.f32 %v251, %v6192
  %6194 = vmatmul.bf16.gmra.mxu0 %v6149
  %v6195 = vpop.f32.mrf.mxu0
  %v6196 = vadd.f32 %v251, %v6195
  %v6197 = vpop.f32.mrf.mxu0
  %v6198 = vadd.f32 %v251, %v6197
  %6199 = vdwg.mxu0
  %6200 = vmatpush.bf16.msra.mxu0 %v758
  %6201 = vmatpush.bf16.msra.mxu0 %v756
  %6202 = vmatpush.bf16.msra.mxu0 %v754
  %6203 = vmatpush.bf16.msra.mxu0 %v752
  %6204 = vmatpush.bf16.msra.mxu0 %v750
  %6205 = vmatpush.bf16.msra.mxu0 %v748
  %6206 = vmatpush.bf16.msra.mxu0 %v746
  %6207 = vmatpush.bf16.msra.mxu0 %v744
  %6208 = vmatmul.bf16.gmra.mxu0 %v6136
  %v6209 = vpop.f32.mrf.mxu0
  %v6210 = vadd.f32 %v6161, %v6209
  %v6211 = vpop.f32.mrf.mxu0
  %v6212 = vadd.f32 %v6163, %v6211
  %6213 = vmatmul.bf16.gmra.mxu0 %v6138
  %v6214 = vpop.f32.mrf.mxu0
  %v6215 = vadd.f32 %v6166, %v6214
  %v6216 = vpop.f32.mrf.mxu0
  %v6217 = vadd.f32 %v6168, %v6216
  %6218 = vmatmul.bf16.gmra.mxu0 %v6140
  %v6219 = vpop.f32.mrf.mxu0
  %v6220 = vadd.f32 %v6171, %v6219
  %v6221 = vpop.f32.mrf.mxu0
  %v6222 = vadd.f32 %v6173, %v6221
  %6223 = vmatmul.bf16.gmra.mxu0 %v6142
  %v6224 = vpop.f32.mrf.mxu0
  %v6225 = vadd.f32 %v6176, %v6224
  %v6226 = vpop.f32.mrf.mxu0
  %v6227 = vadd.f32 %v6178, %v6226
  %6228 = vmatmul.bf16.gmra.mxu0 %v6144
  %v6229 = vpop.f32.mrf.mxu0
  %v6230 = vadd.f32 %v6181, %v6229
  %v6231 = vpop.f32.mrf.mxu0
  %v6232 = vadd.f32 %v6183, %v6231
  %6233 = vmatmul.bf16.gmra.mxu0 %v6146
  %v6234 = vpop.f32.mrf.mxu0
  %v6235 = vadd.f32 %v6186, %v6234
  %v6236 = vpop.f32.mrf.mxu0
  %v6237 = vadd.f32 %v6188, %v6236
  %6238 = vmatmul.bf16.gmra.mxu0 %v6148
  %v6239 = vpop.f32.mrf.mxu0
  %v6240 = vadd.f32 %v6191, %v6239
  %v6241 = vpop.f32.mrf.mxu0
  %v6242 = vadd.f32 %v6193, %v6241
  %6243 = vmatmul.bf16.gmra.mxu0 %v6150
  %v6244 = vpop.f32.mrf.mxu0
  %v6245 = vadd.f32 %v6196, %v6244
  %v6246 = vpop.f32.mrf.mxu0
  %v6247 = vadd.f32 %v6198, %v6246
  %6248 = vdwg.mxu0
  %6249 = vmatpush.bf16.msra.mxu0 %v743
  %6250 = vmatpush.bf16.msra.mxu0 %v741
  %6251 = vmatpush.bf16.msra.mxu0 %v739
  %6252 = vmatpush.bf16.msra.mxu0 %v737
  %6253 = vmatpush.bf16.msra.mxu0 %v735
  %6254 = vmatpush.bf16.msra.mxu0 %v733
  %6255 = vmatpush.bf16.msra.mxu0 %v731
  %6256 = vmatpush.bf16.msra.mxu0 %v729
  %6257 = vmatmul.bf16.gmra.mxu0 %v6135
  %v6258 = vpop.f32.mrf.mxu0
  %v6259 = vadd.f32 %v252, %v6258
  %v6260 = vpop.f32.mrf.mxu0
  %v6261 = vadd.f32 %v252, %v6260
  %6262 = vmatmul.bf16.gmra.mxu0 %v6137
  %v6263 = vpop.f32.mrf.mxu0
  %v6264 = vadd.f32 %v252, %v6263
  %v6265 = vpop.f32.mrf.mxu0
  %v6266 = vadd.f32 %v252, %v6265
  %6267 = vmatmul.bf16.gmra.mxu0 %v6139
  %v6268 = vpop.f32.mrf.mxu0
  %v6269 = vadd.f32 %v252, %v6268
  %v6270 = vpop.f32.mrf.mxu0
  %v6271 = vadd.f32 %v252, %v6270
  %6272 = vmatmul.bf16.gmra.mxu0 %v6141
  %v6273 = vpop.f32.mrf.mxu0
  %v6274 = vadd.f32 %v252, %v6273
  %v6275 = vpop.f32.mrf.mxu0
  %v6276 = vadd.f32 %v252, %v6275
  %6277 = vmatmul.bf16.gmra.mxu0 %v6143
  %v6278 = vpop.f32.mrf.mxu0
  %v6279 = vadd.f32 %v252, %v6278
  %v6280 = vpop.f32.mrf.mxu0
  %v6281 = vadd.f32 %v252, %v6280
  %6282 = vmatmul.bf16.gmra.mxu0 %v6145
  %v6283 = vpop.f32.mrf.mxu0
  %v6284 = vadd.f32 %v252, %v6283
  %v6285 = vpop.f32.mrf.mxu0
  %v6286 = vadd.f32 %v252, %v6285
  %6287 = vmatmul.bf16.gmra.mxu0 %v6147
  %v6288 = vpop.f32.mrf.mxu0
  %v6289 = vadd.f32 %v252, %v6288
  %v6290 = vpop.f32.mrf.mxu0
  %v6291 = vadd.f32 %v252, %v6290
  %6292 = vmatmul.bf16.gmra.mxu0 %v6149
  %v6293 = vpop.f32.mrf.mxu0
  %v6294 = vadd.f32 %v252, %v6293
  %v6295 = vpop.f32.mrf.mxu0
  %v6296 = vadd.f32 %v252, %v6295
  %6297 = vdwg.mxu0
  %6298 = vmatpush.bf16.msra.mxu0 %v759
  %6299 = vmatpush.bf16.msra.mxu0 %v757
  %6300 = vmatpush.bf16.msra.mxu0 %v755
  %6301 = vmatpush.bf16.msra.mxu0 %v753
  %6302 = vmatpush.bf16.msra.mxu0 %v751
  %6303 = vmatpush.bf16.msra.mxu0 %v749
  %6304 = vmatpush.bf16.msra.mxu0 %v747
  %6305 = vmatpush.bf16.msra.mxu0 %v745
  %6306 = vmatmul.bf16.gmra.mxu0 %v6136
  %v6307 = vpop.f32.mrf.mxu0
  %v6308 = vadd.f32 %v6259, %v6307
  %v6309 = vpop.f32.mrf.mxu0
  %v6310 = vadd.f32 %v6261, %v6309
  %6311 = vmatmul.bf16.gmra.mxu0 %v6138
  %v6312 = vpop.f32.mrf.mxu0
  %v6313 = vadd.f32 %v6264, %v6312
  %v6314 = vpop.f32.mrf.mxu0
  %v6315 = vadd.f32 %v6266, %v6314
  %6316 = vmatmul.bf16.gmra.mxu0 %v6140
  %v6317 = vpop.f32.mrf.mxu0
  %v6318 = vadd.f32 %v6269, %v6317
  %v6319 = vpop.f32.mrf.mxu0
  %v6320 = vadd.f32 %v6271, %v6319
  %6321 = vmatmul.bf16.gmra.mxu0 %v6142
  %v6322 = vpop.f32.mrf.mxu0
  %v6323 = vadd.f32 %v6274, %v6322
  %v6324 = vpop.f32.mrf.mxu0
  %v6325 = vadd.f32 %v6276, %v6324
  %6326 = vmatmul.bf16.gmra.mxu0 %v6144
  %v6327 = vpop.f32.mrf.mxu0
  %v6328 = vadd.f32 %v6279, %v6327
  %v6329 = vpop.f32.mrf.mxu0
  %v6330 = vadd.f32 %v6281, %v6329
  %6331 = vmatmul.bf16.gmra.mxu0 %v6146
  %v6332 = vpop.f32.mrf.mxu0
  %v6333 = vadd.f32 %v6284, %v6332
  %v6334 = vpop.f32.mrf.mxu0
  %v6335 = vadd.f32 %v6286, %v6334
  %6336 = vmatmul.bf16.gmra.mxu0 %v6148
  %v6337 = vpop.f32.mrf.mxu0
  %v6338 = vadd.f32 %v6289, %v6337
  %v6339 = vpop.f32.mrf.mxu0
  %v6340 = vadd.f32 %v6291, %v6339
  %6341 = vmatmul.bf16.gmra.mxu0 %v6150
  %v6342 = vpop.f32.mrf.mxu0
  %v6343 = vadd.f32 %v6294, %v6342
  %v6344 = vpop.f32.mrf.mxu0
  %v6345 = vadd.f32 %v6296, %v6344
  %6346 = vdwg.mxu0
  %v6347 = vmax.f32 %v6210, 0.0
  %v6348 = vmax.f32 %v6308, 0.0
  %v6349 = vmax.f32 %v6212, 0.0
  %v6350 = vmax.f32 %v6310, 0.0
  %v6351 = vmax.f32 %v6215, 0.0
  %v6352 = vmax.f32 %v6313, 0.0
  %v6353 = vmax.f32 %v6217, 0.0
  %v6354 = vmax.f32 %v6315, 0.0
  %v6355 = vmax.f32 %v6220, 0.0
  %v6356 = vmax.f32 %v6318, 0.0
  %v6357 = vmax.f32 %v6222, 0.0
  %v6358 = vmax.f32 %v6320, 0.0
  %v6359 = vmax.f32 %v6225, 0.0
  %v6360 = vmax.f32 %v6323, 0.0
  %v6361 = vmax.f32 %v6227, 0.0
  %v6362 = vmax.f32 %v6325, 0.0
  %v6363 = vmax.f32 %v6230, 0.0
  %v6364 = vmax.f32 %v6328, 0.0
  %v6365 = vmax.f32 %v6232, 0.0
  %v6366 = vmax.f32 %v6330, 0.0
  %v6367 = vmax.f32 %v6235, 0.0
  %v6368 = vmax.f32 %v6333, 0.0
  %v6369 = vmax.f32 %v6237, 0.0
  %v6370 = vmax.f32 %v6335, 0.0
  %v6371 = vmax.f32 %v6240, 0.0
  %v6372 = vmax.f32 %v6338, 0.0
  %v6373 = vmax.f32 %v6242, 0.0
  %v6374 = vmax.f32 %v6340, 0.0
  %v6375 = vmax.f32 %v6245, 0.0
  %v6376 = vmax.f32 %v6343, 0.0
  %v6377 = vmax.f32 %v6247, 0.0
  %v6378 = vmax.f32 %v6345, 0.0
  %v6379 = vpack.c.bf16 %v6349, %v6347
  %v6380 = vpack.c.bf16 %v6350, %v6348
  %v6381 = vpack.c.bf16 %v6353, %v6351
  %v6382 = vpack.c.bf16 %v6354, %v6352
  %v6383 = vpack.c.bf16 %v6357, %v6355
  %v6384 = vpack.c.bf16 %v6358, %v6356
  %v6385 = vpack.c.bf16 %v6361, %v6359
  %v6386 = vpack.c.bf16 %v6362, %v6360
  %v6387 = vpack.c.bf16 %v6365, %v6363
  %v6388 = vpack.c.bf16 %v6366, %v6364
  %v6389 = vpack.c.bf16 %v6369, %v6367
  %v6390 = vpack.c.bf16 %v6370, %v6368
  %v6391 = vpack.c.bf16 %v6373, %v6371
  %v6392 = vpack.c.bf16 %v6374, %v6372
  %v6393 = vpack.c.bf16 %v6377, %v6375
  %v6394 = vpack.c.bf16 %v6378, %v6376
  %6395 = vmatpush.bf16.msra.mxu0 %v1178
  %6396 = vmatpush.bf16.msra.mxu0 %v1176
  %6397 = vmatpush.bf16.msra.mxu0 %v1174
  %6398 = vmatpush.bf16.msra.mxu0 %v1172
  %6399 = vmatpush.bf16.msra.mxu0 %v1170
  %6400 = vmatpush.bf16.msra.mxu0 %v1168
  %6401 = vmatpush.bf16.msra.mxu0 %v1166
  %6402 = vmatpush.bf16.msra.mxu0 %v1164
  %6403 = vmatmul.bf16.gmra.mxu0 %v6379
  %v6404 = vpop.f32.mrf.mxu0
  %v6405 = vadd.f32 %v258, %v6404
  %v6406 = vpop.f32.mrf.mxu0
  %v6407 = vadd.f32 %v258, %v6406
  %6408 = vmatmul.bf16.gmra.mxu0 %v6381
  %v6409 = vpop.f32.mrf.mxu0
  %v6410 = vadd.f32 %v258, %v6409
  %v6411 = vpop.f32.mrf.mxu0
  %v6412 = vadd.f32 %v258, %v6411
  %6413 = vmatmul.bf16.gmra.mxu0 %v6383
  %v6414 = vpop.f32.mrf.mxu0
  %v6415 = vadd.f32 %v258, %v6414
  %v6416 = vpop.f32.mrf.mxu0
  %v6417 = vadd.f32 %v258, %v6416
  %6418 = vmatmul.bf16.gmra.mxu0 %v6385
  %v6419 = vpop.f32.mrf.mxu0
  %v6420 = vadd.f32 %v258, %v6419
  %v6421 = vpop.f32.mrf.mxu0
  %v6422 = vadd.f32 %v258, %v6421
  %6423 = vmatmul.bf16.gmra.mxu0 %v6387
  %v6424 = vpop.f32.mrf.mxu0
  %v6425 = vadd.f32 %v258, %v6424
  %v6426 = vpop.f32.mrf.mxu0
  %v6427 = vadd.f32 %v258, %v6426
  %6428 = vmatmul.bf16.gmra.mxu0 %v6389
  %v6429 = vpop.f32.mrf.mxu0
  %v6430 = vadd.f32 %v258, %v6429
  %v6431 = vpop.f32.mrf.mxu0
  %v6432 = vadd.f32 %v258, %v6431
  %6433 = vmatmul.bf16.gmra.mxu0 %v6391
  %v6434 = vpop.f32.mrf.mxu0
  %v6435 = vadd.f32 %v258, %v6434
  %v6436 = vpop.f32.mrf.mxu0
  %v6437 = vadd.f32 %v258, %v6436
  %6438 = vmatmul.bf16.gmra.mxu0 %v6393
  %v6439 = vpop.f32.mrf.mxu0
  %v6440 = vadd.f32 %v258, %v6439
  %v6441 = vpop.f32.mrf.mxu0
  %v6442 = vadd.f32 %v258, %v6441
  %6443 = vdwg.mxu0
  %6444 = vmatpush.bf16.msra.mxu0 %v1194
  %6445 = vmatpush.bf16.msra.mxu0 %v1192
  %6446 = vmatpush.bf16.msra.mxu0 %v1190
  %6447 = vmatpush.bf16.msra.mxu0 %v1188
  %6448 = vmatpush.bf16.msra.mxu0 %v1186
  %6449 = vmatpush.bf16.msra.mxu0 %v1184
  %6450 = vmatpush.bf16.msra.mxu0 %v1182
  %6451 = vmatpush.bf16.msra.mxu0 %v1180
  %6452 = vmatmul.bf16.gmra.mxu0 %v6380
  %v6453 = vpop.f32.mrf.mxu0
  %v6454 = vadd.f32 %v6405, %v6453
  %v6455 = vpop.f32.mrf.mxu0
  %v6456 = vadd.f32 %v6407, %v6455
  %6457 = vmatmul.bf16.gmra.mxu0 %v6382
  %v6458 = vpop.f32.mrf.mxu0
  %v6459 = vadd.f32 %v6410, %v6458
  %v6460 = vpop.f32.mrf.mxu0
  %v6461 = vadd.f32 %v6412, %v6460
  %6462 = vmatmul.bf16.gmra.mxu0 %v6384
  %v6463 = vpop.f32.mrf.mxu0
  %v6464 = vadd.f32 %v6415, %v6463
  %v6465 = vpop.f32.mrf.mxu0
  %v6466 = vadd.f32 %v6417, %v6465
  %6467 = vmatmul.bf16.gmra.mxu0 %v6386
  %v6468 = vpop.f32.mrf.mxu0
  %v6469 = vadd.f32 %v6420, %v6468
  %v6470 = vpop.f32.mrf.mxu0
  %v6471 = vadd.f32 %v6422, %v6470
  %6472 = vmatmul.bf16.gmra.mxu0 %v6388
  %v6473 = vpop.f32.mrf.mxu0
  %v6474 = vadd.f32 %v6425, %v6473
  %v6475 = vpop.f32.mrf.mxu0
  %v6476 = vadd.f32 %v6427, %v6475
  %6477 = vmatmul.bf16.gmra.mxu0 %v6390
  %v6478 = vpop.f32.mrf.mxu0
  %v6479 = vadd.f32 %v6430, %v6478
  %v6480 = vpop.f32.mrf.mxu0
  %v6481 = vadd.f32 %v6432, %v6480
  %6482 = vmatmul.bf16.gmra.mxu0 %v6392
  %v6483 = vpop.f32.mrf.mxu0
  %v6484 = vadd.f32 %v6435, %v6483
  %v6485 = vpop.f32.mrf.mxu0
  %v6486 = vadd.f32 %v6437, %v6485
  %6487 = vmatmul.bf16.gmra.mxu0 %v6394
  %v6488 = vpop.f32.mrf.mxu0
  %v6489 = vadd.f32 %v6440, %v6488
  %v6490 = vpop.f32.mrf.mxu0
  %v6491 = vadd.f32 %v6442, %v6490
  %6492 = vdwg.mxu0
  %6493 = vmatpush.bf16.msra.mxu0 %v1179
  %6494 = vmatpush.bf16.msra.mxu0 %v1177
  %6495 = vmatpush.bf16.msra.mxu0 %v1175
  %6496 = vmatpush.bf16.msra.mxu0 %v1173
  %6497 = vmatpush.bf16.msra.mxu0 %v1171
  %6498 = vmatpush.bf16.msra.mxu0 %v1169
  %6499 = vmatpush.bf16.msra.mxu0 %v1167
  %6500 = vmatpush.bf16.msra.mxu0 %v1165
  %6501 = vmatmul.bf16.gmra.mxu0 %v6379
  %v6502 = vpop.f32.mrf.mxu0
  %v6503 = vadd.f32 %v259, %v6502
  %v6504 = vpop.f32.mrf.mxu0
  %v6505 = vadd.f32 %v259, %v6504
  %6506 = vmatmul.bf16.gmra.mxu0 %v6381
  %v6507 = vpop.f32.mrf.mxu0
  %v6508 = vadd.f32 %v259, %v6507
  %v6509 = vpop.f32.mrf.mxu0
  %v6510 = vadd.f32 %v259, %v6509
  %6511 = vmatmul.bf16.gmra.mxu0 %v6383
  %v6512 = vpop.f32.mrf.mxu0
  %v6513 = vadd.f32 %v259, %v6512
  %v6514 = vpop.f32.mrf.mxu0
  %v6515 = vadd.f32 %v259, %v6514
  %6516 = vmatmul.bf16.gmra.mxu0 %v6385
  %v6517 = vpop.f32.mrf.mxu0
  %v6518 = vadd.f32 %v259, %v6517
  %v6519 = vpop.f32.mrf.mxu0
  %v6520 = vadd.f32 %v259, %v6519
  %6521 = vmatmul.bf16.gmra.mxu0 %v6387
  %v6522 = vpop.f32.mrf.mxu0
  %v6523 = vadd.f32 %v259, %v6522
  %v6524 = vpop.f32.mrf.mxu0
  %v6525 = vadd.f32 %v259, %v6524
  %6526 = vmatmul.bf16.gmra.mxu0 %v6389
  %v6527 = vpop.f32.mrf.mxu0
  %v6528 = vadd.f32 %v259, %v6527
  %v6529 = vpop.f32.mrf.mxu0
  %v6530 = vadd.f32 %v259, %v6529
  %6531 = vmatmul.bf16.gmra.mxu0 %v6391
  %v6532 = vpop.f32.mrf.mxu0
  %v6533 = vadd.f32 %v259, %v6532
  %v6534 = vpop.f32.mrf.mxu0
  %v6535 = vadd.f32 %v259, %v6534
  %6536 = vmatmul.bf16.gmra.mxu0 %v6393
  %v6537 = vpop.f32.mrf.mxu0
  %v6538 = vadd.f32 %v259, %v6537
  %v6539 = vpop.f32.mrf.mxu0
  %v6540 = vadd.f32 %v259, %v6539
  %6541 = vdwg.mxu0
  %6542 = vmatpush.bf16.msra.mxu0 %v1195
  %6543 = vmatpush.bf16.msra.mxu0 %v1193
  %6544 = vmatpush.bf16.msra.mxu0 %v1191
  %6545 = vmatpush.bf16.msra.mxu0 %v1189
  %6546 = vmatpush.bf16.msra.mxu0 %v1187
  %6547 = vmatpush.bf16.msra.mxu0 %v1185
  %6548 = vmatpush.bf16.msra.mxu0 %v1183
  %6549 = vmatpush.bf16.msra.mxu0 %v1181
  %6550 = vmatmul.bf16.gmra.mxu0 %v6380
  %v6551 = vpop.f32.mrf.mxu0
  %v6552 = vadd.f32 %v6503, %v6551
  %v6553 = vpop.f32.mrf.mxu0
  %v6554 = vadd.f32 %v6505, %v6553
  %6555 = vmatmul.bf16.gmra.mxu0 %v6382
  %v6556 = vpop.f32.mrf.mxu0
  %v6557 = vadd.f32 %v6508, %v6556
  %v6558 = vpop.f32.mrf.mxu0
  %v6559 = vadd.f32 %v6510, %v6558
  %6560 = vmatmul.bf16.gmra.mxu0 %v6384
  %v6561 = vpop.f32.mrf.mxu0
  %v6562 = vadd.f32 %v6513, %v6561
  %v6563 = vpop.f32.mrf.mxu0
  %v6564 = vadd.f32 %v6515, %v6563
  %6565 = vmatmul.bf16.gmra.mxu0 %v6386
  %v6566 = vpop.f32.mrf.mxu0
  %v6567 = vadd.f32 %v6518, %v6566
  %v6568 = vpop.f32.mrf.mxu0
  %v6569 = vadd.f32 %v6520, %v6568
  %6570 = vmatmul.bf16.gmra.mxu0 %v6388
  %v6571 = vpop.f32.mrf.mxu0
  %v6572 = vadd.f32 %v6523, %v6571
  %v6573 = vpop.f32.mrf.mxu0
  %v6574 = vadd.f32 %v6525, %v6573
  %6575 = vmatmul.bf16.gmra.mxu0 %v6390
  %v6576 = vpop.f32.mrf.mxu0
  %v6577 = vadd.f32 %v6528, %v6576
  %v6578 = vpop.f32.mrf.mxu0
  %v6579 = vadd.f32 %v6530, %v6578
  %6580 = vmatmul.bf16.gmra.mxu0 %v6392
  %v6581 = vpop.f32.mrf.mxu0
  %v6582 = vadd.f32 %v6533, %v6581
  %v6583 = vpop.f32.mrf.mxu0
  %v6584 = vadd.f32 %v6535, %v6583
  %6585 = vmatmul.bf16.gmra.mxu0 %v6394
  %v6586 = vpop.f32.mrf.mxu0
  %v6587 = vadd.f32 %v6538, %v6586
  %v6588 = vpop.f32.mrf.mxu0
  %v6589 = vadd.f32 %v6540, %v6588
  %6590 = vdwg.mxu0
  %v6591 = vmax.f32 %v6454, 0.0
  %v6592 = vmax.f32 %v6552, 0.0
  %v6593 = vmax.f32 %v6456, 0.0
  %v6594 = vmax.f32 %v6554, 0.0
  %v6595 = vmax.f32 %v6459, 0.0
  %v6596 = vmax.f32 %v6557, 0.0
  %v6597 = vmax.f32 %v6461, 0.0
  %v6598 = vmax.f32 %v6559, 0.0
  %v6599 = vmax.f32 %v6464, 0.0
  %v6600 = vmax.f32 %v6562, 0.0
  %v6601 = vmax.f32 %v6466, 0.0
  %v6602 = vmax.f32 %v6564, 0.0
  %v6603 = vmax.f32 %v6469, 0.0
  %v6604 = vmax.f32 %v6567, 0.0
  %v6605 = vmax.f32 %v6471, 0.0
  %v6606 = vmax.f32 %v6569, 0.0
  %v6607 = vmax.f32 %v6474, 0.0
  %v6608 = vmax.f32 %v6572, 0.0
  %v6609 = vmax.f32 %v6476, 0.0
  %v6610 = vmax.f32 %v6574, 0.0
  %v6611 = vmax.f32 %v6479, 0.0
  %v6612 = vmax.f32 %v6577, 0.0
  %v6613 = vmax.f32 %v6481, 0.0
  %v6614 = vmax.f32 %v6579, 0.0
  %v6615 = vmax.f32 %v6484, 0.0
  %v6616 = vmax.f32 %v6582, 0.0
  %v6617 = vmax.f32 %v6486, 0.0
  %v6618 = vmax.f32 %v6584, 0.0
  %v6619 = vmax.f32 %v6489, 0.0
  %v6620 = vmax.f32 %v6587, 0.0
  %v6621 = vmax.f32 %v6491, 0.0
  %v6622 = vmax.f32 %v6589, 0.0
  %v6623 = vpack.c.bf16 %v6593, %v6591
  %v6624 = vpack.c.bf16 %v6597, %v6595
  %v6625 = vpack.c.bf16 %v6601, %v6599
  %v6626 = vpack.c.bf16 %v6605, %v6603
  %v6627 = vpack.c.bf16 %v6609, %v6607
  %v6628 = vpack.c.bf16 %v6613, %v6611
  %v6629 = vpack.c.bf16 %v6617, %v6615
  %v6630 = vpack.c.bf16 %v6621, %v6619
  %6631 = vmatpush.bf16.msra.mxu0 %v1519
  %6632 = vmatpush.bf16.msra.mxu0 %v1518
  %6633 = vmatpush.bf16.msra.mxu0 %v1517
  %6634 = vmatpush.bf16.msra.mxu0 %v1516
  %6635 = vmatpush.bf16.msra.mxu0 %v1515
  %6636 = vmatpush.bf16.msra.mxu0 %v1514
  %6637 = vmatpush.bf16.msra.mxu0 %v1513
  %6638 = vmatpush.bf16.msra.mxu0 %v1512
  %6639 = vmatmul.bf16.gmra.mxu0 %v6623
  %v6640 = vpop.f32.mrf.mxu0
  %v6641 = vadd.f32 %v262, %v6640
  %v6642 = vpop.f32.mrf.mxu0
  %v6643 = vadd.f32 %v262, %v6642
  %6644 = vmatmul.bf16.gmra.mxu0 %v6624
  %v6645 = vpop.f32.mrf.mxu0
  %v6646 = vadd.f32 %v262, %v6645
  %v6647 = vpop.f32.mrf.mxu0
  %v6648 = vadd.f32 %v262, %v6647
  %6649 = vmatmul.bf16.gmra.mxu0 %v6625
  %v6650 = vpop.f32.mrf.mxu0
  %v6651 = vadd.f32 %v262, %v6650
  %v6652 = vpop.f32.mrf.mxu0
  %v6653 = vadd.f32 %v262, %v6652
  %6654 = vmatmul.bf16.gmra.mxu0 %v6626
  %v6655 = vpop.f32.mrf.mxu0
  %v6656 = vadd.f32 %v262, %v6655
  %v6657 = vpop.f32.mrf.mxu0
  %v6658 = vadd.f32 %v262, %v6657
  %6659 = vmatmul.bf16.gmra.mxu0 %v6627
  %v6660 = vpop.f32.mrf.mxu0
  %v6661 = vadd.f32 %v262, %v6660
  %v6662 = vpop.f32.mrf.mxu0
  %v6663 = vadd.f32 %v262, %v6662
  %6664 = vmatmul.bf16.gmra.mxu0 %v6628
  %v6665 = vpop.f32.mrf.mxu0
  %v6666 = vadd.f32 %v262, %v6665
  %v6667 = vpop.f32.mrf.mxu0
  %v6668 = vadd.f32 %v262, %v6667
  %6669 = vmatmul.bf16.gmra.mxu0 %v6629
  %v6670 = vpop.f32.mrf.mxu0
  %v6671 = vadd.f32 %v262, %v6670
  %v6672 = vpop.f32.mrf.mxu0
  %v6673 = vadd.f32 %v262, %v6672
  %6674 = vmatmul.bf16.gmra.mxu0 %v6630
  %v6675 = vpop.f32.mrf.mxu0
  %v6676 = vadd.f32 %v262, %v6675
  %v6677 = vpop.f32.mrf.mxu0
  %v6678 = vadd.f32 %v262, %v6677
  %6679 = vdwg.mxu0
  %v6680 = vmax.f32 %v6641, 0.0
  %v6681 = vmax.f32 %v6643, 0.0
  %v6682 = vmax.f32 %v6646, 0.0
  %v6683 = vmax.f32 %v6648, 0.0
  %v6684 = vmax.f32 %v6651, 0.0
  %v6685 = vmax.f32 %v6653, 0.0
  %v6686 = vmax.f32 %v6656, 0.0
  %v6687 = vmax.f32 %v6658, 0.0
  %v6688 = vmax.f32 %v6661, 0.0
  %v6689 = vmax.f32 %v6663, 0.0
  %v6690 = vmax.f32 %v6666, 0.0
  %v6691 = vmax.f32 %v6668, 0.0
  %v6692 = vmax.f32 %v6671, 0.0
  %v6693 = vmax.f32 %v6673, 0.0
  %v6694 = vmax.f32 %v6676, 0.0
  %v6695 = vmax.f32 %v6678, 0.0
  %v6696 = vpack.c.bf16 %v6681, %v6680
  %v6697 = vpack.c.bf16 %v6594, %v6592
  %v6698 = vpack.c.bf16 %v6683, %v6682
  %v6699 = vpack.c.bf16 %v6598, %v6596
  %v6700 = vpack.c.bf16 %v6685, %v6684
  %v6701 = vpack.c.bf16 %v6602, %v6600
  %v6702 = vpack.c.bf16 %v6687, %v6686
  %v6703 = vpack.c.bf16 %v6606, %v6604
  %v6704 = vpack.c.bf16 %v6689, %v6688
  %v6705 = vpack.c.bf16 %v6610, %v6608
  %v6706 = vpack.c.bf16 %v6691, %v6690
  %v6707 = vpack.c.bf16 %v6614, %v6612
  %v6708 = vpack.c.bf16 %v6693, %v6692
  %v6709 = vpack.c.bf16 %v6618, %v6616
  %v6710 = vpack.c.bf16 %v6695, %v6694
  %v6711 = vpack.c.bf16 %v6622, %v6620
  %6712 = vmatpush.bf16.msra.mxu0 %v1712
  %6713 = vmatpush.bf16.msra.mxu0 %v1711
  %6714 = vmatpush.bf16.msra.mxu0 %v1710
  %6715 = vmatpush.bf16.msra.mxu0 %v1709
  %6716 = vmatpush.bf16.msra.mxu0 %v1708
  %6717 = vmatpush.bf16.msra.mxu0 %v1707
  %6718 = vmatpush.bf16.msra.mxu0 %v1706
  %6719 = vmatpush.bf16.msra.mxu0 %v1705
  %6720 = vmatmul.bf16.gmra.mxu0 %v6696
  %v6721 = vpop.f32.mrf.mxu0
  %v6722 = vadd.f32 %v263, %v6721
  %v6723 = vpop.f32.mrf.mxu0
  %v6724 = vadd.f32 %v263, %v6723
  %6725 = vmatmul.bf16.gmra.mxu0 %v6698
  %v6726 = vpop.f32.mrf.mxu0
  %v6727 = vadd.f32 %v263, %v6726
  %v6728 = vpop.f32.mrf.mxu0
  %v6729 = vadd.f32 %v263, %v6728
  %6730 = vmatmul.bf16.gmra.mxu0 %v6700
  %v6731 = vpop.f32.mrf.mxu0
  %v6732 = vadd.f32 %v263, %v6731
  %v6733 = vpop.f32.mrf.mxu0
  %v6734 = vadd.f32 %v263, %v6733
  %6735 = vmatmul.bf16.gmra.mxu0 %v6702
  %v6736 = vpop.f32.mrf.mxu0
  %v6737 = vadd.f32 %v263, %v6736
  %v6738 = vpop.f32.mrf.mxu0
  %v6739 = vadd.f32 %v263, %v6738
  %6740 = vmatmul.bf16.gmra.mxu0 %v6704
  %v6741 = vpop.f32.mrf.mxu0
  %v6742 = vadd.f32 %v263, %v6741
  %v6743 = vpop.f32.mrf.mxu0
  %v6744 = vadd.f32 %v263, %v6743
  %6745 = vmatmul.bf16.gmra.mxu0 %v6706
  %v6746 = vpop.f32.mrf.mxu0
  %v6747 = vadd.f32 %v263, %v6746
  %v6748 = vpop.f32.mrf.mxu0
  %v6749 = vadd.f32 %v263, %v6748
  %6750 = vmatmul.bf16.gmra.mxu0 %v6708
  %v6751 = vpop.f32.mrf.mxu0
  %v6752 = vadd.f32 %v263, %v6751
  %v6753 = vpop.f32.mrf.mxu0
  %v6754 = vadd.f32 %v263, %v6753
  %6755 = vmatmul.bf16.gmra.mxu0 %v6710
  %v6756 = vpop.f32.mrf.mxu0
  %v6757 = vadd.f32 %v263, %v6756
  %v6758 = vpop.f32.mrf.mxu0
  %v6759 = vadd.f32 %v263, %v6758
  %6760 = vdwg.mxu0
  %6761 = vmatpush.bf16.msra.mxu0 %v1720
  %6762 = vmatpush.bf16.msra.mxu0 %v1719
  %6763 = vmatpush.bf16.msra.mxu0 %v1718
  %6764 = vmatpush.bf16.msra.mxu0 %v1717
  %6765 = vmatpush.bf16.msra.mxu0 %v1716
  %6766 = vmatpush.bf16.msra.mxu0 %v1715
  %6767 = vmatpush.bf16.msra.mxu0 %v1714
  %6768 = vmatpush.bf16.msra.mxu0 %v1713
  %6769 = vmatmul.bf16.gmra.mxu0 %v6697
  %v6770 = vpop.f32.mrf.mxu0
  %v6771 = vadd.f32 %v6722, %v6770
  %v6772 = vpop.f32.mrf.mxu0
  %v6773 = vadd.f32 %v6724, %v6772
  %6774 = vmatmul.bf16.gmra.mxu0 %v6699
  %v6775 = vpop.f32.mrf.mxu0
  %v6776 = vadd.f32 %v6727, %v6775
  %v6777 = vpop.f32.mrf.mxu0
  %v6778 = vadd.f32 %v6729, %v6777
  %6779 = vmatmul.bf16.gmra.mxu0 %v6701
  %v6780 = vpop.f32.mrf.mxu0
  %v6781 = vadd.f32 %v6732, %v6780
  %v6782 = vpop.f32.mrf.mxu0
  %v6783 = vadd.f32 %v6734, %v6782
  %6784 = vmatmul.bf16.gmra.mxu0 %v6703
  %v6785 = vpop.f32.mrf.mxu0
  %v6786 = vadd.f32 %v6737, %v6785
  %v6787 = vpop.f32.mrf.mxu0
  %v6788 = vadd.f32 %v6739, %v6787
  %6789 = vmatmul.bf16.gmra.mxu0 %v6705
  %v6790 = vpop.f32.mrf.mxu0
  %v6791 = vadd.f32 %v6742, %v6790
  %v6792 = vpop.f32.mrf.mxu0
  %v6793 = vadd.f32 %v6744, %v6792
  %6794 = vmatmul.bf16.gmra.mxu0 %v6707
  %v6795 = vpop.f32.mrf.mxu0
  %v6796 = vadd.f32 %v6747, %v6795
  %v6797 = vpop.f32.mrf.mxu0
  %v6798 = vadd.f32 %v6749, %v6797
  %6799 = vmatmul.bf16.gmra.mxu0 %v6709
  %v6800 = vpop.f32.mrf.mxu0
  %v6801 = vadd.f32 %v6752, %v6800
  %v6802 = vpop.f32.mrf.mxu0
  %v6803 = vadd.f32 %v6754, %v6802
  %6804 = vmatmul.bf16.gmra.mxu0 %v6711
  %v6805 = vpop.f32.mrf.mxu0
  %v6806 = vadd.f32 %v6757, %v6805
  %v6807 = vpop.f32.mrf.mxu0
  %v6808 = vadd.f32 %v6759, %v6807
  %6809 = vdwg.mxu0
  %s6810 = scalar_lea.vmem %s2, 512
  %v6811 = vld [vmem:[%s6810] sm:$0xff]
  %v6812 = vld [vmem:[%s6810 + $0x8] sm:$0xff]
  %v6813 = vld [vmem:[%s6810 + $0x10] sm:$0xff]
  %v6814 = vld [vmem:[%s6810 + $0x18] sm:$0xff]
  %v6815 = vld [vmem:[%s6810 + $0x20] sm:$0xff]
  %v6816 = vld [vmem:[%s6810 + $0x28] sm:$0xff]
  %v6817 = vld [vmem:[%s6810 + $0x30] sm:$0xff]
  %v6818 = vld [vmem:[%s6810 + $0x38] sm:$0xff]
  %v6819 = vld [vmem:[%s6810 + $0x40] sm:$0xff]
  %v6820 = vld [vmem:[%s6810 + $0x48] sm:$0xff]
  %v6821 = vld [vmem:[%s6810 + $0x50] sm:$0xff]
  %v6822 = vld [vmem:[%s6810 + $0x58] sm:$0xff]
  %v6823 = vld [vmem:[%s6810 + $0x60] sm:$0xff]
  %v6824 = vld [vmem:[%s6810 + $0x68] sm:$0xff]
  %v6825 = vld [vmem:[%s6810 + $0x70] sm:$0xff]
  %v6826 = vld [vmem:[%s6810 + $0x78] sm:$0xff]
  %v6827 = vmul.f32 %v1854, %v6811
  %v6828 = vmul.f32 %v1859, %v6812
  %v6829 = vmul.f32 %v1864, %v6813
  %v6830 = vmul.f32 %v1869, %v6814
  %v6831 = vmul.f32 %v1874, %v6815
  %v6832 = vmul.f32 %v1879, %v6816
  %v6833 = vmul.f32 %v1884, %v6817
  %v6834 = vmul.f32 %v1889, %v6818
  %v6835 = vmul.f32 %v1894, %v6819
  %v6836 = vmul.f32 %v1899, %v6820
  %v6837 = vmul.f32 %v1904, %v6821
  %v6838 = vmul.f32 %v1909, %v6822
  %v6839 = vmul.f32 %v1914, %v6823
  %v6840 = vmul.f32 %v1919, %v6824
  %v6841 = vmul.f32 %v1924, %v6825
  %v6842 = vmul.f32 %v1929, %v6826
  %v6843 = vmul.f32 %v6771, %v1950
  %v6844 = vmul.f32 %v6773, %v1955
  %v6845 = vmul.f32 %v6776, %v1960
  %v6846 = vmul.f32 %v6778, %v1965
  %v6847 = vmul.f32 %v6781, %v1970
  %v6848 = vmul.f32 %v6783, %v1975
  %v6849 = vmul.f32 %v6786, %v1980
  %v6850 = vmul.f32 %v6788, %v1985
  %v6851 = vmul.f32 %v6791, %v1990
  %v6852 = vmul.f32 %v6793, %v1995
  %v6853 = vmul.f32 %v6796, %v2000
  %v6854 = vmul.f32 %v6798, %v2005
  %v6855 = vmul.f32 %v6801, %v2010
  %v6856 = vmul.f32 %v6803, %v2015
  %v6857 = vmul.f32 %v6806, %v2020
  %v6858 = vmul.f32 %v6808, %v2025
  %v6859 = vadd.f32 %v5815, %v6843
  %v6860 = vadd.f32 %v5816, %v6844
  %v6861 = vadd.f32 %v5817, %v6845
  %v6862 = vadd.f32 %v5818, %v6846
  %v6863 = vadd.f32 %v5819, %v6847
  %v6864 = vadd.f32 %v5820, %v6848
  %v6865 = vadd.f32 %v5821, %v6849
  %v6866 = vadd.f32 %v5822, %v6850
  %v6867 = vadd.f32 %v5823, %v6851
  %v6868 = vadd.f32 %v5824, %v6852
  %v6869 = vadd.f32 %v5825, %v6853
  %v6870 = vadd.f32 %v5826, %v6854
  %v6871 = vadd.f32 %v5827, %v6855
  %v6872 = vadd.f32 %v5828, %v6856
  %v6873 = vadd.f32 %v5829, %v6857
  %v6874 = vadd.f32 %v5830, %v6858
  %6891 = vrot.lane.b32.xlu0 %v6827, 2
  %v6892 = vpop.permute.xlu0 %6891
  %6893 = vrot.lane.b32.xlu0 %v6828, 2
  %v6894 = vpop.permute.xlu0 %6893
  %6895 = vrot.lane.b32.xlu0 %v6829, 2
  %v6896 = vpop.permute.xlu0 %6895
  %6897 = vrot.lane.b32.xlu0 %v6830, 2
  %v6898 = vpop.permute.xlu0 %6897
  %6899 = vrot.lane.b32.xlu0 %v6831, 2
  %v6900 = vpop.permute.xlu0 %6899
  %6901 = vrot.lane.b32.xlu0 %v6832, 2
  %v6902 = vpop.permute.xlu0 %6901
  %6903 = vrot.lane.b32.xlu0 %v6833, 2
  %v6904 = vpop.permute.xlu0 %6903
  %6905 = vrot.lane.b32.xlu0 %v6834, 2
  %v6906 = vpop.permute.xlu0 %6905
  %6907 = vrot.lane.b32.xlu0 %v6835, 2
  %v6908 = vpop.permute.xlu0 %6907
  %6909 = vrot.lane.b32.xlu0 %v6836, 2
  %v6910 = vpop.permute.xlu0 %6909
  %6911 = vrot.lane.b32.xlu0 %v6837, 2
  %v6912 = vpop.permute.xlu0 %6911
  %6913 = vrot.lane.b32.xlu0 %v6838, 2
  %v6914 = vpop.permute.xlu0 %6913
  %6915 = vrot.lane.b32.xlu0 %v6839, 2
  %v6916 = vpop.permute.xlu0 %6915
  %6917 = vrot.lane.b32.xlu0 %v6840, 2
  %v6918 = vpop.permute.xlu0 %6917
  %6919 = vrot.lane.b32.xlu0 %v6841, 2
  %v6920 = vpop.permute.xlu0 %6919
  %6921 = vrot.lane.b32.xlu0 %v6842, 2
  %v6922 = vpop.permute.xlu0 %6921
  %v6939 = vmul.f32 %v6771, %v6892
  %v6940 = vmul.f32 %v6773, %v6894
  %v6941 = vmul.f32 %v6776, %v6896
  %v6942 = vmul.f32 %v6778, %v6898
  %v6943 = vmul.f32 %v6781, %v6900
  %v6944 = vmul.f32 %v6783, %v6902
  %v6945 = vmul.f32 %v6786, %v6904
  %v6946 = vmul.f32 %v6788, %v6906
  %v6947 = vmul.f32 %v6791, %v6908
  %v6948 = vmul.f32 %v6793, %v6910
  %v6949 = vmul.f32 %v6796, %v6912
  %v6950 = vmul.f32 %v6798, %v6914
  %v6951 = vmul.f32 %v6801, %v6916
  %v6952 = vmul.f32 %v6803, %v6918
  %v6953 = vmul.f32 %v6806, %v6920
  %v6954 = vmul.f32 %v6808, %v6922
  %6971 = vrot.lane.b32.xlu0 %v6939, 126
  %v6972 = vpop.permute.xlu0 %6971
  %6973 = vrot.lane.b32.xlu0 %v6940, 126
  %v6974 = vpop.permute.xlu0 %6973
  %6975 = vrot.lane.b32.xlu0 %v6941, 126
  %v6976 = vpop.permute.xlu0 %6975
  %6977 = vrot.lane.b32.xlu0 %v6942, 126
  %v6978 = vpop.permute.xlu0 %6977
  %6979 = vrot.lane.b32.xlu0 %v6943, 126
  %v6980 = vpop.permute.xlu0 %6979
  %6981 = vrot.lane.b32.xlu0 %v6944, 126
  %v6982 = vpop.permute.xlu0 %6981
  %6983 = vrot.lane.b32.xlu0 %v6945, 126
  %v6984 = vpop.permute.xlu0 %6983
  %6985 = vrot.lane.b32.xlu0 %v6946, 126
  %v6986 = vpop.permute.xlu0 %6985
  %6987 = vrot.lane.b32.xlu0 %v6947, 126
  %v6988 = vpop.permute.xlu0 %6987
  %6989 = vrot.lane.b32.xlu0 %v6948, 126
  %v6990 = vpop.permute.xlu0 %6989
  %6991 = vrot.lane.b32.xlu0 %v6949, 126
  %v6992 = vpop.permute.xlu0 %6991
  %6993 = vrot.lane.b32.xlu0 %v6950, 126
  %v6994 = vpop.permute.xlu0 %6993
  %6995 = vrot.lane.b32.xlu0 %v6951, 126
  %v6996 = vpop.permute.xlu0 %6995
  %6997 = vrot.lane.b32.xlu0 %v6952, 126
  %v6998 = vpop.permute.xlu0 %6997
  %6999 = vrot.lane.b32.xlu0 %v6953, 126
  %v7000 = vpop.permute.xlu0 %6999
  %7001 = vrot.lane.b32.xlu0 %v6954, 126
  %v7002 = vpop.permute.xlu0 %7001
  %v7019 = vadd.f32 %v6859, %v6972
  %v7020 = vadd.f32 %v6860, %v6974
  %v7021 = vadd.f32 %v6861, %v6976
  %v7022 = vadd.f32 %v6862, %v6978
  %v7023 = vadd.f32 %v6863, %v6980
  %v7024 = vadd.f32 %v6864, %v6982
  %v7025 = vadd.f32 %v6865, %v6984
  %v7026 = vadd.f32 %v6866, %v6986
  %v7027 = vadd.f32 %v6867, %v6988
  %v7028 = vadd.f32 %v6868, %v6990
  %v7029 = vadd.f32 %v6869, %v6992
  %v7030 = vadd.f32 %v6870, %v6994
  %v7031 = vadd.f32 %v6871, %v6996
  %v7032 = vadd.f32 %v6872, %v6998
  %v7033 = vadd.f32 %v6873, %v7000
  %v7034 = vadd.f32 %v6874, %v7002
  %7036 = vset.pattern.permute.xlu0 0
  %7037 = vperm.xlu0 %7036, %v7019
  %v7038 = vpop.permute.xlu0 %7037
  %7041 = vset.pattern.permute.xlu0 0
  %7042 = vperm.xlu0 %7041, %v7020
  %v7043 = vpop.permute.xlu0 %7042
  %7046 = vset.pattern.permute.xlu0 0
  %7047 = vperm.xlu0 %7046, %v7021
  %v7048 = vpop.permute.xlu0 %7047
  %7051 = vset.pattern.permute.xlu0 0
  %7052 = vperm.xlu0 %7051, %v7022
  %v7053 = vpop.permute.xlu0 %7052
  %7056 = vset.pattern.permute.xlu0 0
  %7057 = vperm.xlu0 %7056, %v7023
  %v7058 = vpop.permute.xlu0 %7057
  %7061 = vset.pattern.permute.xlu0 0
  %7062 = vperm.xlu0 %7061, %v7024
  %v7063 = vpop.permute.xlu0 %7062
  %7066 = vset.pattern.permute.xlu0 0
  %7067 = vperm.xlu0 %7066, %v7025
  %v7068 = vpop.permute.xlu0 %7067
  %7071 = vset.pattern.permute.xlu0 0
  %7072 = vperm.xlu0 %7071, %v7026
  %v7073 = vpop.permute.xlu0 %7072
  %7076 = vset.pattern.permute.xlu0 0
  %7077 = vperm.xlu0 %7076, %v7027
  %v7078 = vpop.permute.xlu0 %7077
  %7081 = vset.pattern.permute.xlu0 0
  %7082 = vperm.xlu0 %7081, %v7028
  %v7083 = vpop.permute.xlu0 %7082
  %7086 = vset.pattern.permute.xlu0 0
  %7087 = vperm.xlu0 %7086, %v7029
  %v7088 = vpop.permute.xlu0 %7087
  %7091 = vset.pattern.permute.xlu0 0
  %7092 = vperm.xlu0 %7091, %v7030
  %v7093 = vpop.permute.xlu0 %7092
  %7096 = vset.pattern.permute.xlu0 0
  %7097 = vperm.xlu0 %7096, %v7031
  %v7098 = vpop.permute.xlu0 %7097
  %7101 = vset.pattern.permute.xlu0 0
  %7102 = vperm.xlu0 %7101, %v7032
  %v7103 = vpop.permute.xlu0 %7102
  %7106 = vset.pattern.permute.xlu0 0
  %7107 = vperm.xlu0 %7106, %v7033
  %v7108 = vpop.permute.xlu0 %7107
  %7111 = vset.pattern.permute.xlu0 0
  %7112 = vperm.xlu0 %7111, %v7034
  %v7113 = vpop.permute.xlu0 %7112
  %v7115 = vmul.f32 %v7038, %v230
  %v7116 = vmul.f32 %v7038, %v231
  %v7117 = vmul.f32 %v7043, %v230
  %v7118 = vmul.f32 %v7043, %v231
  %v7119 = vmul.f32 %v7048, %v230
  %v7120 = vmul.f32 %v7048, %v231
  %v7121 = vmul.f32 %v7053, %v230
  %v7122 = vmul.f32 %v7053, %v231
  %v7123 = vmul.f32 %v7058, %v230
  %v7124 = vmul.f32 %v7058, %v231
  %v7125 = vmul.f32 %v7063, %v230
  %v7126 = vmul.f32 %v7063, %v231
  %v7127 = vmul.f32 %v7068, %v230
  %v7128 = vmul.f32 %v7068, %v231
  %v7129 = vmul.f32 %v7073, %v230
  %v7130 = vmul.f32 %v7073, %v231
  %v7131 = vmul.f32 %v7078, %v230
  %v7132 = vmul.f32 %v7078, %v231
  %v7133 = vmul.f32 %v7083, %v230
  %v7134 = vmul.f32 %v7083, %v231
  %v7135 = vmul.f32 %v7088, %v230
  %v7136 = vmul.f32 %v7088, %v231
  %v7137 = vmul.f32 %v7093, %v230
  %v7138 = vmul.f32 %v7093, %v231
  %v7139 = vmul.f32 %v7098, %v230
  %v7140 = vmul.f32 %v7098, %v231
  %v7141 = vmul.f32 %v7103, %v230
  %v7142 = vmul.f32 %v7103, %v231
  %v7143 = vmul.f32 %v7108, %v230
  %v7144 = vmul.f32 %v7108, %v231
  %v7145 = vmul.f32 %v7113, %v230
  %v7146 = vmul.f32 %v7113, %v231
  %7147 = vset.pattern.permute.xlu0 1
  %7148 = vperm.xlu0 %7147, %v7019
  %v7149 = vpop.permute.xlu0 %7148
  %7151 = vset.pattern.permute.xlu0 1
  %7152 = vperm.xlu0 %7151, %v7020
  %v7153 = vpop.permute.xlu0 %7152
  %7155 = vset.pattern.permute.xlu0 1
  %7156 = vperm.xlu0 %7155, %v7021
  %v7157 = vpop.permute.xlu0 %7156
  %7159 = vset.pattern.permute.xlu0 1
  %7160 = vperm.xlu0 %7159, %v7022
  %v7161 = vpop.permute.xlu0 %7160
  %7163 = vset.pattern.permute.xlu0 1
  %7164 = vperm.xlu0 %7163, %v7023
  %v7165 = vpop.permute.xlu0 %7164
  %7167 = vset.pattern.permute.xlu0 1
  %7168 = vperm.xlu0 %7167, %v7024
  %v7169 = vpop.permute.xlu0 %7168
  %7171 = vset.pattern.permute.xlu0 1
  %7172 = vperm.xlu0 %7171, %v7025
  %v7173 = vpop.permute.xlu0 %7172
  %7175 = vset.pattern.permute.xlu0 1
  %7176 = vperm.xlu0 %7175, %v7026
  %v7177 = vpop.permute.xlu0 %7176
  %7179 = vset.pattern.permute.xlu0 1
  %7180 = vperm.xlu0 %7179, %v7027
  %v7181 = vpop.permute.xlu0 %7180
  %7183 = vset.pattern.permute.xlu0 1
  %7184 = vperm.xlu0 %7183, %v7028
  %v7185 = vpop.permute.xlu0 %7184
  %7187 = vset.pattern.permute.xlu0 1
  %7188 = vperm.xlu0 %7187, %v7029
  %v7189 = vpop.permute.xlu0 %7188
  %7191 = vset.pattern.permute.xlu0 1
  %7192 = vperm.xlu0 %7191, %v7030
  %v7193 = vpop.permute.xlu0 %7192
  %7195 = vset.pattern.permute.xlu0 1
  %7196 = vperm.xlu0 %7195, %v7031
  %v7197 = vpop.permute.xlu0 %7196
  %7199 = vset.pattern.permute.xlu0 1
  %7200 = vperm.xlu0 %7199, %v7032
  %v7201 = vpop.permute.xlu0 %7200
  %7203 = vset.pattern.permute.xlu0 1
  %7204 = vperm.xlu0 %7203, %v7033
  %v7205 = vpop.permute.xlu0 %7204
  %7207 = vset.pattern.permute.xlu0 1
  %7208 = vperm.xlu0 %7207, %v7034
  %v7209 = vpop.permute.xlu0 %7208
  %v7211 = vmul.f32 %v7149, %v237
  %v7212 = vmul.f32 %v7149, %v238
  %v7213 = vmul.f32 %v7153, %v237
  %v7214 = vmul.f32 %v7153, %v238
  %v7215 = vmul.f32 %v7157, %v237
  %v7216 = vmul.f32 %v7157, %v238
  %v7217 = vmul.f32 %v7161, %v237
  %v7218 = vmul.f32 %v7161, %v238
  %v7219 = vmul.f32 %v7165, %v237
  %v7220 = vmul.f32 %v7165, %v238
  %v7221 = vmul.f32 %v7169, %v237
  %v7222 = vmul.f32 %v7169, %v238
  %v7223 = vmul.f32 %v7173, %v237
  %v7224 = vmul.f32 %v7173, %v238
  %v7225 = vmul.f32 %v7177, %v237
  %v7226 = vmul.f32 %v7177, %v238
  %v7227 = vmul.f32 %v7181, %v237
  %v7228 = vmul.f32 %v7181, %v238
  %v7229 = vmul.f32 %v7185, %v237
  %v7230 = vmul.f32 %v7185, %v238
  %v7231 = vmul.f32 %v7189, %v237
  %v7232 = vmul.f32 %v7189, %v238
  %v7233 = vmul.f32 %v7193, %v237
  %v7234 = vmul.f32 %v7193, %v238
  %v7235 = vmul.f32 %v7197, %v237
  %v7236 = vmul.f32 %v7197, %v238
  %v7237 = vmul.f32 %v7201, %v237
  %v7238 = vmul.f32 %v7201, %v238
  %v7239 = vmul.f32 %v7205, %v237
  %v7240 = vmul.f32 %v7205, %v238
  %v7241 = vmul.f32 %v7209, %v237
  %v7242 = vmul.f32 %v7209, %v238
  %v7243 = vadd.f32 %v7115, %v7211
  %v7244 = vadd.f32 %v7116, %v7212
  %v7245 = vadd.f32 %v7117, %v7213
  %v7246 = vadd.f32 %v7118, %v7214
  %v7247 = vadd.f32 %v7119, %v7215
  %v7248 = vadd.f32 %v7120, %v7216
  %v7249 = vadd.f32 %v7121, %v7217
  %v7250 = vadd.f32 %v7122, %v7218
  %v7251 = vadd.f32 %v7123, %v7219
  %v7252 = vadd.f32 %v7124, %v7220
  %v7253 = vadd.f32 %v7125, %v7221
  %v7254 = vadd.f32 %v7126, %v7222
  %v7255 = vadd.f32 %v7127, %v7223
  %v7256 = vadd.f32 %v7128, %v7224
  %v7257 = vadd.f32 %v7129, %v7225
  %v7258 = vadd.f32 %v7130, %v7226
  %v7259 = vadd.f32 %v7131, %v7227
  %v7260 = vadd.f32 %v7132, %v7228
  %v7261 = vadd.f32 %v7133, %v7229
  %v7262 = vadd.f32 %v7134, %v7230
  %v7263 = vadd.f32 %v7135, %v7231
  %v7264 = vadd.f32 %v7136, %v7232
  %v7265 = vadd.f32 %v7137, %v7233
  %v7266 = vadd.f32 %v7138, %v7234
  %v7267 = vadd.f32 %v7139, %v7235
  %v7268 = vadd.f32 %v7140, %v7236
  %v7269 = vadd.f32 %v7141, %v7237
  %v7270 = vadd.f32 %v7142, %v7238
  %v7271 = vadd.f32 %v7143, %v7239
  %v7272 = vadd.f32 %v7144, %v7240
  %v7273 = vadd.f32 %v7145, %v7241
  %v7274 = vadd.f32 %v7146, %v7242
  %v7275 = vadd.f32 %v7243, %v244
  %v7276 = vadd.f32 %v7244, %v245
  %v7277 = vadd.f32 %v7245, %v244
  %v7278 = vadd.f32 %v7246, %v245
  %v7279 = vadd.f32 %v7247, %v244
  %v7280 = vadd.f32 %v7248, %v245
  %v7281 = vadd.f32 %v7249, %v244
  %v7282 = vadd.f32 %v7250, %v245
  %v7283 = vadd.f32 %v7251, %v244
  %v7284 = vadd.f32 %v7252, %v245
  %v7285 = vadd.f32 %v7253, %v244
  %v7286 = vadd.f32 %v7254, %v245
  %v7287 = vadd.f32 %v7255, %v244
  %v7288 = vadd.f32 %v7256, %v245
  %v7289 = vadd.f32 %v7257, %v244
  %v7290 = vadd.f32 %v7258, %v245
  %v7291 = vadd.f32 %v7259, %v244
  %v7292 = vadd.f32 %v7260, %v245
  %v7293 = vadd.f32 %v7261, %v244
  %v7294 = vadd.f32 %v7262, %v245
  %v7295 = vadd.f32 %v7263, %v244
  %v7296 = vadd.f32 %v7264, %v245
  %v7297 = vadd.f32 %v7265, %v244
  %v7298 = vadd.f32 %v7266, %v245
  %v7299 = vadd.f32 %v7267, %v244
  %v7300 = vadd.f32 %v7268, %v245
  %v7301 = vadd.f32 %v7269, %v244
  %v7302 = vadd.f32 %v7270, %v245
  %v7303 = vadd.f32 %v7271, %v244
  %v7304 = vadd.f32 %v7272, %v245
  %v7305 = vadd.f32 %v7273, %v244
  %v7306 = vadd.f32 %v7274, %v245
  %v7307 = vmax.f32 %v7275, 0.0
  %v7308 = vmax.f32 %v7276, 0.0
  %v7309 = vmax.f32 %v7277, 0.0
  %v7310 = vmax.f32 %v7278, 0.0
  %v7311 = vmax.f32 %v7279, 0.0
  %v7312 = vmax.f32 %v7280, 0.0
  %v7313 = vmax.f32 %v7281, 0.0
  %v7314 = vmax.f32 %v7282, 0.0
  %v7315 = vmax.f32 %v7283, 0.0
  %v7316 = vmax.f32 %v7284, 0.0
  %v7317 = vmax.f32 %v7285, 0.0
  %v7318 = vmax.f32 %v7286, 0.0
  %v7319 = vmax.f32 %v7287, 0.0
  %v7320 = vmax.f32 %v7288, 0.0
  %v7321 = vmax.f32 %v7289, 0.0
  %v7322 = vmax.f32 %v7290, 0.0
  %v7323 = vmax.f32 %v7291, 0.0
  %v7324 = vmax.f32 %v7292, 0.0
  %v7325 = vmax.f32 %v7293, 0.0
  %v7326 = vmax.f32 %v7294, 0.0
  %v7327 = vmax.f32 %v7295, 0.0
  %v7328 = vmax.f32 %v7296, 0.0
  %v7329 = vmax.f32 %v7297, 0.0
  %v7330 = vmax.f32 %v7298, 0.0
  %v7331 = vmax.f32 %v7299, 0.0
  %v7332 = vmax.f32 %v7300, 0.0
  %v7333 = vmax.f32 %v7301, 0.0
  %v7334 = vmax.f32 %v7302, 0.0
  %v7335 = vmax.f32 %v7303, 0.0
  %v7336 = vmax.f32 %v7304, 0.0
  %v7337 = vmax.f32 %v7305, 0.0
  %v7338 = vmax.f32 %v7306, 0.0
  %v7339 = vpack.c.bf16 %v7309, %v7307
  %v7340 = vpack.c.bf16 %v7310, %v7308
  %v7341 = vpack.c.bf16 %v7313, %v7311
  %v7342 = vpack.c.bf16 %v7314, %v7312
  %v7343 = vpack.c.bf16 %v7317, %v7315
  %v7344 = vpack.c.bf16 %v7318, %v7316
  %v7345 = vpack.c.bf16 %v7321, %v7319
  %v7346 = vpack.c.bf16 %v7322, %v7320
  %v7347 = vpack.c.bf16 %v7325, %v7323
  %v7348 = vpack.c.bf16 %v7326, %v7324
  %v7349 = vpack.c.bf16 %v7329, %v7327
  %v7350 = vpack.c.bf16 %v7330, %v7328
  %v7351 = vpack.c.bf16 %v7333, %v7331
  %v7352 = vpack.c.bf16 %v7334, %v7332
  %v7353 = vpack.c.bf16 %v7337, %v7335
  %v7354 = vpack.c.bf16 %v7338, %v7336
  %7355 = vmatpush.bf16.msra.mxu0 %v742
  %7356 = vmatpush.bf16.msra.mxu0 %v740
  %7357 = vmatpush.bf16.msra.mxu0 %v738
  %7358 = vmatpush.bf16.msra.mxu0 %v736
  %7359 = vmatpush.bf16.msra.mxu0 %v734
  %7360 = vmatpush.bf16.msra.mxu0 %v732
  %7361 = vmatpush.bf16.msra.mxu0 %v730
  %7362 = vmatpush.bf16.msra.mxu0 %v728
  %7363 = vmatmul.bf16.gmra.mxu0 %v7339
  %v7364 = vpop.f32.mrf.mxu0
  %v7365 = vadd.f32 %v251, %v7364
  %v7366 = vpop.f32.mrf.mxu0
  %v7367 = vadd.f32 %v251, %v7366
  %7368 = vmatmul.bf16.gmra.mxu0 %v7341
  %v7369 = vpop.f32.mrf.mxu0
  %v7370 = vadd.f32 %v251, %v7369
  %v7371 = vpop.f32.mrf.mxu0
  %v7372 = vadd.f32 %v251, %v7371
  %7373 = vmatmul.bf16.gmra.mxu0 %v7343
  %v7374 = vpop.f32.mrf.mxu0
  %v7375 = vadd.f32 %v251, %v7374
  %v7376 = vpop.f32.mrf.mxu0
  %v7377 = vadd.f32 %v251, %v7376
  %7378 = vmatmul.bf16.gmra.mxu0 %v7345
  %v7379 = vpop.f32.mrf.mxu0
  %v7380 = vadd.f32 %v251, %v7379
  %v7381 = vpop.f32.mrf.mxu0
  %v7382 = vadd.f32 %v251, %v7381
  %7383 = vmatmul.bf16.gmra.mxu0 %v7347
  %v7384 = vpop.f32.mrf.mxu0
  %v7385 = vadd.f32 %v251, %v7384
  %v7386 = vpop.f32.mrf.mxu0
  %v7387 = vadd.f32 %v251, %v7386
  %7388 = vmatmul.bf16.gmra.mxu0 %v7349
  %v7389 = vpop.f32.mrf.mxu0
  %v7390 = vadd.f32 %v251, %v7389
  %v7391 = vpop.f32.mrf.mxu0
  %v7392 = vadd.f32 %v251, %v7391
  %7393 = vmatmul.bf16.gmra.mxu0 %v7351
  %v7394 = vpop.f32.mrf.mxu0
  %v7395 = vadd.f32 %v251, %v7394
  %v7396 = vpop.f32.mrf.mxu0
  %v7397 = vadd.f32 %v251, %v7396
  %7398 = vmatmul.bf16.gmra.mxu0 %v7353
  %v7399 = vpop.f32.mrf.mxu0
  %v7400 = vadd.f32 %v251, %v7399
  %v7401 = vpop.f32.mrf.mxu0
  %v7402 = vadd.f32 %v251, %v7401
  %7403 = vdwg.mxu0
  %7404 = vmatpush.bf16.msra.mxu0 %v758
  %7405 = vmatpush.bf16.msra.mxu0 %v756
  %7406 = vmatpush.bf16.msra.mxu0 %v754
  %7407 = vmatpush.bf16.msra.mxu0 %v752
  %7408 = vmatpush.bf16.msra.mxu0 %v750
  %7409 = vmatpush.bf16.msra.mxu0 %v748
  %7410 = vmatpush.bf16.msra.mxu0 %v746
  %7411 = vmatpush.bf16.msra.mxu0 %v744
  %7412 = vmatmul.bf16.gmra.mxu0 %v7340
  %v7413 = vpop.f32.mrf.mxu0
  %v7414 = vadd.f32 %v7365, %v7413
  %v7415 = vpop.f32.mrf.mxu0
  %v7416 = vadd.f32 %v7367, %v7415
  %7417 = vmatmul.bf16.gmra.mxu0 %v7342
  %v7418 = vpop.f32.mrf.mxu0
  %v7419 = vadd.f32 %v7370, %v7418
  %v7420 = vpop.f32.mrf.mxu0
  %v7421 = vadd.f32 %v7372, %v7420
  %7422 = vmatmul.bf16.gmra.mxu0 %v7344
  %v7423 = vpop.f32.mrf.mxu0
  %v7424 = vadd.f32 %v7375, %v7423
  %v7425 = vpop.f32.mrf.mxu0
  %v7426 = vadd.f32 %v7377, %v7425
  %7427 = vmatmul.bf16.gmra.mxu0 %v7346
  %v7428 = vpop.f32.mrf.mxu0
  %v7429 = vadd.f32 %v7380, %v7428
  %v7430 = vpop.f32.mrf.mxu0
  %v7431 = vadd.f32 %v7382, %v7430
  %7432 = vmatmul.bf16.gmra.mxu0 %v7348
  %v7433 = vpop.f32.mrf.mxu0
  %v7434 = vadd.f32 %v7385, %v7433
  %v7435 = vpop.f32.mrf.mxu0
  %v7436 = vadd.f32 %v7387, %v7435
  %7437 = vmatmul.bf16.gmra.mxu0 %v7350
  %v7438 = vpop.f32.mrf.mxu0
  %v7439 = vadd.f32 %v7390, %v7438
  %v7440 = vpop.f32.mrf.mxu0
  %v7441 = vadd.f32 %v7392, %v7440
  %7442 = vmatmul.bf16.gmra.mxu0 %v7352
  %v7443 = vpop.f32.mrf.mxu0
  %v7444 = vadd.f32 %v7395, %v7443
  %v7445 = vpop.f32.mrf.mxu0
  %v7446 = vadd.f32 %v7397, %v7445
  %7447 = vmatmul.bf16.gmra.mxu0 %v7354
  %v7448 = vpop.f32.mrf.mxu0
  %v7449 = vadd.f32 %v7400, %v7448
  %v7450 = vpop.f32.mrf.mxu0
  %v7451 = vadd.f32 %v7402, %v7450
  %7452 = vdwg.mxu0
  %7453 = vmatpush.bf16.msra.mxu0 %v743
  %7454 = vmatpush.bf16.msra.mxu0 %v741
  %7455 = vmatpush.bf16.msra.mxu0 %v739
  %7456 = vmatpush.bf16.msra.mxu0 %v737
  %7457 = vmatpush.bf16.msra.mxu0 %v735
  %7458 = vmatpush.bf16.msra.mxu0 %v733
  %7459 = vmatpush.bf16.msra.mxu0 %v731
  %7460 = vmatpush.bf16.msra.mxu0 %v729
  %7461 = vmatmul.bf16.gmra.mxu0 %v7339
  %v7462 = vpop.f32.mrf.mxu0
  %v7463 = vadd.f32 %v252, %v7462
  %v7464 = vpop.f32.mrf.mxu0
  %v7465 = vadd.f32 %v252, %v7464
  %7466 = vmatmul.bf16.gmra.mxu0 %v7341
  %v7467 = vpop.f32.mrf.mxu0
  %v7468 = vadd.f32 %v252, %v7467
  %v7469 = vpop.f32.mrf.mxu0
  %v7470 = vadd.f32 %v252, %v7469
  %7471 = vmatmul.bf16.gmra.mxu0 %v7343
  %v7472 = vpop.f32.mrf.mxu0
  %v7473 = vadd.f32 %v252, %v7472
  %v7474 = vpop.f32.mrf.mxu0
  %v7475 = vadd.f32 %v252, %v7474
  %7476 = vmatmul.bf16.gmra.mxu0 %v7345
  %v7477 = vpop.f32.mrf.mxu0
  %v7478 = vadd.f32 %v252, %v7477
  %v7479 = vpop.f32.mrf.mxu0
  %v7480 = vadd.f32 %v252, %v7479
  %7481 = vmatmul.bf16.gmra.mxu0 %v7347
  %v7482 = vpop.f32.mrf.mxu0
  %v7483 = vadd.f32 %v252, %v7482
  %v7484 = vpop.f32.mrf.mxu0
  %v7485 = vadd.f32 %v252, %v7484
  %7486 = vmatmul.bf16.gmra.mxu0 %v7349
  %v7487 = vpop.f32.mrf.mxu0
  %v7488 = vadd.f32 %v252, %v7487
  %v7489 = vpop.f32.mrf.mxu0
  %v7490 = vadd.f32 %v252, %v7489
  %7491 = vmatmul.bf16.gmra.mxu0 %v7351
  %v7492 = vpop.f32.mrf.mxu0
  %v7493 = vadd.f32 %v252, %v7492
  %v7494 = vpop.f32.mrf.mxu0
  %v7495 = vadd.f32 %v252, %v7494
  %7496 = vmatmul.bf16.gmra.mxu0 %v7353
  %v7497 = vpop.f32.mrf.mxu0
  %v7498 = vadd.f32 %v252, %v7497
  %v7499 = vpop.f32.mrf.mxu0
  %v7500 = vadd.f32 %v252, %v7499
  %7501 = vdwg.mxu0
  %7502 = vmatpush.bf16.msra.mxu0 %v759
  %7503 = vmatpush.bf16.msra.mxu0 %v757
  %7504 = vmatpush.bf16.msra.mxu0 %v755
  %7505 = vmatpush.bf16.msra.mxu0 %v753
  %7506 = vmatpush.bf16.msra.mxu0 %v751
  %7507 = vmatpush.bf16.msra.mxu0 %v749
  %7508 = vmatpush.bf16.msra.mxu0 %v747
  %7509 = vmatpush.bf16.msra.mxu0 %v745
  %7510 = vmatmul.bf16.gmra.mxu0 %v7340
  %v7511 = vpop.f32.mrf.mxu0
  %v7512 = vadd.f32 %v7463, %v7511
  %v7513 = vpop.f32.mrf.mxu0
  %v7514 = vadd.f32 %v7465, %v7513
  %7515 = vmatmul.bf16.gmra.mxu0 %v7342
  %v7516 = vpop.f32.mrf.mxu0
  %v7517 = vadd.f32 %v7468, %v7516
  %v7518 = vpop.f32.mrf.mxu0
  %v7519 = vadd.f32 %v7470, %v7518
  %7520 = vmatmul.bf16.gmra.mxu0 %v7344
  %v7521 = vpop.f32.mrf.mxu0
  %v7522 = vadd.f32 %v7473, %v7521
  %v7523 = vpop.f32.mrf.mxu0
  %v7524 = vadd.f32 %v7475, %v7523
  %7525 = vmatmul.bf16.gmra.mxu0 %v7346
  %v7526 = vpop.f32.mrf.mxu0
  %v7527 = vadd.f32 %v7478, %v7526
  %v7528 = vpop.f32.mrf.mxu0
  %v7529 = vadd.f32 %v7480, %v7528
  %7530 = vmatmul.bf16.gmra.mxu0 %v7348
  %v7531 = vpop.f32.mrf.mxu0
  %v7532 = vadd.f32 %v7483, %v7531
  %v7533 = vpop.f32.mrf.mxu0
  %v7534 = vadd.f32 %v7485, %v7533
  %7535 = vmatmul.bf16.gmra.mxu0 %v7350
  %v7536 = vpop.f32.mrf.mxu0
  %v7537 = vadd.f32 %v7488, %v7536
  %v7538 = vpop.f32.mrf.mxu0
  %v7539 = vadd.f32 %v7490, %v7538
  %7540 = vmatmul.bf16.gmra.mxu0 %v7352
  %v7541 = vpop.f32.mrf.mxu0
  %v7542 = vadd.f32 %v7493, %v7541
  %v7543 = vpop.f32.mrf.mxu0
  %v7544 = vadd.f32 %v7495, %v7543
  %7545 = vmatmul.bf16.gmra.mxu0 %v7354
  %v7546 = vpop.f32.mrf.mxu0
  %v7547 = vadd.f32 %v7498, %v7546
  %v7548 = vpop.f32.mrf.mxu0
  %v7549 = vadd.f32 %v7500, %v7548
  %7550 = vdwg.mxu0
  %v7551 = vmax.f32 %v7414, 0.0
  %v7552 = vmax.f32 %v7512, 0.0
  %v7553 = vmax.f32 %v7416, 0.0
  %v7554 = vmax.f32 %v7514, 0.0
  %v7555 = vmax.f32 %v7419, 0.0
  %v7556 = vmax.f32 %v7517, 0.0
  %v7557 = vmax.f32 %v7421, 0.0
  %v7558 = vmax.f32 %v7519, 0.0
  %v7559 = vmax.f32 %v7424, 0.0
  %v7560 = vmax.f32 %v7522, 0.0
  %v7561 = vmax.f32 %v7426, 0.0
  %v7562 = vmax.f32 %v7524, 0.0
  %v7563 = vmax.f32 %v7429, 0.0
  %v7564 = vmax.f32 %v7527, 0.0
  %v7565 = vmax.f32 %v7431, 0.0
  %v7566 = vmax.f32 %v7529, 0.0
  %v7567 = vmax.f32 %v7434, 0.0
  %v7568 = vmax.f32 %v7532, 0.0
  %v7569 = vmax.f32 %v7436, 0.0
  %v7570 = vmax.f32 %v7534, 0.0
  %v7571 = vmax.f32 %v7439, 0.0
  %v7572 = vmax.f32 %v7537, 0.0
  %v7573 = vmax.f32 %v7441, 0.0
  %v7574 = vmax.f32 %v7539, 0.0
  %v7575 = vmax.f32 %v7444, 0.0
  %v7576 = vmax.f32 %v7542, 0.0
  %v7577 = vmax.f32 %v7446, 0.0
  %v7578 = vmax.f32 %v7544, 0.0
  %v7579 = vmax.f32 %v7449, 0.0
  %v7580 = vmax.f32 %v7547, 0.0
  %v7581 = vmax.f32 %v7451, 0.0
  %v7582 = vmax.f32 %v7549, 0.0
  %v7583 = vpack.c.bf16 %v7553, %v7551
  %v7584 = vpack.c.bf16 %v7554, %v7552
  %v7585 = vpack.c.bf16 %v7557, %v7555
  %v7586 = vpack.c.bf16 %v7558, %v7556
  %v7587 = vpack.c.bf16 %v7561, %v7559
  %v7588 = vpack.c.bf16 %v7562, %v7560
  %v7589 = vpack.c.bf16 %v7565, %v7563
  %v7590 = vpack.c.bf16 %v7566, %v7564
  %v7591 = vpack.c.bf16 %v7569, %v7567
  %v7592 = vpack.c.bf16 %v7570, %v7568
  %v7593 = vpack.c.bf16 %v7573, %v7571
  %v7594 = vpack.c.bf16 %v7574, %v7572
  %v7595 = vpack.c.bf16 %v7577, %v7575
  %v7596 = vpack.c.bf16 %v7578, %v7576
  %v7597 = vpack.c.bf16 %v7581, %v7579
  %v7598 = vpack.c.bf16 %v7582, %v7580
  %7599 = vmatpush.bf16.msra.mxu0 %v1178
  %7600 = vmatpush.bf16.msra.mxu0 %v1176
  %7601 = vmatpush.bf16.msra.mxu0 %v1174
  %7602 = vmatpush.bf16.msra.mxu0 %v1172
  %7603 = vmatpush.bf16.msra.mxu0 %v1170
  %7604 = vmatpush.bf16.msra.mxu0 %v1168
  %7605 = vmatpush.bf16.msra.mxu0 %v1166
  %7606 = vmatpush.bf16.msra.mxu0 %v1164
  %7607 = vmatmul.bf16.gmra.mxu0 %v7583
  %v7608 = vpop.f32.mrf.mxu0
  %v7609 = vadd.f32 %v258, %v7608
  %v7610 = vpop.f32.mrf.mxu0
  %v7611 = vadd.f32 %v258, %v7610
  %7612 = vmatmul.bf16.gmra.mxu0 %v7585
  %v7613 = vpop.f32.mrf.mxu0
  %v7614 = vadd.f32 %v258, %v7613
  %v7615 = vpop.f32.mrf.mxu0
  %v7616 = vadd.f32 %v258, %v7615
  %7617 = vmatmul.bf16.gmra.mxu0 %v7587
  %v7618 = vpop.f32.mrf.mxu0
  %v7619 = vadd.f32 %v258, %v7618
  %v7620 = vpop.f32.mrf.mxu0
  %v7621 = vadd.f32 %v258, %v7620
  %7622 = vmatmul.bf16.gmra.mxu0 %v7589
  %v7623 = vpop.f32.mrf.mxu0
  %v7624 = vadd.f32 %v258, %v7623
  %v7625 = vpop.f32.mrf.mxu0
  %v7626 = vadd.f32 %v258, %v7625
  %7627 = vmatmul.bf16.gmra.mxu0 %v7591
  %v7628 = vpop.f32.mrf.mxu0
  %v7629 = vadd.f32 %v258, %v7628
  %v7630 = vpop.f32.mrf.mxu0
  %v7631 = vadd.f32 %v258, %v7630
  %7632 = vmatmul.bf16.gmra.mxu0 %v7593
  %v7633 = vpop.f32.mrf.mxu0
  %v7634 = vadd.f32 %v258, %v7633
  %v7635 = vpop.f32.mrf.mxu0
  %v7636 = vadd.f32 %v258, %v7635
  %7637 = vmatmul.bf16.gmra.mxu0 %v7595
  %v7638 = vpop.f32.mrf.mxu0
  %v7639 = vadd.f32 %v258, %v7638
  %v7640 = vpop.f32.mrf.mxu0
  %v7641 = vadd.f32 %v258, %v7640
  %7642 = vmatmul.bf16.gmra.mxu0 %v7597
  %v7643 = vpop.f32.mrf.mxu0
  %v7644 = vadd.f32 %v258, %v7643
  %v7645 = vpop.f32.mrf.mxu0
  %v7646 = vadd.f32 %v258, %v7645
  %7647 = vdwg.mxu0
  %7648 = vmatpush.bf16.msra.mxu0 %v1194
  %7649 = vmatpush.bf16.msra.mxu0 %v1192
  %7650 = vmatpush.bf16.msra.mxu0 %v1190
  %7651 = vmatpush.bf16.msra.mxu0 %v1188
  %7652 = vmatpush.bf16.msra.mxu0 %v1186
  %7653 = vmatpush.bf16.msra.mxu0 %v1184
  %7654 = vmatpush.bf16.msra.mxu0 %v1182
  %7655 = vmatpush.bf16.msra.mxu0 %v1180
  %7656 = vmatmul.bf16.gmra.mxu0 %v7584
  %v7657 = vpop.f32.mrf.mxu0
  %v7658 = vadd.f32 %v7609, %v7657
  %v7659 = vpop.f32.mrf.mxu0
  %v7660 = vadd.f32 %v7611, %v7659
  %7661 = vmatmul.bf16.gmra.mxu0 %v7586
  %v7662 = vpop.f32.mrf.mxu0
  %v7663 = vadd.f32 %v7614, %v7662
  %v7664 = vpop.f32.mrf.mxu0
  %v7665 = vadd.f32 %v7616, %v7664
  %7666 = vmatmul.bf16.gmra.mxu0 %v7588
  %v7667 = vpop.f32.mrf.mxu0
  %v7668 = vadd.f32 %v7619, %v7667
  %v7669 = vpop.f32.mrf.mxu0
  %v7670 = vadd.f32 %v7621, %v7669
  %7671 = vmatmul.bf16.gmra.mxu0 %v7590
  %v7672 = vpop.f32.mrf.mxu0
  %v7673 = vadd.f32 %v7624, %v7672
  %v7674 = vpop.f32.mrf.mxu0
  %v7675 = vadd.f32 %v7626, %v7674
  %7676 = vmatmul.bf16.gmra.mxu0 %v7592
  %v7677 = vpop.f32.mrf.mxu0
  %v7678 = vadd.f32 %v7629, %v7677
  %v7679 = vpop.f32.mrf.mxu0
  %v7680 = vadd.f32 %v7631, %v7679
  %7681 = vmatmul.bf16.gmra.mxu0 %v7594
  %v7682 = vpop.f32.mrf.mxu0
  %v7683 = vadd.f32 %v7634, %v7682
  %v7684 = vpop.f32.mrf.mxu0
  %v7685 = vadd.f32 %v7636, %v7684
  %7686 = vmatmul.bf16.gmra.mxu0 %v7596
  %v7687 = vpop.f32.mrf.mxu0
  %v7688 = vadd.f32 %v7639, %v7687
  %v7689 = vpop.f32.mrf.mxu0
  %v7690 = vadd.f32 %v7641, %v7689
  %7691 = vmatmul.bf16.gmra.mxu0 %v7598
  %v7692 = vpop.f32.mrf.mxu0
  %v7693 = vadd.f32 %v7644, %v7692
  %v7694 = vpop.f32.mrf.mxu0
  %v7695 = vadd.f32 %v7646, %v7694
  %7696 = vdwg.mxu0
  %7697 = vmatpush.bf16.msra.mxu0 %v1179
  %7698 = vmatpush.bf16.msra.mxu0 %v1177
  %7699 = vmatpush.bf16.msra.mxu0 %v1175
  %7700 = vmatpush.bf16.msra.mxu0 %v1173
  %7701 = vmatpush.bf16.msra.mxu0 %v1171
  %7702 = vmatpush.bf16.msra.mxu0 %v1169
  %7703 = vmatpush.bf16.msra.mxu0 %v1167
  %7704 = vmatpush.bf16.msra.mxu0 %v1165
  %7705 = vmatmul.bf16.gmra.mxu0 %v7583
  %v7706 = vpop.f32.mrf.mxu0
  %v7707 = vadd.f32 %v259, %v7706
  %v7708 = vpop.f32.mrf.mxu0
  %v7709 = vadd.f32 %v259, %v7708
  %7710 = vmatmul.bf16.gmra.mxu0 %v7585
  %v7711 = vpop.f32.mrf.mxu0
  %v7712 = vadd.f32 %v259, %v7711
  %v7713 = vpop.f32.mrf.mxu0
  %v7714 = vadd.f32 %v259, %v7713
  %7715 = vmatmul.bf16.gmra.mxu0 %v7587
  %v7716 = vpop.f32.mrf.mxu0
  %v7717 = vadd.f32 %v259, %v7716
  %v7718 = vpop.f32.mrf.mxu0
  %v7719 = vadd.f32 %v259, %v7718
  %7720 = vmatmul.bf16.gmra.mxu0 %v7589
  %v7721 = vpop.f32.mrf.mxu0
  %v7722 = vadd.f32 %v259, %v7721
  %v7723 = vpop.f32.mrf.mxu0
  %v7724 = vadd.f32 %v259, %v7723
  %7725 = vmatmul.bf16.gmra.mxu0 %v7591
  %v7726 = vpop.f32.mrf.mxu0
  %v7727 = vadd.f32 %v259, %v7726
  %v7728 = vpop.f32.mrf.mxu0
  %v7729 = vadd.f32 %v259, %v7728
  %7730 = vmatmul.bf16.gmra.mxu0 %v7593
  %v7731 = vpop.f32.mrf.mxu0
  %v7732 = vadd.f32 %v259, %v7731
  %v7733 = vpop.f32.mrf.mxu0
  %v7734 = vadd.f32 %v259, %v7733
  %7735 = vmatmul.bf16.gmra.mxu0 %v7595
  %v7736 = vpop.f32.mrf.mxu0
  %v7737 = vadd.f32 %v259, %v7736
  %v7738 = vpop.f32.mrf.mxu0
  %v7739 = vadd.f32 %v259, %v7738
  %7740 = vmatmul.bf16.gmra.mxu0 %v7597
  %v7741 = vpop.f32.mrf.mxu0
  %v7742 = vadd.f32 %v259, %v7741
  %v7743 = vpop.f32.mrf.mxu0
  %v7744 = vadd.f32 %v259, %v7743
  %7745 = vdwg.mxu0
  %7746 = vmatpush.bf16.msra.mxu0 %v1195
  %7747 = vmatpush.bf16.msra.mxu0 %v1193
  %7748 = vmatpush.bf16.msra.mxu0 %v1191
  %7749 = vmatpush.bf16.msra.mxu0 %v1189
  %7750 = vmatpush.bf16.msra.mxu0 %v1187
  %7751 = vmatpush.bf16.msra.mxu0 %v1185
  %7752 = vmatpush.bf16.msra.mxu0 %v1183
  %7753 = vmatpush.bf16.msra.mxu0 %v1181
  %7754 = vmatmul.bf16.gmra.mxu0 %v7584
  %v7755 = vpop.f32.mrf.mxu0
  %v7756 = vadd.f32 %v7707, %v7755
  %v7757 = vpop.f32.mrf.mxu0
  %v7758 = vadd.f32 %v7709, %v7757
  %7759 = vmatmul.bf16.gmra.mxu0 %v7586
  %v7760 = vpop.f32.mrf.mxu0
  %v7761 = vadd.f32 %v7712, %v7760
  %v7762 = vpop.f32.mrf.mxu0
  %v7763 = vadd.f32 %v7714, %v7762
  %7764 = vmatmul.bf16.gmra.mxu0 %v7588
  %v7765 = vpop.f32.mrf.mxu0
  %v7766 = vadd.f32 %v7717, %v7765
  %v7767 = vpop.f32.mrf.mxu0
  %v7768 = vadd.f32 %v7719, %v7767
  %7769 = vmatmul.bf16.gmra.mxu0 %v7590
  %v7770 = vpop.f32.mrf.mxu0
  %v7771 = vadd.f32 %v7722, %v7770
  %v7772 = vpop.f32.mrf.mxu0
  %v7773 = vadd.f32 %v7724, %v7772
  %7774 = vmatmul.bf16.gmra.mxu0 %v7592
  %v7775 = vpop.f32.mrf.mxu0
  %v7776 = vadd.f32 %v7727, %v7775
  %v7777 = vpop.f32.mrf.mxu0
  %v7778 = vadd.f32 %v7729, %v7777
  %7779 = vmatmul.bf16.gmra.mxu0 %v7594
  %v7780 = vpop.f32.mrf.mxu0
  %v7781 = vadd.f32 %v7732, %v7780
  %v7782 = vpop.f32.mrf.mxu0
  %v7783 = vadd.f32 %v7734, %v7782
  %7784 = vmatmul.bf16.gmra.mxu0 %v7596
  %v7785 = vpop.f32.mrf.mxu0
  %v7786 = vadd.f32 %v7737, %v7785
  %v7787 = vpop.f32.mrf.mxu0
  %v7788 = vadd.f32 %v7739, %v7787
  %7789 = vmatmul.bf16.gmra.mxu0 %v7598
  %v7790 = vpop.f32.mrf.mxu0
  %v7791 = vadd.f32 %v7742, %v7790
  %v7792 = vpop.f32.mrf.mxu0
  %v7793 = vadd.f32 %v7744, %v7792
  %7794 = vdwg.mxu0
  %v7795 = vmax.f32 %v7658, 0.0
  %v7796 = vmax.f32 %v7756, 0.0
  %v7797 = vmax.f32 %v7660, 0.0
  %v7798 = vmax.f32 %v7758, 0.0
  %v7799 = vmax.f32 %v7663, 0.0
  %v7800 = vmax.f32 %v7761, 0.0
  %v7801 = vmax.f32 %v7665, 0.0
  %v7802 = vmax.f32 %v7763, 0.0
  %v7803 = vmax.f32 %v7668, 0.0
  %v7804 = vmax.f32 %v7766, 0.0
  %v7805 = vmax.f32 %v7670, 0.0
  %v7806 = vmax.f32 %v7768, 0.0
  %v7807 = vmax.f32 %v7673, 0.0
  %v7808 = vmax.f32 %v7771, 0.0
  %v7809 = vmax.f32 %v7675, 0.0
  %v7810 = vmax.f32 %v7773, 0.0
  %v7811 = vmax.f32 %v7678, 0.0
  %v7812 = vmax.f32 %v7776, 0.0
  %v7813 = vmax.f32 %v7680, 0.0
  %v7814 = vmax.f32 %v7778, 0.0
  %v7815 = vmax.f32 %v7683, 0.0
  %v7816 = vmax.f32 %v7781, 0.0
  %v7817 = vmax.f32 %v7685, 0.0
  %v7818 = vmax.f32 %v7783, 0.0
  %v7819 = vmax.f32 %v7688, 0.0
  %v7820 = vmax.f32 %v7786, 0.0
  %v7821 = vmax.f32 %v7690, 0.0
  %v7822 = vmax.f32 %v7788, 0.0
  %v7823 = vmax.f32 %v7693, 0.0
  %v7824 = vmax.f32 %v7791, 0.0
  %v7825 = vmax.f32 %v7695, 0.0
  %v7826 = vmax.f32 %v7793, 0.0
  %v7827 = vpack.c.bf16 %v7797, %v7795
  %v7828 = vpack.c.bf16 %v7801, %v7799
  %v7829 = vpack.c.bf16 %v7805, %v7803
  %v7830 = vpack.c.bf16 %v7809, %v7807
  %v7831 = vpack.c.bf16 %v7813, %v7811
  %v7832 = vpack.c.bf16 %v7817, %v7815
  %v7833 = vpack.c.bf16 %v7821, %v7819
  %v7834 = vpack.c.bf16 %v7825, %v7823
  %7835 = vmatpush.bf16.msra.mxu0 %v1519
  %7836 = vmatpush.bf16.msra.mxu0 %v1518
  %7837 = vmatpush.bf16.msra.mxu0 %v1517
  %7838 = vmatpush.bf16.msra.mxu0 %v1516
  %7839 = vmatpush.bf16.msra.mxu0 %v1515
  %7840 = vmatpush.bf16.msra.mxu0 %v1514
  %7841 = vmatpush.bf16.msra.mxu0 %v1513
  %7842 = vmatpush.bf16.msra.mxu0 %v1512
  %7843 = vmatmul.bf16.gmra.mxu0 %v7827
  %v7844 = vpop.f32.mrf.mxu0
  %v7845 = vadd.f32 %v262, %v7844
  %v7846 = vpop.f32.mrf.mxu0
  %v7847 = vadd.f32 %v262, %v7846
  %7848 = vmatmul.bf16.gmra.mxu0 %v7828
  %v7849 = vpop.f32.mrf.mxu0
  %v7850 = vadd.f32 %v262, %v7849
  %v7851 = vpop.f32.mrf.mxu0
  %v7852 = vadd.f32 %v262, %v7851
  %7853 = vmatmul.bf16.gmra.mxu0 %v7829
  %v7854 = vpop.f32.mrf.mxu0
  %v7855 = vadd.f32 %v262, %v7854
  %v7856 = vpop.f32.mrf.mxu0
  %v7857 = vadd.f32 %v262, %v7856
  %7858 = vmatmul.bf16.gmra.mxu0 %v7830
  %v7859 = vpop.f32.mrf.mxu0
  %v7860 = vadd.f32 %v262, %v7859
  %v7861 = vpop.f32.mrf.mxu0
  %v7862 = vadd.f32 %v262, %v7861
  %7863 = vmatmul.bf16.gmra.mxu0 %v7831
  %v7864 = vpop.f32.mrf.mxu0
  %v7865 = vadd.f32 %v262, %v7864
  %v7866 = vpop.f32.mrf.mxu0
  %v7867 = vadd.f32 %v262, %v7866
  %7868 = vmatmul.bf16.gmra.mxu0 %v7832
  %v7869 = vpop.f32.mrf.mxu0
  %v7870 = vadd.f32 %v262, %v7869
  %v7871 = vpop.f32.mrf.mxu0
  %v7872 = vadd.f32 %v262, %v7871
  %7873 = vmatmul.bf16.gmra.mxu0 %v7833
  %v7874 = vpop.f32.mrf.mxu0
  %v7875 = vadd.f32 %v262, %v7874
  %v7876 = vpop.f32.mrf.mxu0
  %v7877 = vadd.f32 %v262, %v7876
  %7878 = vmatmul.bf16.gmra.mxu0 %v7834
  %v7879 = vpop.f32.mrf.mxu0
  %v7880 = vadd.f32 %v262, %v7879
  %v7881 = vpop.f32.mrf.mxu0
  %v7882 = vadd.f32 %v262, %v7881
  %7883 = vdwg.mxu0
  %v7884 = vmax.f32 %v7845, 0.0
  %v7885 = vmax.f32 %v7847, 0.0
  %v7886 = vmax.f32 %v7850, 0.0
  %v7887 = vmax.f32 %v7852, 0.0
  %v7888 = vmax.f32 %v7855, 0.0
  %v7889 = vmax.f32 %v7857, 0.0
  %v7890 = vmax.f32 %v7860, 0.0
  %v7891 = vmax.f32 %v7862, 0.0
  %v7892 = vmax.f32 %v7865, 0.0
  %v7893 = vmax.f32 %v7867, 0.0
  %v7894 = vmax.f32 %v7870, 0.0
  %v7895 = vmax.f32 %v7872, 0.0
  %v7896 = vmax.f32 %v7875, 0.0
  %v7897 = vmax.f32 %v7877, 0.0
  %v7898 = vmax.f32 %v7880, 0.0
  %v7899 = vmax.f32 %v7882, 0.0
  %v7900 = vpack.c.bf16 %v7885, %v7884
  %v7901 = vpack.c.bf16 %v7798, %v7796
  %v7902 = vpack.c.bf16 %v7887, %v7886
  %v7903 = vpack.c.bf16 %v7802, %v7800
  %v7904 = vpack.c.bf16 %v7889, %v7888
  %v7905 = vpack.c.bf16 %v7806, %v7804
  %v7906 = vpack.c.bf16 %v7891, %v7890
  %v7907 = vpack.c.bf16 %v7810, %v7808
  %v7908 = vpack.c.bf16 %v7893, %v7892
  %v7909 = vpack.c.bf16 %v7814, %v7812
  %v7910 = vpack.c.bf16 %v7895, %v7894
  %v7911 = vpack.c.bf16 %v7818, %v7816
  %v7912 = vpack.c.bf16 %v7897, %v7896
  %v7913 = vpack.c.bf16 %v7822, %v7820
  %v7914 = vpack.c.bf16 %v7899, %v7898
  %v7915 = vpack.c.bf16 %v7826, %v7824
  %7916 = vmatpush.bf16.msra.mxu0 %v1712
  %7917 = vmatpush.bf16.msra.mxu0 %v1711
  %7918 = vmatpush.bf16.msra.mxu0 %v1710
  %7919 = vmatpush.bf16.msra.mxu0 %v1709
  %7920 = vmatpush.bf16.msra.mxu0 %v1708
  %7921 = vmatpush.bf16.msra.mxu0 %v1707
  %7922 = vmatpush.bf16.msra.mxu0 %v1706
  %7923 = vmatpush.bf16.msra.mxu0 %v1705
  %7924 = vmatmul.bf16.gmra.mxu0 %v7900
  %v7925 = vpop.f32.mrf.mxu0
  %v7926 = vadd.f32 %v263, %v7925
  %v7927 = vpop.f32.mrf.mxu0
  %v7928 = vadd.f32 %v263, %v7927
  %7929 = vmatmul.bf16.gmra.mxu0 %v7902
  %v7930 = vpop.f32.mrf.mxu0
  %v7931 = vadd.f32 %v263, %v7930
  %v7932 = vpop.f32.mrf.mxu0
  %v7933 = vadd.f32 %v263, %v7932
  %7934 = vmatmul.bf16.gmra.mxu0 %v7904
  %v7935 = vpop.f32.mrf.mxu0
  %v7936 = vadd.f32 %v263, %v7935
  %v7937 = vpop.f32.mrf.mxu0
  %v7938 = vadd.f32 %v263, %v7937
  %7939 = vmatmul.bf16.gmra.mxu0 %v7906
  %v7940 = vpop.f32.mrf.mxu0
  %v7941 = vadd.f32 %v263, %v7940
  %v7942 = vpop.f32.mrf.mxu0
  %v7943 = vadd.f32 %v263, %v7942
  %7944 = vmatmul.bf16.gmra.mxu0 %v7908
  %v7945 = vpop.f32.mrf.mxu0
  %v7946 = vadd.f32 %v263, %v7945
  %v7947 = vpop.f32.mrf.mxu0
  %v7948 = vadd.f32 %v263, %v7947
  %7949 = vmatmul.bf16.gmra.mxu0 %v7910
  %v7950 = vpop.f32.mrf.mxu0
  %v7951 = vadd.f32 %v263, %v7950
  %v7952 = vpop.f32.mrf.mxu0
  %v7953 = vadd.f32 %v263, %v7952
  %7954 = vmatmul.bf16.gmra.mxu0 %v7912
  %v7955 = vpop.f32.mrf.mxu0
  %v7956 = vadd.f32 %v263, %v7955
  %v7957 = vpop.f32.mrf.mxu0
  %v7958 = vadd.f32 %v263, %v7957
  %7959 = vmatmul.bf16.gmra.mxu0 %v7914
  %v7960 = vpop.f32.mrf.mxu0
  %v7961 = vadd.f32 %v263, %v7960
  %v7962 = vpop.f32.mrf.mxu0
  %v7963 = vadd.f32 %v263, %v7962
  %7964 = vdwg.mxu0
  %7965 = vmatpush.bf16.msra.mxu0 %v1720
  %7966 = vmatpush.bf16.msra.mxu0 %v1719
  %7967 = vmatpush.bf16.msra.mxu0 %v1718
  %7968 = vmatpush.bf16.msra.mxu0 %v1717
  %7969 = vmatpush.bf16.msra.mxu0 %v1716
  %7970 = vmatpush.bf16.msra.mxu0 %v1715
  %7971 = vmatpush.bf16.msra.mxu0 %v1714
  %7972 = vmatpush.bf16.msra.mxu0 %v1713
  %7973 = vmatmul.bf16.gmra.mxu0 %v7901
  %v7974 = vpop.f32.mrf.mxu0
  %v7975 = vadd.f32 %v7926, %v7974
  %v7976 = vpop.f32.mrf.mxu0
  %v7977 = vadd.f32 %v7928, %v7976
  %7978 = vmatmul.bf16.gmra.mxu0 %v7903
  %v7979 = vpop.f32.mrf.mxu0
  %v7980 = vadd.f32 %v7931, %v7979
  %v7981 = vpop.f32.mrf.mxu0
  %v7982 = vadd.f32 %v7933, %v7981
  %7983 = vmatmul.bf16.gmra.mxu0 %v7905
  %v7984 = vpop.f32.mrf.mxu0
  %v7985 = vadd.f32 %v7936, %v7984
  %v7986 = vpop.f32.mrf.mxu0
  %v7987 = vadd.f32 %v7938, %v7986
  %7988 = vmatmul.bf16.gmra.mxu0 %v7907
  %v7989 = vpop.f32.mrf.mxu0
  %v7990 = vadd.f32 %v7941, %v7989
  %v7991 = vpop.f32.mrf.mxu0
  %v7992 = vadd.f32 %v7943, %v7991
  %7993 = vmatmul.bf16.gmra.mxu0 %v7909
  %v7994 = vpop.f32.mrf.mxu0
  %v7995 = vadd.f32 %v7946, %v7994
  %v7996 = vpop.f32.mrf.mxu0
  %v7997 = vadd.f32 %v7948, %v7996
  %7998 = vmatmul.bf16.gmra.mxu0 %v7911
  %v7999 = vpop.f32.mrf.mxu0
  %v8000 = vadd.f32 %v7951, %v7999
  %v8001 = vpop.f32.mrf.mxu0
  %v8002 = vadd.f32 %v7953, %v8001
  %8003 = vmatmul.bf16.gmra.mxu0 %v7913
  %v8004 = vpop.f32.mrf.mxu0
  %v8005 = vadd.f32 %v7956, %v8004
  %v8006 = vpop.f32.mrf.mxu0
  %v8007 = vadd.f32 %v7958, %v8006
  %8008 = vmatmul.bf16.gmra.mxu0 %v7915
  %v8009 = vpop.f32.mrf.mxu0
  %v8010 = vadd.f32 %v7961, %v8009
  %v8011 = vpop.f32.mrf.mxu0
  %v8012 = vadd.f32 %v7963, %v8011
  %8013 = vdwg.mxu0
  %s8014 = scalar_lea.vmem %s2, 640
  %v8015 = vld [vmem:[%s8014] sm:$0xff]
  %v8016 = vld [vmem:[%s8014 + $0x8] sm:$0xff]
  %v8017 = vld [vmem:[%s8014 + $0x10] sm:$0xff]
  %v8018 = vld [vmem:[%s8014 + $0x18] sm:$0xff]
  %v8019 = vld [vmem:[%s8014 + $0x20] sm:$0xff]
  %v8020 = vld [vmem:[%s8014 + $0x28] sm:$0xff]
  %v8021 = vld [vmem:[%s8014 + $0x30] sm:$0xff]
  %v8022 = vld [vmem:[%s8014 + $0x38] sm:$0xff]
  %v8023 = vld [vmem:[%s8014 + $0x40] sm:$0xff]
  %v8024 = vld [vmem:[%s8014 + $0x48] sm:$0xff]
  %v8025 = vld [vmem:[%s8014 + $0x50] sm:$0xff]
  %v8026 = vld [vmem:[%s8014 + $0x58] sm:$0xff]
  %v8027 = vld [vmem:[%s8014 + $0x60] sm:$0xff]
  %v8028 = vld [vmem:[%s8014 + $0x68] sm:$0xff]
  %v8029 = vld [vmem:[%s8014 + $0x70] sm:$0xff]
  %v8030 = vld [vmem:[%s8014 + $0x78] sm:$0xff]
  %v8031 = vmul.f32 %v1854, %v8015
  %v8032 = vmul.f32 %v1859, %v8016
  %v8033 = vmul.f32 %v1864, %v8017
  %v8034 = vmul.f32 %v1869, %v8018
  %v8035 = vmul.f32 %v1874, %v8019
  %v8036 = vmul.f32 %v1879, %v8020
  %v8037 = vmul.f32 %v1884, %v8021
  %v8038 = vmul.f32 %v1889, %v8022
  %v8039 = vmul.f32 %v1894, %v8023
  %v8040 = vmul.f32 %v1899, %v8024
  %v8041 = vmul.f32 %v1904, %v8025
  %v8042 = vmul.f32 %v1909, %v8026
  %v8043 = vmul.f32 %v1914, %v8027
  %v8044 = vmul.f32 %v1919, %v8028
  %v8045 = vmul.f32 %v1924, %v8029
  %v8046 = vmul.f32 %v1929, %v8030
  %v8047 = vmul.f32 %v7975, %v1950
  %v8048 = vmul.f32 %v7977, %v1955
  %v8049 = vmul.f32 %v7980, %v1960
  %v8050 = vmul.f32 %v7982, %v1965
  %v8051 = vmul.f32 %v7985, %v1970
  %v8052 = vmul.f32 %v7987, %v1975
  %v8053 = vmul.f32 %v7990, %v1980
  %v8054 = vmul.f32 %v7992, %v1985
  %v8055 = vmul.f32 %v7995, %v1990
  %v8056 = vmul.f32 %v7997, %v1995
  %v8057 = vmul.f32 %v8000, %v2000
  %v8058 = vmul.f32 %v8002, %v2005
  %v8059 = vmul.f32 %v8005, %v2010
  %v8060 = vmul.f32 %v8007, %v2015
  %v8061 = vmul.f32 %v8010, %v2020
  %v8062 = vmul.f32 %v8012, %v2025
  %v8063 = vadd.f32 %v7019, %v8047
  %v8064 = vadd.f32 %v7020, %v8048
  %v8065 = vadd.f32 %v7021, %v8049
  %v8066 = vadd.f32 %v7022, %v8050
  %v8067 = vadd.f32 %v7023, %v8051
  %v8068 = vadd.f32 %v7024, %v8052
  %v8069 = vadd.f32 %v7025, %v8053
  %v8070 = vadd.f32 %v7026, %v8054
  %v8071 = vadd.f32 %v7027, %v8055
  %v8072 = vadd.f32 %v7028, %v8056
  %v8073 = vadd.f32 %v7029, %v8057
  %v8074 = vadd.f32 %v7030, %v8058
  %v8075 = vadd.f32 %v7031, %v8059
  %v8076 = vadd.f32 %v7032, %v8060
  %v8077 = vadd.f32 %v7033, %v8061
  %v8078 = vadd.f32 %v7034, %v8062
  %8095 = vrot.lane.b32.xlu0 %v8031, 2
  %v8096 = vpop.permute.xlu0 %8095
  %8097 = vrot.lane.b32.xlu0 %v8032, 2
  %v8098 = vpop.permute.xlu0 %8097
  %8099 = vrot.lane.b32.xlu0 %v8033, 2
  %v8100 = vpop.permute.xlu0 %8099
  %8101 = vrot.lane.b32.xlu0 %v8034, 2
  %v8102 = vpop.permute.xlu0 %8101
  %8103 = vrot.lane.b32.xlu0 %v8035, 2
  %v8104 = vpop.permute.xlu0 %8103
  %8105 = vrot.lane.b32.xlu0 %v8036, 2
  %v8106 = vpop.permute.xlu0 %8105
  %8107 = vrot.lane.b32.xlu0 %v8037, 2
  %v8108 = vpop.permute.xlu0 %8107
  %8109 = vrot.lane.b32.xlu0 %v8038, 2
  %v8110 = vpop.permute.xlu0 %8109
  %8111 = vrot.lane.b32.xlu0 %v8039, 2
  %v8112 = vpop.permute.xlu0 %8111
  %8113 = vrot.lane.b32.xlu0 %v8040, 2
  %v8114 = vpop.permute.xlu0 %8113
  %8115 = vrot.lane.b32.xlu0 %v8041, 2
  %v8116 = vpop.permute.xlu0 %8115
  %8117 = vrot.lane.b32.xlu0 %v8042, 2
  %v8118 = vpop.permute.xlu0 %8117
  %8119 = vrot.lane.b32.xlu0 %v8043, 2
  %v8120 = vpop.permute.xlu0 %8119
  %8121 = vrot.lane.b32.xlu0 %v8044, 2
  %v8122 = vpop.permute.xlu0 %8121
  %8123 = vrot.lane.b32.xlu0 %v8045, 2
  %v8124 = vpop.permute.xlu0 %8123
  %8125 = vrot.lane.b32.xlu0 %v8046, 2
  %v8126 = vpop.permute.xlu0 %8125
  %v8143 = vmul.f32 %v7975, %v8096
  %v8144 = vmul.f32 %v7977, %v8098
  %v8145 = vmul.f32 %v7980, %v8100
  %v8146 = vmul.f32 %v7982, %v8102
  %v8147 = vmul.f32 %v7985, %v8104
  %v8148 = vmul.f32 %v7987, %v8106
  %v8149 = vmul.f32 %v7990, %v8108
  %v8150 = vmul.f32 %v7992, %v8110
  %v8151 = vmul.f32 %v7995, %v8112
  %v8152 = vmul.f32 %v7997, %v8114
  %v8153 = vmul.f32 %v8000, %v8116
  %v8154 = vmul.f32 %v8002, %v8118
  %v8155 = vmul.f32 %v8005, %v8120
  %v8156 = vmul.f32 %v8007, %v8122
  %v8157 = vmul.f32 %v8010, %v8124
  %v8158 = vmul.f32 %v8012, %v8126
  %8175 = vrot.lane.b32.xlu0 %v8143, 126
  %v8176 = vpop.permute.xlu0 %8175
  %8177 = vrot.lane.b32.xlu0 %v8144, 126
  %v8178 = vpop.permute.xlu0 %8177
  %8179 = vrot.lane.b32.xlu0 %v8145, 126
  %v8180 = vpop.permute.xlu0 %8179
  %8181 = vrot.lane.b32.xlu0 %v8146, 126
  %v8182 = vpop.permute.xlu0 %8181
  %8183 = vrot.lane.b32.xlu0 %v8147, 126
  %v8184 = vpop.permute.xlu0 %8183
  %8185 = vrot.lane.b32.xlu0 %v8148, 126
  %v8186 = vpop.permute.xlu0 %8185
  %8187 = vrot.lane.b32.xlu0 %v8149, 126
  %v8188 = vpop.permute.xlu0 %8187
  %8189 = vrot.lane.b32.xlu0 %v8150, 126
  %v8190 = vpop.permute.xlu0 %8189
  %8191 = vrot.lane.b32.xlu0 %v8151, 126
  %v8192 = vpop.permute.xlu0 %8191
  %8193 = vrot.lane.b32.xlu0 %v8152, 126
  %v8194 = vpop.permute.xlu0 %8193
  %8195 = vrot.lane.b32.xlu0 %v8153, 126
  %v8196 = vpop.permute.xlu0 %8195
  %8197 = vrot.lane.b32.xlu0 %v8154, 126
  %v8198 = vpop.permute.xlu0 %8197
  %8199 = vrot.lane.b32.xlu0 %v8155, 126
  %v8200 = vpop.permute.xlu0 %8199
  %8201 = vrot.lane.b32.xlu0 %v8156, 126
  %v8202 = vpop.permute.xlu0 %8201
  %8203 = vrot.lane.b32.xlu0 %v8157, 126
  %v8204 = vpop.permute.xlu0 %8203
  %8205 = vrot.lane.b32.xlu0 %v8158, 126
  %v8206 = vpop.permute.xlu0 %8205
  %v8223 = vadd.f32 %v8063, %v8176
  %v8224 = vadd.f32 %v8064, %v8178
  %v8225 = vadd.f32 %v8065, %v8180
  %v8226 = vadd.f32 %v8066, %v8182
  %v8227 = vadd.f32 %v8067, %v8184
  %v8228 = vadd.f32 %v8068, %v8186
  %v8229 = vadd.f32 %v8069, %v8188
  %v8230 = vadd.f32 %v8070, %v8190
  %v8231 = vadd.f32 %v8071, %v8192
  %v8232 = vadd.f32 %v8072, %v8194
  %v8233 = vadd.f32 %v8073, %v8196
  %v8234 = vadd.f32 %v8074, %v8198
  %v8235 = vadd.f32 %v8075, %v8200
  %v8236 = vadd.f32 %v8076, %v8202
  %v8237 = vadd.f32 %v8077, %v8204
  %v8238 = vadd.f32 %v8078, %v8206
  %8240 = vset.pattern.permute.xlu0 0
  %8241 = vperm.xlu0 %8240, %v8223
  %v8242 = vpop.permute.xlu0 %8241
  %8245 = vset.pattern.permute.xlu0 0
  %8246 = vperm.xlu0 %8245, %v8224
  %v8247 = vpop.permute.xlu0 %8246
  %8250 = vset.pattern.permute.xlu0 0
  %8251 = vperm.xlu0 %8250, %v8225
  %v8252 = vpop.permute.xlu0 %8251
  %8255 = vset.pattern.permute.xlu0 0
  %8256 = vperm.xlu0 %8255, %v8226
  %v8257 = vpop.permute.xlu0 %8256
  %8260 = vset.pattern.permute.xlu0 0
  %8261 = vperm.xlu0 %8260, %v8227
  %v8262 = vpop.permute.xlu0 %8261
  %8265 = vset.pattern.permute.xlu0 0
  %8266 = vperm.xlu0 %8265, %v8228
  %v8267 = vpop.permute.xlu0 %8266
  %8270 = vset.pattern.permute.xlu0 0
  %8271 = vperm.xlu0 %8270, %v8229
  %v8272 = vpop.permute.xlu0 %8271
  %8275 = vset.pattern.permute.xlu0 0
  %8276 = vperm.xlu0 %8275, %v8230
  %v8277 = vpop.permute.xlu0 %8276
  %8280 = vset.pattern.permute.xlu0 0
  %8281 = vperm.xlu0 %8280, %v8231
  %v8282 = vpop.permute.xlu0 %8281
  %8285 = vset.pattern.permute.xlu0 0
  %8286 = vperm.xlu0 %8285, %v8232
  %v8287 = vpop.permute.xlu0 %8286
  %8290 = vset.pattern.permute.xlu0 0
  %8291 = vperm.xlu0 %8290, %v8233
  %v8292 = vpop.permute.xlu0 %8291
  %8295 = vset.pattern.permute.xlu0 0
  %8296 = vperm.xlu0 %8295, %v8234
  %v8297 = vpop.permute.xlu0 %8296
  %8300 = vset.pattern.permute.xlu0 0
  %8301 = vperm.xlu0 %8300, %v8235
  %v8302 = vpop.permute.xlu0 %8301
  %8305 = vset.pattern.permute.xlu0 0
  %8306 = vperm.xlu0 %8305, %v8236
  %v8307 = vpop.permute.xlu0 %8306
  %8310 = vset.pattern.permute.xlu0 0
  %8311 = vperm.xlu0 %8310, %v8237
  %v8312 = vpop.permute.xlu0 %8311
  %8315 = vset.pattern.permute.xlu0 0
  %8316 = vperm.xlu0 %8315, %v8238
  %v8317 = vpop.permute.xlu0 %8316
  %v8319 = vmul.f32 %v8242, %v230
  %v8320 = vmul.f32 %v8242, %v231
  %v8321 = vmul.f32 %v8247, %v230
  %v8322 = vmul.f32 %v8247, %v231
  %v8323 = vmul.f32 %v8252, %v230
  %v8324 = vmul.f32 %v8252, %v231
  %v8325 = vmul.f32 %v8257, %v230
  %v8326 = vmul.f32 %v8257, %v231
  %v8327 = vmul.f32 %v8262, %v230
  %v8328 = vmul.f32 %v8262, %v231
  %v8329 = vmul.f32 %v8267, %v230
  %v8330 = vmul.f32 %v8267, %v231
  %v8331 = vmul.f32 %v8272, %v230
  %v8332 = vmul.f32 %v8272, %v231
  %v8333 = vmul.f32 %v8277, %v230
  %v8334 = vmul.f32 %v8277, %v231
  %v8335 = vmul.f32 %v8282, %v230
  %v8336 = vmul.f32 %v8282, %v231
  %v8337 = vmul.f32 %v8287, %v230
  %v8338 = vmul.f32 %v8287, %v231
  %v8339 = vmul.f32 %v8292, %v230
  %v8340 = vmul.f32 %v8292, %v231
  %v8341 = vmul.f32 %v8297, %v230
  %v8342 = vmul.f32 %v8297, %v231
  %v8343 = vmul.f32 %v8302, %v230
  %v8344 = vmul.f32 %v8302, %v231
  %v8345 = vmul.f32 %v8307, %v230
  %v8346 = vmul.f32 %v8307, %v231
  %v8347 = vmul.f32 %v8312, %v230
  %v8348 = vmul.f32 %v8312, %v231
  %v8349 = vmul.f32 %v8317, %v230
  %v8350 = vmul.f32 %v8317, %v231
  %8351 = vset.pattern.permute.xlu0 1
  %8352 = vperm.xlu0 %8351, %v8223
  %v8353 = vpop.permute.xlu0 %8352
  %8355 = vset.pattern.permute.xlu0 1
  %8356 = vperm.xlu0 %8355, %v8224
  %v8357 = vpop.permute.xlu0 %8356
  %8359 = vset.pattern.permute.xlu0 1
  %8360 = vperm.xlu0 %8359, %v8225
  %v8361 = vpop.permute.xlu0 %8360
  %8363 = vset.pattern.permute.xlu0 1
  %8364 = vperm.xlu0 %8363, %v8226
  %v8365 = vpop.permute.xlu0 %8364
  %8367 = vset.pattern.permute.xlu0 1
  %8368 = vperm.xlu0 %8367, %v8227
  %v8369 = vpop.permute.xlu0 %8368
  %8371 = vset.pattern.permute.xlu0 1
  %8372 = vperm.xlu0 %8371, %v8228
  %v8373 = vpop.permute.xlu0 %8372
  %8375 = vset.pattern.permute.xlu0 1
  %8376 = vperm.xlu0 %8375, %v8229
  %v8377 = vpop.permute.xlu0 %8376
  %8379 = vset.pattern.permute.xlu0 1
  %8380 = vperm.xlu0 %8379, %v8230
  %v8381 = vpop.permute.xlu0 %8380
  %8383 = vset.pattern.permute.xlu0 1
  %8384 = vperm.xlu0 %8383, %v8231
  %v8385 = vpop.permute.xlu0 %8384
  %8387 = vset.pattern.permute.xlu0 1
  %8388 = vperm.xlu0 %8387, %v8232
  %v8389 = vpop.permute.xlu0 %8388
  %8391 = vset.pattern.permute.xlu0 1
  %8392 = vperm.xlu0 %8391, %v8233
  %v8393 = vpop.permute.xlu0 %8392
  %8395 = vset.pattern.permute.xlu0 1
  %8396 = vperm.xlu0 %8395, %v8234
  %v8397 = vpop.permute.xlu0 %8396
  %8399 = vset.pattern.permute.xlu0 1
  %8400 = vperm.xlu0 %8399, %v8235
  %v8401 = vpop.permute.xlu0 %8400
  %8403 = vset.pattern.permute.xlu0 1
  %8404 = vperm.xlu0 %8403, %v8236
  %v8405 = vpop.permute.xlu0 %8404
  %8407 = vset.pattern.permute.xlu0 1
  %8408 = vperm.xlu0 %8407, %v8237
  %v8409 = vpop.permute.xlu0 %8408
  %8411 = vset.pattern.permute.xlu0 1
  %8412 = vperm.xlu0 %8411, %v8238
  %v8413 = vpop.permute.xlu0 %8412
  %v8415 = vmul.f32 %v8353, %v237
  %v8416 = vmul.f32 %v8353, %v238
  %v8417 = vmul.f32 %v8357, %v237
  %v8418 = vmul.f32 %v8357, %v238
  %v8419 = vmul.f32 %v8361, %v237
  %v8420 = vmul.f32 %v8361, %v238
  %v8421 = vmul.f32 %v8365, %v237
  %v8422 = vmul.f32 %v8365, %v238
  %v8423 = vmul.f32 %v8369, %v237
  %v8424 = vmul.f32 %v8369, %v238
  %v8425 = vmul.f32 %v8373, %v237
  %v8426 = vmul.f32 %v8373, %v238
  %v8427 = vmul.f32 %v8377, %v237
  %v8428 = vmul.f32 %v8377, %v238
  %v8429 = vmul.f32 %v8381, %v237
  %v8430 = vmul.f32 %v8381, %v238
  %v8431 = vmul.f32 %v8385, %v237
  %v8432 = vmul.f32 %v8385, %v238
  %v8433 = vmul.f32 %v8389, %v237
  %v8434 = vmul.f32 %v8389, %v238
  %v8435 = vmul.f32 %v8393, %v237
  %v8436 = vmul.f32 %v8393, %v238
  %v8437 = vmul.f32 %v8397, %v237
  %v8438 = vmul.f32 %v8397, %v238
  %v8439 = vmul.f32 %v8401, %v237
  %v8440 = vmul.f32 %v8401, %v238
  %v8441 = vmul.f32 %v8405, %v237
  %v8442 = vmul.f32 %v8405, %v238
  %v8443 = vmul.f32 %v8409, %v237
  %v8444 = vmul.f32 %v8409, %v238
  %v8445 = vmul.f32 %v8413, %v237
  %v8446 = vmul.f32 %v8413, %v238
  %v8447 = vadd.f32 %v8319, %v8415
  %v8448 = vadd.f32 %v8320, %v8416
  %v8449 = vadd.f32 %v8321, %v8417
  %v8450 = vadd.f32 %v8322, %v8418
  %v8451 = vadd.f32 %v8323, %v8419
  %v8452 = vadd.f32 %v8324, %v8420
  %v8453 = vadd.f32 %v8325, %v8421
  %v8454 = vadd.f32 %v8326, %v8422
  %v8455 = vadd.f32 %v8327, %v8423
  %v8456 = vadd.f32 %v8328, %v8424
  %v8457 = vadd.f32 %v8329, %v8425
  %v8458 = vadd.f32 %v8330, %v8426
  %v8459 = vadd.f32 %v8331, %v8427
  %v8460 = vadd.f32 %v8332, %v8428
  %v8461 = vadd.f32 %v8333, %v8429
  %v8462 = vadd.f32 %v8334, %v8430
  %v8463 = vadd.f32 %v8335, %v8431
  %v8464 = vadd.f32 %v8336, %v8432
  %v8465 = vadd.f32 %v8337, %v8433
  %v8466 = vadd.f32 %v8338, %v8434
  %v8467 = vadd.f32 %v8339, %v8435
  %v8468 = vadd.f32 %v8340, %v8436
  %v8469 = vadd.f32 %v8341, %v8437
  %v8470 = vadd.f32 %v8342, %v8438
  %v8471 = vadd.f32 %v8343, %v8439
  %v8472 = vadd.f32 %v8344, %v8440
  %v8473 = vadd.f32 %v8345, %v8441
  %v8474 = vadd.f32 %v8346, %v8442
  %v8475 = vadd.f32 %v8347, %v8443
  %v8476 = vadd.f32 %v8348, %v8444
  %v8477 = vadd.f32 %v8349, %v8445
  %v8478 = vadd.f32 %v8350, %v8446
  %v8479 = vadd.f32 %v8447, %v244
  %v8480 = vadd.f32 %v8448, %v245
  %v8481 = vadd.f32 %v8449, %v244
  %v8482 = vadd.f32 %v8450, %v245
  %v8483 = vadd.f32 %v8451, %v244
  %v8484 = vadd.f32 %v8452, %v245
  %v8485 = vadd.f32 %v8453, %v244
  %v8486 = vadd.f32 %v8454, %v245
  %v8487 = vadd.f32 %v8455, %v244
  %v8488 = vadd.f32 %v8456, %v245
  %v8489 = vadd.f32 %v8457, %v244
  %v8490 = vadd.f32 %v8458, %v245
  %v8491 = vadd.f32 %v8459, %v244
  %v8492 = vadd.f32 %v8460, %v245
  %v8493 = vadd.f32 %v8461, %v244
  %v8494 = vadd.f32 %v8462, %v245
  %v8495 = vadd.f32 %v8463, %v244
  %v8496 = vadd.f32 %v8464, %v245
  %v8497 = vadd.f32 %v8465, %v244
  %v8498 = vadd.f32 %v8466, %v245
  %v8499 = vadd.f32 %v8467, %v244
  %v8500 = vadd.f32 %v8468, %v245
  %v8501 = vadd.f32 %v8469, %v244
  %v8502 = vadd.f32 %v8470, %v245
  %v8503 = vadd.f32 %v8471, %v244
  %v8504 = vadd.f32 %v8472, %v245
  %v8505 = vadd.f32 %v8473, %v244
  %v8506 = vadd.f32 %v8474, %v245
  %v8507 = vadd.f32 %v8475, %v244
  %v8508 = vadd.f32 %v8476, %v245
  %v8509 = vadd.f32 %v8477, %v244
  %v8510 = vadd.f32 %v8478, %v245
  %v8511 = vmax.f32 %v8479, 0.0
  %v8512 = vmax.f32 %v8480, 0.0
  %v8513 = vmax.f32 %v8481, 0.0
  %v8514 = vmax.f32 %v8482, 0.0
  %v8515 = vmax.f32 %v8483, 0.0
  %v8516 = vmax.f32 %v8484, 0.0
  %v8517 = vmax.f32 %v8485, 0.0
  %v8518 = vmax.f32 %v8486, 0.0
  %v8519 = vmax.f32 %v8487, 0.0
  %v8520 = vmax.f32 %v8488, 0.0
  %v8521 = vmax.f32 %v8489, 0.0
  %v8522 = vmax.f32 %v8490, 0.0
  %v8523 = vmax.f32 %v8491, 0.0
  %v8524 = vmax.f32 %v8492, 0.0
  %v8525 = vmax.f32 %v8493, 0.0
  %v8526 = vmax.f32 %v8494, 0.0
  %v8527 = vmax.f32 %v8495, 0.0
  %v8528 = vmax.f32 %v8496, 0.0
  %v8529 = vmax.f32 %v8497, 0.0
  %v8530 = vmax.f32 %v8498, 0.0
  %v8531 = vmax.f32 %v8499, 0.0
  %v8532 = vmax.f32 %v8500, 0.0
  %v8533 = vmax.f32 %v8501, 0.0
  %v8534 = vmax.f32 %v8502, 0.0
  %v8535 = vmax.f32 %v8503, 0.0
  %v8536 = vmax.f32 %v8504, 0.0
  %v8537 = vmax.f32 %v8505, 0.0
  %v8538 = vmax.f32 %v8506, 0.0
  %v8539 = vmax.f32 %v8507, 0.0
  %v8540 = vmax.f32 %v8508, 0.0
  %v8541 = vmax.f32 %v8509, 0.0
  %v8542 = vmax.f32 %v8510, 0.0
  %v8543 = vpack.c.bf16 %v8513, %v8511
  %v8544 = vpack.c.bf16 %v8514, %v8512
  %v8545 = vpack.c.bf16 %v8517, %v8515
  %v8546 = vpack.c.bf16 %v8518, %v8516
  %v8547 = vpack.c.bf16 %v8521, %v8519
  %v8548 = vpack.c.bf16 %v8522, %v8520
  %v8549 = vpack.c.bf16 %v8525, %v8523
  %v8550 = vpack.c.bf16 %v8526, %v8524
  %v8551 = vpack.c.bf16 %v8529, %v8527
  %v8552 = vpack.c.bf16 %v8530, %v8528
  %v8553 = vpack.c.bf16 %v8533, %v8531
  %v8554 = vpack.c.bf16 %v8534, %v8532
  %v8555 = vpack.c.bf16 %v8537, %v8535
  %v8556 = vpack.c.bf16 %v8538, %v8536
  %v8557 = vpack.c.bf16 %v8541, %v8539
  %v8558 = vpack.c.bf16 %v8542, %v8540
  %8559 = vmatpush.bf16.msra.mxu0 %v742
  %8560 = vmatpush.bf16.msra.mxu0 %v740
  %8561 = vmatpush.bf16.msra.mxu0 %v738
  %8562 = vmatpush.bf16.msra.mxu0 %v736
  %8563 = vmatpush.bf16.msra.mxu0 %v734
  %8564 = vmatpush.bf16.msra.mxu0 %v732
  %8565 = vmatpush.bf16.msra.mxu0 %v730
  %8566 = vmatpush.bf16.msra.mxu0 %v728
  %8567 = vmatmul.bf16.gmra.mxu0 %v8543
  %v8568 = vpop.f32.mrf.mxu0
  %v8569 = vadd.f32 %v251, %v8568
  %v8570 = vpop.f32.mrf.mxu0
  %v8571 = vadd.f32 %v251, %v8570
  %8572 = vmatmul.bf16.gmra.mxu0 %v8545
  %v8573 = vpop.f32.mrf.mxu0
  %v8574 = vadd.f32 %v251, %v8573
  %v8575 = vpop.f32.mrf.mxu0
  %v8576 = vadd.f32 %v251, %v8575
  %8577 = vmatmul.bf16.gmra.mxu0 %v8547
  %v8578 = vpop.f32.mrf.mxu0
  %v8579 = vadd.f32 %v251, %v8578
  %v8580 = vpop.f32.mrf.mxu0
  %v8581 = vadd.f32 %v251, %v8580
  %8582 = vmatmul.bf16.gmra.mxu0 %v8549
  %v8583 = vpop.f32.mrf.mxu0
  %v8584 = vadd.f32 %v251, %v8583
  %v8585 = vpop.f32.mrf.mxu0
  %v8586 = vadd.f32 %v251, %v8585
  %8587 = vmatmul.bf16.gmra.mxu0 %v8551
  %v8588 = vpop.f32.mrf.mxu0
  %v8589 = vadd.f32 %v251, %v8588
  %v8590 = vpop.f32.mrf.mxu0
  %v8591 = vadd.f32 %v251, %v8590
  %8592 = vmatmul.bf16.gmra.mxu0 %v8553
  %v8593 = vpop.f32.mrf.mxu0
  %v8594 = vadd.f32 %v251, %v8593
  %v8595 = vpop.f32.mrf.mxu0
  %v8596 = vadd.f32 %v251, %v8595
  %8597 = vmatmul.bf16.gmra.mxu0 %v8555
  %v8598 = vpop.f32.mrf.mxu0
  %v8599 = vadd.f32 %v251, %v8598
  %v8600 = vpop.f32.mrf.mxu0
  %v8601 = vadd.f32 %v251, %v8600
  %8602 = vmatmul.bf16.gmra.mxu0 %v8557
  %v8603 = vpop.f32.mrf.mxu0
  %v8604 = vadd.f32 %v251, %v8603
  %v8605 = vpop.f32.mrf.mxu0
  %v8606 = vadd.f32 %v251, %v8605
  %8607 = vdwg.mxu0
  %8608 = vmatpush.bf16.msra.mxu0 %v758
  %8609 = vmatpush.bf16.msra.mxu0 %v756
  %8610 = vmatpush.bf16.msra.mxu0 %v754
  %8611 = vmatpush.bf16.msra.mxu0 %v752
  %8612 = vmatpush.bf16.msra.mxu0 %v750
  %8613 = vmatpush.bf16.msra.mxu0 %v748
  %8614 = vmatpush.bf16.msra.mxu0 %v746
  %8615 = vmatpush.bf16.msra.mxu0 %v744
  %8616 = vmatmul.bf16.gmra.mxu0 %v8544
  %v8617 = vpop.f32.mrf.mxu0
  %v8618 = vadd.f32 %v8569, %v8617
  %v8619 = vpop.f32.mrf.mxu0
  %v8620 = vadd.f32 %v8571, %v8619
  %8621 = vmatmul.bf16.gmra.mxu0 %v8546
  %v8622 = vpop.f32.mrf.mxu0
  %v8623 = vadd.f32 %v8574, %v8622
  %v8624 = vpop.f32.mrf.mxu0
  %v8625 = vadd.f32 %v8576, %v8624
  %8626 = vmatmul.bf16.gmra.mxu0 %v8548
  %v8627 = vpop.f32.mrf.mxu0
  %v8628 = vadd.f32 %v8579, %v8627
  %v8629 = vpop.f32.mrf.mxu0
  %v8630 = vadd.f32 %v8581, %v8629
  %8631 = vmatmul.bf16.gmra.mxu0 %v8550
  %v8632 = vpop.f32.mrf.mxu0
  %v8633 = vadd.f32 %v8584, %v8632
  %v8634 = vpop.f32.mrf.mxu0
  %v8635 = vadd.f32 %v8586, %v8634
  %8636 = vmatmul.bf16.gmra.mxu0 %v8552
  %v8637 = vpop.f32.mrf.mxu0
  %v8638 = vadd.f32 %v8589, %v8637
  %v8639 = vpop.f32.mrf.mxu0
  %v8640 = vadd.f32 %v8591, %v8639
  %8641 = vmatmul.bf16.gmra.mxu0 %v8554
  %v8642 = vpop.f32.mrf.mxu0
  %v8643 = vadd.f32 %v8594, %v8642
  %v8644 = vpop.f32.mrf.mxu0
  %v8645 = vadd.f32 %v8596, %v8644
  %8646 = vmatmul.bf16.gmra.mxu0 %v8556
  %v8647 = vpop.f32.mrf.mxu0
  %v8648 = vadd.f32 %v8599, %v8647
  %v8649 = vpop.f32.mrf.mxu0
  %v8650 = vadd.f32 %v8601, %v8649
  %8651 = vmatmul.bf16.gmra.mxu0 %v8558
  %v8652 = vpop.f32.mrf.mxu0
  %v8653 = vadd.f32 %v8604, %v8652
  %v8654 = vpop.f32.mrf.mxu0
  %v8655 = vadd.f32 %v8606, %v8654
  %8656 = vdwg.mxu0
  %8657 = vmatpush.bf16.msra.mxu0 %v743
  %8658 = vmatpush.bf16.msra.mxu0 %v741
  %8659 = vmatpush.bf16.msra.mxu0 %v739
  %8660 = vmatpush.bf16.msra.mxu0 %v737
  %8661 = vmatpush.bf16.msra.mxu0 %v735
  %8662 = vmatpush.bf16.msra.mxu0 %v733
  %8663 = vmatpush.bf16.msra.mxu0 %v731
  %8664 = vmatpush.bf16.msra.mxu0 %v729
  %8665 = vmatmul.bf16.gmra.mxu0 %v8543
  %v8666 = vpop.f32.mrf.mxu0
  %v8667 = vadd.f32 %v252, %v8666
  %v8668 = vpop.f32.mrf.mxu0
  %v8669 = vadd.f32 %v252, %v8668
  %8670 = vmatmul.bf16.gmra.mxu0 %v8545
  %v8671 = vpop.f32.mrf.mxu0
  %v8672 = vadd.f32 %v252, %v8671
  %v8673 = vpop.f32.mrf.mxu0
  %v8674 = vadd.f32 %v252, %v8673
  %8675 = vmatmul.bf16.gmra.mxu0 %v8547
  %v8676 = vpop.f32.mrf.mxu0
  %v8677 = vadd.f32 %v252, %v8676
  %v8678 = vpop.f32.mrf.mxu0
  %v8679 = vadd.f32 %v252, %v8678
  %8680 = vmatmul.bf16.gmra.mxu0 %v8549
  %v8681 = vpop.f32.mrf.mxu0
  %v8682 = vadd.f32 %v252, %v8681
  %v8683 = vpop.f32.mrf.mxu0
  %v8684 = vadd.f32 %v252, %v8683
  %8685 = vmatmul.bf16.gmra.mxu0 %v8551
  %v8686 = vpop.f32.mrf.mxu0
  %v8687 = vadd.f32 %v252, %v8686
  %v8688 = vpop.f32.mrf.mxu0
  %v8689 = vadd.f32 %v252, %v8688
  %8690 = vmatmul.bf16.gmra.mxu0 %v8553
  %v8691 = vpop.f32.mrf.mxu0
  %v8692 = vadd.f32 %v252, %v8691
  %v8693 = vpop.f32.mrf.mxu0
  %v8694 = vadd.f32 %v252, %v8693
  %8695 = vmatmul.bf16.gmra.mxu0 %v8555
  %v8696 = vpop.f32.mrf.mxu0
  %v8697 = vadd.f32 %v252, %v8696
  %v8698 = vpop.f32.mrf.mxu0
  %v8699 = vadd.f32 %v252, %v8698
  %8700 = vmatmul.bf16.gmra.mxu0 %v8557
  %v8701 = vpop.f32.mrf.mxu0
  %v8702 = vadd.f32 %v252, %v8701
  %v8703 = vpop.f32.mrf.mxu0
  %v8704 = vadd.f32 %v252, %v8703
  %8705 = vdwg.mxu0
  %8706 = vmatpush.bf16.msra.mxu0 %v759
  %8707 = vmatpush.bf16.msra.mxu0 %v757
  %8708 = vmatpush.bf16.msra.mxu0 %v755
  %8709 = vmatpush.bf16.msra.mxu0 %v753
  %8710 = vmatpush.bf16.msra.mxu0 %v751
  %8711 = vmatpush.bf16.msra.mxu0 %v749
  %8712 = vmatpush.bf16.msra.mxu0 %v747
  %8713 = vmatpush.bf16.msra.mxu0 %v745
  %8714 = vmatmul.bf16.gmra.mxu0 %v8544
  %v8715 = vpop.f32.mrf.mxu0
  %v8716 = vadd.f32 %v8667, %v8715
  %v8717 = vpop.f32.mrf.mxu0
  %v8718 = vadd.f32 %v8669, %v8717
  %8719 = vmatmul.bf16.gmra.mxu0 %v8546
  %v8720 = vpop.f32.mrf.mxu0
  %v8721 = vadd.f32 %v8672, %v8720
  %v8722 = vpop.f32.mrf.mxu0
  %v8723 = vadd.f32 %v8674, %v8722
  %8724 = vmatmul.bf16.gmra.mxu0 %v8548
  %v8725 = vpop.f32.mrf.mxu0
  %v8726 = vadd.f32 %v8677, %v8725
  %v8727 = vpop.f32.mrf.mxu0
  %v8728 = vadd.f32 %v8679, %v8727
  %8729 = vmatmul.bf16.gmra.mxu0 %v8550
  %v8730 = vpop.f32.mrf.mxu0
  %v8731 = vadd.f32 %v8682, %v8730
  %v8732 = vpop.f32.mrf.mxu0
  %v8733 = vadd.f32 %v8684, %v8732
  %8734 = vmatmul.bf16.gmra.mxu0 %v8552
  %v8735 = vpop.f32.mrf.mxu0
  %v8736 = vadd.f32 %v8687, %v8735
  %v8737 = vpop.f32.mrf.mxu0
  %v8738 = vadd.f32 %v8689, %v8737
  %8739 = vmatmul.bf16.gmra.mxu0 %v8554
  %v8740 = vpop.f32.mrf.mxu0
  %v8741 = vadd.f32 %v8692, %v8740
  %v8742 = vpop.f32.mrf.mxu0
  %v8743 = vadd.f32 %v8694, %v8742
  %8744 = vmatmul.bf16.gmra.mxu0 %v8556
  %v8745 = vpop.f32.mrf.mxu0
  %v8746 = vadd.f32 %v8697, %v8745
  %v8747 = vpop.f32.mrf.mxu0
  %v8748 = vadd.f32 %v8699, %v8747
  %8749 = vmatmul.bf16.gmra.mxu0 %v8558
  %v8750 = vpop.f32.mrf.mxu0
  %v8751 = vadd.f32 %v8702, %v8750
  %v8752 = vpop.f32.mrf.mxu0
  %v8753 = vadd.f32 %v8704, %v8752
  %8754 = vdwg.mxu0
  %v8755 = vmax.f32 %v8618, 0.0
  %v8756 = vmax.f32 %v8716, 0.0
  %v8757 = vmax.f32 %v8620, 0.0
  %v8758 = vmax.f32 %v8718, 0.0
  %v8759 = vmax.f32 %v8623, 0.0
  %v8760 = vmax.f32 %v8721, 0.0
  %v8761 = vmax.f32 %v8625, 0.0
  %v8762 = vmax.f32 %v8723, 0.0
  %v8763 = vmax.f32 %v8628, 0.0
  %v8764 = vmax.f32 %v8726, 0.0
  %v8765 = vmax.f32 %v8630, 0.0
  %v8766 = vmax.f32 %v8728, 0.0
  %v8767 = vmax.f32 %v8633, 0.0
  %v8768 = vmax.f32 %v8731, 0.0
  %v8769 = vmax.f32 %v8635, 0.0
  %v8770 = vmax.f32 %v8733, 0.0
  %v8771 = vmax.f32 %v8638, 0.0
  %v8772 = vmax.f32 %v8736, 0.0
  %v8773 = vmax.f32 %v8640, 0.0
  %v8774 = vmax.f32 %v8738, 0.0
  %v8775 = vmax.f32 %v8643, 0.0
  %v8776 = vmax.f32 %v8741, 0.0
  %v8777 = vmax.f32 %v8645, 0.0
  %v8778 = vmax.f32 %v8743, 0.0
  %v8779 = vmax.f32 %v8648, 0.0
  %v8780 = vmax.f32 %v8746, 0.0
  %v8781 = vmax.f32 %v8650, 0.0
  %v8782 = vmax.f32 %v8748, 0.0
  %v8783 = vmax.f32 %v8653, 0.0
  %v8784 = vmax.f32 %v8751, 0.0
  %v8785 = vmax.f32 %v8655, 0.0
  %v8786 = vmax.f32 %v8753, 0.0
  %v8787 = vpack.c.bf16 %v8757, %v8755
  %v8788 = vpack.c.bf16 %v8758, %v8756
  %v8789 = vpack.c.bf16 %v8761, %v8759
  %v8790 = vpack.c.bf16 %v8762, %v8760
  %v8791 = vpack.c.bf16 %v8765, %v8763
  %v8792 = vpack.c.bf16 %v8766, %v8764
  %v8793 = vpack.c.bf16 %v8769, %v8767
  %v8794 = vpack.c.bf16 %v8770, %v8768
  %v8795 = vpack.c.bf16 %v8773, %v8771
  %v8796 = vpack.c.bf16 %v8774, %v8772
  %v8797 = vpack.c.bf16 %v8777, %v8775
  %v8798 = vpack.c.bf16 %v8778, %v8776
  %v8799 = vpack.c.bf16 %v8781, %v8779
  %v8800 = vpack.c.bf16 %v8782, %v8780
  %v8801 = vpack.c.bf16 %v8785, %v8783
  %v8802 = vpack.c.bf16 %v8786, %v8784
  %8803 = vmatpush.bf16.msra.mxu0 %v1178
  %8804 = vmatpush.bf16.msra.mxu0 %v1176
  %8805 = vmatpush.bf16.msra.mxu0 %v1174
  %8806 = vmatpush.bf16.msra.mxu0 %v1172
  %8807 = vmatpush.bf16.msra.mxu0 %v1170
  %8808 = vmatpush.bf16.msra.mxu0 %v1168
  %8809 = vmatpush.bf16.msra.mxu0 %v1166
  %8810 = vmatpush.bf16.msra.mxu0 %v1164
  %8811 = vmatmul.bf16.gmra.mxu0 %v8787
  %v8812 = vpop.f32.mrf.mxu0
  %v8813 = vadd.f32 %v258, %v8812
  %v8814 = vpop.f32.mrf.mxu0
  %v8815 = vadd.f32 %v258, %v8814
  %8816 = vmatmul.bf16.gmra.mxu0 %v8789
  %v8817 = vpop.f32.mrf.mxu0
  %v8818 = vadd.f32 %v258, %v8817
  %v8819 = vpop.f32.mrf.mxu0
  %v8820 = vadd.f32 %v258, %v8819
  %8821 = vmatmul.bf16.gmra.mxu0 %v8791
  %v8822 = vpop.f32.mrf.mxu0
  %v8823 = vadd.f32 %v258, %v8822
  %v8824 = vpop.f32.mrf.mxu0
  %v8825 = vadd.f32 %v258, %v8824
  %8826 = vmatmul.bf16.gmra.mxu0 %v8793
  %v8827 = vpop.f32.mrf.mxu0
  %v8828 = vadd.f32 %v258, %v8827
  %v8829 = vpop.f32.mrf.mxu0
  %v8830 = vadd.f32 %v258, %v8829
  %8831 = vmatmul.bf16.gmra.mxu0 %v8795
  %v8832 = vpop.f32.mrf.mxu0
  %v8833 = vadd.f32 %v258, %v8832
  %v8834 = vpop.f32.mrf.mxu0
  %v8835 = vadd.f32 %v258, %v8834
  %8836 = vmatmul.bf16.gmra.mxu0 %v8797
  %v8837 = vpop.f32.mrf.mxu0
  %v8838 = vadd.f32 %v258, %v8837
  %v8839 = vpop.f32.mrf.mxu0
  %v8840 = vadd.f32 %v258, %v8839
  %8841 = vmatmul.bf16.gmra.mxu0 %v8799
  %v8842 = vpop.f32.mrf.mxu0
  %v8843 = vadd.f32 %v258, %v8842
  %v8844 = vpop.f32.mrf.mxu0
  %v8845 = vadd.f32 %v258, %v8844
  %8846 = vmatmul.bf16.gmra.mxu0 %v8801
  %v8847 = vpop.f32.mrf.mxu0
  %v8848 = vadd.f32 %v258, %v8847
  %v8849 = vpop.f32.mrf.mxu0
  %v8850 = vadd.f32 %v258, %v8849
  %8851 = vdwg.mxu0
  %8852 = vmatpush.bf16.msra.mxu0 %v1194
  %8853 = vmatpush.bf16.msra.mxu0 %v1192
  %8854 = vmatpush.bf16.msra.mxu0 %v1190
  %8855 = vmatpush.bf16.msra.mxu0 %v1188
  %8856 = vmatpush.bf16.msra.mxu0 %v1186
  %8857 = vmatpush.bf16.msra.mxu0 %v1184
  %8858 = vmatpush.bf16.msra.mxu0 %v1182
  %8859 = vmatpush.bf16.msra.mxu0 %v1180
  %8860 = vmatmul.bf16.gmra.mxu0 %v8788
  %v8861 = vpop.f32.mrf.mxu0
  %v8862 = vadd.f32 %v8813, %v8861
  %v8863 = vpop.f32.mrf.mxu0
  %v8864 = vadd.f32 %v8815, %v8863
  %8865 = vmatmul.bf16.gmra.mxu0 %v8790
  %v8866 = vpop.f32.mrf.mxu0
  %v8867 = vadd.f32 %v8818, %v8866
  %v8868 = vpop.f32.mrf.mxu0
  %v8869 = vadd.f32 %v8820, %v8868
  %8870 = vmatmul.bf16.gmra.mxu0 %v8792
  %v8871 = vpop.f32.mrf.mxu0
  %v8872 = vadd.f32 %v8823, %v8871
  %v8873 = vpop.f32.mrf.mxu0
  %v8874 = vadd.f32 %v8825, %v8873
  %8875 = vmatmul.bf16.gmra.mxu0 %v8794
  %v8876 = vpop.f32.mrf.mxu0
  %v8877 = vadd.f32 %v8828, %v8876
  %v8878 = vpop.f32.mrf.mxu0
  %v8879 = vadd.f32 %v8830, %v8878
  %8880 = vmatmul.bf16.gmra.mxu0 %v8796
  %v8881 = vpop.f32.mrf.mxu0
  %v8882 = vadd.f32 %v8833, %v8881
  %v8883 = vpop.f32.mrf.mxu0
  %v8884 = vadd.f32 %v8835, %v8883
  %8885 = vmatmul.bf16.gmra.mxu0 %v8798
  %v8886 = vpop.f32.mrf.mxu0
  %v8887 = vadd.f32 %v8838, %v8886
  %v8888 = vpop.f32.mrf.mxu0
  %v8889 = vadd.f32 %v8840, %v8888
  %8890 = vmatmul.bf16.gmra.mxu0 %v8800
  %v8891 = vpop.f32.mrf.mxu0
  %v8892 = vadd.f32 %v8843, %v8891
  %v8893 = vpop.f32.mrf.mxu0
  %v8894 = vadd.f32 %v8845, %v8893
  %8895 = vmatmul.bf16.gmra.mxu0 %v8802
  %v8896 = vpop.f32.mrf.mxu0
  %v8897 = vadd.f32 %v8848, %v8896
  %v8898 = vpop.f32.mrf.mxu0
  %v8899 = vadd.f32 %v8850, %v8898
  %8900 = vdwg.mxu0
  %8901 = vmatpush.bf16.msra.mxu0 %v1179
  %8902 = vmatpush.bf16.msra.mxu0 %v1177
  %8903 = vmatpush.bf16.msra.mxu0 %v1175
  %8904 = vmatpush.bf16.msra.mxu0 %v1173
  %8905 = vmatpush.bf16.msra.mxu0 %v1171
  %8906 = vmatpush.bf16.msra.mxu0 %v1169
  %8907 = vmatpush.bf16.msra.mxu0 %v1167
  %8908 = vmatpush.bf16.msra.mxu0 %v1165
  %8909 = vmatmul.bf16.gmra.mxu0 %v8787
  %v8910 = vpop.f32.mrf.mxu0
  %v8911 = vadd.f32 %v259, %v8910
  %v8912 = vpop.f32.mrf.mxu0
  %v8913 = vadd.f32 %v259, %v8912
  %8914 = vmatmul.bf16.gmra.mxu0 %v8789
  %v8915 = vpop.f32.mrf.mxu0
  %v8916 = vadd.f32 %v259, %v8915
  %v8917 = vpop.f32.mrf.mxu0
  %v8918 = vadd.f32 %v259, %v8917
  %8919 = vmatmul.bf16.gmra.mxu0 %v8791
  %v8920 = vpop.f32.mrf.mxu0
  %v8921 = vadd.f32 %v259, %v8920
  %v8922 = vpop.f32.mrf.mxu0
  %v8923 = vadd.f32 %v259, %v8922
  %8924 = vmatmul.bf16.gmra.mxu0 %v8793
  %v8925 = vpop.f32.mrf.mxu0
  %v8926 = vadd.f32 %v259, %v8925
  %v8927 = vpop.f32.mrf.mxu0
  %v8928 = vadd.f32 %v259, %v8927
  %8929 = vmatmul.bf16.gmra.mxu0 %v8795
  %v8930 = vpop.f32.mrf.mxu0
  %v8931 = vadd.f32 %v259, %v8930
  %v8932 = vpop.f32.mrf.mxu0
  %v8933 = vadd.f32 %v259, %v8932
  %8934 = vmatmul.bf16.gmra.mxu0 %v8797
  %v8935 = vpop.f32.mrf.mxu0
  %v8936 = vadd.f32 %v259, %v8935
  %v8937 = vpop.f32.mrf.mxu0
  %v8938 = vadd.f32 %v259, %v8937
  %8939 = vmatmul.bf16.gmra.mxu0 %v8799
  %v8940 = vpop.f32.mrf.mxu0
  %v8941 = vadd.f32 %v259, %v8940
  %v8942 = vpop.f32.mrf.mxu0
  %v8943 = vadd.f32 %v259, %v8942
  %8944 = vmatmul.bf16.gmra.mxu0 %v8801
  %v8945 = vpop.f32.mrf.mxu0
  %v8946 = vadd.f32 %v259, %v8945
  %v8947 = vpop.f32.mrf.mxu0
  %v8948 = vadd.f32 %v259, %v8947
  %8949 = vdwg.mxu0
  %8950 = vmatpush.bf16.msra.mxu0 %v1195
  %8951 = vmatpush.bf16.msra.mxu0 %v1193
  %8952 = vmatpush.bf16.msra.mxu0 %v1191
  %8953 = vmatpush.bf16.msra.mxu0 %v1189
  %8954 = vmatpush.bf16.msra.mxu0 %v1187
  %8955 = vmatpush.bf16.msra.mxu0 %v1185
  %8956 = vmatpush.bf16.msra.mxu0 %v1183
  %8957 = vmatpush.bf16.msra.mxu0 %v1181
  %8958 = vmatmul.bf16.gmra.mxu0 %v8788
  %v8959 = vpop.f32.mrf.mxu0
  %v8960 = vadd.f32 %v8911, %v8959
  %v8961 = vpop.f32.mrf.mxu0
  %v8962 = vadd.f32 %v8913, %v8961
  %8963 = vmatmul.bf16.gmra.mxu0 %v8790
  %v8964 = vpop.f32.mrf.mxu0
  %v8965 = vadd.f32 %v8916, %v8964
  %v8966 = vpop.f32.mrf.mxu0
  %v8967 = vadd.f32 %v8918, %v8966
  %8968 = vmatmul.bf16.gmra.mxu0 %v8792
  %v8969 = vpop.f32.mrf.mxu0
  %v8970 = vadd.f32 %v8921, %v8969
  %v8971 = vpop.f32.mrf.mxu0
  %v8972 = vadd.f32 %v8923, %v8971
  %8973 = vmatmul.bf16.gmra.mxu0 %v8794
  %v8974 = vpop.f32.mrf.mxu0
  %v8975 = vadd.f32 %v8926, %v8974
  %v8976 = vpop.f32.mrf.mxu0
  %v8977 = vadd.f32 %v8928, %v8976
  %8978 = vmatmul.bf16.gmra.mxu0 %v8796
  %v8979 = vpop.f32.mrf.mxu0
  %v8980 = vadd.f32 %v8931, %v8979
  %v8981 = vpop.f32.mrf.mxu0
  %v8982 = vadd.f32 %v8933, %v8981
  %8983 = vmatmul.bf16.gmra.mxu0 %v8798
  %v8984 = vpop.f32.mrf.mxu0
  %v8985 = vadd.f32 %v8936, %v8984
  %v8986 = vpop.f32.mrf.mxu0
  %v8987 = vadd.f32 %v8938, %v8986
  %8988 = vmatmul.bf16.gmra.mxu0 %v8800
  %v8989 = vpop.f32.mrf.mxu0
  %v8990 = vadd.f32 %v8941, %v8989
  %v8991 = vpop.f32.mrf.mxu0
  %v8992 = vadd.f32 %v8943, %v8991
  %8993 = vmatmul.bf16.gmra.mxu0 %v8802
  %v8994 = vpop.f32.mrf.mxu0
  %v8995 = vadd.f32 %v8946, %v8994
  %v8996 = vpop.f32.mrf.mxu0
  %v8997 = vadd.f32 %v8948, %v8996
  %8998 = vdwg.mxu0
  %v8999 = vmax.f32 %v8862, 0.0
  %v9000 = vmax.f32 %v8960, 0.0
  %v9001 = vmax.f32 %v8864, 0.0
  %v9002 = vmax.f32 %v8962, 0.0
  %v9003 = vmax.f32 %v8867, 0.0
  %v9004 = vmax.f32 %v8965, 0.0
  %v9005 = vmax.f32 %v8869, 0.0
  %v9006 = vmax.f32 %v8967, 0.0
  %v9007 = vmax.f32 %v8872, 0.0
  %v9008 = vmax.f32 %v8970, 0.0
  %v9009 = vmax.f32 %v8874, 0.0
  %v9010 = vmax.f32 %v8972, 0.0
  %v9011 = vmax.f32 %v8877, 0.0
  %v9012 = vmax.f32 %v8975, 0.0
  %v9013 = vmax.f32 %v8879, 0.0
  %v9014 = vmax.f32 %v8977, 0.0
  %v9015 = vmax.f32 %v8882, 0.0
  %v9016 = vmax.f32 %v8980, 0.0
  %v9017 = vmax.f32 %v8884, 0.0
  %v9018 = vmax.f32 %v8982, 0.0
  %v9019 = vmax.f32 %v8887, 0.0
  %v9020 = vmax.f32 %v8985, 0.0
  %v9021 = vmax.f32 %v8889, 0.0
  %v9022 = vmax.f32 %v8987, 0.0
  %v9023 = vmax.f32 %v8892, 0.0
  %v9024 = vmax.f32 %v8990, 0.0
  %v9025 = vmax.f32 %v8894, 0.0
  %v9026 = vmax.f32 %v8992, 0.0
  %v9027 = vmax.f32 %v8897, 0.0
  %v9028 = vmax.f32 %v8995, 0.0
  %v9029 = vmax.f32 %v8899, 0.0
  %v9030 = vmax.f32 %v8997, 0.0
  %v9031 = vpack.c.bf16 %v9001, %v8999
  %v9032 = vpack.c.bf16 %v9005, %v9003
  %v9033 = vpack.c.bf16 %v9009, %v9007
  %v9034 = vpack.c.bf16 %v9013, %v9011
  %v9035 = vpack.c.bf16 %v9017, %v9015
  %v9036 = vpack.c.bf16 %v9021, %v9019
  %v9037 = vpack.c.bf16 %v9025, %v9023
  %v9038 = vpack.c.bf16 %v9029, %v9027
  %9039 = vmatpush.bf16.msra.mxu0 %v1519
  %9040 = vmatpush.bf16.msra.mxu0 %v1518
  %9041 = vmatpush.bf16.msra.mxu0 %v1517
  %9042 = vmatpush.bf16.msra.mxu0 %v1516
  %9043 = vmatpush.bf16.msra.mxu0 %v1515
  %9044 = vmatpush.bf16.msra.mxu0 %v1514
  %9045 = vmatpush.bf16.msra.mxu0 %v1513
  %9046 = vmatpush.bf16.msra.mxu0 %v1512
  %9047 = vmatmul.bf16.gmra.mxu0 %v9031
  %v9048 = vpop.f32.mrf.mxu0
  %v9049 = vadd.f32 %v262, %v9048
  %v9050 = vpop.f32.mrf.mxu0
  %v9051 = vadd.f32 %v262, %v9050
  %9052 = vmatmul.bf16.gmra.mxu0 %v9032
  %v9053 = vpop.f32.mrf.mxu0
  %v9054 = vadd.f32 %v262, %v9053
  %v9055 = vpop.f32.mrf.mxu0
  %v9056 = vadd.f32 %v262, %v9055
  %9057 = vmatmul.bf16.gmra.mxu0 %v9033
  %v9058 = vpop.f32.mrf.mxu0
  %v9059 = vadd.f32 %v262, %v9058
  %v9060 = vpop.f32.mrf.mxu0
  %v9061 = vadd.f32 %v262, %v9060
  %9062 = vmatmul.bf16.gmra.mxu0 %v9034
  %v9063 = vpop.f32.mrf.mxu0
  %v9064 = vadd.f32 %v262, %v9063
  %v9065 = vpop.f32.mrf.mxu0
  %v9066 = vadd.f32 %v262, %v9065
  %9067 = vmatmul.bf16.gmra.mxu0 %v9035
  %v9068 = vpop.f32.mrf.mxu0
  %v9069 = vadd.f32 %v262, %v9068
  %v9070 = vpop.f32.mrf.mxu0
  %v9071 = vadd.f32 %v262, %v9070
  %9072 = vmatmul.bf16.gmra.mxu0 %v9036
  %v9073 = vpop.f32.mrf.mxu0
  %v9074 = vadd.f32 %v262, %v9073
  %v9075 = vpop.f32.mrf.mxu0
  %v9076 = vadd.f32 %v262, %v9075
  %9077 = vmatmul.bf16.gmra.mxu0 %v9037
  %v9078 = vpop.f32.mrf.mxu0
  %v9079 = vadd.f32 %v262, %v9078
  %v9080 = vpop.f32.mrf.mxu0
  %v9081 = vadd.f32 %v262, %v9080
  %9082 = vmatmul.bf16.gmra.mxu0 %v9038
  %v9083 = vpop.f32.mrf.mxu0
  %v9084 = vadd.f32 %v262, %v9083
  %v9085 = vpop.f32.mrf.mxu0
  %v9086 = vadd.f32 %v262, %v9085
  %9087 = vdwg.mxu0
  %v9088 = vmax.f32 %v9049, 0.0
  %v9089 = vmax.f32 %v9051, 0.0
  %v9090 = vmax.f32 %v9054, 0.0
  %v9091 = vmax.f32 %v9056, 0.0
  %v9092 = vmax.f32 %v9059, 0.0
  %v9093 = vmax.f32 %v9061, 0.0
  %v9094 = vmax.f32 %v9064, 0.0
  %v9095 = vmax.f32 %v9066, 0.0
  %v9096 = vmax.f32 %v9069, 0.0
  %v9097 = vmax.f32 %v9071, 0.0
  %v9098 = vmax.f32 %v9074, 0.0
  %v9099 = vmax.f32 %v9076, 0.0
  %v9100 = vmax.f32 %v9079, 0.0
  %v9101 = vmax.f32 %v9081, 0.0
  %v9102 = vmax.f32 %v9084, 0.0
  %v9103 = vmax.f32 %v9086, 0.0
  %v9104 = vpack.c.bf16 %v9089, %v9088
  %v9105 = vpack.c.bf16 %v9002, %v9000
  %v9106 = vpack.c.bf16 %v9091, %v9090
  %v9107 = vpack.c.bf16 %v9006, %v9004
  %v9108 = vpack.c.bf16 %v9093, %v9092
  %v9109 = vpack.c.bf16 %v9010, %v9008
  %v9110 = vpack.c.bf16 %v9095, %v9094
  %v9111 = vpack.c.bf16 %v9014, %v9012
  %v9112 = vpack.c.bf16 %v9097, %v9096
  %v9113 = vpack.c.bf16 %v9018, %v9016
  %v9114 = vpack.c.bf16 %v9099, %v9098
  %v9115 = vpack.c.bf16 %v9022, %v9020
  %v9116 = vpack.c.bf16 %v9101, %v9100
  %v9117 = vpack.c.bf16 %v9026, %v9024
  %v9118 = vpack.c.bf16 %v9103, %v9102
  %v9119 = vpack.c.bf16 %v9030, %v9028
  %9120 = vmatpush.bf16.msra.mxu0 %v1712
  %9121 = vmatpush.bf16.msra.mxu0 %v1711
  %9122 = vmatpush.bf16.msra.mxu0 %v1710
  %9123 = vmatpush.bf16.msra.mxu0 %v1709
  %9124 = vmatpush.bf16.msra.mxu0 %v1708
  %9125 = vmatpush.bf16.msra.mxu0 %v1707
  %9126 = vmatpush.bf16.msra.mxu0 %v1706
  %9127 = vmatpush.bf16.msra.mxu0 %v1705
  %9128 = vmatmul.bf16.gmra.mxu0 %v9104
  %v9129 = vpop.f32.mrf.mxu0
  %v9130 = vadd.f32 %v263, %v9129
  %v9131 = vpop.f32.mrf.mxu0
  %v9132 = vadd.f32 %v263, %v9131
  %9133 = vmatmul.bf16.gmra.mxu0 %v9106
  %v9134 = vpop.f32.mrf.mxu0
  %v9135 = vadd.f32 %v263, %v9134
  %v9136 = vpop.f32.mrf.mxu0
  %v9137 = vadd.f32 %v263, %v9136
  %9138 = vmatmul.bf16.gmra.mxu0 %v9108
  %v9139 = vpop.f32.mrf.mxu0
  %v9140 = vadd.f32 %v263, %v9139
  %v9141 = vpop.f32.mrf.mxu0
  %v9142 = vadd.f32 %v263, %v9141
  %9143 = vmatmul.bf16.gmra.mxu0 %v9110
  %v9144 = vpop.f32.mrf.mxu0
  %v9145 = vadd.f32 %v263, %v9144
  %v9146 = vpop.f32.mrf.mxu0
  %v9147 = vadd.f32 %v263, %v9146
  %9148 = vmatmul.bf16.gmra.mxu0 %v9112
  %v9149 = vpop.f32.mrf.mxu0
  %v9150 = vadd.f32 %v263, %v9149
  %v9151 = vpop.f32.mrf.mxu0
  %v9152 = vadd.f32 %v263, %v9151
  %9153 = vmatmul.bf16.gmra.mxu0 %v9114
  %v9154 = vpop.f32.mrf.mxu0
  %v9155 = vadd.f32 %v263, %v9154
  %v9156 = vpop.f32.mrf.mxu0
  %v9157 = vadd.f32 %v263, %v9156
  %9158 = vmatmul.bf16.gmra.mxu0 %v9116
  %v9159 = vpop.f32.mrf.mxu0
  %v9160 = vadd.f32 %v263, %v9159
  %v9161 = vpop.f32.mrf.mxu0
  %v9162 = vadd.f32 %v263, %v9161
  %9163 = vmatmul.bf16.gmra.mxu0 %v9118
  %v9164 = vpop.f32.mrf.mxu0
  %v9165 = vadd.f32 %v263, %v9164
  %v9166 = vpop.f32.mrf.mxu0
  %v9167 = vadd.f32 %v263, %v9166
  %9168 = vdwg.mxu0
  %9169 = vmatpush.bf16.msra.mxu0 %v1720
  %9170 = vmatpush.bf16.msra.mxu0 %v1719
  %9171 = vmatpush.bf16.msra.mxu0 %v1718
  %9172 = vmatpush.bf16.msra.mxu0 %v1717
  %9173 = vmatpush.bf16.msra.mxu0 %v1716
  %9174 = vmatpush.bf16.msra.mxu0 %v1715
  %9175 = vmatpush.bf16.msra.mxu0 %v1714
  %9176 = vmatpush.bf16.msra.mxu0 %v1713
  %9177 = vmatmul.bf16.gmra.mxu0 %v9105
  %v9178 = vpop.f32.mrf.mxu0
  %v9179 = vadd.f32 %v9130, %v9178
  %v9180 = vpop.f32.mrf.mxu0
  %v9181 = vadd.f32 %v9132, %v9180
  %9182 = vmatmul.bf16.gmra.mxu0 %v9107
  %v9183 = vpop.f32.mrf.mxu0
  %v9184 = vadd.f32 %v9135, %v9183
  %v9185 = vpop.f32.mrf.mxu0
  %v9186 = vadd.f32 %v9137, %v9185
  %9187 = vmatmul.bf16.gmra.mxu0 %v9109
  %v9188 = vpop.f32.mrf.mxu0
  %v9189 = vadd.f32 %v9140, %v9188
  %v9190 = vpop.f32.mrf.mxu0
  %v9191 = vadd.f32 %v9142, %v9190
  %9192 = vmatmul.bf16.gmra.mxu0 %v9111
  %v9193 = vpop.f32.mrf.mxu0
  %v9194 = vadd.f32 %v9145, %v9193
  %v9195 = vpop.f32.mrf.mxu0
  %v9196 = vadd.f32 %v9147, %v9195
  %9197 = vmatmul.bf16.gmra.mxu0 %v9113
  %v9198 = vpop.f32.mrf.mxu0
  %v9199 = vadd.f32 %v9150, %v9198
  %v9200 = vpop.f32.mrf.mxu0
  %v9201 = vadd.f32 %v9152, %v9200
  %9202 = vmatmul.bf16.gmra.mxu0 %v9115
  %v9203 = vpop.f32.mrf.mxu0
  %v9204 = vadd.f32 %v9155, %v9203
  %v9205 = vpop.f32.mrf.mxu0
  %v9206 = vadd.f32 %v9157, %v9205
  %9207 = vmatmul.bf16.gmra.mxu0 %v9117
  %v9208 = vpop.f32.mrf.mxu0
  %v9209 = vadd.f32 %v9160, %v9208
  %v9210 = vpop.f32.mrf.mxu0
  %v9211 = vadd.f32 %v9162, %v9210
  %9212 = vmatmul.bf16.gmra.mxu0 %v9119
  %v9213 = vpop.f32.mrf.mxu0
  %v9214 = vadd.f32 %v9165, %v9213
  %v9215 = vpop.f32.mrf.mxu0
  %v9216 = vadd.f32 %v9167, %v9215
  %9217 = vdwg.mxu0
  %s9218 = scalar_lea.vmem %s2, 768
  %v9219 = vld [vmem:[%s9218] sm:$0xff]
  %v9220 = vld [vmem:[%s9218 + $0x8] sm:$0xff]
  %v9221 = vld [vmem:[%s9218 + $0x10] sm:$0xff]
  %v9222 = vld [vmem:[%s9218 + $0x18] sm:$0xff]
  %v9223 = vld [vmem:[%s9218 + $0x20] sm:$0xff]
  %v9224 = vld [vmem:[%s9218 + $0x28] sm:$0xff]
  %v9225 = vld [vmem:[%s9218 + $0x30] sm:$0xff]
  %v9226 = vld [vmem:[%s9218 + $0x38] sm:$0xff]
  %v9227 = vld [vmem:[%s9218 + $0x40] sm:$0xff]
  %v9228 = vld [vmem:[%s9218 + $0x48] sm:$0xff]
  %v9229 = vld [vmem:[%s9218 + $0x50] sm:$0xff]
  %v9230 = vld [vmem:[%s9218 + $0x58] sm:$0xff]
  %v9231 = vld [vmem:[%s9218 + $0x60] sm:$0xff]
  %v9232 = vld [vmem:[%s9218 + $0x68] sm:$0xff]
  %v9233 = vld [vmem:[%s9218 + $0x70] sm:$0xff]
  %v9234 = vld [vmem:[%s9218 + $0x78] sm:$0xff]
  %v9235 = vmul.f32 %v1854, %v9219
  %v9236 = vmul.f32 %v1859, %v9220
  %v9237 = vmul.f32 %v1864, %v9221
  %v9238 = vmul.f32 %v1869, %v9222
  %v9239 = vmul.f32 %v1874, %v9223
  %v9240 = vmul.f32 %v1879, %v9224
  %v9241 = vmul.f32 %v1884, %v9225
  %v9242 = vmul.f32 %v1889, %v9226
  %v9243 = vmul.f32 %v1894, %v9227
  %v9244 = vmul.f32 %v1899, %v9228
  %v9245 = vmul.f32 %v1904, %v9229
  %v9246 = vmul.f32 %v1909, %v9230
  %v9247 = vmul.f32 %v1914, %v9231
  %v9248 = vmul.f32 %v1919, %v9232
  %v9249 = vmul.f32 %v1924, %v9233
  %v9250 = vmul.f32 %v1929, %v9234
  %v9251 = vmul.f32 %v9179, %v1950
  %v9252 = vmul.f32 %v9181, %v1955
  %v9253 = vmul.f32 %v9184, %v1960
  %v9254 = vmul.f32 %v9186, %v1965
  %v9255 = vmul.f32 %v9189, %v1970
  %v9256 = vmul.f32 %v9191, %v1975
  %v9257 = vmul.f32 %v9194, %v1980
  %v9258 = vmul.f32 %v9196, %v1985
  %v9259 = vmul.f32 %v9199, %v1990
  %v9260 = vmul.f32 %v9201, %v1995
  %v9261 = vmul.f32 %v9204, %v2000
  %v9262 = vmul.f32 %v9206, %v2005
  %v9263 = vmul.f32 %v9209, %v2010
  %v9264 = vmul.f32 %v9211, %v2015
  %v9265 = vmul.f32 %v9214, %v2020
  %v9266 = vmul.f32 %v9216, %v2025
  %v9267 = vadd.f32 %v8223, %v9251
  %v9268 = vadd.f32 %v8224, %v9252
  %v9269 = vadd.f32 %v8225, %v9253
  %v9270 = vadd.f32 %v8226, %v9254
  %v9271 = vadd.f32 %v8227, %v9255
  %v9272 = vadd.f32 %v8228, %v9256
  %v9273 = vadd.f32 %v8229, %v9257
  %v9274 = vadd.f32 %v8230, %v9258
  %v9275 = vadd.f32 %v8231, %v9259
  %v9276 = vadd.f32 %v8232, %v9260
  %v9277 = vadd.f32 %v8233, %v9261
  %v9278 = vadd.f32 %v8234, %v9262
  %v9279 = vadd.f32 %v8235, %v9263
  %v9280 = vadd.f32 %v8236, %v9264
  %v9281 = vadd.f32 %v8237, %v9265
  %v9282 = vadd.f32 %v8238, %v9266
  %9299 = vrot.lane.b32.xlu0 %v9235, 2
  %v9300 = vpop.permute.xlu0 %9299
  %9301 = vrot.lane.b32.xlu0 %v9236, 2
  %v9302 = vpop.permute.xlu0 %9301
  %9303 = vrot.lane.b32.xlu0 %v9237, 2
  %v9304 = vpop.permute.xlu0 %9303
  %9305 = vrot.lane.b32.xlu0 %v9238, 2
  %v9306 = vpop.permute.xlu0 %9305
  %9307 = vrot.lane.b32.xlu0 %v9239, 2
  %v9308 = vpop.permute.xlu0 %9307
  %9309 = vrot.lane.b32.xlu0 %v9240, 2
  %v9310 = vpop.permute.xlu0 %9309
  %9311 = vrot.lane.b32.xlu0 %v9241, 2
  %v9312 = vpop.permute.xlu0 %9311
  %9313 = vrot.lane.b32.xlu0 %v9242, 2
  %v9314 = vpop.permute.xlu0 %9313
  %9315 = vrot.lane.b32.xlu0 %v9243, 2
  %v9316 = vpop.permute.xlu0 %9315
  %9317 = vrot.lane.b32.xlu0 %v9244, 2
  %v9318 = vpop.permute.xlu0 %9317
  %9319 = vrot.lane.b32.xlu0 %v9245, 2
  %v9320 = vpop.permute.xlu0 %9319
  %9321 = vrot.lane.b32.xlu0 %v9246, 2
  %v9322 = vpop.permute.xlu0 %9321
  %9323 = vrot.lane.b32.xlu0 %v9247, 2
  %v9324 = vpop.permute.xlu0 %9323
  %9325 = vrot.lane.b32.xlu0 %v9248, 2
  %v9326 = vpop.permute.xlu0 %9325
  %9327 = vrot.lane.b32.xlu0 %v9249, 2
  %v9328 = vpop.permute.xlu0 %9327
  %9329 = vrot.lane.b32.xlu0 %v9250, 2
  %v9330 = vpop.permute.xlu0 %9329
  %v9347 = vmul.f32 %v9179, %v9300
  %v9348 = vmul.f32 %v9181, %v9302
  %v9349 = vmul.f32 %v9184, %v9304
  %v9350 = vmul.f32 %v9186, %v9306
  %v9351 = vmul.f32 %v9189, %v9308
  %v9352 = vmul.f32 %v9191, %v9310
  %v9353 = vmul.f32 %v9194, %v9312
  %v9354 = vmul.f32 %v9196, %v9314
  %v9355 = vmul.f32 %v9199, %v9316
  %v9356 = vmul.f32 %v9201, %v9318
  %v9357 = vmul.f32 %v9204, %v9320
  %v9358 = vmul.f32 %v9206, %v9322
  %v9359 = vmul.f32 %v9209, %v9324
  %v9360 = vmul.f32 %v9211, %v9326
  %v9361 = vmul.f32 %v9214, %v9328
  %v9362 = vmul.f32 %v9216, %v9330
  %9379 = vrot.lane.b32.xlu0 %v9347, 126
  %v9380 = vpop.permute.xlu0 %9379
  %9381 = vrot.lane.b32.xlu0 %v9348, 126
  %v9382 = vpop.permute.xlu0 %9381
  %9383 = vrot.lane.b32.xlu0 %v9349, 126
  %v9384 = vpop.permute.xlu0 %9383
  %9385 = vrot.lane.b32.xlu0 %v9350, 126
  %v9386 = vpop.permute.xlu0 %9385
  %9387 = vrot.lane.b32.xlu0 %v9351, 126
  %v9388 = vpop.permute.xlu0 %9387
  %9389 = vrot.lane.b32.xlu0 %v9352, 126
  %v9390 = vpop.permute.xlu0 %9389
  %9391 = vrot.lane.b32.xlu0 %v9353, 126
  %v9392 = vpop.permute.xlu0 %9391
  %9393 = vrot.lane.b32.xlu0 %v9354, 126
  %v9394 = vpop.permute.xlu0 %9393
  %9395 = vrot.lane.b32.xlu0 %v9355, 126
  %v9396 = vpop.permute.xlu0 %9395
  %9397 = vrot.lane.b32.xlu0 %v9356, 126
  %v9398 = vpop.permute.xlu0 %9397
  %9399 = vrot.lane.b32.xlu0 %v9357, 126
  %v9400 = vpop.permute.xlu0 %9399
  %9401 = vrot.lane.b32.xlu0 %v9358, 126
  %v9402 = vpop.permute.xlu0 %9401
  %9403 = vrot.lane.b32.xlu0 %v9359, 126
  %v9404 = vpop.permute.xlu0 %9403
  %9405 = vrot.lane.b32.xlu0 %v9360, 126
  %v9406 = vpop.permute.xlu0 %9405
  %9407 = vrot.lane.b32.xlu0 %v9361, 126
  %v9408 = vpop.permute.xlu0 %9407
  %9409 = vrot.lane.b32.xlu0 %v9362, 126
  %v9410 = vpop.permute.xlu0 %9409
  %v9427 = vadd.f32 %v9267, %v9380
  %v9428 = vadd.f32 %v9268, %v9382
  %v9429 = vadd.f32 %v9269, %v9384
  %v9430 = vadd.f32 %v9270, %v9386
  %v9431 = vadd.f32 %v9271, %v9388
  %v9432 = vadd.f32 %v9272, %v9390
  %v9433 = vadd.f32 %v9273, %v9392
  %v9434 = vadd.f32 %v9274, %v9394
  %v9435 = vadd.f32 %v9275, %v9396
  %v9436 = vadd.f32 %v9276, %v9398
  %v9437 = vadd.f32 %v9277, %v9400
  %v9438 = vadd.f32 %v9278, %v9402
  %v9439 = vadd.f32 %v9279, %v9404
  %v9440 = vadd.f32 %v9280, %v9406
  %v9441 = vadd.f32 %v9281, %v9408
  %v9442 = vadd.f32 %v9282, %v9410
  %9444 = vset.pattern.permute.xlu0 0
  %9445 = vperm.xlu0 %9444, %v9427
  %v9446 = vpop.permute.xlu0 %9445
  %9449 = vset.pattern.permute.xlu0 0
  %9450 = vperm.xlu0 %9449, %v9428
  %v9451 = vpop.permute.xlu0 %9450
  %9454 = vset.pattern.permute.xlu0 0
  %9455 = vperm.xlu0 %9454, %v9429
  %v9456 = vpop.permute.xlu0 %9455
  %9459 = vset.pattern.permute.xlu0 0
  %9460 = vperm.xlu0 %9459, %v9430
  %v9461 = vpop.permute.xlu0 %9460
  %9464 = vset.pattern.permute.xlu0 0
  %9465 = vperm.xlu0 %9464, %v9431
  %v9466 = vpop.permute.xlu0 %9465
  %9469 = vset.pattern.permute.xlu0 0
  %9470 = vperm.xlu0 %9469, %v9432
  %v9471 = vpop.permute.xlu0 %9470
  %9474 = vset.pattern.permute.xlu0 0
  %9475 = vperm.xlu0 %9474, %v9433
  %v9476 = vpop.permute.xlu0 %9475
  %9479 = vset.pattern.permute.xlu0 0
  %9480 = vperm.xlu0 %9479, %v9434
  %v9481 = vpop.permute.xlu0 %9480
  %9484 = vset.pattern.permute.xlu0 0
  %9485 = vperm.xlu0 %9484, %v9435
  %v9486 = vpop.permute.xlu0 %9485
  %9489 = vset.pattern.permute.xlu0 0
  %9490 = vperm.xlu0 %9489, %v9436
  %v9491 = vpop.permute.xlu0 %9490
  %9494 = vset.pattern.permute.xlu0 0
  %9495 = vperm.xlu0 %9494, %v9437
  %v9496 = vpop.permute.xlu0 %9495
  %9499 = vset.pattern.permute.xlu0 0
  %9500 = vperm.xlu0 %9499, %v9438
  %v9501 = vpop.permute.xlu0 %9500
  %9504 = vset.pattern.permute.xlu0 0
  %9505 = vperm.xlu0 %9504, %v9439
  %v9506 = vpop.permute.xlu0 %9505
  %9509 = vset.pattern.permute.xlu0 0
  %9510 = vperm.xlu0 %9509, %v9440
  %v9511 = vpop.permute.xlu0 %9510
  %9514 = vset.pattern.permute.xlu0 0
  %9515 = vperm.xlu0 %9514, %v9441
  %v9516 = vpop.permute.xlu0 %9515
  %9519 = vset.pattern.permute.xlu0 0
  %9520 = vperm.xlu0 %9519, %v9442
  %v9521 = vpop.permute.xlu0 %9520
  %v9523 = vmul.f32 %v9446, %v230
  %v9524 = vmul.f32 %v9446, %v231
  %v9525 = vmul.f32 %v9451, %v230
  %v9526 = vmul.f32 %v9451, %v231
  %v9527 = vmul.f32 %v9456, %v230
  %v9528 = vmul.f32 %v9456, %v231
  %v9529 = vmul.f32 %v9461, %v230
  %v9530 = vmul.f32 %v9461, %v231
  %v9531 = vmul.f32 %v9466, %v230
  %v9532 = vmul.f32 %v9466, %v231
  %v9533 = vmul.f32 %v9471, %v230
  %v9534 = vmul.f32 %v9471, %v231
  %v9535 = vmul.f32 %v9476, %v230
  %v9536 = vmul.f32 %v9476, %v231
  %v9537 = vmul.f32 %v9481, %v230
  %v9538 = vmul.f32 %v9481, %v231
  %v9539 = vmul.f32 %v9486, %v230
  %v9540 = vmul.f32 %v9486, %v231
  %v9541 = vmul.f32 %v9491, %v230
  %v9542 = vmul.f32 %v9491, %v231
  %v9543 = vmul.f32 %v9496, %v230
  %v9544 = vmul.f32 %v9496, %v231
  %v9545 = vmul.f32 %v9501, %v230
  %v9546 = vmul.f32 %v9501, %v231
  %v9547 = vmul.f32 %v9506, %v230
  %v9548 = vmul.f32 %v9506, %v231
  %v9549 = vmul.f32 %v9511, %v230
  %v9550 = vmul.f32 %v9511, %v231
  %v9551 = vmul.f32 %v9516, %v230
  %v9552 = vmul.f32 %v9516, %v231
  %v9553 = vmul.f32 %v9521, %v230
  %v9554 = vmul.f32 %v9521, %v231
  %9555 = vset.pattern.permute.xlu0 1
  %9556 = vperm.xlu0 %9555, %v9427
  %v9557 = vpop.permute.xlu0 %9556
  %9559 = vset.pattern.permute.xlu0 1
  %9560 = vperm.xlu0 %9559, %v9428
  %v9561 = vpop.permute.xlu0 %9560
  %9563 = vset.pattern.permute.xlu0 1
  %9564 = vperm.xlu0 %9563, %v9429
  %v9565 = vpop.permute.xlu0 %9564
  %9567 = vset.pattern.permute.xlu0 1
  %9568 = vperm.xlu0 %9567, %v9430
  %v9569 = vpop.permute.xlu0 %9568
  %9571 = vset.pattern.permute.xlu0 1
  %9572 = vperm.xlu0 %9571, %v9431
  %v9573 = vpop.permute.xlu0 %9572
  %9575 = vset.pattern.permute.xlu0 1
  %9576 = vperm.xlu0 %9575, %v9432
  %v9577 = vpop.permute.xlu0 %9576
  %9579 = vset.pattern.permute.xlu0 1
  %9580 = vperm.xlu0 %9579, %v9433
  %v9581 = vpop.permute.xlu0 %9580
  %9583 = vset.pattern.permute.xlu0 1
  %9584 = vperm.xlu0 %9583, %v9434
  %v9585 = vpop.permute.xlu0 %9584
  %9587 = vset.pattern.permute.xlu0 1
  %9588 = vperm.xlu0 %9587, %v9435
  %v9589 = vpop.permute.xlu0 %9588
  %9591 = vset.pattern.permute.xlu0 1
  %9592 = vperm.xlu0 %9591, %v9436
  %v9593 = vpop.permute.xlu0 %9592
  %9595 = vset.pattern.permute.xlu0 1
  %9596 = vperm.xlu0 %9595, %v9437
  %v9597 = vpop.permute.xlu0 %9596
  %9599 = vset.pattern.permute.xlu0 1
  %9600 = vperm.xlu0 %9599, %v9438
  %v9601 = vpop.permute.xlu0 %9600
  %9603 = vset.pattern.permute.xlu0 1
  %9604 = vperm.xlu0 %9603, %v9439
  %v9605 = vpop.permute.xlu0 %9604
  %9607 = vset.pattern.permute.xlu0 1
  %9608 = vperm.xlu0 %9607, %v9440
  %v9609 = vpop.permute.xlu0 %9608
  %9611 = vset.pattern.permute.xlu0 1
  %9612 = vperm.xlu0 %9611, %v9441
  %v9613 = vpop.permute.xlu0 %9612
  %9615 = vset.pattern.permute.xlu0 1
  %9616 = vperm.xlu0 %9615, %v9442
  %v9617 = vpop.permute.xlu0 %9616
  %v9619 = vmul.f32 %v9557, %v237
  %v9620 = vmul.f32 %v9557, %v238
  %v9621 = vmul.f32 %v9561, %v237
  %v9622 = vmul.f32 %v9561, %v238
  %v9623 = vmul.f32 %v9565, %v237
  %v9624 = vmul.f32 %v9565, %v238
  %v9625 = vmul.f32 %v9569, %v237
  %v9626 = vmul.f32 %v9569, %v238
  %v9627 = vmul.f32 %v9573, %v237
  %v9628 = vmul.f32 %v9573, %v238
  %v9629 = vmul.f32 %v9577, %v237
  %v9630 = vmul.f32 %v9577, %v238
  %v9631 = vmul.f32 %v9581, %v237
  %v9632 = vmul.f32 %v9581, %v238
  %v9633 = vmul.f32 %v9585, %v237
  %v9634 = vmul.f32 %v9585, %v238
  %v9635 = vmul.f32 %v9589, %v237
  %v9636 = vmul.f32 %v9589, %v238
  %v9637 = vmul.f32 %v9593, %v237
  %v9638 = vmul.f32 %v9593, %v238
  %v9639 = vmul.f32 %v9597, %v237
  %v9640 = vmul.f32 %v9597, %v238
  %v9641 = vmul.f32 %v9601, %v237
  %v9642 = vmul.f32 %v9601, %v238
  %v9643 = vmul.f32 %v9605, %v237
  %v9644 = vmul.f32 %v9605, %v238
  %v9645 = vmul.f32 %v9609, %v237
  %v9646 = vmul.f32 %v9609, %v238
  %v9647 = vmul.f32 %v9613, %v237
  %v9648 = vmul.f32 %v9613, %v238
  %v9649 = vmul.f32 %v9617, %v237
  %v9650 = vmul.f32 %v9617, %v238
  %v9651 = vadd.f32 %v9523, %v9619
  %v9652 = vadd.f32 %v9524, %v9620
  %v9653 = vadd.f32 %v9525, %v9621
  %v9654 = vadd.f32 %v9526, %v9622
  %v9655 = vadd.f32 %v9527, %v9623
  %v9656 = vadd.f32 %v9528, %v9624
  %v9657 = vadd.f32 %v9529, %v9625
  %v9658 = vadd.f32 %v9530, %v9626
  %v9659 = vadd.f32 %v9531, %v9627
  %v9660 = vadd.f32 %v9532, %v9628
  %v9661 = vadd.f32 %v9533, %v9629
  %v9662 = vadd.f32 %v9534, %v9630
  %v9663 = vadd.f32 %v9535, %v9631
  %v9664 = vadd.f32 %v9536, %v9632
  %v9665 = vadd.f32 %v9537, %v9633
  %v9666 = vadd.f32 %v9538, %v9634
  %v9667 = vadd.f32 %v9539, %v9635
  %v9668 = vadd.f32 %v9540, %v9636
  %v9669 = vadd.f32 %v9541, %v9637
  %v9670 = vadd.f32 %v9542, %v9638
  %v9671 = vadd.f32 %v9543, %v9639
  %v9672 = vadd.f32 %v9544, %v9640
  %v9673 = vadd.f32 %v9545, %v9641
  %v9674 = vadd.f32 %v9546, %v9642
  %v9675 = vadd.f32 %v9547, %v9643
  %v9676 = vadd.f32 %v9548, %v9644
  %v9677 = vadd.f32 %v9549, %v9645
  %v9678 = vadd.f32 %v9550, %v9646
  %v9679 = vadd.f32 %v9551, %v9647
  %v9680 = vadd.f32 %v9552, %v9648
  %v9681 = vadd.f32 %v9553, %v9649
  %v9682 = vadd.f32 %v9554, %v9650
  %v9683 = vadd.f32 %v9651, %v244
  %v9684 = vadd.f32 %v9652, %v245
  %v9685 = vadd.f32 %v9653, %v244
  %v9686 = vadd.f32 %v9654, %v245
  %v9687 = vadd.f32 %v9655, %v244
  %v9688 = vadd.f32 %v9656, %v245
  %v9689 = vadd.f32 %v9657, %v244
  %v9690 = vadd.f32 %v9658, %v245
  %v9691 = vadd.f32 %v9659, %v244
  %v9692 = vadd.f32 %v9660, %v245
  %v9693 = vadd.f32 %v9661, %v244
  %v9694 = vadd.f32 %v9662, %v245
  %v9695 = vadd.f32 %v9663, %v244
  %v9696 = vadd.f32 %v9664, %v245
  %v9697 = vadd.f32 %v9665, %v244
  %v9698 = vadd.f32 %v9666, %v245
  %v9699 = vadd.f32 %v9667, %v244
  %v9700 = vadd.f32 %v9668, %v245
  %v9701 = vadd.f32 %v9669, %v244
  %v9702 = vadd.f32 %v9670, %v245
  %v9703 = vadd.f32 %v9671, %v244
  %v9704 = vadd.f32 %v9672, %v245
  %v9705 = vadd.f32 %v9673, %v244
  %v9706 = vadd.f32 %v9674, %v245
  %v9707 = vadd.f32 %v9675, %v244
  %v9708 = vadd.f32 %v9676, %v245
  %v9709 = vadd.f32 %v9677, %v244
  %v9710 = vadd.f32 %v9678, %v245
  %v9711 = vadd.f32 %v9679, %v244
  %v9712 = vadd.f32 %v9680, %v245
  %v9713 = vadd.f32 %v9681, %v244
  %v9714 = vadd.f32 %v9682, %v245
  %v9715 = vmax.f32 %v9683, 0.0
  %v9716 = vmax.f32 %v9684, 0.0
  %v9717 = vmax.f32 %v9685, 0.0
  %v9718 = vmax.f32 %v9686, 0.0
  %v9719 = vmax.f32 %v9687, 0.0
  %v9720 = vmax.f32 %v9688, 0.0
  %v9721 = vmax.f32 %v9689, 0.0
  %v9722 = vmax.f32 %v9690, 0.0
  %v9723 = vmax.f32 %v9691, 0.0
  %v9724 = vmax.f32 %v9692, 0.0
  %v9725 = vmax.f32 %v9693, 0.0
  %v9726 = vmax.f32 %v9694, 0.0
  %v9727 = vmax.f32 %v9695, 0.0
  %v9728 = vmax.f32 %v9696, 0.0
  %v9729 = vmax.f32 %v9697, 0.0
  %v9730 = vmax.f32 %v9698, 0.0
  %v9731 = vmax.f32 %v9699, 0.0
  %v9732 = vmax.f32 %v9700, 0.0
  %v9733 = vmax.f32 %v9701, 0.0
  %v9734 = vmax.f32 %v9702, 0.0
  %v9735 = vmax.f32 %v9703, 0.0
  %v9736 = vmax.f32 %v9704, 0.0
  %v9737 = vmax.f32 %v9705, 0.0
  %v9738 = vmax.f32 %v9706, 0.0
  %v9739 = vmax.f32 %v9707, 0.0
  %v9740 = vmax.f32 %v9708, 0.0
  %v9741 = vmax.f32 %v9709, 0.0
  %v9742 = vmax.f32 %v9710, 0.0
  %v9743 = vmax.f32 %v9711, 0.0
  %v9744 = vmax.f32 %v9712, 0.0
  %v9745 = vmax.f32 %v9713, 0.0
  %v9746 = vmax.f32 %v9714, 0.0
  %v9747 = vpack.c.bf16 %v9717, %v9715
  %v9748 = vpack.c.bf16 %v9718, %v9716
  %v9749 = vpack.c.bf16 %v9721, %v9719
  %v9750 = vpack.c.bf16 %v9722, %v9720
  %v9751 = vpack.c.bf16 %v9725, %v9723
  %v9752 = vpack.c.bf16 %v9726, %v9724
  %v9753 = vpack.c.bf16 %v9729, %v9727
  %v9754 = vpack.c.bf16 %v9730, %v9728
  %v9755 = vpack.c.bf16 %v9733, %v9731
  %v9756 = vpack.c.bf16 %v9734, %v9732
  %v9757 = vpack.c.bf16 %v9737, %v9735
  %v9758 = vpack.c.bf16 %v9738, %v9736
  %v9759 = vpack.c.bf16 %v9741, %v9739
  %v9760 = vpack.c.bf16 %v9742, %v9740
  %v9761 = vpack.c.bf16 %v9745, %v9743
  %v9762 = vpack.c.bf16 %v9746, %v9744
  %9763 = vmatpush.bf16.msra.mxu0 %v742
  %9764 = vmatpush.bf16.msra.mxu0 %v740
  %9765 = vmatpush.bf16.msra.mxu0 %v738
  %9766 = vmatpush.bf16.msra.mxu0 %v736
  %9767 = vmatpush.bf16.msra.mxu0 %v734
  %9768 = vmatpush.bf16.msra.mxu0 %v732
  %9769 = vmatpush.bf16.msra.mxu0 %v730
  %9770 = vmatpush.bf16.msra.mxu0 %v728
  %9771 = vmatmul.bf16.gmra.mxu0 %v9747
  %v9772 = vpop.f32.mrf.mxu0
  %v9773 = vadd.f32 %v251, %v9772
  %v9774 = vpop.f32.mrf.mxu0
  %v9775 = vadd.f32 %v251, %v9774
  %9776 = vmatmul.bf16.gmra.mxu0 %v9749
  %v9777 = vpop.f32.mrf.mxu0
  %v9778 = vadd.f32 %v251, %v9777
  %v9779 = vpop.f32.mrf.mxu0
  %v9780 = vadd.f32 %v251, %v9779
  %9781 = vmatmul.bf16.gmra.mxu0 %v9751
  %v9782 = vpop.f32.mrf.mxu0
  %v9783 = vadd.f32 %v251, %v9782
  %v9784 = vpop.f32.mrf.mxu0
  %v9785 = vadd.f32 %v251, %v9784
  %9786 = vmatmul.bf16.gmra.mxu0 %v9753
  %v9787 = vpop.f32.mrf.mxu0
  %v9788 = vadd.f32 %v251, %v9787
  %v9789 = vpop.f32.mrf.mxu0
  %v9790 = vadd.f32 %v251, %v9789
  %9791 = vmatmul.bf16.gmra.mxu0 %v9755
  %v9792 = vpop.f32.mrf.mxu0
  %v9793 = vadd.f32 %v251, %v9792
  %v9794 = vpop.f32.mrf.mxu0
  %v9795 = vadd.f32 %v251, %v9794
  %9796 = vmatmul.bf16.gmra.mxu0 %v9757
  %v9797 = vpop.f32.mrf.mxu0
  %v9798 = vadd.f32 %v251, %v9797
  %v9799 = vpop.f32.mrf.mxu0
  %v9800 = vadd.f32 %v251, %v9799
  %9801 = vmatmul.bf16.gmra.mxu0 %v9759
  %v9802 = vpop.f32.mrf.mxu0
  %v9803 = vadd.f32 %v251, %v9802
  %v9804 = vpop.f32.mrf.mxu0
  %v9805 = vadd.f32 %v251, %v9804
  %9806 = vmatmul.bf16.gmra.mxu0 %v9761
  %v9807 = vpop.f32.mrf.mxu0
  %v9808 = vadd.f32 %v251, %v9807
  %v9809 = vpop.f32.mrf.mxu0
  %v9810 = vadd.f32 %v251, %v9809
  %9811 = vdwg.mxu0
  %9812 = vmatpush.bf16.msra.mxu0 %v758
  %9813 = vmatpush.bf16.msra.mxu0 %v756
  %9814 = vmatpush.bf16.msra.mxu0 %v754
  %9815 = vmatpush.bf16.msra.mxu0 %v752
  %9816 = vmatpush.bf16.msra.mxu0 %v750
  %9817 = vmatpush.bf16.msra.mxu0 %v748
  %9818 = vmatpush.bf16.msra.mxu0 %v746
  %9819 = vmatpush.bf16.msra.mxu0 %v744
  %9820 = vmatmul.bf16.gmra.mxu0 %v9748
  %v9821 = vpop.f32.mrf.mxu0
  %v9822 = vadd.f32 %v9773, %v9821
  %v9823 = vpop.f32.mrf.mxu0
  %v9824 = vadd.f32 %v9775, %v9823
  %9825 = vmatmul.bf16.gmra.mxu0 %v9750
  %v9826 = vpop.f32.mrf.mxu0
  %v9827 = vadd.f32 %v9778, %v9826
  %v9828 = vpop.f32.mrf.mxu0
  %v9829 = vadd.f32 %v9780, %v9828
  %9830 = vmatmul.bf16.gmra.mxu0 %v9752
  %v9831 = vpop.f32.mrf.mxu0
  %v9832 = vadd.f32 %v9783, %v9831
  %v9833 = vpop.f32.mrf.mxu0
  %v9834 = vadd.f32 %v9785, %v9833
  %9835 = vmatmul.bf16.gmra.mxu0 %v9754
  %v9836 = vpop.f32.mrf.mxu0
  %v9837 = vadd.f32 %v9788, %v9836
  %v9838 = vpop.f32.mrf.mxu0
  %v9839 = vadd.f32 %v9790, %v9838
  %9840 = vmatmul.bf16.gmra.mxu0 %v9756
  %v9841 = vpop.f32.mrf.mxu0
  %v9842 = vadd.f32 %v9793, %v9841
  %v9843 = vpop.f32.mrf.mxu0
  %v9844 = vadd.f32 %v9795, %v9843
  %9845 = vmatmul.bf16.gmra.mxu0 %v9758
  %v9846 = vpop.f32.mrf.mxu0
  %v9847 = vadd.f32 %v9798, %v9846
  %v9848 = vpop.f32.mrf.mxu0
  %v9849 = vadd.f32 %v9800, %v9848
  %9850 = vmatmul.bf16.gmra.mxu0 %v9760
  %v9851 = vpop.f32.mrf.mxu0
  %v9852 = vadd.f32 %v9803, %v9851
  %v9853 = vpop.f32.mrf.mxu0
  %v9854 = vadd.f32 %v9805, %v9853
  %9855 = vmatmul.bf16.gmra.mxu0 %v9762
  %v9856 = vpop.f32.mrf.mxu0
  %v9857 = vadd.f32 %v9808, %v9856
  %v9858 = vpop.f32.mrf.mxu0
  %v9859 = vadd.f32 %v9810, %v9858
  %9860 = vdwg.mxu0
  %9861 = vmatpush.bf16.msra.mxu0 %v743
  %9862 = vmatpush.bf16.msra.mxu0 %v741
  %9863 = vmatpush.bf16.msra.mxu0 %v739
  %9864 = vmatpush.bf16.msra.mxu0 %v737
  %9865 = vmatpush.bf16.msra.mxu0 %v735
  %9866 = vmatpush.bf16.msra.mxu0 %v733
  %9867 = vmatpush.bf16.msra.mxu0 %v731
  %9868 = vmatpush.bf16.msra.mxu0 %v729
  %9869 = vmatmul.bf16.gmra.mxu0 %v9747
  %v9870 = vpop.f32.mrf.mxu0
  %v9871 = vadd.f32 %v252, %v9870
  %v9872 = vpop.f32.mrf.mxu0
  %v9873 = vadd.f32 %v252, %v9872
  %9874 = vmatmul.bf16.gmra.mxu0 %v9749
  %v9875 = vpop.f32.mrf.mxu0
  %v9876 = vadd.f32 %v252, %v9875
  %v9877 = vpop.f32.mrf.mxu0
  %v9878 = vadd.f32 %v252, %v9877
  %9879 = vmatmul.bf16.gmra.mxu0 %v9751
  %v9880 = vpop.f32.mrf.mxu0
  %v9881 = vadd.f32 %v252, %v9880
  %v9882 = vpop.f32.mrf.mxu0
  %v9883 = vadd.f32 %v252, %v9882
  %9884 = vmatmul.bf16.gmra.mxu0 %v9753
  %v9885 = vpop.f32.mrf.mxu0
  %v9886 = vadd.f32 %v252, %v9885
  %v9887 = vpop.f32.mrf.mxu0
  %v9888 = vadd.f32 %v252, %v9887
  %9889 = vmatmul.bf16.gmra.mxu0 %v9755
  %v9890 = vpop.f32.mrf.mxu0
  %v9891 = vadd.f32 %v252, %v9890
  %v9892 = vpop.f32.mrf.mxu0
  %v9893 = vadd.f32 %v252, %v9892
  %9894 = vmatmul.bf16.gmra.mxu0 %v9757
  %v9895 = vpop.f32.mrf.mxu0
  %v9896 = vadd.f32 %v252, %v9895
  %v9897 = vpop.f32.mrf.mxu0
  %v9898 = vadd.f32 %v252, %v9897
  %9899 = vmatmul.bf16.gmra.mxu0 %v9759
  %v9900 = vpop.f32.mrf.mxu0
  %v9901 = vadd.f32 %v252, %v9900
  %v9902 = vpop.f32.mrf.mxu0
  %v9903 = vadd.f32 %v252, %v9902
  %9904 = vmatmul.bf16.gmra.mxu0 %v9761
  %v9905 = vpop.f32.mrf.mxu0
  %v9906 = vadd.f32 %v252, %v9905
  %v9907 = vpop.f32.mrf.mxu0
  %v9908 = vadd.f32 %v252, %v9907
  %9909 = vdwg.mxu0
  %9910 = vmatpush.bf16.msra.mxu0 %v759
  %9911 = vmatpush.bf16.msra.mxu0 %v757
  %9912 = vmatpush.bf16.msra.mxu0 %v755
  %9913 = vmatpush.bf16.msra.mxu0 %v753
  %9914 = vmatpush.bf16.msra.mxu0 %v751
  %9915 = vmatpush.bf16.msra.mxu0 %v749
  %9916 = vmatpush.bf16.msra.mxu0 %v747
  %9917 = vmatpush.bf16.msra.mxu0 %v745
  %9918 = vmatmul.bf16.gmra.mxu0 %v9748
  %v9919 = vpop.f32.mrf.mxu0
  %v9920 = vadd.f32 %v9871, %v9919
  %v9921 = vpop.f32.mrf.mxu0
  %v9922 = vadd.f32 %v9873, %v9921
  %9923 = vmatmul.bf16.gmra.mxu0 %v9750
  %v9924 = vpop.f32.mrf.mxu0
  %v9925 = vadd.f32 %v9876, %v9924
  %v9926 = vpop.f32.mrf.mxu0
  %v9927 = vadd.f32 %v9878, %v9926
  %9928 = vmatmul.bf16.gmra.mxu0 %v9752
  %v9929 = vpop.f32.mrf.mxu0
  %v9930 = vadd.f32 %v9881, %v9929
  %v9931 = vpop.f32.mrf.mxu0
  %v9932 = vadd.f32 %v9883, %v9931
  %9933 = vmatmul.bf16.gmra.mxu0 %v9754
  %v9934 = vpop.f32.mrf.mxu0
  %v9935 = vadd.f32 %v9886, %v9934
  %v9936 = vpop.f32.mrf.mxu0
  %v9937 = vadd.f32 %v9888, %v9936
  %9938 = vmatmul.bf16.gmra.mxu0 %v9756
  %v9939 = vpop.f32.mrf.mxu0
  %v9940 = vadd.f32 %v9891, %v9939
  %v9941 = vpop.f32.mrf.mxu0
  %v9942 = vadd.f32 %v9893, %v9941
  %9943 = vmatmul.bf16.gmra.mxu0 %v9758
  %v9944 = vpop.f32.mrf.mxu0
  %v9945 = vadd.f32 %v9896, %v9944
  %v9946 = vpop.f32.mrf.mxu0
  %v9947 = vadd.f32 %v9898, %v9946
  %9948 = vmatmul.bf16.gmra.mxu0 %v9760
  %v9949 = vpop.f32.mrf.mxu0
  %v9950 = vadd.f32 %v9901, %v9949
  %v9951 = vpop.f32.mrf.mxu0
  %v9952 = vadd.f32 %v9903, %v9951
  %9953 = vmatmul.bf16.gmra.mxu0 %v9762
  %v9954 = vpop.f32.mrf.mxu0
  %v9955 = vadd.f32 %v9906, %v9954
  %v9956 = vpop.f32.mrf.mxu0
  %v9957 = vadd.f32 %v9908, %v9956
  %9958 = vdwg.mxu0
  %v9959 = vmax.f32 %v9822, 0.0
  %v9960 = vmax.f32 %v9920, 0.0
  %v9961 = vmax.f32 %v9824, 0.0
  %v9962 = vmax.f32 %v9922, 0.0
  %v9963 = vmax.f32 %v9827, 0.0
  %v9964 = vmax.f32 %v9925, 0.0
  %v9965 = vmax.f32 %v9829, 0.0
  %v9966 = vmax.f32 %v9927, 0.0
  %v9967 = vmax.f32 %v9832, 0.0
  %v9968 = vmax.f32 %v9930, 0.0
  %v9969 = vmax.f32 %v9834, 0.0
  %v9970 = vmax.f32 %v9932, 0.0
  %v9971 = vmax.f32 %v9837, 0.0
  %v9972 = vmax.f32 %v9935, 0.0
  %v9973 = vmax.f32 %v9839, 0.0
  %v9974 = vmax.f32 %v9937, 0.0
  %v9975 = vmax.f32 %v9842, 0.0
  %v9976 = vmax.f32 %v9940, 0.0
  %v9977 = vmax.f32 %v9844, 0.0
  %v9978 = vmax.f32 %v9942, 0.0
  %v9979 = vmax.f32 %v9847, 0.0
  %v9980 = vmax.f32 %v9945, 0.0
  %v9981 = vmax.f32 %v9849, 0.0
  %v9982 = vmax.f32 %v9947, 0.0
  %v9983 = vmax.f32 %v9852, 0.0
  %v9984 = vmax.f32 %v9950, 0.0
  %v9985 = vmax.f32 %v9854, 0.0
  %v9986 = vmax.f32 %v9952, 0.0
  %v9987 = vmax.f32 %v9857, 0.0
  %v9988 = vmax.f32 %v9955, 0.0
  %v9989 = vmax.f32 %v9859, 0.0
  %v9990 = vmax.f32 %v9957, 0.0
  %v9991 = vpack.c.bf16 %v9961, %v9959
  %v9992 = vpack.c.bf16 %v9962, %v9960
  %v9993 = vpack.c.bf16 %v9965, %v9963
  %v9994 = vpack.c.bf16 %v9966, %v9964
  %v9995 = vpack.c.bf16 %v9969, %v9967
  %v9996 = vpack.c.bf16 %v9970, %v9968
  %v9997 = vpack.c.bf16 %v9973, %v9971
  %v9998 = vpack.c.bf16 %v9974, %v9972
  %v9999 = vpack.c.bf16 %v9977, %v9975
  %v10000 = vpack.c.bf16 %v9978, %v9976
  %v10001 = vpack.c.bf16 %v9981, %v9979
  %v10002 = vpack.c.bf16 %v9982, %v9980
  %v10003 = vpack.c.bf16 %v9985, %v9983
  %v10004 = vpack.c.bf16 %v9986, %v9984
  %v10005 = vpack.c.bf16 %v9989, %v9987
  %v10006 = vpack.c.bf16 %v9990, %v9988
  %10007 = vmatpush.bf16.msra.mxu0 %v1178
  %10008 = vmatpush.bf16.msra.mxu0 %v1176
  %10009 = vmatpush.bf16.msra.mxu0 %v1174
  %10010 = vmatpush.bf16.msra.mxu0 %v1172
  %10011 = vmatpush.bf16.msra.mxu0 %v1170
  %10012 = vmatpush.bf16.msra.mxu0 %v1168
  %10013 = vmatpush.bf16.msra.mxu0 %v1166
  %10014 = vmatpush.bf16.msra.mxu0 %v1164
  %10015 = vmatmul.bf16.gmra.mxu0 %v9991
  %v10016 = vpop.f32.mrf.mxu0
  %v10017 = vadd.f32 %v258, %v10016
  %v10018 = vpop.f32.mrf.mxu0
  %v10019 = vadd.f32 %v258, %v10018
  %10020 = vmatmul.bf16.gmra.mxu0 %v9993
  %v10021 = vpop.f32.mrf.mxu0
  %v10022 = vadd.f32 %v258, %v10021
  %v10023 = vpop.f32.mrf.mxu0
  %v10024 = vadd.f32 %v258, %v10023
  %10025 = vmatmul.bf16.gmra.mxu0 %v9995
  %v10026 = vpop.f32.mrf.mxu0
  %v10027 = vadd.f32 %v258, %v10026
  %v10028 = vpop.f32.mrf.mxu0
  %v10029 = vadd.f32 %v258, %v10028
  %10030 = vmatmul.bf16.gmra.mxu0 %v9997
  %v10031 = vpop.f32.mrf.mxu0
  %v10032 = vadd.f32 %v258, %v10031
  %v10033 = vpop.f32.mrf.mxu0
  %v10034 = vadd.f32 %v258, %v10033
  %10035 = vmatmul.bf16.gmra.mxu0 %v9999
  %v10036 = vpop.f32.mrf.mxu0
  %v10037 = vadd.f32 %v258, %v10036
  %v10038 = vpop.f32.mrf.mxu0
  %v10039 = vadd.f32 %v258, %v10038
  %10040 = vmatmul.bf16.gmra.mxu0 %v10001
  %v10041 = vpop.f32.mrf.mxu0
  %v10042 = vadd.f32 %v258, %v10041
  %v10043 = vpop.f32.mrf.mxu0
  %v10044 = vadd.f32 %v258, %v10043
  %10045 = vmatmul.bf16.gmra.mxu0 %v10003
  %v10046 = vpop.f32.mrf.mxu0
  %v10047 = vadd.f32 %v258, %v10046
  %v10048 = vpop.f32.mrf.mxu0
  %v10049 = vadd.f32 %v258, %v10048
  %10050 = vmatmul.bf16.gmra.mxu0 %v10005
  %v10051 = vpop.f32.mrf.mxu0
  %v10052 = vadd.f32 %v258, %v10051
  %v10053 = vpop.f32.mrf.mxu0
  %v10054 = vadd.f32 %v258, %v10053
  %10055 = vdwg.mxu0
  %10056 = vmatpush.bf16.msra.mxu0 %v1194
  %10057 = vmatpush.bf16.msra.mxu0 %v1192
  %10058 = vmatpush.bf16.msra.mxu0 %v1190
  %10059 = vmatpush.bf16.msra.mxu0 %v1188
  %10060 = vmatpush.bf16.msra.mxu0 %v1186
  %10061 = vmatpush.bf16.msra.mxu0 %v1184
  %10062 = vmatpush.bf16.msra.mxu0 %v1182
  %10063 = vmatpush.bf16.msra.mxu0 %v1180
  %10064 = vmatmul.bf16.gmra.mxu0 %v9992
  %v10065 = vpop.f32.mrf.mxu0
  %v10066 = vadd.f32 %v10017, %v10065
  %v10067 = vpop.f32.mrf.mxu0
  %v10068 = vadd.f32 %v10019, %v10067
  %10069 = vmatmul.bf16.gmra.mxu0 %v9994
  %v10070 = vpop.f32.mrf.mxu0
  %v10071 = vadd.f32 %v10022, %v10070
  %v10072 = vpop.f32.mrf.mxu0
  %v10073 = vadd.f32 %v10024, %v10072
  %10074 = vmatmul.bf16.gmra.mxu0 %v9996
  %v10075 = vpop.f32.mrf.mxu0
  %v10076 = vadd.f32 %v10027, %v10075
  %v10077 = vpop.f32.mrf.mxu0
  %v10078 = vadd.f32 %v10029, %v10077
  %10079 = vmatmul.bf16.gmra.mxu0 %v9998
  %v10080 = vpop.f32.mrf.mxu0
  %v10081 = vadd.f32 %v10032, %v10080
  %v10082 = vpop.f32.mrf.mxu0
  %v10083 = vadd.f32 %v10034, %v10082
  %10084 = vmatmul.bf16.gmra.mxu0 %v10000
  %v10085 = vpop.f32.mrf.mxu0
  %v10086 = vadd.f32 %v10037, %v10085
  %v10087 = vpop.f32.mrf.mxu0
  %v10088 = vadd.f32 %v10039, %v10087
  %10089 = vmatmul.bf16.gmra.mxu0 %v10002
  %v10090 = vpop.f32.mrf.mxu0
  %v10091 = vadd.f32 %v10042, %v10090
  %v10092 = vpop.f32.mrf.mxu0
  %v10093 = vadd.f32 %v10044, %v10092
  %10094 = vmatmul.bf16.gmra.mxu0 %v10004
  %v10095 = vpop.f32.mrf.mxu0
  %v10096 = vadd.f32 %v10047, %v10095
  %v10097 = vpop.f32.mrf.mxu0
  %v10098 = vadd.f32 %v10049, %v10097
  %10099 = vmatmul.bf16.gmra.mxu0 %v10006
  %v10100 = vpop.f32.mrf.mxu0
  %v10101 = vadd.f32 %v10052, %v10100
  %v10102 = vpop.f32.mrf.mxu0
  %v10103 = vadd.f32 %v10054, %v10102
  %10104 = vdwg.mxu0
  %10105 = vmatpush.bf16.msra.mxu0 %v1179
  %10106 = vmatpush.bf16.msra.mxu0 %v1177
  %10107 = vmatpush.bf16.msra.mxu0 %v1175
  %10108 = vmatpush.bf16.msra.mxu0 %v1173
  %10109 = vmatpush.bf16.msra.mxu0 %v1171
  %10110 = vmatpush.bf16.msra.mxu0 %v1169
  %10111 = vmatpush.bf16.msra.mxu0 %v1167
  %10112 = vmatpush.bf16.msra.mxu0 %v1165
  %10113 = vmatmul.bf16.gmra.mxu0 %v9991
  %v10114 = vpop.f32.mrf.mxu0
  %v10115 = vadd.f32 %v259, %v10114
  %v10116 = vpop.f32.mrf.mxu0
  %v10117 = vadd.f32 %v259, %v10116
  %10118 = vmatmul.bf16.gmra.mxu0 %v9993
  %v10119 = vpop.f32.mrf.mxu0
  %v10120 = vadd.f32 %v259, %v10119
  %v10121 = vpop.f32.mrf.mxu0
  %v10122 = vadd.f32 %v259, %v10121
  %10123 = vmatmul.bf16.gmra.mxu0 %v9995
  %v10124 = vpop.f32.mrf.mxu0
  %v10125 = vadd.f32 %v259, %v10124
  %v10126 = vpop.f32.mrf.mxu0
  %v10127 = vadd.f32 %v259, %v10126
  %10128 = vmatmul.bf16.gmra.mxu0 %v9997
  %v10129 = vpop.f32.mrf.mxu0
  %v10130 = vadd.f32 %v259, %v10129
  %v10131 = vpop.f32.mrf.mxu0
  %v10132 = vadd.f32 %v259, %v10131
  %10133 = vmatmul.bf16.gmra.mxu0 %v9999
  %v10134 = vpop.f32.mrf.mxu0
  %v10135 = vadd.f32 %v259, %v10134
  %v10136 = vpop.f32.mrf.mxu0
  %v10137 = vadd.f32 %v259, %v10136
  %10138 = vmatmul.bf16.gmra.mxu0 %v10001
  %v10139 = vpop.f32.mrf.mxu0
  %v10140 = vadd.f32 %v259, %v10139
  %v10141 = vpop.f32.mrf.mxu0
  %v10142 = vadd.f32 %v259, %v10141
  %10143 = vmatmul.bf16.gmra.mxu0 %v10003
  %v10144 = vpop.f32.mrf.mxu0
  %v10145 = vadd.f32 %v259, %v10144
  %v10146 = vpop.f32.mrf.mxu0
  %v10147 = vadd.f32 %v259, %v10146
  %10148 = vmatmul.bf16.gmra.mxu0 %v10005
  %v10149 = vpop.f32.mrf.mxu0
  %v10150 = vadd.f32 %v259, %v10149
  %v10151 = vpop.f32.mrf.mxu0
  %v10152 = vadd.f32 %v259, %v10151
  %10153 = vdwg.mxu0
  %10154 = vmatpush.bf16.msra.mxu0 %v1195
  %10155 = vmatpush.bf16.msra.mxu0 %v1193
  %10156 = vmatpush.bf16.msra.mxu0 %v1191
  %10157 = vmatpush.bf16.msra.mxu0 %v1189
  %10158 = vmatpush.bf16.msra.mxu0 %v1187
  %10159 = vmatpush.bf16.msra.mxu0 %v1185
  %10160 = vmatpush.bf16.msra.mxu0 %v1183
  %10161 = vmatpush.bf16.msra.mxu0 %v1181
  %10162 = vmatmul.bf16.gmra.mxu0 %v9992
  %v10163 = vpop.f32.mrf.mxu0
  %v10164 = vadd.f32 %v10115, %v10163
  %v10165 = vpop.f32.mrf.mxu0
  %v10166 = vadd.f32 %v10117, %v10165
  %10167 = vmatmul.bf16.gmra.mxu0 %v9994
  %v10168 = vpop.f32.mrf.mxu0
  %v10169 = vadd.f32 %v10120, %v10168
  %v10170 = vpop.f32.mrf.mxu0
  %v10171 = vadd.f32 %v10122, %v10170
  %10172 = vmatmul.bf16.gmra.mxu0 %v9996
  %v10173 = vpop.f32.mrf.mxu0
  %v10174 = vadd.f32 %v10125, %v10173
  %v10175 = vpop.f32.mrf.mxu0
  %v10176 = vadd.f32 %v10127, %v10175
  %10177 = vmatmul.bf16.gmra.mxu0 %v9998
  %v10178 = vpop.f32.mrf.mxu0
  %v10179 = vadd.f32 %v10130, %v10178
  %v10180 = vpop.f32.mrf.mxu0
  %v10181 = vadd.f32 %v10132, %v10180
  %10182 = vmatmul.bf16.gmra.mxu0 %v10000
  %v10183 = vpop.f32.mrf.mxu0
  %v10184 = vadd.f32 %v10135, %v10183
  %v10185 = vpop.f32.mrf.mxu0
  %v10186 = vadd.f32 %v10137, %v10185
  %10187 = vmatmul.bf16.gmra.mxu0 %v10002
  %v10188 = vpop.f32.mrf.mxu0
  %v10189 = vadd.f32 %v10140, %v10188
  %v10190 = vpop.f32.mrf.mxu0
  %v10191 = vadd.f32 %v10142, %v10190
  %10192 = vmatmul.bf16.gmra.mxu0 %v10004
  %v10193 = vpop.f32.mrf.mxu0
  %v10194 = vadd.f32 %v10145, %v10193
  %v10195 = vpop.f32.mrf.mxu0
  %v10196 = vadd.f32 %v10147, %v10195
  %10197 = vmatmul.bf16.gmra.mxu0 %v10006
  %v10198 = vpop.f32.mrf.mxu0
  %v10199 = vadd.f32 %v10150, %v10198
  %v10200 = vpop.f32.mrf.mxu0
  %v10201 = vadd.f32 %v10152, %v10200
  %10202 = vdwg.mxu0
  %v10203 = vmax.f32 %v10066, 0.0
  %v10204 = vmax.f32 %v10164, 0.0
  %v10205 = vmax.f32 %v10068, 0.0
  %v10206 = vmax.f32 %v10166, 0.0
  %v10207 = vmax.f32 %v10071, 0.0
  %v10208 = vmax.f32 %v10169, 0.0
  %v10209 = vmax.f32 %v10073, 0.0
  %v10210 = vmax.f32 %v10171, 0.0
  %v10211 = vmax.f32 %v10076, 0.0
  %v10212 = vmax.f32 %v10174, 0.0
  %v10213 = vmax.f32 %v10078, 0.0
  %v10214 = vmax.f32 %v10176, 0.0
  %v10215 = vmax.f32 %v10081, 0.0
  %v10216 = vmax.f32 %v10179, 0.0
  %v10217 = vmax.f32 %v10083, 0.0
  %v10218 = vmax.f32 %v10181, 0.0
  %v10219 = vmax.f32 %v10086, 0.0
  %v10220 = vmax.f32 %v10184, 0.0
  %v10221 = vmax.f32 %v10088, 0.0
  %v10222 = vmax.f32 %v10186, 0.0
  %v10223 = vmax.f32 %v10091, 0.0
  %v10224 = vmax.f32 %v10189, 0.0
  %v10225 = vmax.f32 %v10093, 0.0
  %v10226 = vmax.f32 %v10191, 0.0
  %v10227 = vmax.f32 %v10096, 0.0
  %v10228 = vmax.f32 %v10194, 0.0
  %v10229 = vmax.f32 %v10098, 0.0
  %v10230 = vmax.f32 %v10196, 0.0
  %v10231 = vmax.f32 %v10101, 0.0
  %v10232 = vmax.f32 %v10199, 0.0
  %v10233 = vmax.f32 %v10103, 0.0
  %v10234 = vmax.f32 %v10201, 0.0
  %v10235 = vpack.c.bf16 %v10205, %v10203
  %v10236 = vpack.c.bf16 %v10209, %v10207
  %v10237 = vpack.c.bf16 %v10213, %v10211
  %v10238 = vpack.c.bf16 %v10217, %v10215
  %v10239 = vpack.c.bf16 %v10221, %v10219
  %v10240 = vpack.c.bf16 %v10225, %v10223
  %v10241 = vpack.c.bf16 %v10229, %v10227
  %v10242 = vpack.c.bf16 %v10233, %v10231
  %10243 = vmatpush.bf16.msra.mxu0 %v1519
  %10244 = vmatpush.bf16.msra.mxu0 %v1518
  %10245 = vmatpush.bf16.msra.mxu0 %v1517
  %10246 = vmatpush.bf16.msra.mxu0 %v1516
  %10247 = vmatpush.bf16.msra.mxu0 %v1515
  %10248 = vmatpush.bf16.msra.mxu0 %v1514
  %10249 = vmatpush.bf16.msra.mxu0 %v1513
  %10250 = vmatpush.bf16.msra.mxu0 %v1512
  %10251 = vmatmul.bf16.gmra.mxu0 %v10235
  %v10252 = vpop.f32.mrf.mxu0
  %v10253 = vadd.f32 %v262, %v10252
  %v10254 = vpop.f32.mrf.mxu0
  %v10255 = vadd.f32 %v262, %v10254
  %10256 = vmatmul.bf16.gmra.mxu0 %v10236
  %v10257 = vpop.f32.mrf.mxu0
  %v10258 = vadd.f32 %v262, %v10257
  %v10259 = vpop.f32.mrf.mxu0
  %v10260 = vadd.f32 %v262, %v10259
  %10261 = vmatmul.bf16.gmra.mxu0 %v10237
  %v10262 = vpop.f32.mrf.mxu0
  %v10263 = vadd.f32 %v262, %v10262
  %v10264 = vpop.f32.mrf.mxu0
  %v10265 = vadd.f32 %v262, %v10264
  %10266 = vmatmul.bf16.gmra.mxu0 %v10238
  %v10267 = vpop.f32.mrf.mxu0
  %v10268 = vadd.f32 %v262, %v10267
  %v10269 = vpop.f32.mrf.mxu0
  %v10270 = vadd.f32 %v262, %v10269
  %10271 = vmatmul.bf16.gmra.mxu0 %v10239
  %v10272 = vpop.f32.mrf.mxu0
  %v10273 = vadd.f32 %v262, %v10272
  %v10274 = vpop.f32.mrf.mxu0
  %v10275 = vadd.f32 %v262, %v10274
  %10276 = vmatmul.bf16.gmra.mxu0 %v10240
  %v10277 = vpop.f32.mrf.mxu0
  %v10278 = vadd.f32 %v262, %v10277
  %v10279 = vpop.f32.mrf.mxu0
  %v10280 = vadd.f32 %v262, %v10279
  %10281 = vmatmul.bf16.gmra.mxu0 %v10241
  %v10282 = vpop.f32.mrf.mxu0
  %v10283 = vadd.f32 %v262, %v10282
  %v10284 = vpop.f32.mrf.mxu0
  %v10285 = vadd.f32 %v262, %v10284
  %10286 = vmatmul.bf16.gmra.mxu0 %v10242
  %v10287 = vpop.f32.mrf.mxu0
  %v10288 = vadd.f32 %v262, %v10287
  %v10289 = vpop.f32.mrf.mxu0
  %v10290 = vadd.f32 %v262, %v10289
  %10291 = vdwg.mxu0
  %v10292 = vmax.f32 %v10253, 0.0
  %v10293 = vmax.f32 %v10255, 0.0
  %v10294 = vmax.f32 %v10258, 0.0
  %v10295 = vmax.f32 %v10260, 0.0
  %v10296 = vmax.f32 %v10263, 0.0
  %v10297 = vmax.f32 %v10265, 0.0
  %v10298 = vmax.f32 %v10268, 0.0
  %v10299 = vmax.f32 %v10270, 0.0
  %v10300 = vmax.f32 %v10273, 0.0
  %v10301 = vmax.f32 %v10275, 0.0
  %v10302 = vmax.f32 %v10278, 0.0
  %v10303 = vmax.f32 %v10280, 0.0
  %v10304 = vmax.f32 %v10283, 0.0
  %v10305 = vmax.f32 %v10285, 0.0
  %v10306 = vmax.f32 %v10288, 0.0
  %v10307 = vmax.f32 %v10290, 0.0
  %v10308 = vpack.c.bf16 %v10293, %v10292
  %v10309 = vpack.c.bf16 %v10206, %v10204
  %v10310 = vpack.c.bf16 %v10295, %v10294
  %v10311 = vpack.c.bf16 %v10210, %v10208
  %v10312 = vpack.c.bf16 %v10297, %v10296
  %v10313 = vpack.c.bf16 %v10214, %v10212
  %v10314 = vpack.c.bf16 %v10299, %v10298
  %v10315 = vpack.c.bf16 %v10218, %v10216
  %v10316 = vpack.c.bf16 %v10301, %v10300
  %v10317 = vpack.c.bf16 %v10222, %v10220
  %v10318 = vpack.c.bf16 %v10303, %v10302
  %v10319 = vpack.c.bf16 %v10226, %v10224
  %v10320 = vpack.c.bf16 %v10305, %v10304
  %v10321 = vpack.c.bf16 %v10230, %v10228
  %v10322 = vpack.c.bf16 %v10307, %v10306
  %v10323 = vpack.c.bf16 %v10234, %v10232
  %10324 = vmatpush.bf16.msra.mxu0 %v1712
  %10325 = vmatpush.bf16.msra.mxu0 %v1711
  %10326 = vmatpush.bf16.msra.mxu0 %v1710
  %10327 = vmatpush.bf16.msra.mxu0 %v1709
  %10328 = vmatpush.bf16.msra.mxu0 %v1708
  %10329 = vmatpush.bf16.msra.mxu0 %v1707
  %10330 = vmatpush.bf16.msra.mxu0 %v1706
  %10331 = vmatpush.bf16.msra.mxu0 %v1705
  %10332 = vmatmul.bf16.gmra.mxu0 %v10308
  %v10333 = vpop.f32.mrf.mxu0
  %v10334 = vadd.f32 %v263, %v10333
  %v10335 = vpop.f32.mrf.mxu0
  %v10336 = vadd.f32 %v263, %v10335
  %10337 = vmatmul.bf16.gmra.mxu0 %v10310
  %v10338 = vpop.f32.mrf.mxu0
  %v10339 = vadd.f32 %v263, %v10338
  %v10340 = vpop.f32.mrf.mxu0
  %v10341 = vadd.f32 %v263, %v10340
  %10342 = vmatmul.bf16.gmra.mxu0 %v10312
  %v10343 = vpop.f32.mrf.mxu0
  %v10344 = vadd.f32 %v263, %v10343
  %v10345 = vpop.f32.mrf.mxu0
  %v10346 = vadd.f32 %v263, %v10345
  %10347 = vmatmul.bf16.gmra.mxu0 %v10314
  %v10348 = vpop.f32.mrf.mxu0
  %v10349 = vadd.f32 %v263, %v10348
  %v10350 = vpop.f32.mrf.mxu0
  %v10351 = vadd.f32 %v263, %v10350
  %10352 = vmatmul.bf16.gmra.mxu0 %v10316
  %v10353 = vpop.f32.mrf.mxu0
  %v10354 = vadd.f32 %v263, %v10353
  %v10355 = vpop.f32.mrf.mxu0
  %v10356 = vadd.f32 %v263, %v10355
  %10357 = vmatmul.bf16.gmra.mxu0 %v10318
  %v10358 = vpop.f32.mrf.mxu0
  %v10359 = vadd.f32 %v263, %v10358
  %v10360 = vpop.f32.mrf.mxu0
  %v10361 = vadd.f32 %v263, %v10360
  %10362 = vmatmul.bf16.gmra.mxu0 %v10320
  %v10363 = vpop.f32.mrf.mxu0
  %v10364 = vadd.f32 %v263, %v10363
  %v10365 = vpop.f32.mrf.mxu0
  %v10366 = vadd.f32 %v263, %v10365
  %10367 = vmatmul.bf16.gmra.mxu0 %v10322
  %v10368 = vpop.f32.mrf.mxu0
  %v10369 = vadd.f32 %v263, %v10368
  %v10370 = vpop.f32.mrf.mxu0
  %v10371 = vadd.f32 %v263, %v10370
  %10372 = vdwg.mxu0
  %10373 = vmatpush.bf16.msra.mxu0 %v1720
  %10374 = vmatpush.bf16.msra.mxu0 %v1719
  %10375 = vmatpush.bf16.msra.mxu0 %v1718
  %10376 = vmatpush.bf16.msra.mxu0 %v1717
  %10377 = vmatpush.bf16.msra.mxu0 %v1716
  %10378 = vmatpush.bf16.msra.mxu0 %v1715
  %10379 = vmatpush.bf16.msra.mxu0 %v1714
  %10380 = vmatpush.bf16.msra.mxu0 %v1713
  %10381 = vmatmul.bf16.gmra.mxu0 %v10309
  %v10382 = vpop.f32.mrf.mxu0
  %v10383 = vadd.f32 %v10334, %v10382
  %v10384 = vpop.f32.mrf.mxu0
  %v10385 = vadd.f32 %v10336, %v10384
  %10386 = vmatmul.bf16.gmra.mxu0 %v10311
  %v10387 = vpop.f32.mrf.mxu0
  %v10388 = vadd.f32 %v10339, %v10387
  %v10389 = vpop.f32.mrf.mxu0
  %v10390 = vadd.f32 %v10341, %v10389
  %10391 = vmatmul.bf16.gmra.mxu0 %v10313
  %v10392 = vpop.f32.mrf.mxu0
  %v10393 = vadd.f32 %v10344, %v10392
  %v10394 = vpop.f32.mrf.mxu0
  %v10395 = vadd.f32 %v10346, %v10394
  %10396 = vmatmul.bf16.gmra.mxu0 %v10315
  %v10397 = vpop.f32.mrf.mxu0
  %v10398 = vadd.f32 %v10349, %v10397
  %v10399 = vpop.f32.mrf.mxu0
  %v10400 = vadd.f32 %v10351, %v10399
  %10401 = vmatmul.bf16.gmra.mxu0 %v10317
  %v10402 = vpop.f32.mrf.mxu0
  %v10403 = vadd.f32 %v10354, %v10402
  %v10404 = vpop.f32.mrf.mxu0
  %v10405 = vadd.f32 %v10356, %v10404
  %10406 = vmatmul.bf16.gmra.mxu0 %v10319
  %v10407 = vpop.f32.mrf.mxu0
  %v10408 = vadd.f32 %v10359, %v10407
  %v10409 = vpop.f32.mrf.mxu0
  %v10410 = vadd.f32 %v10361, %v10409
  %10411 = vmatmul.bf16.gmra.mxu0 %v10321
  %v10412 = vpop.f32.mrf.mxu0
  %v10413 = vadd.f32 %v10364, %v10412
  %v10414 = vpop.f32.mrf.mxu0
  %v10415 = vadd.f32 %v10366, %v10414
  %10416 = vmatmul.bf16.gmra.mxu0 %v10323
  %v10417 = vpop.f32.mrf.mxu0
  %v10418 = vadd.f32 %v10369, %v10417
  %v10419 = vpop.f32.mrf.mxu0
  %v10420 = vadd.f32 %v10371, %v10419
  %10421 = vdwg.mxu0
  %s10422 = scalar_lea.vmem %s2, 896
  %v10423 = vld [vmem:[%s10422] sm:$0xff]
  %v10424 = vld [vmem:[%s10422 + $0x8] sm:$0xff]
  %v10425 = vld [vmem:[%s10422 + $0x10] sm:$0xff]
  %v10426 = vld [vmem:[%s10422 + $0x18] sm:$0xff]
  %v10427 = vld [vmem:[%s10422 + $0x20] sm:$0xff]
  %v10428 = vld [vmem:[%s10422 + $0x28] sm:$0xff]
  %v10429 = vld [vmem:[%s10422 + $0x30] sm:$0xff]
  %v10430 = vld [vmem:[%s10422 + $0x38] sm:$0xff]
  %v10431 = vld [vmem:[%s10422 + $0x40] sm:$0xff]
  %v10432 = vld [vmem:[%s10422 + $0x48] sm:$0xff]
  %v10433 = vld [vmem:[%s10422 + $0x50] sm:$0xff]
  %v10434 = vld [vmem:[%s10422 + $0x58] sm:$0xff]
  %v10435 = vld [vmem:[%s10422 + $0x60] sm:$0xff]
  %v10436 = vld [vmem:[%s10422 + $0x68] sm:$0xff]
  %v10437 = vld [vmem:[%s10422 + $0x70] sm:$0xff]
  %v10438 = vld [vmem:[%s10422 + $0x78] sm:$0xff]
  %v10439 = vmul.f32 %v1854, %v10423
  %v10440 = vmul.f32 %v1859, %v10424
  %v10441 = vmul.f32 %v1864, %v10425
  %v10442 = vmul.f32 %v1869, %v10426
  %v10443 = vmul.f32 %v1874, %v10427
  %v10444 = vmul.f32 %v1879, %v10428
  %v10445 = vmul.f32 %v1884, %v10429
  %v10446 = vmul.f32 %v1889, %v10430
  %v10447 = vmul.f32 %v1894, %v10431
  %v10448 = vmul.f32 %v1899, %v10432
  %v10449 = vmul.f32 %v1904, %v10433
  %v10450 = vmul.f32 %v1909, %v10434
  %v10451 = vmul.f32 %v1914, %v10435
  %v10452 = vmul.f32 %v1919, %v10436
  %v10453 = vmul.f32 %v1924, %v10437
  %v10454 = vmul.f32 %v1929, %v10438
  %v10455 = vmul.f32 %v10383, %v1950
  %v10456 = vmul.f32 %v10385, %v1955
  %v10457 = vmul.f32 %v10388, %v1960
  %v10458 = vmul.f32 %v10390, %v1965
  %v10459 = vmul.f32 %v10393, %v1970
  %v10460 = vmul.f32 %v10395, %v1975
  %v10461 = vmul.f32 %v10398, %v1980
  %v10462 = vmul.f32 %v10400, %v1985
  %v10463 = vmul.f32 %v10403, %v1990
  %v10464 = vmul.f32 %v10405, %v1995
  %v10465 = vmul.f32 %v10408, %v2000
  %v10466 = vmul.f32 %v10410, %v2005
  %v10467 = vmul.f32 %v10413, %v2010
  %v10468 = vmul.f32 %v10415, %v2015
  %v10469 = vmul.f32 %v10418, %v2020
  %v10470 = vmul.f32 %v10420, %v2025
  %v10471 = vadd.f32 %v9427, %v10455
  %v10472 = vadd.f32 %v9428, %v10456
  %v10473 = vadd.f32 %v9429, %v10457
  %v10474 = vadd.f32 %v9430, %v10458
  %v10475 = vadd.f32 %v9431, %v10459
  %v10476 = vadd.f32 %v9432, %v10460
  %v10477 = vadd.f32 %v9433, %v10461
  %v10478 = vadd.f32 %v9434, %v10462
  %v10479 = vadd.f32 %v9435, %v10463
  %v10480 = vadd.f32 %v9436, %v10464
  %v10481 = vadd.f32 %v9437, %v10465
  %v10482 = vadd.f32 %v9438, %v10466
  %v10483 = vadd.f32 %v9439, %v10467
  %v10484 = vadd.f32 %v9440, %v10468
  %v10485 = vadd.f32 %v9441, %v10469
  %v10486 = vadd.f32 %v9442, %v10470
  %10503 = vrot.lane.b32.xlu0 %v10439, 2
  %v10504 = vpop.permute.xlu0 %10503
  %10505 = vrot.lane.b32.xlu0 %v10440, 2
  %v10506 = vpop.permute.xlu0 %10505
  %10507 = vrot.lane.b32.xlu0 %v10441, 2
  %v10508 = vpop.permute.xlu0 %10507
  %10509 = vrot.lane.b32.xlu0 %v10442, 2
  %v10510 = vpop.permute.xlu0 %10509
  %10511 = vrot.lane.b32.xlu0 %v10443, 2
  %v10512 = vpop.permute.xlu0 %10511
  %10513 = vrot.lane.b32.xlu0 %v10444, 2
  %v10514 = vpop.permute.xlu0 %10513
  %10515 = vrot.lane.b32.xlu0 %v10445, 2
  %v10516 = vpop.permute.xlu0 %10515
  %10517 = vrot.lane.b32.xlu0 %v10446, 2
  %v10518 = vpop.permute.xlu0 %10517
  %10519 = vrot.lane.b32.xlu0 %v10447, 2
  %v10520 = vpop.permute.xlu0 %10519
  %10521 = vrot.lane.b32.xlu0 %v10448, 2
  %v10522 = vpop.permute.xlu0 %10521
  %10523 = vrot.lane.b32.xlu0 %v10449, 2
  %v10524 = vpop.permute.xlu0 %10523
  %10525 = vrot.lane.b32.xlu0 %v10450, 2
  %v10526 = vpop.permute.xlu0 %10525
  %10527 = vrot.lane.b32.xlu0 %v10451, 2
  %v10528 = vpop.permute.xlu0 %10527
  %10529 = vrot.lane.b32.xlu0 %v10452, 2
  %v10530 = vpop.permute.xlu0 %10529
  %10531 = vrot.lane.b32.xlu0 %v10453, 2
  %v10532 = vpop.permute.xlu0 %10531
  %10533 = vrot.lane.b32.xlu0 %v10454, 2
  %v10534 = vpop.permute.xlu0 %10533
  %v10551 = vmul.f32 %v10383, %v10504
  %v10552 = vmul.f32 %v10385, %v10506
  %v10553 = vmul.f32 %v10388, %v10508
  %v10554 = vmul.f32 %v10390, %v10510
  %v10555 = vmul.f32 %v10393, %v10512
  %v10556 = vmul.f32 %v10395, %v10514
  %v10557 = vmul.f32 %v10398, %v10516
  %v10558 = vmul.f32 %v10400, %v10518
  %v10559 = vmul.f32 %v10403, %v10520
  %v10560 = vmul.f32 %v10405, %v10522
  %v10561 = vmul.f32 %v10408, %v10524
  %v10562 = vmul.f32 %v10410, %v10526
  %v10563 = vmul.f32 %v10413, %v10528
  %v10564 = vmul.f32 %v10415, %v10530
  %v10565 = vmul.f32 %v10418, %v10532
  %v10566 = vmul.f32 %v10420, %v10534
  %10583 = vrot.lane.b32.xlu0 %v10551, 126
  %v10584 = vpop.permute.xlu0 %10583
  %10585 = vrot.lane.b32.xlu0 %v10552, 126
  %v10586 = vpop.permute.xlu0 %10585
  %10587 = vrot.lane.b32.xlu0 %v10553, 126
  %v10588 = vpop.permute.xlu0 %10587
  %10589 = vrot.lane.b32.xlu0 %v10554, 126
  %v10590 = vpop.permute.xlu0 %10589
  %10591 = vrot.lane.b32.xlu0 %v10555, 126
  %v10592 = vpop.permute.xlu0 %10591
  %10593 = vrot.lane.b32.xlu0 %v10556, 126
  %v10594 = vpop.permute.xlu0 %10593
  %10595 = vrot.lane.b32.xlu0 %v10557, 126
  %v10596 = vpop.permute.xlu0 %10595
  %10597 = vrot.lane.b32.xlu0 %v10558, 126
  %v10598 = vpop.permute.xlu0 %10597
  %10599 = vrot.lane.b32.xlu0 %v10559, 126
  %v10600 = vpop.permute.xlu0 %10599
  %10601 = vrot.lane.b32.xlu0 %v10560, 126
  %v10602 = vpop.permute.xlu0 %10601
  %10603 = vrot.lane.b32.xlu0 %v10561, 126
  %v10604 = vpop.permute.xlu0 %10603
  %10605 = vrot.lane.b32.xlu0 %v10562, 126
  %v10606 = vpop.permute.xlu0 %10605
  %10607 = vrot.lane.b32.xlu0 %v10563, 126
  %v10608 = vpop.permute.xlu0 %10607
  %10609 = vrot.lane.b32.xlu0 %v10564, 126
  %v10610 = vpop.permute.xlu0 %10609
  %10611 = vrot.lane.b32.xlu0 %v10565, 126
  %v10612 = vpop.permute.xlu0 %10611
  %10613 = vrot.lane.b32.xlu0 %v10566, 126
  %v10614 = vpop.permute.xlu0 %10613
  %v10631 = vadd.f32 %v10471, %v10584
  %v10632 = vadd.f32 %v10472, %v10586
  %v10633 = vadd.f32 %v10473, %v10588
  %v10634 = vadd.f32 %v10474, %v10590
  %v10635 = vadd.f32 %v10475, %v10592
  %v10636 = vadd.f32 %v10476, %v10594
  %v10637 = vadd.f32 %v10477, %v10596
  %v10638 = vadd.f32 %v10478, %v10598
  %v10639 = vadd.f32 %v10479, %v10600
  %v10640 = vadd.f32 %v10480, %v10602
  %v10641 = vadd.f32 %v10481, %v10604
  %v10642 = vadd.f32 %v10482, %v10606
  %v10643 = vadd.f32 %v10483, %v10608
  %v10644 = vadd.f32 %v10484, %v10610
  %v10645 = vadd.f32 %v10485, %v10612
  %v10646 = vadd.f32 %v10486, %v10614
  %vm10647 = vcmask 15360
  %10648 = vst.msk [vmem:[%s5] sm:$0xff] %vm10647, %v10631
  %10649 = vst.msk [vmem:[%s5 + $0x8] sm:$0xff] %vm10647, %v10632
  %10650 = vst.msk [vmem:[%s5 + $0x10] sm:$0xff] %vm10647, %v10633
  %10651 = vst.msk [vmem:[%s5 + $0x18] sm:$0xff] %vm10647, %v10634
  %10652 = vst.msk [vmem:[%s5 + $0x20] sm:$0xff] %vm10647, %v10635
  %10653 = vst.msk [vmem:[%s5 + $0x28] sm:$0xff] %vm10647, %v10636
  %10654 = vst.msk [vmem:[%s5 + $0x30] sm:$0xff] %vm10647, %v10637
  %10655 = vst.msk [vmem:[%s5 + $0x38] sm:$0xff] %vm10647, %v10638
  %10656 = vst.msk [vmem:[%s5 + $0x40] sm:$0xff] %vm10647, %v10639
  %10657 = vst.msk [vmem:[%s5 + $0x48] sm:$0xff] %vm10647, %v10640
  %10658 = vst.msk [vmem:[%s5 + $0x50] sm:$0xff] %vm10647, %v10641
  %10659 = vst.msk [vmem:[%s5 + $0x58] sm:$0xff] %vm10647, %v10642
  %10660 = vst.msk [vmem:[%s5 + $0x60] sm:$0xff] %vm10647, %v10643
  %10661 = vst.msk [vmem:[%s5 + $0x68] sm:$0xff] %vm10647, %v10644
  %10662 = vst.msk [vmem:[%s5 + $0x70] sm:$0xff] %vm10647, %v10645
  %10663 = vst.msk [vmem:[%s5 + $0x78] sm:$0xff] %vm10647, %v10646
  // Predicated region
  $region22: #{tpu_custom_call.1} parent=0 // pred_check
    _
  $region23: #{tpu_custom_call.1} parent=0 // pred_check_branch
    %10665 = sbr.rel (0) target = $region25
  $region24: #{tpu_custom_call.1} parent=0 // pred_region
    _
  $region25: #{tpu_custom_call.1} parent=0 // pred_fallthru
    _
  // Predicated region
  $region26: #{tpu_custom_call.1} parent=0 // pred_check
    _
  $region27: #{tpu_custom_call.1} parent=0 // pred_check_branch
    %10667 = sbr.rel (0) target = $region29
  $region28: #{tpu_custom_call.1} parent=0 // pred_region
    _
  $region29: #{tpu_custom_call.1} parent=0 // pred_fallthru
    _

</llo_original>
